<compile_context>
chip_gen: v7x
topology: tpu7x:2x2x1
jax: 0.10.0
libtpu: 0.0.40
codegen_flags: <defaults>
</compile_context>

<pallas_src>
import math
from functools import partial

import jax
import jax.numpy as jnp
from jax import lax
from jax.experimental import pallas as pl
from jax.experimental.pallas import tpu as pltpu

NEG_INF = -1e30          # finite stand-in for -inf (kept in f32, never added in bf16)
_ENC_REFS = 12
_DEC_REFS = 20


# ----------------------------- in-kernel helpers ----------------------------

def _layernorm(x, g, b, eps):
    """PyTorch LayerNorm (biased variance), computed in f32."""
    mean = jnp.mean(x, axis=-1, keepdims=True)
    c = x - mean
    var = jnp.mean(c * c, axis=-1, keepdims=True)
    return c * lax.rsqrt(var + eps) * g + b


def _dot(a_f32, w_bf16):
    """MXU matmul: bf16 operands (weights pre-cast at init), f32 accumulation."""
    return jnp.dot(a_f32.astype(jnp.bfloat16), w_bf16,
                   preferred_element_type=jnp.float32)


def _mha(q, k, v, mask, H):
    """Single-batch multi-head attention.

    q: (Sq, E) f32, k/v: (Sk, E) f32, mask: additive (Sq, Sk) f32 or None.
    The 1/sqrt(Dh) scale is already folded into the Q projection weights.
    Per-head outputs are concatenated (lane-dense) -- no scratch stores.
    """
    E = q.shape[-1]
    Dh = E // H
    qb = q.astype(jnp.bfloat16)       # one cast per array, not per head-slice
    kb = k.astype(jnp.bfloat16)
    vb = v.astype(jnp.bfloat16)
    outs = []
    for h in range(H):
        qh = qb[:, h * Dh:(h + 1) * Dh]
        kh = kb[:, h * Dh:(h + 1) * Dh]
        vh = vb[:, h * Dh:(h + 1) * Dh]
        # scores = qh @ kh.T (contract on head_dim), f32 accumulation
        s = lax.dot_general(qh, kh, (((1,), (1,)), ((), ())),
                            preferred_element_type=jnp.float32)        # (Sq, Sk)
        if mask is not None:
            s = s + mask
        s = s - jnp.max(s, axis=-1, keepdims=True)
        p = jnp.exp(s)
        p = p * pl.reciprocal(jnp.sum(p, axis=-1, keepdims=True), approx=True)
        outs.append(jnp.dot(p.astype(jnp.bfloat16), vh,
                            preferred_element_type=jnp.float32))        # (Sq, Dh)
    return jnp.concatenate(outs, axis=-1)                               # (Sq, E)


def _enc_layer(x, refs, H, mask, eps):
    (w_qkv, b_qkv, w_o, b_o, n1g, n1b, w1, b1, w2, b2, n2g, n2b) = refs
    E = x.shape[-1]
    qkv = _dot(x, w_qkv[...]) + b_qkv[...]
    q, k, v = qkv[:, :E], qkv[:, E:2 * E], qkv[:, 2 * E:]
    a = _mha(q, k, v, mask, H)
    x = _layernorm(_dot(a, w_o[...]) + b_o[...] + x, n1g[...], n1b[...], eps)
    hdn = jnp.maximum(_dot(x, w1[...]) + b1[...], 0.0)
    f = _dot(hdn, w2[...]) + b2[...]
    return _layernorm(f + x, n2g[...], n2b[...], eps)


def _dec_layer(y, mem, refs, H, causal_mask, cross_mask, eps):
    (w_qkv, b_qkv, w_o, b_o, n1g, n1b,
     cw_q, cb_q, cw_kv, cb_kv, cw_o, cb_o, n2g, n2b,
     w1, b1, w2, b2, n3g, n3b) = refs
    E = y.shape[-1]
    # masked self-attention (fused QKV)
    qkv = _dot(y, w_qkv[...]) + b_qkv[...]
    q, k, v = qkv[:, :E], qkv[:, E:2 * E], qkv[:, 2 * E:]
    a = _mha(q, k, v, causal_mask, H)
    y = _layernorm(_dot(a, w_o[...]) + b_o[...] + y, n1g[...], n1b[...], eps)
    # cross-attention on encoder memory
    q = _dot(y, cw_q[...]) + cb_q[...]
    kv = _dot(mem, cw_kv[...]) + cb_kv[...]
    kk, vv = kv[:, :E], kv[:, E:]
    a = _mha(q, kk, vv, cross_mask, H)
    y = _layernorm(_dot(a, cw_o[...]) + cb_o[...] + y, n2g[...], n2b[...], eps)
    # feed-forward
    hdn = jnp.maximum(_dot(y, w1[...]) + b1[...], 0.0)
    f = _dot(hdn, w2[...]) + b2[...]
    return _layernorm(f + y, n3g[...], n3b[...], eps)


# ------------------------------ fused model kernel ---------------------------

def _model_kernel(*refs, n_enc, n_dec, n_heads, S, eps):
    out_ref = refs[-1]
    in_refs = refs[:-1]
    pos = 0

    def take(n):
        nonlocal pos
        r = in_refs[pos:pos + n]
        pos += n
        return r

    src_ref, trg_ref = take(2)
    x = src_ref[0]                                     # (Sp, E) f32
    y = trg_ref[0]                                     # (Tp, E) f32
    Sp = x.shape[0]
    Tp = y.shape[0]

    # Masks generated in-kernel (free VPU filler) -- no HBM mask inputs.
    col_s = lax.broadcasted_iota(jnp.int32, (Sp, Sp), 1)
    enc_mask = jnp.where(col_s < S, 0.0, NEG_INF).astype(jnp.float32)
    row_t = lax.broadcasted_iota(jnp.int32, (Tp, Tp), 0)
    col_t = lax.broadcasted_iota(jnp.int32, (Tp, Tp), 1)
    causal_mask = jnp.where(col_t <= row_t, 0.0, NEG_INF).astype(jnp.float32)
    col_cs = lax.broadcasted_iota(jnp.int32, (Tp, Sp), 1)
    cross_mask = jnp.where(col_cs < S, 0.0, NEG_INF).astype(jnp.float32)

    # encoder stack + final encoder LayerNorm
    for _ in range(n_enc):
        x = _enc_layer(x, take(_ENC_REFS), n_heads, enc_mask, eps)
    eng, enb = take(2)
    mem = _layernorm(x, eng[...], enb[...], eps)

    # decoder stack + final decoder LayerNorm + lane-dense (vocab-padded) LM head
    for _ in range(n_dec):
        y = _dec_layer(y, mem, take(_DEC_REFS), n_heads, causal_mask, cross_mask, eps)
    dng, dnb, w_out, b_out = take(4)
    y = _layernorm(y, dng[...], dnb[...], eps)
    out_ref[0] = (_dot(y, w_out[...]) + b_out[...]).astype(out_ref.dtype)


# ------------------------------ model forward --------------------------------

def _round_up(n, m):
    return ((n + m - 1) // m) * m


def positional_encoding(max_len, d_model):
    position = jnp.arange(max_len, dtype=jnp.float32)[:, None]
    div_term = jnp.exp(jnp.arange(0, d_model, 2, dtype=jnp.float32)
                       * (-math.log(10000.0) / d_model))
    pe = jnp.zeros((max_len, d_model), jnp.float32)
    pe = pe.at[:, 0::2].set(jnp.sin(position * div_term))
    pe = pe.at[:, 1::2].set(jnp.cos(position * div_term))
    return pe                                          # (max_len, d_model)


def transformer_decoder_model_forward(src_tok, trg_tok, params, num_heads, vocab_size):
    """src_tok: (S, B) int32, trg_tok: (T, B) int32 -> logits (T, B, vocab)."""
    E = params["pe"].shape[1]
    Vp = params["out_w"].shape[1]
    S, B = src_tok.shape
    T = trg_tok.shape[0]
    Sp = _round_up(S, 8)
    Tp = _round_up(T, 8)
    scale = math.sqrt(E)
    pe = params["pe"]

    # Embedding + positional encoding (plain-JAX gather), batch-first layout,
    # sequence padded to 8-sublane multiples so all in-kernel slices are aligned.
    # TODO(synk): nn.Dropout in PositionalEncoding / layers is identity (eval mode).
    src = params["src_embed"][src_tok.T] * scale + pe[None, :S, :]    # (B, S, E)
    trg = params["trg_embed"][trg_tok.T] * scale + pe[None, :T, :]    # (B, T, E)
    src = jnp.pad(src, ((0, 0), (0, Sp - S), (0, 0)))
    trg = jnp.pad(trg, ((0, 0), (0, Tp - T), (0, 0)))

    # Flatten everything in the exact order the kernel consumes it.
    flat = [src, trg]
    for lp in params["enc_layers"]:
        flat += [lp["w_qkv"], lp["b_qkv"], lp["w_o"], lp["b_o"],
                 lp["norm1_g"], lp["norm1_b"], lp["w1"], lp["b1"],
                 lp["w2"], lp["b2"], lp["norm2_g"], lp["norm2_b"]]
    flat += [params["enc_norm_g"], params["enc_norm_b"]]
    for lp in params["dec_layers"]:
        sa, ca = lp["self_attn"], lp["cross_attn"]
        flat += [sa["w_qkv"], sa["b_qkv"], sa["w_o"], sa["b_o"],
                 lp["norm1_g"], lp["norm1_b"],
                 ca["w_q"], ca["b_q"], ca["w_kv"], ca["b_kv"], ca["w_o"], ca["b_o"],
                 lp["norm2_g"], lp["norm2_b"],
                 lp["w1"], lp["b1"], lp["w2"], lp["b2"],
                 lp["norm3_g"], lp["norm3_b"]]
    flat += [params["dec_norm_g"], params["dec_norm_b"],
             params["out_w"], params["out_b"]]

    def in_spec(a):
        if a.ndim == 3:     # per-batch activations: one batch element per grid step
            return pl.BlockSpec((1,) + a.shape[1:], lambda b: (b, 0, 0))
        # weights: full block, constant index -> stays resident across grid steps
        return pl.BlockSpec(a.shape, lambda b: (0,) * a.ndim)

    kernel = partial(_model_kernel,
                     n_enc=len(params["enc_layers"]),
                     n_dec=len(params["dec_layers"]),
                     n_heads=num_heads, S=S, eps=1e-5)

    out = pl.pallas_call(
        kernel,
        grid=(B,),
        in_specs=[in_spec(a) for a in flat],
        out_specs=pl.BlockSpec((1, Tp, Vp), lambda b: (b, 0, 0)),
        out_shape=jax.ShapeDtypeStruct((B, Tp, Vp), jnp.float32),
        compiler_params=pltpu.CompilerParams(
            dimension_semantics=("parallel",)),        # v7x: shard batch over both TCs
    )(*flat)

    return out[:, :T, :vocab_size].transpose(1, 0, 2)  # (T, B, V)


# ----------------------------- parameter init --------------------------------

def init_params(key, vocab_size, embed_dim, hidden_dim, n_enc, n_dec, num_heads):
    E, Hd = embed_dim, hidden_dim
    Dh = E // num_heads
    q_scale = 1.0 / math.sqrt(Dh)
    keys = iter(jax.random.split(key, 512))

    def w(shape, s=0.02):
        return jax.random.normal(next(keys), shape, jnp.float32) * s

    def bf(x):
        return x.astype(jnp.bfloat16)                  # matmul weights pre-cast at init

    def self_attn_params():
        in_w = w((3 * E, E))                           # PyTorch in_proj_weight (3E, E)
        in_b = w((3 * E,))
        in_w = in_w.at[:E].multiply(q_scale)           # fold 1/sqrt(Dh) into Q proj
        in_b = in_b.at[:E].multiply(q_scale)
        out_w = w((E, E))                              # PyTorch out_proj.weight (out, in)
        out_b = w((E,))
        return dict(w_qkv=bf(in_w.T), b_qkv=in_b[None, :],     # (E, 3E): [q | k | v]
                    w_o=bf(out_w.T), b_o=out_b[None, :])

    def cross_attn_params():
        in_w = w((3 * E, E))
        in_b = w((3 * E,))
        wq = in_w[:E] * q_scale                        # fold 1/sqrt(Dh) into Q proj
        bq = in_b[:E] * q_scale
        out_w = w((E, E))
        out_b = w((E,))
        return dict(w_q=bf(wq.T), b_q=bq[None, :],
                    w_kv=bf(in_w[E:].T), b_kv=in_b[E:][None, :],   # (E, 2E)
                    w_o=bf(out_w.T), b_o=out_b[None, :])

    def ln_pair():
        return jnp.ones((1, E), jnp.float32), jnp.zeros((1, E), jnp.float32)

    def enc_layer():
        a = self_attn_params()
        n1g, n1b = ln_pair()
        n2g, n2b = ln_pair()
        return dict(w_qkv=a["w_qkv"], b_qkv=a["b_qkv"], w_o=a["w_o"], b_o=a["b_o"],
                    w1=bf(w((Hd, E)).T), b1=w((Hd,))[None, :],
                    w2=bf(w((E, Hd)).T), b2=w((E,))[None, :],
                    norm1_g=n1g, norm1_b=n1b, norm2_g=n2g, norm2_b=n2b)

    def dec_layer():
        n1g, n1b = ln_pair()
        n2g, n2b = ln_pair()
        n3g, n3b = ln_pair()
        return dict(self_attn=self_attn_params(), cross_attn=cross_attn_params(),
                    w1=bf(w((Hd, E)).T), b1=w((Hd,))[None, :],
                    w2=bf(w((E, Hd)).T), b2=w((E,))[None, :],
                    norm1_g=n1g, norm1_b=n1b, norm2_g=n2g, norm2_b=n2b,
                    norm3_g=n3g, norm3_b=n3b)

    eng, enb = ln_pair()
    dng, dnb = ln_pair()

    # LM head padded to a 128-multiple vocab once, at init (lane-dense output store).
    Vp = _round_up(vocab_size, 128)
    out_w = jnp.pad(w((vocab_size, E)).T, ((0, 0), (0, Vp - vocab_size)))
    out_b = jnp.pad(w((vocab_size,)), ((0, Vp - vocab_size),))

    return dict(
        src_embed=w((vocab_size, E), 1.0),
        trg_embed=w((vocab_size, E), 1.0),
        pe=positional_encoding(5000, E),
        enc_layers=[enc_layer() for _ in range(n_enc)],
        dec_layers=[dec_layer() for _ in range(n_dec)],
        enc_norm_g=eng, enc_norm_b=enb,
        dec_norm_g=dng, dec_norm_b=dnb,
        out_w=bf(out_w),                               # (E, Vp) bf16
        out_b=out_b[None, :],                          # (1, Vp) f32
    )


# ---------------------------------- main -------------------------------------

if __name__ == "__main__":
    vocab_size = 50
    embed_dim = 32
    num_heads = 4
    hidden_dim = 64
    num_encoder_layers = 2
    num_decoder_layers = 2
    S, T, B = 10, 8, 2                                 # src len, tgt len, batch

    key = jax.random.PRNGKey(0)
    kp, ks, kt = jax.random.split(key, 3)
    params = init_params(kp, vocab_size, embed_dim, hidden_dim,
                         num_encoder_layers, num_decoder_layers, num_heads)
    src = jax.random.randint(ks, (S, B), 0, vocab_size, jnp.int32)
    trg = jax.random.randint(kt, (T, B), 0, vocab_size, jnp.int32)

    fwd = jax.jit(transformer_decoder_model_forward, static_argnums=(3, 4))
    out = fwd(src, trg, params, num_heads, vocab_size)
    out = jax.block_until_ready(out)
    assert out.shape == (T, B, vocab_size)
    assert bool(jnp.all(jnp.isfinite(out)))
    print("KERNEL_OK")
</pallas_src>

<mosaic_0001>
module attributes {stable_mosaic.version = 11 : i64} {
  func.func @_model_kernel(%arg0: i32, %arg1: memref<1x16x32xf32, #tpu.memory_space<vmem>>, %arg2: memref<1x8x32xf32, #tpu.memory_space<vmem>>, %arg3: memref<32x96xbf16, #tpu.memory_space<vmem>>, %arg4: memref<1x96xf32, #tpu.memory_space<vmem>>, %arg5: memref<32x32xbf16, #tpu.memory_space<vmem>>, %arg6: memref<1x32xf32, #tpu.memory_space<vmem>>, %arg7: memref<1x32xf32, #tpu.memory_space<vmem>>, %arg8: memref<1x32xf32, #tpu.memory_space<vmem>>, %arg9: memref<32x64xbf16, #tpu.memory_space<vmem>>, %arg10: memref<1x64xf32, #tpu.memory_space<vmem>>, %arg11: memref<64x32xbf16, #tpu.memory_space<vmem>>, %arg12: memref<1x32xf32, #tpu.memory_space<vmem>>, %arg13: memref<1x32xf32, #tpu.memory_space<vmem>>, %arg14: memref<1x32xf32, #tpu.memory_space<vmem>>, %arg15: memref<32x96xbf16, #tpu.memory_space<vmem>>, %arg16: memref<1x96xf32, #tpu.memory_space<vmem>>, %arg17: memref<32x32xbf16, #tpu.memory_space<vmem>>, %arg18: memref<1x32xf32, #tpu.memory_space<vmem>>, %arg19: memref<1x32xf32, #tpu.memory_space<vmem>>, %arg20: memref<1x32xf32, #tpu.memory_space<vmem>>, %arg21: memref<32x64xbf16, #tpu.memory_space<vmem>>, %arg22: memref<1x64xf32, #tpu.memory_space<vmem>>, %arg23: memref<64x32xbf16, #tpu.memory_space<vmem>>, %arg24: memref<1x32xf32, #tpu.memory_space<vmem>>, %arg25: memref<1x32xf32, #tpu.memory_space<vmem>>, %arg26: memref<1x32xf32, #tpu.memory_space<vmem>>, %arg27: memref<1x32xf32, #tpu.memory_space<vmem>>, %arg28: memref<1x32xf32, #tpu.memory_space<vmem>>, %arg29: memref<32x96xbf16, #tpu.memory_space<vmem>>, %arg30: memref<1x96xf32, #tpu.memory_space<vmem>>, %arg31: memref<32x32xbf16, #tpu.memory_space<vmem>>, %arg32: memref<1x32xf32, #tpu.memory_space<vmem>>, %arg33: memref<1x32xf32, #tpu.memory_space<vmem>>, %arg34: memref<1x32xf32, #tpu.memory_space<vmem>>, %arg35: memref<32x32xbf16, #tpu.memory_space<vmem>>, %arg36: memref<1x32xf32, #tpu.memory_space<vmem>>, %arg37: memref<32x64xbf16, #tpu.memory_space<vmem>>, %arg38: memref<1x64xf32, #tpu.memory_space<vmem>>, %arg39: memref<32x32xbf16, #tpu.memory_space<vmem>>, %arg40: memref<1x32xf32, #tpu.memory_space<vmem>>, %arg41: memref<1x32xf32, #tpu.memory_space<vmem>>, %arg42: memref<1x32xf32, #tpu.memory_space<vmem>>, %arg43: memref<32x64xbf16, #tpu.memory_space<vmem>>, %arg44: memref<1x64xf32, #tpu.memory_space<vmem>>, %arg45: memref<64x32xbf16, #tpu.memory_space<vmem>>, %arg46: memref<1x32xf32, #tpu.memory_space<vmem>>, %arg47: memref<1x32xf32, #tpu.memory_space<vmem>>, %arg48: memref<1x32xf32, #tpu.memory_space<vmem>>, %arg49: memref<32x96xbf16, #tpu.memory_space<vmem>>, %arg50: memref<1x96xf32, #tpu.memory_space<vmem>>, %arg51: memref<32x32xbf16, #tpu.memory_space<vmem>>, %arg52: memref<1x32xf32, #tpu.memory_space<vmem>>, %arg53: memref<1x32xf32, #tpu.memory_space<vmem>>, %arg54: memref<1x32xf32, #tpu.memory_space<vmem>>, %arg55: memref<32x32xbf16, #tpu.memory_space<vmem>>, %arg56: memref<1x32xf32, #tpu.memory_space<vmem>>, %arg57: memref<32x64xbf16, #tpu.memory_space<vmem>>, %arg58: memref<1x64xf32, #tpu.memory_space<vmem>>, %arg59: memref<32x32xbf16, #tpu.memory_space<vmem>>, %arg60: memref<1x32xf32, #tpu.memory_space<vmem>>, %arg61: memref<1x32xf32, #tpu.memory_space<vmem>>, %arg62: memref<1x32xf32, #tpu.memory_space<vmem>>, %arg63: memref<32x64xbf16, #tpu.memory_space<vmem>>, %arg64: memref<1x64xf32, #tpu.memory_space<vmem>>, %arg65: memref<64x32xbf16, #tpu.memory_space<vmem>>, %arg66: memref<1x32xf32, #tpu.memory_space<vmem>>, %arg67: memref<1x32xf32, #tpu.memory_space<vmem>>, %arg68: memref<1x32xf32, #tpu.memory_space<vmem>>, %arg69: memref<1x32xf32, #tpu.memory_space<vmem>>, %arg70: memref<1x32xf32, #tpu.memory_space<vmem>>, %arg71: memref<32x128xbf16, #tpu.memory_space<vmem>>, %arg72: memref<1x128xf32, #tpu.memory_space<vmem>>, %arg73: memref<1x8x128xf32, #tpu.memory_space<vmem>>) attributes {dimension_semantics = [#tpu.dimension_semantics<parallel>], iteration_bounds = array<i64: 2>, scalar_prefetch = 0 : i64, scratch_operands = 0 : i64, tpu.core_type = #tpu.core_type<tc>, window_params = [{transform_indices = @transform_0, window_bounds = array<i64: 1, 16, 32>}, {transform_indices = @transform_1, window_bounds = array<i64: 1, 8, 32>}, {pipeline_mode = #tpu.pipeline_mode<synchronous>, transform_indices = @transform_2, window_bounds = array<i64: 32, 96>}, {pipeline_mode = #tpu.pipeline_mode<synchronous>, transform_indices = @transform_3, window_bounds = array<i64: 1, 96>}, {pipeline_mode = #tpu.pipeline_mode<synchronous>, transform_indices = @transform_4, window_bounds = array<i64: 32, 32>}, {pipeline_mode = #tpu.pipeline_mode<synchronous>, transform_indices = @transform_5, window_bounds = array<i64: 1, 32>}, {pipeline_mode = #tpu.pipeline_mode<synchronous>, transform_indices = @transform_6, window_bounds = array<i64: 1, 32>}, {pipeline_mode = #tpu.pipeline_mode<synchronous>, transform_indices = @transform_7, window_bounds = array<i64: 1, 32>}, {pipeline_mode = #tpu.pipeline_mode<synchronous>, transform_indices = @transform_8, window_bounds = array<i64: 32, 64>}, {pipeline_mode = #tpu.pipeline_mode<synchronous>, transform_indices = @transform_9, window_bounds = array<i64: 1, 64>}, {pipeline_mode = #tpu.pipeline_mode<synchronous>, transform_indices = @transform_10, window_bounds = array<i64: 64, 32>}, {pipeline_mode = #tpu.pipeline_mode<synchronous>, transform_indices = @transform_11, window_bounds = array<i64: 1, 32>}, {pipeline_mode = #tpu.pipeline_mode<synchronous>, transform_indices = @transform_12, window_bounds = array<i64: 1, 32>}, {pipeline_mode = #tpu.pipeline_mode<synchronous>, transform_indices = @transform_13, window_bounds = array<i64: 1, 32>}, {pipeline_mode = #tpu.pipeline_mode<synchronous>, transform_indices = @transform_14, window_bounds = array<i64: 32, 96>}, {pipeline_mode = #tpu.pipeline_mode<synchronous>, transform_indices = @transform_15, window_bounds = array<i64: 1, 96>}, {pipeline_mode = #tpu.pipeline_mode<synchronous>, transform_indices = @transform_16, window_bounds = array<i64: 32, 32>}, {pipeline_mode = #tpu.pipeline_mode<synchronous>, transform_indices = @transform_17, window_bounds = array<i64: 1, 32>}, {pipeline_mode = #tpu.pipeline_mode<synchronous>, transform_indices = @transform_18, window_bounds = array<i64: 1, 32>}, {pipeline_mode = #tpu.pipeline_mode<synchronous>, transform_indices = @transform_19, window_bounds = array<i64: 1, 32>}, {pipeline_mode = #tpu.pipeline_mode<synchronous>, transform_indices = @transform_20, window_bounds = array<i64: 32, 64>}, {pipeline_mode = #tpu.pipeline_mode<synchronous>, transform_indices = @transform_21, window_bounds = array<i64: 1, 64>}, {pipeline_mode = #tpu.pipeline_mode<synchronous>, transform_indices = @transform_22, window_bounds = array<i64: 64, 32>}, {pipeline_mode = #tpu.pipeline_mode<synchronous>, transform_indices = @transform_23, window_bounds = array<i64: 1, 32>}, {pipeline_mode = #tpu.pipeline_mode<synchronous>, transform_indices = @transform_24, window_bounds = array<i64: 1, 32>}, {pipeline_mode = #tpu.pipeline_mode<synchronous>, transform_indices = @transform_25, window_bounds = array<i64: 1, 32>}, {pipeline_mode = #tpu.pipeline_mode<synchronous>, transform_indices = @transform_26, window_bounds = array<i64: 1, 32>}, {pipeline_mode = #tpu.pipeline_mode<synchronous>, transform_indices = @transform_27, window_bounds = array<i64: 1, 32>}, {pipeline_mode = #tpu.pipeline_mode<synchronous>, transform_indices = @transform_28, window_bounds = array<i64: 32, 96>}, {pipeline_mode = #tpu.pipeline_mode<synchronous>, transform_indices = @transform_29, window_bounds = array<i64: 1, 96>}, {pipeline_mode = #tpu.pipeline_mode<synchronous>, transform_indices = @transform_30, window_bounds = array<i64: 32, 32>}, {pipeline_mode = #tpu.pipeline_mode<synchronous>, transform_indices = @transform_31, window_bounds = array<i64: 1, 32>}, {pipeline_mode = #tpu.pipeline_mode<synchronous>, transform_indices = @transform_32, window_bounds = array<i64: 1, 32>}, {pipeline_mode = #tpu.pipeline_mode<synchronous>, transform_indices = @transform_33, window_bounds = array<i64: 1, 32>}, {pipeline_mode = #tpu.pipeline_mode<synchronous>, transform_indices = @transform_34, window_bounds = array<i64: 32, 32>}, {pipeline_mode = #tpu.pipeline_mode<synchronous>, transform_indices = @transform_35, window_bounds = array<i64: 1, 32>}, {pipeline_mode = #tpu.pipeline_mode<synchronous>, transform_indices = @transform_36, window_bounds = array<i64: 32, 64>}, {pipeline_mode = #tpu.pipeline_mode<synchronous>, transform_indices = @transform_37, window_bounds = array<i64: 1, 64>}, {pipeline_mode = #tpu.pipeline_mode<synchronous>, transform_indices = @transform_38, window_bounds = array<i64: 32, 32>}, {pipeline_mode = #tpu.pipeline_mode<synchronous>, transform_indices = @transform_39, window_bounds = array<i64: 1, 32>}, {pipeline_mode = #tpu.pipeline_mode<synchronous>, transform_indices = @transform_40, window_bounds = array<i64: 1, 32>}, {pipeline_mode = #tpu.pipeline_mode<synchronous>, transform_indices = @transform_41, window_bounds = array<i64: 1, 32>}, {pipeline_mode = #tpu.pipeline_mode<synchronous>, transform_indices = @transform_42, window_bounds = array<i64: 32, 64>}, {pipeline_mode = #tpu.pipeline_mode<synchronous>, transform_indices = @transform_43, window_bounds = array<i64: 1, 64>}, {pipeline_mode = #tpu.pipeline_mode<synchronous>, transform_indices = @transform_44, window_bounds = array<i64: 64, 32>}, {pipeline_mode = #tpu.pipeline_mode<synchronous>, transform_indices = @transform_45, window_bounds = array<i64: 1, 32>}, {pipeline_mode = #tpu.pipeline_mode<synchronous>, transform_indices = @transform_46, window_bounds = array<i64: 1, 32>}, {pipeline_mode = #tpu.pipeline_mode<synchronous>, transform_indices = @transform_47, window_bounds = array<i64: 1, 32>}, {pipeline_mode = #tpu.pipeline_mode<synchronous>, transform_indices = @transform_48, window_bounds = array<i64: 32, 96>}, {pipeline_mode = #tpu.pipeline_mode<synchronous>, transform_indices = @transform_49, window_bounds = array<i64: 1, 96>}, {pipeline_mode = #tpu.pipeline_mode<synchronous>, transform_indices = @transform_50, window_bounds = array<i64: 32, 32>}, {pipeline_mode = #tpu.pipeline_mode<synchronous>, transform_indices = @transform_51, window_bounds = array<i64: 1, 32>}, {pipeline_mode = #tpu.pipeline_mode<synchronous>, transform_indices = @transform_52, window_bounds = array<i64: 1, 32>}, {pipeline_mode = #tpu.pipeline_mode<synchronous>, transform_indices = @transform_53, window_bounds = array<i64: 1, 32>}, {pipeline_mode = #tpu.pipeline_mode<synchronous>, transform_indices = @transform_54, window_bounds = array<i64: 32, 32>}, {pipeline_mode = #tpu.pipeline_mode<synchronous>, transform_indices = @transform_55, window_bounds = array<i64: 1, 32>}, {pipeline_mode = #tpu.pipeline_mode<synchronous>, transform_indices = @transform_56, window_bounds = array<i64: 32, 64>}, {pipeline_mode = #tpu.pipeline_mode<synchronous>, transform_indices = @transform_57, window_bounds = array<i64: 1, 64>}, {pipeline_mode = #tpu.pipeline_mode<synchronous>, transform_indices = @transform_58, window_bounds = array<i64: 32, 32>}, {pipeline_mode = #tpu.pipeline_mode<synchronous>, transform_indices = @transform_59, window_bounds = array<i64: 1, 32>}, {pipeline_mode = #tpu.pipeline_mode<synchronous>, transform_indices = @transform_60, window_bounds = array<i64: 1, 32>}, {pipeline_mode = #tpu.pipeline_mode<synchronous>, transform_indices = @transform_61, window_bounds = array<i64: 1, 32>}, {pipeline_mode = #tpu.pipeline_mode<synchronous>, transform_indices = @transform_62, window_bounds = array<i64: 32, 64>}, {pipeline_mode = #tpu.pipeline_mode<synchronous>, transform_indices = @transform_63, window_bounds = array<i64: 1, 64>}, {pipeline_mode = #tpu.pipeline_mode<synchronous>, transform_indices = @transform_64, window_bounds = array<i64: 64, 32>}, {pipeline_mode = #tpu.pipeline_mode<synchronous>, transform_indices = @transform_65, window_bounds = array<i64: 1, 32>}, {pipeline_mode = #tpu.pipeline_mode<synchronous>, transform_indices = @transform_66, window_bounds = array<i64: 1, 32>}, {pipeline_mode = #tpu.pipeline_mode<synchronous>, transform_indices = @transform_67, window_bounds = array<i64: 1, 32>}, {pipeline_mode = #tpu.pipeline_mode<synchronous>, transform_indices = @transform_68, window_bounds = array<i64: 1, 32>}, {pipeline_mode = #tpu.pipeline_mode<synchronous>, transform_indices = @transform_69, window_bounds = array<i64: 1, 32>}, {pipeline_mode = #tpu.pipeline_mode<synchronous>, transform_indices = @transform_70, window_bounds = array<i64: 32, 128>}, {pipeline_mode = #tpu.pipeline_mode<synchronous>, transform_indices = @transform_71, window_bounds = array<i64: 1, 128>}, {transform_indices = @transform_72, window_bounds = array<i64: 1, 8, 128>}]} {
    %c0 = arith.constant 0 : index
    %c0_0 = arith.constant 0 : index
    %c0_1 = arith.constant 0 : index
    %0 = vector.load %arg1[%c0, %c0_0, %c0_1] : memref<1x16x32xf32, #tpu.memory_space<vmem>>, vector<1x16x32xf32>
    %1 = vector.shape_cast %0 : vector<1x16x32xf32> to vector<16x32xf32>
    %c0_2 = arith.constant 0 : index
    %c0_3 = arith.constant 0 : index
    %c0_4 = arith.constant 0 : index
    %2 = vector.load %arg2[%c0_2, %c0_3, %c0_4] : memref<1x8x32xf32, #tpu.memory_space<vmem>>, vector<1x8x32xf32>
    %3 = vector.shape_cast %2 : vector<1x8x32xf32> to vector<8x32xf32>
    %4 = tpu.iota {dimensions = array<i32: 1>} : vector<16x16xi32>
    %c10_i32 = arith.constant 10 : i32
    %5 = vector.broadcast %c10_i32 : i32 to vector<16x16xi32>
    %6 = arith.cmpi slt, %4, %5 : vector<16x16xi32>
    %cst = arith.constant 0.000000e+00 : f32
    %cst_5 = arith.constant -1.000000e+30 : f32
    %7 = vector.broadcast %cst : f32 to vector<16x16xf32>
    %8 = vector.broadcast %cst_5 : f32 to vector<16x16xf32>
    %9 = arith.select %6, %7, %8 : vector<16x16xi1>, vector<16x16xf32>
    %10 = tpu.iota {dimensions = array<i32: 0>} : vector<8x8xi32>
    %11 = tpu.iota {dimensions = array<i32: 1>} : vector<8x8xi32>
    %12 = arith.cmpi sle, %11, %10 : vector<8x8xi32>
    %cst_6 = arith.constant 0.000000e+00 : f32
    %cst_7 = arith.constant -1.000000e+30 : f32
    %13 = vector.broadcast %cst_6 : f32 to vector<8x8xf32>
    %14 = vector.broadcast %cst_7 : f32 to vector<8x8xf32>
    %15 = arith.select %12, %13, %14 : vector<8x8xi1>, vector<8x8xf32>
    %16 = tpu.iota {dimensions = array<i32: 1>} : vector<8x16xi32>
    %c10_i32_8 = arith.constant 10 : i32
    %17 = vector.broadcast %c10_i32_8 : i32 to vector<8x16xi32>
    %18 = arith.cmpi slt, %16, %17 : vector<8x16xi32>
    %cst_9 = arith.constant 0.000000e+00 : f32
    %cst_10 = arith.constant -1.000000e+30 : f32
    %19 = vector.broadcast %cst_9 : f32 to vector<8x16xf32>
    %20 = vector.broadcast %cst_10 : f32 to vector<8x16xf32>
    %21 = arith.select %18, %19, %20 : vector<8x16xi1>, vector<8x16xf32>
    %c0_11 = arith.constant 0 : index
    %c0_12 = arith.constant 0 : index
    %22 = vector.load %arg3[%c0_11, %c0_12] : memref<32x96xbf16, #tpu.memory_space<vmem>>, vector<32x96xbf16>
    %23 = arith.truncf %1 : vector<16x32xf32> to vector<16x32xbf16>
    %cst_13 = arith.constant dense<0.000000e+00> : vector<16x96xf32>
    %24 = tpu.matmul %23, %22, %cst_13 {dimension_numbers = #tpu.dot_dimension_numbers<[1], [0], [0], [1], [0, 0, 1, 1], [], []>} : vector<16x32xbf16>, vector<32x96xbf16>, vector<16x96xf32> -> vector<16x96xf32>
    %c0_14 = arith.constant 0 : index
    %c0_15 = arith.constant 0 : index
    %25 = vector.load %arg4[%c0_14, %c0_15] : memref<1x96xf32, #tpu.memory_space<vmem>>, vector<1x96xf32>
    %26 = vector.broadcast %25 : vector<1x96xf32> to vector<16x96xf32>
    %27 = arith.addf %24, %26 : vector<16x96xf32>
    %28 = vector.extract_strided_slice %27 {offsets = [0, 0], sizes = [16, 32], strides = [1, 1]} : vector<16x96xf32> to vector<16x32xf32>
    %29 = vector.extract_strided_slice %27 {offsets = [0, 32], sizes = [16, 32], strides = [1, 1]} : vector<16x96xf32> to vector<16x32xf32>
    %30 = vector.extract_strided_slice %27 {offsets = [0, 64], sizes = [16, 32], strides = [1, 1]} : vector<16x96xf32> to vector<16x32xf32>
    %31 = arith.truncf %28 : vector<16x32xf32> to vector<16x32xbf16>
    %32 = arith.truncf %29 : vector<16x32xf32> to vector<16x32xbf16>
    %33 = arith.truncf %30 : vector<16x32xf32> to vector<16x32xbf16>
    %34 = vector.extract_strided_slice %31 {offsets = [0, 0], sizes = [16, 8], strides = [1, 1]} : vector<16x32xbf16> to vector<16x8xbf16>
    %35 = vector.extract_strided_slice %32 {offsets = [0, 0], sizes = [16, 8], strides = [1, 1]} : vector<16x32xbf16> to vector<16x8xbf16>
    %36 = vector.extract_strided_slice %33 {offsets = [0, 0], sizes = [16, 8], strides = [1, 1]} : vector<16x32xbf16> to vector<16x8xbf16>
    %cst_16 = arith.constant dense<0.000000e+00> : vector<16x16xf32>
    %37 = tpu.matmul %34, %35, %cst_16 {dimension_numbers = #tpu.dot_dimension_numbers<[1], [1], [0], [0], [0, 0, 1, 0], [], []>} : vector<16x8xbf16>, vector<16x8xbf16>, vector<16x16xf32> -> vector<16x16xf32>
    %38 = arith.addf %37, %9 : vector<16x16xf32>
    %cst_17 = arith.constant dense<0xFF800000> : vector<16xf32>
    %39 = vector.multi_reduction <maximumf>, %38, %cst_17 [1] : vector<16x16xf32> to vector<16xf32>
    %40 = vector.shape_cast %39 : vector<16xf32> to vector<16x1xf32>
    %41 = vector.broadcast %40 : vector<16x1xf32> to vector<16x16xf32>
    %42 = arith.subf %38, %41 : vector<16x16xf32>
    %43 = math.exp %42 : vector<16x16xf32>
    %cst_18 = arith.constant dense<0.000000e+00> : vector<16xf32>
    %44 = vector.multi_reduction <add>, %43, %cst_18 [1] : vector<16x16xf32> to vector<16xf32>
    %45 = vector.shape_cast %44 : vector<16xf32> to vector<16x1xf32>
    %46 = tpu.reciprocal %45 {approx = true} : vector<16x1xf32> -> vector<16x1xf32>
    %47 = vector.broadcast %46 : vector<16x1xf32> to vector<16x16xf32>
    %48 = arith.mulf %43, %47 : vector<16x16xf32>
    %49 = arith.truncf %48 : vector<16x16xf32> to vector<16x16xbf16>
    %cst_19 = arith.constant dense<0.000000e+00> : vector<16x8xf32>
    %50 = tpu.matmul %49, %36, %cst_19 {dimension_numbers = #tpu.dot_dimension_numbers<[1], [0], [0], [1], [0, 0, 1, 1], [], []>} : vector<16x16xbf16>, vector<16x8xbf16>, vector<16x8xf32> -> vector<16x8xf32>
    %51 = vector.extract_strided_slice %31 {offsets = [0, 8], sizes = [16, 8], strides = [1, 1]} : vector<16x32xbf16> to vector<16x8xbf16>
    %52 = vector.extract_strided_slice %32 {offsets = [0, 8], sizes = [16, 8], strides = [1, 1]} : vector<16x32xbf16> to vector<16x8xbf16>
    %53 = vector.extract_strided_slice %33 {offsets = [0, 8], sizes = [16, 8], strides = [1, 1]} : vector<16x32xbf16> to vector<16x8xbf16>
    %cst_20 = arith.constant dense<0.000000e+00> : vector<16x16xf32>
    %54 = tpu.matmul %51, %52, %cst_20 {dimension_numbers = #tpu.dot_dimension_numbers<[1], [1], [0], [0], [0, 0, 1, 0], [], []>} : vector<16x8xbf16>, vector<16x8xbf16>, vector<16x16xf32> -> vector<16x16xf32>
    %55 = arith.addf %54, %9 : vector<16x16xf32>
    %cst_21 = arith.constant dense<0xFF800000> : vector<16xf32>
    %56 = vector.multi_reduction <maximumf>, %55, %cst_21 [1] : vector<16x16xf32> to vector<16xf32>
    %57 = vector.shape_cast %56 : vector<16xf32> to vector<16x1xf32>
    %58 = vector.broadcast %57 : vector<16x1xf32> to vector<16x16xf32>
    %59 = arith.subf %55, %58 : vector<16x16xf32>
    %60 = math.exp %59 : vector<16x16xf32>
    %cst_22 = arith.constant dense<0.000000e+00> : vector<16xf32>
    %61 = vector.multi_reduction <add>, %60, %cst_22 [1] : vector<16x16xf32> to vector<16xf32>
    %62 = vector.shape_cast %61 : vector<16xf32> to vector<16x1xf32>
    %63 = tpu.reciprocal %62 {approx = true} : vector<16x1xf32> -> vector<16x1xf32>
    %64 = vector.broadcast %63 : vector<16x1xf32> to vector<16x16xf32>
    %65 = arith.mulf %60, %64 : vector<16x16xf32>
    %66 = arith.truncf %65 : vector<16x16xf32> to vector<16x16xbf16>
    %cst_23 = arith.constant dense<0.000000e+00> : vector<16x8xf32>
    %67 = tpu.matmul %66, %53, %cst_23 {dimension_numbers = #tpu.dot_dimension_numbers<[1], [0], [0], [1], [0, 0, 1, 1], [], []>} : vector<16x16xbf16>, vector<16x8xbf16>, vector<16x8xf32> -> vector<16x8xf32>
    %68 = vector.extract_strided_slice %31 {offsets = [0, 16], sizes = [16, 8], strides = [1, 1]} : vector<16x32xbf16> to vector<16x8xbf16>
    %69 = vector.extract_strided_slice %32 {offsets = [0, 16], sizes = [16, 8], strides = [1, 1]} : vector<16x32xbf16> to vector<16x8xbf16>
    %70 = vector.extract_strided_slice %33 {offsets = [0, 16], sizes = [16, 8], strides = [1, 1]} : vector<16x32xbf16> to vector<16x8xbf16>
    %cst_24 = arith.constant dense<0.000000e+00> : vector<16x16xf32>
    %71 = tpu.matmul %68, %69, %cst_24 {dimension_numbers = #tpu.dot_dimension_numbers<[1], [1], [0], [0], [0, 0, 1, 0], [], []>} : vector<16x8xbf16>, vector<16x8xbf16>, vector<16x16xf32> -> vector<16x16xf32>
    %72 = arith.addf %71, %9 : vector<16x16xf32>
    %cst_25 = arith.constant dense<0xFF800000> : vector<16xf32>
    %73 = vector.multi_reduction <maximumf>, %72, %cst_25 [1] : vector<16x16xf32> to vector<16xf32>
    %74 = vector.shape_cast %73 : vector<16xf32> to vector<16x1xf32>
    %75 = vector.broadcast %74 : vector<16x1xf32> to vector<16x16xf32>
    %76 = arith.subf %72, %75 : vector<16x16xf32>
    %77 = math.exp %76 : vector<16x16xf32>
    %cst_26 = arith.constant dense<0.000000e+00> : vector<16xf32>
    %78 = vector.multi_reduction <add>, %77, %cst_26 [1] : vector<16x16xf32> to vector<16xf32>
    %79 = vector.shape_cast %78 : vector<16xf32> to vector<16x1xf32>
    %80 = tpu.reciprocal %79 {approx = true} : vector<16x1xf32> -> vector<16x1xf32>
    %81 = vector.broadcast %80 : vector<16x1xf32> to vector<16x16xf32>
    %82 = arith.mulf %77, %81 : vector<16x16xf32>
    %83 = arith.truncf %82 : vector<16x16xf32> to vector<16x16xbf16>
    %cst_27 = arith.constant dense<0.000000e+00> : vector<16x8xf32>
    %84 = tpu.matmul %83, %70, %cst_27 {dimension_numbers = #tpu.dot_dimension_numbers<[1], [0], [0], [1], [0, 0, 1, 1], [], []>} : vector<16x16xbf16>, vector<16x8xbf16>, vector<16x8xf32> -> vector<16x8xf32>
    %85 = vector.extract_strided_slice %31 {offsets = [0, 24], sizes = [16, 8], strides = [1, 1]} : vector<16x32xbf16> to vector<16x8xbf16>
    %86 = vector.extract_strided_slice %32 {offsets = [0, 24], sizes = [16, 8], strides = [1, 1]} : vector<16x32xbf16> to vector<16x8xbf16>
    %87 = vector.extract_strided_slice %33 {offsets = [0, 24], sizes = [16, 8], strides = [1, 1]} : vector<16x32xbf16> to vector<16x8xbf16>
    %cst_28 = arith.constant dense<0.000000e+00> : vector<16x16xf32>
    %88 = tpu.matmul %85, %86, %cst_28 {dimension_numbers = #tpu.dot_dimension_numbers<[1], [1], [0], [0], [0, 0, 1, 0], [], []>} : vector<16x8xbf16>, vector<16x8xbf16>, vector<16x16xf32> -> vector<16x16xf32>
    %89 = arith.addf %88, %9 : vector<16x16xf32>
    %cst_29 = arith.constant dense<0xFF800000> : vector<16xf32>
    %90 = vector.multi_reduction <maximumf>, %89, %cst_29 [1] : vector<16x16xf32> to vector<16xf32>
    %91 = vector.shape_cast %90 : vector<16xf32> to vector<16x1xf32>
    %92 = vector.broadcast %91 : vector<16x1xf32> to vector<16x16xf32>
    %93 = arith.subf %89, %92 : vector<16x16xf32>
    %94 = math.exp %93 : vector<16x16xf32>
    %cst_30 = arith.constant dense<0.000000e+00> : vector<16xf32>
    %95 = vector.multi_reduction <add>, %94, %cst_30 [1] : vector<16x16xf32> to vector<16xf32>
    %96 = vector.shape_cast %95 : vector<16xf32> to vector<16x1xf32>
    %97 = tpu.reciprocal %96 {approx = true} : vector<16x1xf32> -> vector<16x1xf32>
    %98 = vector.broadcast %97 : vector<16x1xf32> to vector<16x16xf32>
    %99 = arith.mulf %94, %98 : vector<16x16xf32>
    %100 = arith.truncf %99 : vector<16x16xf32> to vector<16x16xbf16>
    %cst_31 = arith.constant dense<0.000000e+00> : vector<16x8xf32>
    %101 = tpu.matmul %100, %87, %cst_31 {dimension_numbers = #tpu.dot_dimension_numbers<[1], [0], [0], [1], [0, 0, 1, 1], [], []>} : vector<16x16xbf16>, vector<16x8xbf16>, vector<16x8xf32> -> vector<16x8xf32>
    %102 = tpu.concatenate %50, %67, %84, %101 in 1 : vector<16x8xf32>, vector<16x8xf32>, vector<16x8xf32>, vector<16x8xf32> -> vector<16x32xf32>
    %c0_32 = arith.constant 0 : index
    %c0_33 = arith.constant 0 : index
    %103 = vector.load %arg5[%c0_32, %c0_33] : memref<32x32xbf16, #tpu.memory_space<vmem>>, vector<32x32xbf16>
    %104 = arith.truncf %102 : vector<16x32xf32> to vector<16x32xbf16>
    %cst_34 = arith.constant dense<0.000000e+00> : vector<16x32xf32>
    %105 = tpu.matmul %104, %103, %cst_34 {dimension_numbers = #tpu.dot_dimension_numbers<[1], [0], [0], [1], [0, 0, 1, 1], [], []>} : vector<16x32xbf16>, vector<32x32xbf16>, vector<16x32xf32> -> vector<16x32xf32>
    %c0_35 = arith.constant 0 : index
    %c0_36 = arith.constant 0 : index
    %106 = vector.load %arg6[%c0_35, %c0_36] : memref<1x32xf32, #tpu.memory_space<vmem>>, vector<1x32xf32>
    %107 = vector.broadcast %106 : vector<1x32xf32> to vector<16x32xf32>
    %108 = arith.addf %105, %107 : vector<16x32xf32>
    %109 = arith.addf %108, %1 : vector<16x32xf32>
    %c0_37 = arith.constant 0 : index
    %c0_38 = arith.constant 0 : index
    %110 = vector.load %arg7[%c0_37, %c0_38] : memref<1x32xf32, #tpu.memory_space<vmem>>, vector<1x32xf32>
    %c0_39 = arith.constant 0 : index
    %c0_40 = arith.constant 0 : index
    %111 = vector.load %arg8[%c0_39, %c0_40] : memref<1x32xf32, #tpu.memory_space<vmem>>, vector<1x32xf32>
    %cst_41 = arith.constant dense<0.000000e+00> : vector<16xf32>
    %112 = vector.multi_reduction <add>, %109, %cst_41 [1] : vector<16x32xf32> to vector<16xf32>
    %113 = vector.shape_cast %112 : vector<16xf32> to vector<16x1xf32>
    %cst_42 = arith.constant 3.200000e+01 : f32
    %114 = vector.broadcast %cst_42 : f32 to vector<16x1xf32>
    %115 = arith.divf %113, %114 : vector<16x1xf32>
    %116 = vector.broadcast %115 : vector<16x1xf32> to vector<16x32xf32>
    %117 = arith.subf %109, %116 : vector<16x32xf32>
    %118 = arith.mulf %117, %117 : vector<16x32xf32>
    %cst_43 = arith.constant dense<0.000000e+00> : vector<16xf32>
    %119 = vector.multi_reduction <add>, %118, %cst_43 [1] : vector<16x32xf32> to vector<16xf32>
    %120 = vector.shape_cast %119 : vector<16xf32> to vector<16x1xf32>
    %cst_44 = arith.constant 3.200000e+01 : f32
    %121 = vector.broadcast %cst_44 : f32 to vector<16x1xf32>
    %122 = arith.divf %120, %121 : vector<16x1xf32>
    %cst_45 = arith.constant 9.99999974E-6 : f32
    %123 = vector.broadcast %cst_45 : f32 to vector<16x1xf32>
    %124 = arith.addf %122, %123 : vector<16x1xf32>
    %125 = math.rsqrt %124 : vector<16x1xf32>
    %126 = vector.broadcast %125 : vector<16x1xf32> to vector<16x32xf32>
    %127 = arith.mulf %117, %126 : vector<16x32xf32>
    %128 = vector.broadcast %110 : vector<1x32xf32> to vector<16x32xf32>
    %129 = arith.mulf %127, %128 : vector<16x32xf32>
    %130 = vector.broadcast %111 : vector<1x32xf32> to vector<16x32xf32>
    %131 = arith.addf %129, %130 : vector<16x32xf32>
    %c0_46 = arith.constant 0 : index
    %c0_47 = arith.constant 0 : index
    %132 = vector.load %arg9[%c0_46, %c0_47] : memref<32x64xbf16, #tpu.memory_space<vmem>>, vector<32x64xbf16>
    %133 = arith.truncf %131 : vector<16x32xf32> to vector<16x32xbf16>
    %cst_48 = arith.constant dense<0.000000e+00> : vector<16x64xf32>
    %134 = tpu.matmul %133, %132, %cst_48 {dimension_numbers = #tpu.dot_dimension_numbers<[1], [0], [0], [1], [0, 0, 1, 1], [], []>} : vector<16x32xbf16>, vector<32x64xbf16>, vector<16x64xf32> -> vector<16x64xf32>
    %c0_49 = arith.constant 0 : index
    %c0_50 = arith.constant 0 : index
    %135 = vector.load %arg10[%c0_49, %c0_50] : memref<1x64xf32, #tpu.memory_space<vmem>>, vector<1x64xf32>
    %136 = vector.broadcast %135 : vector<1x64xf32> to vector<16x64xf32>
    %137 = arith.addf %134, %136 : vector<16x64xf32>
    %cst_51 = arith.constant 0.000000e+00 : f32
    %138 = vector.broadcast %cst_51 : f32 to vector<16x64xf32>
    %139 = arith.maximumf %137, %138 : vector<16x64xf32>
    %c0_52 = arith.constant 0 : index
    %c0_53 = arith.constant 0 : index
    %140 = vector.load %arg11[%c0_52, %c0_53] : memref<64x32xbf16, #tpu.memory_space<vmem>>, vector<64x32xbf16>
    %141 = arith.truncf %139 : vector<16x64xf32> to vector<16x64xbf16>
    %cst_54 = arith.constant dense<0.000000e+00> : vector<16x32xf32>
    %142 = tpu.matmul %141, %140, %cst_54 {dimension_numbers = #tpu.dot_dimension_numbers<[1], [0], [0], [1], [0, 0, 1, 1], [], []>} : vector<16x64xbf16>, vector<64x32xbf16>, vector<16x32xf32> -> vector<16x32xf32>
    %c0_55 = arith.constant 0 : index
    %c0_56 = arith.constant 0 : index
    %143 = vector.load %arg12[%c0_55, %c0_56] : memref<1x32xf32, #tpu.memory_space<vmem>>, vector<1x32xf32>
    %144 = vector.broadcast %143 : vector<1x32xf32> to vector<16x32xf32>
    %145 = arith.addf %142, %144 : vector<16x32xf32>
    %146 = arith.addf %145, %131 : vector<16x32xf32>
    %c0_57 = arith.constant 0 : index
    %c0_58 = arith.constant 0 : index
    %147 = vector.load %arg13[%c0_57, %c0_58] : memref<1x32xf32, #tpu.memory_space<vmem>>, vector<1x32xf32>
    %c0_59 = arith.constant 0 : index
    %c0_60 = arith.constant 0 : index
    %148 = vector.load %arg14[%c0_59, %c0_60] : memref<1x32xf32, #tpu.memory_space<vmem>>, vector<1x32xf32>
    %cst_61 = arith.constant dense<0.000000e+00> : vector<16xf32>
    %149 = vector.multi_reduction <add>, %146, %cst_61 [1] : vector<16x32xf32> to vector<16xf32>
    %150 = vector.shape_cast %149 : vector<16xf32> to vector<16x1xf32>
    %cst_62 = arith.constant 3.200000e+01 : f32
    %151 = vector.broadcast %cst_62 : f32 to vector<16x1xf32>
    %152 = arith.divf %150, %151 : vector<16x1xf32>
    %153 = vector.broadcast %152 : vector<16x1xf32> to vector<16x32xf32>
    %154 = arith.subf %146, %153 : vector<16x32xf32>
    %155 = arith.mulf %154, %154 : vector<16x32xf32>
    %cst_63 = arith.constant dense<0.000000e+00> : vector<16xf32>
    %156 = vector.multi_reduction <add>, %155, %cst_63 [1] : vector<16x32xf32> to vector<16xf32>
    %157 = vector.shape_cast %156 : vector<16xf32> to vector<16x1xf32>
    %cst_64 = arith.constant 3.200000e+01 : f32
    %158 = vector.broadcast %cst_64 : f32 to vector<16x1xf32>
    %159 = arith.divf %157, %158 : vector<16x1xf32>
    %cst_65 = arith.constant 9.99999974E-6 : f32
    %160 = vector.broadcast %cst_65 : f32 to vector<16x1xf32>
    %161 = arith.addf %159, %160 : vector<16x1xf32>
    %162 = math.rsqrt %161 : vector<16x1xf32>
    %163 = vector.broadcast %162 : vector<16x1xf32> to vector<16x32xf32>
    %164 = arith.mulf %154, %163 : vector<16x32xf32>
    %165 = vector.broadcast %147 : vector<1x32xf32> to vector<16x32xf32>
    %166 = arith.mulf %164, %165 : vector<16x32xf32>
    %167 = vector.broadcast %148 : vector<1x32xf32> to vector<16x32xf32>
    %168 = arith.addf %166, %167 : vector<16x32xf32>
    %c0_66 = arith.constant 0 : index
    %c0_67 = arith.constant 0 : index
    %169 = vector.load %arg15[%c0_66, %c0_67] : memref<32x96xbf16, #tpu.memory_space<vmem>>, vector<32x96xbf16>
    %170 = arith.truncf %168 : vector<16x32xf32> to vector<16x32xbf16>
    %cst_68 = arith.constant dense<0.000000e+00> : vector<16x96xf32>
    %171 = tpu.matmul %170, %169, %cst_68 {dimension_numbers = #tpu.dot_dimension_numbers<[1], [0], [0], [1], [0, 0, 1, 1], [], []>} : vector<16x32xbf16>, vector<32x96xbf16>, vector<16x96xf32> -> vector<16x96xf32>
    %c0_69 = arith.constant 0 : index
    %c0_70 = arith.constant 0 : index
    %172 = vector.load %arg16[%c0_69, %c0_70] : memref<1x96xf32, #tpu.memory_space<vmem>>, vector<1x96xf32>
    %173 = vector.broadcast %172 : vector<1x96xf32> to vector<16x96xf32>
    %174 = arith.addf %171, %173 : vector<16x96xf32>
    %175 = vector.extract_strided_slice %174 {offsets = [0, 0], sizes = [16, 32], strides = [1, 1]} : vector<16x96xf32> to vector<16x32xf32>
    %176 = vector.extract_strided_slice %174 {offsets = [0, 32], sizes = [16, 32], strides = [1, 1]} : vector<16x96xf32> to vector<16x32xf32>
    %177 = vector.extract_strided_slice %174 {offsets = [0, 64], sizes = [16, 32], strides = [1, 1]} : vector<16x96xf32> to vector<16x32xf32>
    %178 = arith.truncf %175 : vector<16x32xf32> to vector<16x32xbf16>
    %179 = arith.truncf %176 : vector<16x32xf32> to vector<16x32xbf16>
    %180 = arith.truncf %177 : vector<16x32xf32> to vector<16x32xbf16>
    %181 = vector.extract_strided_slice %178 {offsets = [0, 0], sizes = [16, 8], strides = [1, 1]} : vector<16x32xbf16> to vector<16x8xbf16>
    %182 = vector.extract_strided_slice %179 {offsets = [0, 0], sizes = [16, 8], strides = [1, 1]} : vector<16x32xbf16> to vector<16x8xbf16>
    %183 = vector.extract_strided_slice %180 {offsets = [0, 0], sizes = [16, 8], strides = [1, 1]} : vector<16x32xbf16> to vector<16x8xbf16>
    %cst_71 = arith.constant dense<0.000000e+00> : vector<16x16xf32>
    %184 = tpu.matmul %181, %182, %cst_71 {dimension_numbers = #tpu.dot_dimension_numbers<[1], [1], [0], [0], [0, 0, 1, 0], [], []>} : vector<16x8xbf16>, vector<16x8xbf16>, vector<16x16xf32> -> vector<16x16xf32>
    %185 = arith.addf %184, %9 : vector<16x16xf32>
    %cst_72 = arith.constant dense<0xFF800000> : vector<16xf32>
    %186 = vector.multi_reduction <maximumf>, %185, %cst_72 [1] : vector<16x16xf32> to vector<16xf32>
    %187 = vector.shape_cast %186 : vector<16xf32> to vector<16x1xf32>
    %188 = vector.broadcast %187 : vector<16x1xf32> to vector<16x16xf32>
    %189 = arith.subf %185, %188 : vector<16x16xf32>
    %190 = math.exp %189 : vector<16x16xf32>
    %cst_73 = arith.constant dense<0.000000e+00> : vector<16xf32>
    %191 = vector.multi_reduction <add>, %190, %cst_73 [1] : vector<16x16xf32> to vector<16xf32>
    %192 = vector.shape_cast %191 : vector<16xf32> to vector<16x1xf32>
    %193 = tpu.reciprocal %192 {approx = true} : vector<16x1xf32> -> vector<16x1xf32>
    %194 = vector.broadcast %193 : vector<16x1xf32> to vector<16x16xf32>
    %195 = arith.mulf %190, %194 : vector<16x16xf32>
    %196 = arith.truncf %195 : vector<16x16xf32> to vector<16x16xbf16>
    %cst_74 = arith.constant dense<0.000000e+00> : vector<16x8xf32>
    %197 = tpu.matmul %196, %183, %cst_74 {dimension_numbers = #tpu.dot_dimension_numbers<[1], [0], [0], [1], [0, 0, 1, 1], [], []>} : vector<16x16xbf16>, vector<16x8xbf16>, vector<16x8xf32> -> vector<16x8xf32>
    %198 = vector.extract_strided_slice %178 {offsets = [0, 8], sizes = [16, 8], strides = [1, 1]} : vector<16x32xbf16> to vector<16x8xbf16>
    %199 = vector.extract_strided_slice %179 {offsets = [0, 8], sizes = [16, 8], strides = [1, 1]} : vector<16x32xbf16> to vector<16x8xbf16>
    %200 = vector.extract_strided_slice %180 {offsets = [0, 8], sizes = [16, 8], strides = [1, 1]} : vector<16x32xbf16> to vector<16x8xbf16>
    %cst_75 = arith.constant dense<0.000000e+00> : vector<16x16xf32>
    %201 = tpu.matmul %198, %199, %cst_75 {dimension_numbers = #tpu.dot_dimension_numbers<[1], [1], [0], [0], [0, 0, 1, 0], [], []>} : vector<16x8xbf16>, vector<16x8xbf16>, vector<16x16xf32> -> vector<16x16xf32>
    %202 = arith.addf %201, %9 : vector<16x16xf32>
    %cst_76 = arith.constant dense<0xFF800000> : vector<16xf32>
    %203 = vector.multi_reduction <maximumf>, %202, %cst_76 [1] : vector<16x16xf32> to vector<16xf32>
    %204 = vector.shape_cast %203 : vector<16xf32> to vector<16x1xf32>
    %205 = vector.broadcast %204 : vector<16x1xf32> to vector<16x16xf32>
    %206 = arith.subf %202, %205 : vector<16x16xf32>
    %207 = math.exp %206 : vector<16x16xf32>
    %cst_77 = arith.constant dense<0.000000e+00> : vector<16xf32>
    %208 = vector.multi_reduction <add>, %207, %cst_77 [1] : vector<16x16xf32> to vector<16xf32>
    %209 = vector.shape_cast %208 : vector<16xf32> to vector<16x1xf32>
    %210 = tpu.reciprocal %209 {approx = true} : vector<16x1xf32> -> vector<16x1xf32>
    %211 = vector.broadcast %210 : vector<16x1xf32> to vector<16x16xf32>
    %212 = arith.mulf %207, %211 : vector<16x16xf32>
    %213 = arith.truncf %212 : vector<16x16xf32> to vector<16x16xbf16>
    %cst_78 = arith.constant dense<0.000000e+00> : vector<16x8xf32>
    %214 = tpu.matmul %213, %200, %cst_78 {dimension_numbers = #tpu.dot_dimension_numbers<[1], [0], [0], [1], [0, 0, 1, 1], [], []>} : vector<16x16xbf16>, vector<16x8xbf16>, vector<16x8xf32> -> vector<16x8xf32>
    %215 = vector.extract_strided_slice %178 {offsets = [0, 16], sizes = [16, 8], strides = [1, 1]} : vector<16x32xbf16> to vector<16x8xbf16>
    %216 = vector.extract_strided_slice %179 {offsets = [0, 16], sizes = [16, 8], strides = [1, 1]} : vector<16x32xbf16> to vector<16x8xbf16>
    %217 = vector.extract_strided_slice %180 {offsets = [0, 16], sizes = [16, 8], strides = [1, 1]} : vector<16x32xbf16> to vector<16x8xbf16>
    %cst_79 = arith.constant dense<0.000000e+00> : vector<16x16xf32>
    %218 = tpu.matmul %215, %216, %cst_79 {dimension_numbers = #tpu.dot_dimension_numbers<[1], [1], [0], [0], [0, 0, 1, 0], [], []>} : vector<16x8xbf16>, vector<16x8xbf16>, vector<16x16xf32> -> vector<16x16xf32>
    %219 = arith.addf %218, %9 : vector<16x16xf32>
    %cst_80 = arith.constant dense<0xFF800000> : vector<16xf32>
    %220 = vector.multi_reduction <maximumf>, %219, %cst_80 [1] : vector<16x16xf32> to vector<16xf32>
    %221 = vector.shape_cast %220 : vector<16xf32> to vector<16x1xf32>
    %222 = vector.broadcast %221 : vector<16x1xf32> to vector<16x16xf32>
    %223 = arith.subf %219, %222 : vector<16x16xf32>
    %224 = math.exp %223 : vector<16x16xf32>
    %cst_81 = arith.constant dense<0.000000e+00> : vector<16xf32>
    %225 = vector.multi_reduction <add>, %224, %cst_81 [1] : vector<16x16xf32> to vector<16xf32>
    %226 = vector.shape_cast %225 : vector<16xf32> to vector<16x1xf32>
    %227 = tpu.reciprocal %226 {approx = true} : vector<16x1xf32> -> vector<16x1xf32>
    %228 = vector.broadcast %227 : vector<16x1xf32> to vector<16x16xf32>
    %229 = arith.mulf %224, %228 : vector<16x16xf32>
    %230 = arith.truncf %229 : vector<16x16xf32> to vector<16x16xbf16>
    %cst_82 = arith.constant dense<0.000000e+00> : vector<16x8xf32>
    %231 = tpu.matmul %230, %217, %cst_82 {dimension_numbers = #tpu.dot_dimension_numbers<[1], [0], [0], [1], [0, 0, 1, 1], [], []>} : vector<16x16xbf16>, vector<16x8xbf16>, vector<16x8xf32> -> vector<16x8xf32>
    %232 = vector.extract_strided_slice %178 {offsets = [0, 24], sizes = [16, 8], strides = [1, 1]} : vector<16x32xbf16> to vector<16x8xbf16>
    %233 = vector.extract_strided_slice %179 {offsets = [0, 24], sizes = [16, 8], strides = [1, 1]} : vector<16x32xbf16> to vector<16x8xbf16>
    %234 = vector.extract_strided_slice %180 {offsets = [0, 24], sizes = [16, 8], strides = [1, 1]} : vector<16x32xbf16> to vector<16x8xbf16>
    %cst_83 = arith.constant dense<0.000000e+00> : vector<16x16xf32>
    %235 = tpu.matmul %232, %233, %cst_83 {dimension_numbers = #tpu.dot_dimension_numbers<[1], [1], [0], [0], [0, 0, 1, 0], [], []>} : vector<16x8xbf16>, vector<16x8xbf16>, vector<16x16xf32> -> vector<16x16xf32>
    %236 = arith.addf %235, %9 : vector<16x16xf32>
    %cst_84 = arith.constant dense<0xFF800000> : vector<16xf32>
    %237 = vector.multi_reduction <maximumf>, %236, %cst_84 [1] : vector<16x16xf32> to vector<16xf32>
    %238 = vector.shape_cast %237 : vector<16xf32> to vector<16x1xf32>
    %239 = vector.broadcast %238 : vector<16x1xf32> to vector<16x16xf32>
    %240 = arith.subf %236, %239 : vector<16x16xf32>
    %241 = math.exp %240 : vector<16x16xf32>
    %cst_85 = arith.constant dense<0.000000e+00> : vector<16xf32>
    %242 = vector.multi_reduction <add>, %241, %cst_85 [1] : vector<16x16xf32> to vector<16xf32>
    %243 = vector.shape_cast %242 : vector<16xf32> to vector<16x1xf32>
    %244 = tpu.reciprocal %243 {approx = true} : vector<16x1xf32> -> vector<16x1xf32>
    %245 = vector.broadcast %244 : vector<16x1xf32> to vector<16x16xf32>
    %246 = arith.mulf %241, %245 : vector<16x16xf32>
    %247 = arith.truncf %246 : vector<16x16xf32> to vector<16x16xbf16>
    %cst_86 = arith.constant dense<0.000000e+00> : vector<16x8xf32>
    %248 = tpu.matmul %247, %234, %cst_86 {dimension_numbers = #tpu.dot_dimension_numbers<[1], [0], [0], [1], [0, 0, 1, 1], [], []>} : vector<16x16xbf16>, vector<16x8xbf16>, vector<16x8xf32> -> vector<16x8xf32>
    %249 = tpu.concatenate %197, %214, %231, %248 in 1 : vector<16x8xf32>, vector<16x8xf32>, vector<16x8xf32>, vector<16x8xf32> -> vector<16x32xf32>
    %c0_87 = arith.constant 0 : index
    %c0_88 = arith.constant 0 : index
    %250 = vector.load %arg17[%c0_87, %c0_88] : memref<32x32xbf16, #tpu.memory_space<vmem>>, vector<32x32xbf16>
    %251 = arith.truncf %249 : vector<16x32xf32> to vector<16x32xbf16>
    %cst_89 = arith.constant dense<0.000000e+00> : vector<16x32xf32>
    %252 = tpu.matmul %251, %250, %cst_89 {dimension_numbers = #tpu.dot_dimension_numbers<[1], [0], [0], [1], [0, 0, 1, 1], [], []>} : vector<16x32xbf16>, vector<32x32xbf16>, vector<16x32xf32> -> vector<16x32xf32>
    %c0_90 = arith.constant 0 : index
    %c0_91 = arith.constant 0 : index
    %253 = vector.load %arg18[%c0_90, %c0_91] : memref<1x32xf32, #tpu.memory_space<vmem>>, vector<1x32xf32>
    %254 = vector.broadcast %253 : vector<1x32xf32> to vector<16x32xf32>
    %255 = arith.addf %252, %254 : vector<16x32xf32>
    %256 = arith.addf %255, %168 : vector<16x32xf32>
    %c0_92 = arith.constant 0 : index
    %c0_93 = arith.constant 0 : index
    %257 = vector.load %arg19[%c0_92, %c0_93] : memref<1x32xf32, #tpu.memory_space<vmem>>, vector<1x32xf32>
    %c0_94 = arith.constant 0 : index
    %c0_95 = arith.constant 0 : index
    %258 = vector.load %arg20[%c0_94, %c0_95] : memref<1x32xf32, #tpu.memory_space<vmem>>, vector<1x32xf32>
    %cst_96 = arith.constant dense<0.000000e+00> : vector<16xf32>
    %259 = vector.multi_reduction <add>, %256, %cst_96 [1] : vector<16x32xf32> to vector<16xf32>
    %260 = vector.shape_cast %259 : vector<16xf32> to vector<16x1xf32>
    %cst_97 = arith.constant 3.200000e+01 : f32
    %261 = vector.broadcast %cst_97 : f32 to vector<16x1xf32>
    %262 = arith.divf %260, %261 : vector<16x1xf32>
    %263 = vector.broadcast %262 : vector<16x1xf32> to vector<16x32xf32>
    %264 = arith.subf %256, %263 : vector<16x32xf32>
    %265 = arith.mulf %264, %264 : vector<16x32xf32>
    %cst_98 = arith.constant dense<0.000000e+00> : vector<16xf32>
    %266 = vector.multi_reduction <add>, %265, %cst_98 [1] : vector<16x32xf32> to vector<16xf32>
    %267 = vector.shape_cast %266 : vector<16xf32> to vector<16x1xf32>
    %cst_99 = arith.constant 3.200000e+01 : f32
    %268 = vector.broadcast %cst_99 : f32 to vector<16x1xf32>
    %269 = arith.divf %267, %268 : vector<16x1xf32>
    %cst_100 = arith.constant 9.99999974E-6 : f32
    %270 = vector.broadcast %cst_100 : f32 to vector<16x1xf32>
    %271 = arith.addf %269, %270 : vector<16x1xf32>
    %272 = math.rsqrt %271 : vector<16x1xf32>
    %273 = vector.broadcast %272 : vector<16x1xf32> to vector<16x32xf32>
    %274 = arith.mulf %264, %273 : vector<16x32xf32>
    %275 = vector.broadcast %257 : vector<1x32xf32> to vector<16x32xf32>
    %276 = arith.mulf %274, %275 : vector<16x32xf32>
    %277 = vector.broadcast %258 : vector<1x32xf32> to vector<16x32xf32>
    %278 = arith.addf %276, %277 : vector<16x32xf32>
    %c0_101 = arith.constant 0 : index
    %c0_102 = arith.constant 0 : index
    %279 = vector.load %arg21[%c0_101, %c0_102] : memref<32x64xbf16, #tpu.memory_space<vmem>>, vector<32x64xbf16>
    %280 = arith.truncf %278 : vector<16x32xf32> to vector<16x32xbf16>
    %cst_103 = arith.constant dense<0.000000e+00> : vector<16x64xf32>
    %281 = tpu.matmul %280, %279, %cst_103 {dimension_numbers = #tpu.dot_dimension_numbers<[1], [0], [0], [1], [0, 0, 1, 1], [], []>} : vector<16x32xbf16>, vector<32x64xbf16>, vector<16x64xf32> -> vector<16x64xf32>
    %c0_104 = arith.constant 0 : index
    %c0_105 = arith.constant 0 : index
    %282 = vector.load %arg22[%c0_104, %c0_105] : memref<1x64xf32, #tpu.memory_space<vmem>>, vector<1x64xf32>
    %283 = vector.broadcast %282 : vector<1x64xf32> to vector<16x64xf32>
    %284 = arith.addf %281, %283 : vector<16x64xf32>
    %cst_106 = arith.constant 0.000000e+00 : f32
    %285 = vector.broadcast %cst_106 : f32 to vector<16x64xf32>
    %286 = arith.maximumf %284, %285 : vector<16x64xf32>
    %c0_107 = arith.constant 0 : index
    %c0_108 = arith.constant 0 : index
    %287 = vector.load %arg23[%c0_107, %c0_108] : memref<64x32xbf16, #tpu.memory_space<vmem>>, vector<64x32xbf16>
    %288 = arith.truncf %286 : vector<16x64xf32> to vector<16x64xbf16>
    %cst_109 = arith.constant dense<0.000000e+00> : vector<16x32xf32>
    %289 = tpu.matmul %288, %287, %cst_109 {dimension_numbers = #tpu.dot_dimension_numbers<[1], [0], [0], [1], [0, 0, 1, 1], [], []>} : vector<16x64xbf16>, vector<64x32xbf16>, vector<16x32xf32> -> vector<16x32xf32>
    %c0_110 = arith.constant 0 : index
    %c0_111 = arith.constant 0 : index
    %290 = vector.load %arg24[%c0_110, %c0_111] : memref<1x32xf32, #tpu.memory_space<vmem>>, vector<1x32xf32>
    %291 = vector.broadcast %290 : vector<1x32xf32> to vector<16x32xf32>
    %292 = arith.addf %289, %291 : vector<16x32xf32>
    %293 = arith.addf %292, %278 : vector<16x32xf32>
    %c0_112 = arith.constant 0 : index
    %c0_113 = arith.constant 0 : index
    %294 = vector.load %arg25[%c0_112, %c0_113] : memref<1x32xf32, #tpu.memory_space<vmem>>, vector<1x32xf32>
    %c0_114 = arith.constant 0 : index
    %c0_115 = arith.constant 0 : index
    %295 = vector.load %arg26[%c0_114, %c0_115] : memref<1x32xf32, #tpu.memory_space<vmem>>, vector<1x32xf32>
    %cst_116 = arith.constant dense<0.000000e+00> : vector<16xf32>
    %296 = vector.multi_reduction <add>, %293, %cst_116 [1] : vector<16x32xf32> to vector<16xf32>
    %297 = vector.shape_cast %296 : vector<16xf32> to vector<16x1xf32>
    %cst_117 = arith.constant 3.200000e+01 : f32
    %298 = vector.broadcast %cst_117 : f32 to vector<16x1xf32>
    %299 = arith.divf %297, %298 : vector<16x1xf32>
    %300 = vector.broadcast %299 : vector<16x1xf32> to vector<16x32xf32>
    %301 = arith.subf %293, %300 : vector<16x32xf32>
    %302 = arith.mulf %301, %301 : vector<16x32xf32>
    %cst_118 = arith.constant dense<0.000000e+00> : vector<16xf32>
    %303 = vector.multi_reduction <add>, %302, %cst_118 [1] : vector<16x32xf32> to vector<16xf32>
    %304 = vector.shape_cast %303 : vector<16xf32> to vector<16x1xf32>
    %cst_119 = arith.constant 3.200000e+01 : f32
    %305 = vector.broadcast %cst_119 : f32 to vector<16x1xf32>
    %306 = arith.divf %304, %305 : vector<16x1xf32>
    %cst_120 = arith.constant 9.99999974E-6 : f32
    %307 = vector.broadcast %cst_120 : f32 to vector<16x1xf32>
    %308 = arith.addf %306, %307 : vector<16x1xf32>
    %309 = math.rsqrt %308 : vector<16x1xf32>
    %310 = vector.broadcast %309 : vector<16x1xf32> to vector<16x32xf32>
    %311 = arith.mulf %301, %310 : vector<16x32xf32>
    %312 = vector.broadcast %294 : vector<1x32xf32> to vector<16x32xf32>
    %313 = arith.mulf %311, %312 : vector<16x32xf32>
    %314 = vector.broadcast %295 : vector<1x32xf32> to vector<16x32xf32>
    %315 = arith.addf %313, %314 : vector<16x32xf32>
    %c0_121 = arith.constant 0 : index
    %c0_122 = arith.constant 0 : index
    %316 = vector.load %arg27[%c0_121, %c0_122] : memref<1x32xf32, #tpu.memory_space<vmem>>, vector<1x32xf32>
    %c0_123 = arith.constant 0 : index
    %c0_124 = arith.constant 0 : index
    %317 = vector.load %arg28[%c0_123, %c0_124] : memref<1x32xf32, #tpu.memory_space<vmem>>, vector<1x32xf32>
    %cst_125 = arith.constant dense<0.000000e+00> : vector<16xf32>
    %318 = vector.multi_reduction <add>, %315, %cst_125 [1] : vector<16x32xf32> to vector<16xf32>
    %319 = vector.shape_cast %318 : vector<16xf32> to vector<16x1xf32>
    %cst_126 = arith.constant 3.200000e+01 : f32
    %320 = vector.broadcast %cst_126 : f32 to vector<16x1xf32>
    %321 = arith.divf %319, %320 : vector<16x1xf32>
    %322 = vector.broadcast %321 : vector<16x1xf32> to vector<16x32xf32>
    %323 = arith.subf %315, %322 : vector<16x32xf32>
    %324 = arith.mulf %323, %323 : vector<16x32xf32>
    %cst_127 = arith.constant dense<0.000000e+00> : vector<16xf32>
    %325 = vector.multi_reduction <add>, %324, %cst_127 [1] : vector<16x32xf32> to vector<16xf32>
    %326 = vector.shape_cast %325 : vector<16xf32> to vector<16x1xf32>
    %cst_128 = arith.constant 3.200000e+01 : f32
    %327 = vector.broadcast %cst_128 : f32 to vector<16x1xf32>
    %328 = arith.divf %326, %327 : vector<16x1xf32>
    %cst_129 = arith.constant 9.99999974E-6 : f32
    %329 = vector.broadcast %cst_129 : f32 to vector<16x1xf32>
    %330 = arith.addf %328, %329 : vector<16x1xf32>
    %331 = math.rsqrt %330 : vector<16x1xf32>
    %332 = vector.broadcast %331 : vector<16x1xf32> to vector<16x32xf32>
    %333 = arith.mulf %323, %332 : vector<16x32xf32>
    %334 = vector.broadcast %316 : vector<1x32xf32> to vector<16x32xf32>
    %335 = arith.mulf %333, %334 : vector<16x32xf32>
    %336 = vector.broadcast %317 : vector<1x32xf32> to vector<16x32xf32>
    %337 = arith.addf %335, %336 : vector<16x32xf32>
    %c0_130 = arith.constant 0 : index
    %c0_131 = arith.constant 0 : index
    %338 = vector.load %arg29[%c0_130, %c0_131] : memref<32x96xbf16, #tpu.memory_space<vmem>>, vector<32x96xbf16>
    %339 = arith.truncf %3 : vector<8x32xf32> to vector<8x32xbf16>
    %cst_132 = arith.constant dense<0.000000e+00> : vector<8x96xf32>
    %340 = tpu.matmul %339, %338, %cst_132 {dimension_numbers = #tpu.dot_dimension_numbers<[1], [0], [0], [1], [0, 0, 1, 1], [], []>} : vector<8x32xbf16>, vector<32x96xbf16>, vector<8x96xf32> -> vector<8x96xf32>
    %c0_133 = arith.constant 0 : index
    %c0_134 = arith.constant 0 : index
    %341 = vector.load %arg30[%c0_133, %c0_134] : memref<1x96xf32, #tpu.memory_space<vmem>>, vector<1x96xf32>
    %342 = vector.broadcast %341 : vector<1x96xf32> to vector<8x96xf32>
    %343 = arith.addf %340, %342 : vector<8x96xf32>
    %344 = vector.extract_strided_slice %343 {offsets = [0, 0], sizes = [8, 32], strides = [1, 1]} : vector<8x96xf32> to vector<8x32xf32>
    %345 = vector.extract_strided_slice %343 {offsets = [0, 32], sizes = [8, 32], strides = [1, 1]} : vector<8x96xf32> to vector<8x32xf32>
    %346 = vector.extract_strided_slice %343 {offsets = [0, 64], sizes = [8, 32], strides = [1, 1]} : vector<8x96xf32> to vector<8x32xf32>
    %347 = arith.truncf %344 : vector<8x32xf32> to vector<8x32xbf16>
    %348 = arith.truncf %345 : vector<8x32xf32> to vector<8x32xbf16>
    %349 = arith.truncf %346 : vector<8x32xf32> to vector<8x32xbf16>
    %350 = vector.extract_strided_slice %347 {offsets = [0, 0], sizes = [8, 8], strides = [1, 1]} : vector<8x32xbf16> to vector<8x8xbf16>
    %351 = vector.extract_strided_slice %348 {offsets = [0, 0], sizes = [8, 8], strides = [1, 1]} : vector<8x32xbf16> to vector<8x8xbf16>
    %352 = vector.extract_strided_slice %349 {offsets = [0, 0], sizes = [8, 8], strides = [1, 1]} : vector<8x32xbf16> to vector<8x8xbf16>
    %cst_135 = arith.constant dense<0.000000e+00> : vector<8x8xf32>
    %353 = tpu.matmul %350, %351, %cst_135 {dimension_numbers = #tpu.dot_dimension_numbers<[1], [1], [0], [0], [0, 0, 1, 0], [], []>} : vector<8x8xbf16>, vector<8x8xbf16>, vector<8x8xf32> -> vector<8x8xf32>
    %354 = arith.addf %353, %15 : vector<8x8xf32>
    %cst_136 = arith.constant dense<0xFF800000> : vector<8xf32>
    %355 = vector.multi_reduction <maximumf>, %354, %cst_136 [1] : vector<8x8xf32> to vector<8xf32>
    %356 = vector.shape_cast %355 : vector<8xf32> to vector<8x1xf32>
    %357 = vector.broadcast %356 : vector<8x1xf32> to vector<8x8xf32>
    %358 = arith.subf %354, %357 : vector<8x8xf32>
    %359 = math.exp %358 : vector<8x8xf32>
    %cst_137 = arith.constant dense<0.000000e+00> : vector<8xf32>
    %360 = vector.multi_reduction <add>, %359, %cst_137 [1] : vector<8x8xf32> to vector<8xf32>
    %361 = vector.shape_cast %360 : vector<8xf32> to vector<8x1xf32>
    %362 = tpu.reciprocal %361 {approx = true} : vector<8x1xf32> -> vector<8x1xf32>
    %363 = vector.broadcast %362 : vector<8x1xf32> to vector<8x8xf32>
    %364 = arith.mulf %359, %363 : vector<8x8xf32>
    %365 = arith.truncf %364 : vector<8x8xf32> to vector<8x8xbf16>
    %cst_138 = arith.constant dense<0.000000e+00> : vector<8x8xf32>
    %366 = tpu.matmul %365, %352, %cst_138 {dimension_numbers = #tpu.dot_dimension_numbers<[1], [0], [0], [1], [0, 0, 1, 1], [], []>} : vector<8x8xbf16>, vector<8x8xbf16>, vector<8x8xf32> -> vector<8x8xf32>
    %367 = vector.extract_strided_slice %347 {offsets = [0, 8], sizes = [8, 8], strides = [1, 1]} : vector<8x32xbf16> to vector<8x8xbf16>
    %368 = vector.extract_strided_slice %348 {offsets = [0, 8], sizes = [8, 8], strides = [1, 1]} : vector<8x32xbf16> to vector<8x8xbf16>
    %369 = vector.extract_strided_slice %349 {offsets = [0, 8], sizes = [8, 8], strides = [1, 1]} : vector<8x32xbf16> to vector<8x8xbf16>
    %cst_139 = arith.constant dense<0.000000e+00> : vector<8x8xf32>
    %370 = tpu.matmul %367, %368, %cst_139 {dimension_numbers = #tpu.dot_dimension_numbers<[1], [1], [0], [0], [0, 0, 1, 0], [], []>} : vector<8x8xbf16>, vector<8x8xbf16>, vector<8x8xf32> -> vector<8x8xf32>
    %371 = arith.addf %370, %15 : vector<8x8xf32>
    %cst_140 = arith.constant dense<0xFF800000> : vector<8xf32>
    %372 = vector.multi_reduction <maximumf>, %371, %cst_140 [1] : vector<8x8xf32> to vector<8xf32>
    %373 = vector.shape_cast %372 : vector<8xf32> to vector<8x1xf32>
    %374 = vector.broadcast %373 : vector<8x1xf32> to vector<8x8xf32>
    %375 = arith.subf %371, %374 : vector<8x8xf32>
    %376 = math.exp %375 : vector<8x8xf32>
    %cst_141 = arith.constant dense<0.000000e+00> : vector<8xf32>
    %377 = vector.multi_reduction <add>, %376, %cst_141 [1] : vector<8x8xf32> to vector<8xf32>
    %378 = vector.shape_cast %377 : vector<8xf32> to vector<8x1xf32>
    %379 = tpu.reciprocal %378 {approx = true} : vector<8x1xf32> -> vector<8x1xf32>
    %380 = vector.broadcast %379 : vector<8x1xf32> to vector<8x8xf32>
    %381 = arith.mulf %376, %380 : vector<8x8xf32>
    %382 = arith.truncf %381 : vector<8x8xf32> to vector<8x8xbf16>
    %cst_142 = arith.constant dense<0.000000e+00> : vector<8x8xf32>
    %383 = tpu.matmul %382, %369, %cst_142 {dimension_numbers = #tpu.dot_dimension_numbers<[1], [0], [0], [1], [0, 0, 1, 1], [], []>} : vector<8x8xbf16>, vector<8x8xbf16>, vector<8x8xf32> -> vector<8x8xf32>
    %384 = vector.extract_strided_slice %347 {offsets = [0, 16], sizes = [8, 8], strides = [1, 1]} : vector<8x32xbf16> to vector<8x8xbf16>
    %385 = vector.extract_strided_slice %348 {offsets = [0, 16], sizes = [8, 8], strides = [1, 1]} : vector<8x32xbf16> to vector<8x8xbf16>
    %386 = vector.extract_strided_slice %349 {offsets = [0, 16], sizes = [8, 8], strides = [1, 1]} : vector<8x32xbf16> to vector<8x8xbf16>
    %cst_143 = arith.constant dense<0.000000e+00> : vector<8x8xf32>
    %387 = tpu.matmul %384, %385, %cst_143 {dimension_numbers = #tpu.dot_dimension_numbers<[1], [1], [0], [0], [0, 0, 1, 0], [], []>} : vector<8x8xbf16>, vector<8x8xbf16>, vector<8x8xf32> -> vector<8x8xf32>
    %388 = arith.addf %387, %15 : vector<8x8xf32>
    %cst_144 = arith.constant dense<0xFF800000> : vector<8xf32>
    %389 = vector.multi_reduction <maximumf>, %388, %cst_144 [1] : vector<8x8xf32> to vector<8xf32>
    %390 = vector.shape_cast %389 : vector<8xf32> to vector<8x1xf32>
    %391 = vector.broadcast %390 : vector<8x1xf32> to vector<8x8xf32>
    %392 = arith.subf %388, %391 : vector<8x8xf32>
    %393 = math.exp %392 : vector<8x8xf32>
    %cst_145 = arith.constant dense<0.000000e+00> : vector<8xf32>
    %394 = vector.multi_reduction <add>, %393, %cst_145 [1] : vector<8x8xf32> to vector<8xf32>
    %395 = vector.shape_cast %394 : vector<8xf32> to vector<8x1xf32>
    %396 = tpu.reciprocal %395 {approx = true} : vector<8x1xf32> -> vector<8x1xf32>
    %397 = vector.broadcast %396 : vector<8x1xf32> to vector<8x8xf32>
    %398 = arith.mulf %393, %397 : vector<8x8xf32>
    %399 = arith.truncf %398 : vector<8x8xf32> to vector<8x8xbf16>
    %cst_146 = arith.constant dense<0.000000e+00> : vector<8x8xf32>
    %400 = tpu.matmul %399, %386, %cst_146 {dimension_numbers = #tpu.dot_dimension_numbers<[1], [0], [0], [1], [0, 0, 1, 1], [], []>} : vector<8x8xbf16>, vector<8x8xbf16>, vector<8x8xf32> -> vector<8x8xf32>
    %401 = vector.extract_strided_slice %347 {offsets = [0, 24], sizes = [8, 8], strides = [1, 1]} : vector<8x32xbf16> to vector<8x8xbf16>
    %402 = vector.extract_strided_slice %348 {offsets = [0, 24], sizes = [8, 8], strides = [1, 1]} : vector<8x32xbf16> to vector<8x8xbf16>
    %403 = vector.extract_strided_slice %349 {offsets = [0, 24], sizes = [8, 8], strides = [1, 1]} : vector<8x32xbf16> to vector<8x8xbf16>
    %cst_147 = arith.constant dense<0.000000e+00> : vector<8x8xf32>
    %404 = tpu.matmul %401, %402, %cst_147 {dimension_numbers = #tpu.dot_dimension_numbers<[1], [1], [0], [0], [0, 0, 1, 0], [], []>} : vector<8x8xbf16>, vector<8x8xbf16>, vector<8x8xf32> -> vector<8x8xf32>
    %405 = arith.addf %404, %15 : vector<8x8xf32>
    %cst_148 = arith.constant dense<0xFF800000> : vector<8xf32>
    %406 = vector.multi_reduction <maximumf>, %405, %cst_148 [1] : vector<8x8xf32> to vector<8xf32>
    %407 = vector.shape_cast %406 : vector<8xf32> to vector<8x1xf32>
    %408 = vector.broadcast %407 : vector<8x1xf32> to vector<8x8xf32>
    %409 = arith.subf %405, %408 : vector<8x8xf32>
    %410 = math.exp %409 : vector<8x8xf32>
    %cst_149 = arith.constant dense<0.000000e+00> : vector<8xf32>
    %411 = vector.multi_reduction <add>, %410, %cst_149 [1] : vector<8x8xf32> to vector<8xf32>
    %412 = vector.shape_cast %411 : vector<8xf32> to vector<8x1xf32>
    %413 = tpu.reciprocal %412 {approx = true} : vector<8x1xf32> -> vector<8x1xf32>
    %414 = vector.broadcast %413 : vector<8x1xf32> to vector<8x8xf32>
    %415 = arith.mulf %410, %414 : vector<8x8xf32>
    %416 = arith.truncf %415 : vector<8x8xf32> to vector<8x8xbf16>
    %cst_150 = arith.constant dense<0.000000e+00> : vector<8x8xf32>
    %417 = tpu.matmul %416, %403, %cst_150 {dimension_numbers = #tpu.dot_dimension_numbers<[1], [0], [0], [1], [0, 0, 1, 1], [], []>} : vector<8x8xbf16>, vector<8x8xbf16>, vector<8x8xf32> -> vector<8x8xf32>
    %418 = tpu.concatenate %366, %383, %400, %417 in 1 : vector<8x8xf32>, vector<8x8xf32>, vector<8x8xf32>, vector<8x8xf32> -> vector<8x32xf32>
    %c0_151 = arith.constant 0 : index
    %c0_152 = arith.constant 0 : index
    %419 = vector.load %arg31[%c0_151, %c0_152] : memref<32x32xbf16, #tpu.memory_space<vmem>>, vector<32x32xbf16>
    %420 = arith.truncf %418 : vector<8x32xf32> to vector<8x32xbf16>
    %cst_153 = arith.constant dense<0.000000e+00> : vector<8x32xf32>
    %421 = tpu.matmul %420, %419, %cst_153 {dimension_numbers = #tpu.dot_dimension_numbers<[1], [0], [0], [1], [0, 0, 1, 1], [], []>} : vector<8x32xbf16>, vector<32x32xbf16>, vector<8x32xf32> -> vector<8x32xf32>
    %c0_154 = arith.constant 0 : index
    %c0_155 = arith.constant 0 : index
    %422 = vector.load %arg32[%c0_154, %c0_155] : memref<1x32xf32, #tpu.memory_space<vmem>>, vector<1x32xf32>
    %423 = vector.broadcast %422 : vector<1x32xf32> to vector<8x32xf32>
    %424 = arith.addf %421, %423 : vector<8x32xf32>
    %425 = arith.addf %424, %3 : vector<8x32xf32>
    %c0_156 = arith.constant 0 : index
    %c0_157 = arith.constant 0 : index
    %426 = vector.load %arg33[%c0_156, %c0_157] : memref<1x32xf32, #tpu.memory_space<vmem>>, vector<1x32xf32>
    %c0_158 = arith.constant 0 : index
    %c0_159 = arith.constant 0 : index
    %427 = vector.load %arg34[%c0_158, %c0_159] : memref<1x32xf32, #tpu.memory_space<vmem>>, vector<1x32xf32>
    %cst_160 = arith.constant dense<0.000000e+00> : vector<8xf32>
    %428 = vector.multi_reduction <add>, %425, %cst_160 [1] : vector<8x32xf32> to vector<8xf32>
    %429 = vector.shape_cast %428 : vector<8xf32> to vector<8x1xf32>
    %cst_161 = arith.constant 3.200000e+01 : f32
    %430 = vector.broadcast %cst_161 : f32 to vector<8x1xf32>
    %431 = arith.divf %429, %430 : vector<8x1xf32>
    %432 = vector.broadcast %431 : vector<8x1xf32> to vector<8x32xf32>
    %433 = arith.subf %425, %432 : vector<8x32xf32>
    %434 = arith.mulf %433, %433 : vector<8x32xf32>
    %cst_162 = arith.constant dense<0.000000e+00> : vector<8xf32>
    %435 = vector.multi_reduction <add>, %434, %cst_162 [1] : vector<8x32xf32> to vector<8xf32>
    %436 = vector.shape_cast %435 : vector<8xf32> to vector<8x1xf32>
    %cst_163 = arith.constant 3.200000e+01 : f32
    %437 = vector.broadcast %cst_163 : f32 to vector<8x1xf32>
    %438 = arith.divf %436, %437 : vector<8x1xf32>
    %cst_164 = arith.constant 9.99999974E-6 : f32
    %439 = vector.broadcast %cst_164 : f32 to vector<8x1xf32>
    %440 = arith.addf %438, %439 : vector<8x1xf32>
    %441 = math.rsqrt %440 : vector<8x1xf32>
    %442 = vector.broadcast %441 : vector<8x1xf32> to vector<8x32xf32>
    %443 = arith.mulf %433, %442 : vector<8x32xf32>
    %444 = vector.broadcast %426 : vector<1x32xf32> to vector<8x32xf32>
    %445 = arith.mulf %443, %444 : vector<8x32xf32>
    %446 = vector.broadcast %427 : vector<1x32xf32> to vector<8x32xf32>
    %447 = arith.addf %445, %446 : vector<8x32xf32>
    %c0_165 = arith.constant 0 : index
    %c0_166 = arith.constant 0 : index
    %448 = vector.load %arg35[%c0_165, %c0_166] : memref<32x32xbf16, #tpu.memory_space<vmem>>, vector<32x32xbf16>
    %449 = arith.truncf %447 : vector<8x32xf32> to vector<8x32xbf16>
    %cst_167 = arith.constant dense<0.000000e+00> : vector<8x32xf32>
    %450 = tpu.matmul %449, %448, %cst_167 {dimension_numbers = #tpu.dot_dimension_numbers<[1], [0], [0], [1], [0, 0, 1, 1], [], []>} : vector<8x32xbf16>, vector<32x32xbf16>, vector<8x32xf32> -> vector<8x32xf32>
    %c0_168 = arith.constant 0 : index
    %c0_169 = arith.constant 0 : index
    %451 = vector.load %arg36[%c0_168, %c0_169] : memref<1x32xf32, #tpu.memory_space<vmem>>, vector<1x32xf32>
    %452 = vector.broadcast %451 : vector<1x32xf32> to vector<8x32xf32>
    %453 = arith.addf %450, %452 : vector<8x32xf32>
    %c0_170 = arith.constant 0 : index
    %c0_171 = arith.constant 0 : index
    %454 = vector.load %arg37[%c0_170, %c0_171] : memref<32x64xbf16, #tpu.memory_space<vmem>>, vector<32x64xbf16>
    %455 = arith.truncf %337 : vector<16x32xf32> to vector<16x32xbf16>
    %cst_172 = arith.constant dense<0.000000e+00> : vector<16x64xf32>
    %456 = tpu.matmul %455, %454, %cst_172 {dimension_numbers = #tpu.dot_dimension_numbers<[1], [0], [0], [1], [0, 0, 1, 1], [], []>} : vector<16x32xbf16>, vector<32x64xbf16>, vector<16x64xf32> -> vector<16x64xf32>
    %c0_173 = arith.constant 0 : index
    %c0_174 = arith.constant 0 : index
    %457 = vector.load %arg38[%c0_173, %c0_174] : memref<1x64xf32, #tpu.memory_space<vmem>>, vector<1x64xf32>
    %458 = vector.broadcast %457 : vector<1x64xf32> to vector<16x64xf32>
    %459 = arith.addf %456, %458 : vector<16x64xf32>
    %460 = vector.extract_strided_slice %459 {offsets = [0, 0], sizes = [16, 32], strides = [1, 1]} : vector<16x64xf32> to vector<16x32xf32>
    %461 = vector.extract_strided_slice %459 {offsets = [0, 32], sizes = [16, 32], strides = [1, 1]} : vector<16x64xf32> to vector<16x32xf32>
    %462 = arith.truncf %453 : vector<8x32xf32> to vector<8x32xbf16>
    %463 = arith.truncf %460 : vector<16x32xf32> to vector<16x32xbf16>
    %464 = arith.truncf %461 : vector<16x32xf32> to vector<16x32xbf16>
    %465 = vector.extract_strided_slice %462 {offsets = [0, 0], sizes = [8, 8], strides = [1, 1]} : vector<8x32xbf16> to vector<8x8xbf16>
    %466 = vector.extract_strided_slice %463 {offsets = [0, 0], sizes = [16, 8], strides = [1, 1]} : vector<16x32xbf16> to vector<16x8xbf16>
    %467 = vector.extract_strided_slice %464 {offsets = [0, 0], sizes = [16, 8], strides = [1, 1]} : vector<16x32xbf16> to vector<16x8xbf16>
    %cst_175 = arith.constant dense<0.000000e+00> : vector<8x16xf32>
    %468 = tpu.matmul %465, %466, %cst_175 {dimension_numbers = #tpu.dot_dimension_numbers<[1], [1], [0], [0], [0, 0, 1, 0], [], []>} : vector<8x8xbf16>, vector<16x8xbf16>, vector<8x16xf32> -> vector<8x16xf32>
    %469 = arith.addf %468, %21 : vector<8x16xf32>
    %cst_176 = arith.constant dense<0xFF800000> : vector<8xf32>
    %470 = vector.multi_reduction <maximumf>, %469, %cst_176 [1] : vector<8x16xf32> to vector<8xf32>
    %471 = vector.shape_cast %470 : vector<8xf32> to vector<8x1xf32>
    %472 = vector.broadcast %471 : vector<8x1xf32> to vector<8x16xf32>
    %473 = arith.subf %469, %472 : vector<8x16xf32>
    %474 = math.exp %473 : vector<8x16xf32>
    %cst_177 = arith.constant dense<0.000000e+00> : vector<8xf32>
    %475 = vector.multi_reduction <add>, %474, %cst_177 [1] : vector<8x16xf32> to vector<8xf32>
    %476 = vector.shape_cast %475 : vector<8xf32> to vector<8x1xf32>
    %477 = tpu.reciprocal %476 {approx = true} : vector<8x1xf32> -> vector<8x1xf32>
    %478 = vector.broadcast %477 : vector<8x1xf32> to vector<8x16xf32>
    %479 = arith.mulf %474, %478 : vector<8x16xf32>
    %480 = arith.truncf %479 : vector<8x16xf32> to vector<8x16xbf16>
    %cst_178 = arith.constant dense<0.000000e+00> : vector<8x8xf32>
    %481 = tpu.matmul %480, %467, %cst_178 {dimension_numbers = #tpu.dot_dimension_numbers<[1], [0], [0], [1], [0, 0, 1, 1], [], []>} : vector<8x16xbf16>, vector<16x8xbf16>, vector<8x8xf32> -> vector<8x8xf32>
    %482 = vector.extract_strided_slice %462 {offsets = [0, 8], sizes = [8, 8], strides = [1, 1]} : vector<8x32xbf16> to vector<8x8xbf16>
    %483 = vector.extract_strided_slice %463 {offsets = [0, 8], sizes = [16, 8], strides = [1, 1]} : vector<16x32xbf16> to vector<16x8xbf16>
    %484 = vector.extract_strided_slice %464 {offsets = [0, 8], sizes = [16, 8], strides = [1, 1]} : vector<16x32xbf16> to vector<16x8xbf16>
    %cst_179 = arith.constant dense<0.000000e+00> : vector<8x16xf32>
    %485 = tpu.matmul %482, %483, %cst_179 {dimension_numbers = #tpu.dot_dimension_numbers<[1], [1], [0], [0], [0, 0, 1, 0], [], []>} : vector<8x8xbf16>, vector<16x8xbf16>, vector<8x16xf32> -> vector<8x16xf32>
    %486 = arith.addf %485, %21 : vector<8x16xf32>
    %cst_180 = arith.constant dense<0xFF800000> : vector<8xf32>
    %487 = vector.multi_reduction <maximumf>, %486, %cst_180 [1] : vector<8x16xf32> to vector<8xf32>
    %488 = vector.shape_cast %487 : vector<8xf32> to vector<8x1xf32>
    %489 = vector.broadcast %488 : vector<8x1xf32> to vector<8x16xf32>
    %490 = arith.subf %486, %489 : vector<8x16xf32>
    %491 = math.exp %490 : vector<8x16xf32>
    %cst_181 = arith.constant dense<0.000000e+00> : vector<8xf32>
    %492 = vector.multi_reduction <add>, %491, %cst_181 [1] : vector<8x16xf32> to vector<8xf32>
    %493 = vector.shape_cast %492 : vector<8xf32> to vector<8x1xf32>
    %494 = tpu.reciprocal %493 {approx = true} : vector<8x1xf32> -> vector<8x1xf32>
    %495 = vector.broadcast %494 : vector<8x1xf32> to vector<8x16xf32>
    %496 = arith.mulf %491, %495 : vector<8x16xf32>
    %497 = arith.truncf %496 : vector<8x16xf32> to vector<8x16xbf16>
    %cst_182 = arith.constant dense<0.000000e+00> : vector<8x8xf32>
    %498 = tpu.matmul %497, %484, %cst_182 {dimension_numbers = #tpu.dot_dimension_numbers<[1], [0], [0], [1], [0, 0, 1, 1], [], []>} : vector<8x16xbf16>, vector<16x8xbf16>, vector<8x8xf32> -> vector<8x8xf32>
    %499 = vector.extract_strided_slice %462 {offsets = [0, 16], sizes = [8, 8], strides = [1, 1]} : vector<8x32xbf16> to vector<8x8xbf16>
    %500 = vector.extract_strided_slice %463 {offsets = [0, 16], sizes = [16, 8], strides = [1, 1]} : vector<16x32xbf16> to vector<16x8xbf16>
    %501 = vector.extract_strided_slice %464 {offsets = [0, 16], sizes = [16, 8], strides = [1, 1]} : vector<16x32xbf16> to vector<16x8xbf16>
    %cst_183 = arith.constant dense<0.000000e+00> : vector<8x16xf32>
    %502 = tpu.matmul %499, %500, %cst_183 {dimension_numbers = #tpu.dot_dimension_numbers<[1], [1], [0], [0], [0, 0, 1, 0], [], []>} : vector<8x8xbf16>, vector<16x8xbf16>, vector<8x16xf32> -> vector<8x16xf32>
    %503 = arith.addf %502, %21 : vector<8x16xf32>
    %cst_184 = arith.constant dense<0xFF800000> : vector<8xf32>
    %504 = vector.multi_reduction <maximumf>, %503, %cst_184 [1] : vector<8x16xf32> to vector<8xf32>
    %505 = vector.shape_cast %504 : vector<8xf32> to vector<8x1xf32>
    %506 = vector.broadcast %505 : vector<8x1xf32> to vector<8x16xf32>
    %507 = arith.subf %503, %506 : vector<8x16xf32>
    %508 = math.exp %507 : vector<8x16xf32>
    %cst_185 = arith.constant dense<0.000000e+00> : vector<8xf32>
    %509 = vector.multi_reduction <add>, %508, %cst_185 [1] : vector<8x16xf32> to vector<8xf32>
    %510 = vector.shape_cast %509 : vector<8xf32> to vector<8x1xf32>
    %511 = tpu.reciprocal %510 {approx = true} : vector<8x1xf32> -> vector<8x1xf32>
    %512 = vector.broadcast %511 : vector<8x1xf32> to vector<8x16xf32>
    %513 = arith.mulf %508, %512 : vector<8x16xf32>
    %514 = arith.truncf %513 : vector<8x16xf32> to vector<8x16xbf16>
    %cst_186 = arith.constant dense<0.000000e+00> : vector<8x8xf32>
    %515 = tpu.matmul %514, %501, %cst_186 {dimension_numbers = #tpu.dot_dimension_numbers<[1], [0], [0], [1], [0, 0, 1, 1], [], []>} : vector<8x16xbf16>, vector<16x8xbf16>, vector<8x8xf32> -> vector<8x8xf32>
    %516 = vector.extract_strided_slice %462 {offsets = [0, 24], sizes = [8, 8], strides = [1, 1]} : vector<8x32xbf16> to vector<8x8xbf16>
    %517 = vector.extract_strided_slice %463 {offsets = [0, 24], sizes = [16, 8], strides = [1, 1]} : vector<16x32xbf16> to vector<16x8xbf16>
    %518 = vector.extract_strided_slice %464 {offsets = [0, 24], sizes = [16, 8], strides = [1, 1]} : vector<16x32xbf16> to vector<16x8xbf16>
    %cst_187 = arith.constant dense<0.000000e+00> : vector<8x16xf32>
    %519 = tpu.matmul %516, %517, %cst_187 {dimension_numbers = #tpu.dot_dimension_numbers<[1], [1], [0], [0], [0, 0, 1, 0], [], []>} : vector<8x8xbf16>, vector<16x8xbf16>, vector<8x16xf32> -> vector<8x16xf32>
    %520 = arith.addf %519, %21 : vector<8x16xf32>
    %cst_188 = arith.constant dense<0xFF800000> : vector<8xf32>
    %521 = vector.multi_reduction <maximumf>, %520, %cst_188 [1] : vector<8x16xf32> to vector<8xf32>
    %522 = vector.shape_cast %521 : vector<8xf32> to vector<8x1xf32>
    %523 = vector.broadcast %522 : vector<8x1xf32> to vector<8x16xf32>
    %524 = arith.subf %520, %523 : vector<8x16xf32>
    %525 = math.exp %524 : vector<8x16xf32>
    %cst_189 = arith.constant dense<0.000000e+00> : vector<8xf32>
    %526 = vector.multi_reduction <add>, %525, %cst_189 [1] : vector<8x16xf32> to vector<8xf32>
    %527 = vector.shape_cast %526 : vector<8xf32> to vector<8x1xf32>
    %528 = tpu.reciprocal %527 {approx = true} : vector<8x1xf32> -> vector<8x1xf32>
    %529 = vector.broadcast %528 : vector<8x1xf32> to vector<8x16xf32>
    %530 = arith.mulf %525, %529 : vector<8x16xf32>
    %531 = arith.truncf %530 : vector<8x16xf32> to vector<8x16xbf16>
    %cst_190 = arith.constant dense<0.000000e+00> : vector<8x8xf32>
    %532 = tpu.matmul %531, %518, %cst_190 {dimension_numbers = #tpu.dot_dimension_numbers<[1], [0], [0], [1], [0, 0, 1, 1], [], []>} : vector<8x16xbf16>, vector<16x8xbf16>, vector<8x8xf32> -> vector<8x8xf32>
    %533 = tpu.concatenate %481, %498, %515, %532 in 1 : vector<8x8xf32>, vector<8x8xf32>, vector<8x8xf32>, vector<8x8xf32> -> vector<8x32xf32>
    %c0_191 = arith.constant 0 : index
    %c0_192 = arith.constant 0 : index
    %534 = vector.load %arg39[%c0_191, %c0_192] : memref<32x32xbf16, #tpu.memory_space<vmem>>, vector<32x32xbf16>
    %535 = arith.truncf %533 : vector<8x32xf32> to vector<8x32xbf16>
    %cst_193 = arith.constant dense<0.000000e+00> : vector<8x32xf32>
    %536 = tpu.matmul %535, %534, %cst_193 {dimension_numbers = #tpu.dot_dimension_numbers<[1], [0], [0], [1], [0, 0, 1, 1], [], []>} : vector<8x32xbf16>, vector<32x32xbf16>, vector<8x32xf32> -> vector<8x32xf32>
    %c0_194 = arith.constant 0 : index
    %c0_195 = arith.constant 0 : index
    %537 = vector.load %arg40[%c0_194, %c0_195] : memref<1x32xf32, #tpu.memory_space<vmem>>, vector<1x32xf32>
    %538 = vector.broadcast %537 : vector<1x32xf32> to vector<8x32xf32>
    %539 = arith.addf %536, %538 : vector<8x32xf32>
    %540 = arith.addf %539, %447 : vector<8x32xf32>
    %c0_196 = arith.constant 0 : index
    %c0_197 = arith.constant 0 : index
    %541 = vector.load %arg41[%c0_196, %c0_197] : memref<1x32xf32, #tpu.memory_space<vmem>>, vector<1x32xf32>
    %c0_198 = arith.constant 0 : index
    %c0_199 = arith.constant 0 : index
    %542 = vector.load %arg42[%c0_198, %c0_199] : memref<1x32xf32, #tpu.memory_space<vmem>>, vector<1x32xf32>
    %cst_200 = arith.constant dense<0.000000e+00> : vector<8xf32>
    %543 = vector.multi_reduction <add>, %540, %cst_200 [1] : vector<8x32xf32> to vector<8xf32>
    %544 = vector.shape_cast %543 : vector<8xf32> to vector<8x1xf32>
    %cst_201 = arith.constant 3.200000e+01 : f32
    %545 = vector.broadcast %cst_201 : f32 to vector<8x1xf32>
    %546 = arith.divf %544, %545 : vector<8x1xf32>
    %547 = vector.broadcast %546 : vector<8x1xf32> to vector<8x32xf32>
    %548 = arith.subf %540, %547 : vector<8x32xf32>
    %549 = arith.mulf %548, %548 : vector<8x32xf32>
    %cst_202 = arith.constant dense<0.000000e+00> : vector<8xf32>
    %550 = vector.multi_reduction <add>, %549, %cst_202 [1] : vector<8x32xf32> to vector<8xf32>
    %551 = vector.shape_cast %550 : vector<8xf32> to vector<8x1xf32>
    %cst_203 = arith.constant 3.200000e+01 : f32
    %552 = vector.broadcast %cst_203 : f32 to vector<8x1xf32>
    %553 = arith.divf %551, %552 : vector<8x1xf32>
    %cst_204 = arith.constant 9.99999974E-6 : f32
    %554 = vector.broadcast %cst_204 : f32 to vector<8x1xf32>
    %555 = arith.addf %553, %554 : vector<8x1xf32>
    %556 = math.rsqrt %555 : vector<8x1xf32>
    %557 = vector.broadcast %556 : vector<8x1xf32> to vector<8x32xf32>
    %558 = arith.mulf %548, %557 : vector<8x32xf32>
    %559 = vector.broadcast %541 : vector<1x32xf32> to vector<8x32xf32>
    %560 = arith.mulf %558, %559 : vector<8x32xf32>
    %561 = vector.broadcast %542 : vector<1x32xf32> to vector<8x32xf32>
    %562 = arith.addf %560, %561 : vector<8x32xf32>
    %c0_205 = arith.constant 0 : index
    %c0_206 = arith.constant 0 : index
    %563 = vector.load %arg43[%c0_205, %c0_206] : memref<32x64xbf16, #tpu.memory_space<vmem>>, vector<32x64xbf16>
    %564 = arith.truncf %562 : vector<8x32xf32> to vector<8x32xbf16>
    %cst_207 = arith.constant dense<0.000000e+00> : vector<8x64xf32>
    %565 = tpu.matmul %564, %563, %cst_207 {dimension_numbers = #tpu.dot_dimension_numbers<[1], [0], [0], [1], [0, 0, 1, 1], [], []>} : vector<8x32xbf16>, vector<32x64xbf16>, vector<8x64xf32> -> vector<8x64xf32>
    %c0_208 = arith.constant 0 : index
    %c0_209 = arith.constant 0 : index
    %566 = vector.load %arg44[%c0_208, %c0_209] : memref<1x64xf32, #tpu.memory_space<vmem>>, vector<1x64xf32>
    %567 = vector.broadcast %566 : vector<1x64xf32> to vector<8x64xf32>
    %568 = arith.addf %565, %567 : vector<8x64xf32>
    %cst_210 = arith.constant 0.000000e+00 : f32
    %569 = vector.broadcast %cst_210 : f32 to vector<8x64xf32>
    %570 = arith.maximumf %568, %569 : vector<8x64xf32>
    %c0_211 = arith.constant 0 : index
    %c0_212 = arith.constant 0 : index
    %571 = vector.load %arg45[%c0_211, %c0_212] : memref<64x32xbf16, #tpu.memory_space<vmem>>, vector<64x32xbf16>
    %572 = arith.truncf %570 : vector<8x64xf32> to vector<8x64xbf16>
    %cst_213 = arith.constant dense<0.000000e+00> : vector<8x32xf32>
    %573 = tpu.matmul %572, %571, %cst_213 {dimension_numbers = #tpu.dot_dimension_numbers<[1], [0], [0], [1], [0, 0, 1, 1], [], []>} : vector<8x64xbf16>, vector<64x32xbf16>, vector<8x32xf32> -> vector<8x32xf32>
    %c0_214 = arith.constant 0 : index
    %c0_215 = arith.constant 0 : index
    %574 = vector.load %arg46[%c0_214, %c0_215] : memref<1x32xf32, #tpu.memory_space<vmem>>, vector<1x32xf32>
    %575 = vector.broadcast %574 : vector<1x32xf32> to vector<8x32xf32>
    %576 = arith.addf %573, %575 : vector<8x32xf32>
    %577 = arith.addf %576, %562 : vector<8x32xf32>
    %c0_216 = arith.constant 0 : index
    %c0_217 = arith.constant 0 : index
    %578 = vector.load %arg47[%c0_216, %c0_217] : memref<1x32xf32, #tpu.memory_space<vmem>>, vector<1x32xf32>
    %c0_218 = arith.constant 0 : index
    %c0_219 = arith.constant 0 : index
    %579 = vector.load %arg48[%c0_218, %c0_219] : memref<1x32xf32, #tpu.memory_space<vmem>>, vector<1x32xf32>
    %cst_220 = arith.constant dense<0.000000e+00> : vector<8xf32>
    %580 = vector.multi_reduction <add>, %577, %cst_220 [1] : vector<8x32xf32> to vector<8xf32>
    %581 = vector.shape_cast %580 : vector<8xf32> to vector<8x1xf32>
    %cst_221 = arith.constant 3.200000e+01 : f32
    %582 = vector.broadcast %cst_221 : f32 to vector<8x1xf32>
    %583 = arith.divf %581, %582 : vector<8x1xf32>
    %584 = vector.broadcast %583 : vector<8x1xf32> to vector<8x32xf32>
    %585 = arith.subf %577, %584 : vector<8x32xf32>
    %586 = arith.mulf %585, %585 : vector<8x32xf32>
    %cst_222 = arith.constant dense<0.000000e+00> : vector<8xf32>
    %587 = vector.multi_reduction <add>, %586, %cst_222 [1] : vector<8x32xf32> to vector<8xf32>
    %588 = vector.shape_cast %587 : vector<8xf32> to vector<8x1xf32>
    %cst_223 = arith.constant 3.200000e+01 : f32
    %589 = vector.broadcast %cst_223 : f32 to vector<8x1xf32>
    %590 = arith.divf %588, %589 : vector<8x1xf32>
    %cst_224 = arith.constant 9.99999974E-6 : f32
    %591 = vector.broadcast %cst_224 : f32 to vector<8x1xf32>
    %592 = arith.addf %590, %591 : vector<8x1xf32>
    %593 = math.rsqrt %592 : vector<8x1xf32>
    %594 = vector.broadcast %593 : vector<8x1xf32> to vector<8x32xf32>
    %595 = arith.mulf %585, %594 : vector<8x32xf32>
    %596 = vector.broadcast %578 : vector<1x32xf32> to vector<8x32xf32>
    %597 = arith.mulf %595, %596 : vector<8x32xf32>
    %598 = vector.broadcast %579 : vector<1x32xf32> to vector<8x32xf32>
    %599 = arith.addf %597, %598 : vector<8x32xf32>
    %c0_225 = arith.constant 0 : index
    %c0_226 = arith.constant 0 : index
    %600 = vector.load %arg49[%c0_225, %c0_226] : memref<32x96xbf16, #tpu.memory_space<vmem>>, vector<32x96xbf16>
    %601 = arith.truncf %599 : vector<8x32xf32> to vector<8x32xbf16>
    %cst_227 = arith.constant dense<0.000000e+00> : vector<8x96xf32>
    %602 = tpu.matmul %601, %600, %cst_227 {dimension_numbers = #tpu.dot_dimension_numbers<[1], [0], [0], [1], [0, 0, 1, 1], [], []>} : vector<8x32xbf16>, vector<32x96xbf16>, vector<8x96xf32> -> vector<8x96xf32>
    %c0_228 = arith.constant 0 : index
    %c0_229 = arith.constant 0 : index
    %603 = vector.load %arg50[%c0_228, %c0_229] : memref<1x96xf32, #tpu.memory_space<vmem>>, vector<1x96xf32>
    %604 = vector.broadcast %603 : vector<1x96xf32> to vector<8x96xf32>
    %605 = arith.addf %602, %604 : vector<8x96xf32>
    %606 = vector.extract_strided_slice %605 {offsets = [0, 0], sizes = [8, 32], strides = [1, 1]} : vector<8x96xf32> to vector<8x32xf32>
    %607 = vector.extract_strided_slice %605 {offsets = [0, 32], sizes = [8, 32], strides = [1, 1]} : vector<8x96xf32> to vector<8x32xf32>
    %608 = vector.extract_strided_slice %605 {offsets = [0, 64], sizes = [8, 32], strides = [1, 1]} : vector<8x96xf32> to vector<8x32xf32>
    %609 = arith.truncf %606 : vector<8x32xf32> to vector<8x32xbf16>
    %610 = arith.truncf %607 : vector<8x32xf32> to vector<8x32xbf16>
    %611 = arith.truncf %608 : vector<8x32xf32> to vector<8x32xbf16>
    %612 = vector.extract_strided_slice %609 {offsets = [0, 0], sizes = [8, 8], strides = [1, 1]} : vector<8x32xbf16> to vector<8x8xbf16>
    %613 = vector.extract_strided_slice %610 {offsets = [0, 0], sizes = [8, 8], strides = [1, 1]} : vector<8x32xbf16> to vector<8x8xbf16>
    %614 = vector.extract_strided_slice %611 {offsets = [0, 0], sizes = [8, 8], strides = [1, 1]} : vector<8x32xbf16> to vector<8x8xbf16>
    %cst_230 = arith.constant dense<0.000000e+00> : vector<8x8xf32>
    %615 = tpu.matmul %612, %613, %cst_230 {dimension_numbers = #tpu.dot_dimension_numbers<[1], [1], [0], [0], [0, 0, 1, 0], [], []>} : vector<8x8xbf16>, vector<8x8xbf16>, vector<8x8xf32> -> vector<8x8xf32>
    %616 = arith.addf %615, %15 : vector<8x8xf32>
    %cst_231 = arith.constant dense<0xFF800000> : vector<8xf32>
    %617 = vector.multi_reduction <maximumf>, %616, %cst_231 [1] : vector<8x8xf32> to vector<8xf32>
    %618 = vector.shape_cast %617 : vector<8xf32> to vector<8x1xf32>
    %619 = vector.broadcast %618 : vector<8x1xf32> to vector<8x8xf32>
    %620 = arith.subf %616, %619 : vector<8x8xf32>
    %621 = math.exp %620 : vector<8x8xf32>
    %cst_232 = arith.constant dense<0.000000e+00> : vector<8xf32>
    %622 = vector.multi_reduction <add>, %621, %cst_232 [1] : vector<8x8xf32> to vector<8xf32>
    %623 = vector.shape_cast %622 : vector<8xf32> to vector<8x1xf32>
    %624 = tpu.reciprocal %623 {approx = true} : vector<8x1xf32> -> vector<8x1xf32>
    %625 = vector.broadcast %624 : vector<8x1xf32> to vector<8x8xf32>
    %626 = arith.mulf %621, %625 : vector<8x8xf32>
    %627 = arith.truncf %626 : vector<8x8xf32> to vector<8x8xbf16>
    %cst_233 = arith.constant dense<0.000000e+00> : vector<8x8xf32>
    %628 = tpu.matmul %627, %614, %cst_233 {dimension_numbers = #tpu.dot_dimension_numbers<[1], [0], [0], [1], [0, 0, 1, 1], [], []>} : vector<8x8xbf16>, vector<8x8xbf16>, vector<8x8xf32> -> vector<8x8xf32>
    %629 = vector.extract_strided_slice %609 {offsets = [0, 8], sizes = [8, 8], strides = [1, 1]} : vector<8x32xbf16> to vector<8x8xbf16>
    %630 = vector.extract_strided_slice %610 {offsets = [0, 8], sizes = [8, 8], strides = [1, 1]} : vector<8x32xbf16> to vector<8x8xbf16>
    %631 = vector.extract_strided_slice %611 {offsets = [0, 8], sizes = [8, 8], strides = [1, 1]} : vector<8x32xbf16> to vector<8x8xbf16>
    %cst_234 = arith.constant dense<0.000000e+00> : vector<8x8xf32>
    %632 = tpu.matmul %629, %630, %cst_234 {dimension_numbers = #tpu.dot_dimension_numbers<[1], [1], [0], [0], [0, 0, 1, 0], [], []>} : vector<8x8xbf16>, vector<8x8xbf16>, vector<8x8xf32> -> vector<8x8xf32>
    %633 = arith.addf %632, %15 : vector<8x8xf32>
    %cst_235 = arith.constant dense<0xFF800000> : vector<8xf32>
    %634 = vector.multi_reduction <maximumf>, %633, %cst_235 [1] : vector<8x8xf32> to vector<8xf32>
    %635 = vector.shape_cast %634 : vector<8xf32> to vector<8x1xf32>
    %636 = vector.broadcast %635 : vector<8x1xf32> to vector<8x8xf32>
    %637 = arith.subf %633, %636 : vector<8x8xf32>
    %638 = math.exp %637 : vector<8x8xf32>
    %cst_236 = arith.constant dense<0.000000e+00> : vector<8xf32>
    %639 = vector.multi_reduction <add>, %638, %cst_236 [1] : vector<8x8xf32> to vector<8xf32>
    %640 = vector.shape_cast %639 : vector<8xf32> to vector<8x1xf32>
    %641 = tpu.reciprocal %640 {approx = true} : vector<8x1xf32> -> vector<8x1xf32>
    %642 = vector.broadcast %641 : vector<8x1xf32> to vector<8x8xf32>
    %643 = arith.mulf %638, %642 : vector<8x8xf32>
    %644 = arith.truncf %643 : vector<8x8xf32> to vector<8x8xbf16>
    %cst_237 = arith.constant dense<0.000000e+00> : vector<8x8xf32>
    %645 = tpu.matmul %644, %631, %cst_237 {dimension_numbers = #tpu.dot_dimension_numbers<[1], [0], [0], [1], [0, 0, 1, 1], [], []>} : vector<8x8xbf16>, vector<8x8xbf16>, vector<8x8xf32> -> vector<8x8xf32>
    %646 = vector.extract_strided_slice %609 {offsets = [0, 16], sizes = [8, 8], strides = [1, 1]} : vector<8x32xbf16> to vector<8x8xbf16>
    %647 = vector.extract_strided_slice %610 {offsets = [0, 16], sizes = [8, 8], strides = [1, 1]} : vector<8x32xbf16> to vector<8x8xbf16>
    %648 = vector.extract_strided_slice %611 {offsets = [0, 16], sizes = [8, 8], strides = [1, 1]} : vector<8x32xbf16> to vector<8x8xbf16>
    %cst_238 = arith.constant dense<0.000000e+00> : vector<8x8xf32>
    %649 = tpu.matmul %646, %647, %cst_238 {dimension_numbers = #tpu.dot_dimension_numbers<[1], [1], [0], [0], [0, 0, 1, 0], [], []>} : vector<8x8xbf16>, vector<8x8xbf16>, vector<8x8xf32> -> vector<8x8xf32>
    %650 = arith.addf %649, %15 : vector<8x8xf32>
    %cst_239 = arith.constant dense<0xFF800000> : vector<8xf32>
    %651 = vector.multi_reduction <maximumf>, %650, %cst_239 [1] : vector<8x8xf32> to vector<8xf32>
    %652 = vector.shape_cast %651 : vector<8xf32> to vector<8x1xf32>
    %653 = vector.broadcast %652 : vector<8x1xf32> to vector<8x8xf32>
    %654 = arith.subf %650, %653 : vector<8x8xf32>
    %655 = math.exp %654 : vector<8x8xf32>
    %cst_240 = arith.constant dense<0.000000e+00> : vector<8xf32>
    %656 = vector.multi_reduction <add>, %655, %cst_240 [1] : vector<8x8xf32> to vector<8xf32>
    %657 = vector.shape_cast %656 : vector<8xf32> to vector<8x1xf32>
    %658 = tpu.reciprocal %657 {approx = true} : vector<8x1xf32> -> vector<8x1xf32>
    %659 = vector.broadcast %658 : vector<8x1xf32> to vector<8x8xf32>
    %660 = arith.mulf %655, %659 : vector<8x8xf32>
    %661 = arith.truncf %660 : vector<8x8xf32> to vector<8x8xbf16>
    %cst_241 = arith.constant dense<0.000000e+00> : vector<8x8xf32>
    %662 = tpu.matmul %661, %648, %cst_241 {dimension_numbers = #tpu.dot_dimension_numbers<[1], [0], [0], [1], [0, 0, 1, 1], [], []>} : vector<8x8xbf16>, vector<8x8xbf16>, vector<8x8xf32> -> vector<8x8xf32>
    %663 = vector.extract_strided_slice %609 {offsets = [0, 24], sizes = [8, 8], strides = [1, 1]} : vector<8x32xbf16> to vector<8x8xbf16>
    %664 = vector.extract_strided_slice %610 {offsets = [0, 24], sizes = [8, 8], strides = [1, 1]} : vector<8x32xbf16> to vector<8x8xbf16>
    %665 = vector.extract_strided_slice %611 {offsets = [0, 24], sizes = [8, 8], strides = [1, 1]} : vector<8x32xbf16> to vector<8x8xbf16>
    %cst_242 = arith.constant dense<0.000000e+00> : vector<8x8xf32>
    %666 = tpu.matmul %663, %664, %cst_242 {dimension_numbers = #tpu.dot_dimension_numbers<[1], [1], [0], [0], [0, 0, 1, 0], [], []>} : vector<8x8xbf16>, vector<8x8xbf16>, vector<8x8xf32> -> vector<8x8xf32>
    %667 = arith.addf %666, %15 : vector<8x8xf32>
    %cst_243 = arith.constant dense<0xFF800000> : vector<8xf32>
    %668 = vector.multi_reduction <maximumf>, %667, %cst_243 [1] : vector<8x8xf32> to vector<8xf32>
    %669 = vector.shape_cast %668 : vector<8xf32> to vector<8x1xf32>
    %670 = vector.broadcast %669 : vector<8x1xf32> to vector<8x8xf32>
    %671 = arith.subf %667, %670 : vector<8x8xf32>
    %672 = math.exp %671 : vector<8x8xf32>
    %cst_244 = arith.constant dense<0.000000e+00> : vector<8xf32>
    %673 = vector.multi_reduction <add>, %672, %cst_244 [1] : vector<8x8xf32> to vector<8xf32>
    %674 = vector.shape_cast %673 : vector<8xf32> to vector<8x1xf32>
    %675 = tpu.reciprocal %674 {approx = true} : vector<8x1xf32> -> vector<8x1xf32>
    %676 = vector.broadcast %675 : vector<8x1xf32> to vector<8x8xf32>
    %677 = arith.mulf %672, %676 : vector<8x8xf32>
    %678 = arith.truncf %677 : vector<8x8xf32> to vector<8x8xbf16>
    %cst_245 = arith.constant dense<0.000000e+00> : vector<8x8xf32>
    %679 = tpu.matmul %678, %665, %cst_245 {dimension_numbers = #tpu.dot_dimension_numbers<[1], [0], [0], [1], [0, 0, 1, 1], [], []>} : vector<8x8xbf16>, vector<8x8xbf16>, vector<8x8xf32> -> vector<8x8xf32>
    %680 = tpu.concatenate %628, %645, %662, %679 in 1 : vector<8x8xf32>, vector<8x8xf32>, vector<8x8xf32>, vector<8x8xf32> -> vector<8x32xf32>
    %c0_246 = arith.constant 0 : index
    %c0_247 = arith.constant 0 : index
    %681 = vector.load %arg51[%c0_246, %c0_247] : memref<32x32xbf16, #tpu.memory_space<vmem>>, vector<32x32xbf16>
    %682 = arith.truncf %680 : vector<8x32xf32> to vector<8x32xbf16>
    %cst_248 = arith.constant dense<0.000000e+00> : vector<8x32xf32>
    %683 = tpu.matmul %682, %681, %cst_248 {dimension_numbers = #tpu.dot_dimension_numbers<[1], [0], [0], [1], [0, 0, 1, 1], [], []>} : vector<8x32xbf16>, vector<32x32xbf16>, vector<8x32xf32> -> vector<8x32xf32>
    %c0_249 = arith.constant 0 : index
    %c0_250 = arith.constant 0 : index
    %684 = vector.load %arg52[%c0_249, %c0_250] : memref<1x32xf32, #tpu.memory_space<vmem>>, vector<1x32xf32>
    %685 = vector.broadcast %684 : vector<1x32xf32> to vector<8x32xf32>
    %686 = arith.addf %683, %685 : vector<8x32xf32>
    %687 = arith.addf %686, %599 : vector<8x32xf32>
    %c0_251 = arith.constant 0 : index
    %c0_252 = arith.constant 0 : index
    %688 = vector.load %arg53[%c0_251, %c0_252] : memref<1x32xf32, #tpu.memory_space<vmem>>, vector<1x32xf32>
    %c0_253 = arith.constant 0 : index
    %c0_254 = arith.constant 0 : index
    %689 = vector.load %arg54[%c0_253, %c0_254] : memref<1x32xf32, #tpu.memory_space<vmem>>, vector<1x32xf32>
    %cst_255 = arith.constant dense<0.000000e+00> : vector<8xf32>
    %690 = vector.multi_reduction <add>, %687, %cst_255 [1] : vector<8x32xf32> to vector<8xf32>
    %691 = vector.shape_cast %690 : vector<8xf32> to vector<8x1xf32>
    %cst_256 = arith.constant 3.200000e+01 : f32
    %692 = vector.broadcast %cst_256 : f32 to vector<8x1xf32>
    %693 = arith.divf %691, %692 : vector<8x1xf32>
    %694 = vector.broadcast %693 : vector<8x1xf32> to vector<8x32xf32>
    %695 = arith.subf %687, %694 : vector<8x32xf32>
    %696 = arith.mulf %695, %695 : vector<8x32xf32>
    %cst_257 = arith.constant dense<0.000000e+00> : vector<8xf32>
    %697 = vector.multi_reduction <add>, %696, %cst_257 [1] : vector<8x32xf32> to vector<8xf32>
    %698 = vector.shape_cast %697 : vector<8xf32> to vector<8x1xf32>
    %cst_258 = arith.constant 3.200000e+01 : f32
    %699 = vector.broadcast %cst_258 : f32 to vector<8x1xf32>
    %700 = arith.divf %698, %699 : vector<8x1xf32>
    %cst_259 = arith.constant 9.99999974E-6 : f32
    %701 = vector.broadcast %cst_259 : f32 to vector<8x1xf32>
    %702 = arith.addf %700, %701 : vector<8x1xf32>
    %703 = math.rsqrt %702 : vector<8x1xf32>
    %704 = vector.broadcast %703 : vector<8x1xf32> to vector<8x32xf32>
    %705 = arith.mulf %695, %704 : vector<8x32xf32>
    %706 = vector.broadcast %688 : vector<1x32xf32> to vector<8x32xf32>
    %707 = arith.mulf %705, %706 : vector<8x32xf32>
    %708 = vector.broadcast %689 : vector<1x32xf32> to vector<8x32xf32>
    %709 = arith.addf %707, %708 : vector<8x32xf32>
    %c0_260 = arith.constant 0 : index
    %c0_261 = arith.constant 0 : index
    %710 = vector.load %arg55[%c0_260, %c0_261] : memref<32x32xbf16, #tpu.memory_space<vmem>>, vector<32x32xbf16>
    %711 = arith.truncf %709 : vector<8x32xf32> to vector<8x32xbf16>
    %cst_262 = arith.constant dense<0.000000e+00> : vector<8x32xf32>
    %712 = tpu.matmul %711, %710, %cst_262 {dimension_numbers = #tpu.dot_dimension_numbers<[1], [0], [0], [1], [0, 0, 1, 1], [], []>} : vector<8x32xbf16>, vector<32x32xbf16>, vector<8x32xf32> -> vector<8x32xf32>
    %c0_263 = arith.constant 0 : index
    %c0_264 = arith.constant 0 : index
    %713 = vector.load %arg56[%c0_263, %c0_264] : memref<1x32xf32, #tpu.memory_space<vmem>>, vector<1x32xf32>
    %714 = vector.broadcast %713 : vector<1x32xf32> to vector<8x32xf32>
    %715 = arith.addf %712, %714 : vector<8x32xf32>
    %c0_265 = arith.constant 0 : index
    %c0_266 = arith.constant 0 : index
    %716 = vector.load %arg57[%c0_265, %c0_266] : memref<32x64xbf16, #tpu.memory_space<vmem>>, vector<32x64xbf16>
    %717 = arith.truncf %337 : vector<16x32xf32> to vector<16x32xbf16>
    %cst_267 = arith.constant dense<0.000000e+00> : vector<16x64xf32>
    %718 = tpu.matmul %717, %716, %cst_267 {dimension_numbers = #tpu.dot_dimension_numbers<[1], [0], [0], [1], [0, 0, 1, 1], [], []>} : vector<16x32xbf16>, vector<32x64xbf16>, vector<16x64xf32> -> vector<16x64xf32>
    %c0_268 = arith.constant 0 : index
    %c0_269 = arith.constant 0 : index
    %719 = vector.load %arg58[%c0_268, %c0_269] : memref<1x64xf32, #tpu.memory_space<vmem>>, vector<1x64xf32>
    %720 = vector.broadcast %719 : vector<1x64xf32> to vector<16x64xf32>
    %721 = arith.addf %718, %720 : vector<16x64xf32>
    %722 = vector.extract_strided_slice %721 {offsets = [0, 0], sizes = [16, 32], strides = [1, 1]} : vector<16x64xf32> to vector<16x32xf32>
    %723 = vector.extract_strided_slice %721 {offsets = [0, 32], sizes = [16, 32], strides = [1, 1]} : vector<16x64xf32> to vector<16x32xf32>
    %724 = arith.truncf %715 : vector<8x32xf32> to vector<8x32xbf16>
    %725 = arith.truncf %722 : vector<16x32xf32> to vector<16x32xbf16>
    %726 = arith.truncf %723 : vector<16x32xf32> to vector<16x32xbf16>
    %727 = vector.extract_strided_slice %724 {offsets = [0, 0], sizes = [8, 8], strides = [1, 1]} : vector<8x32xbf16> to vector<8x8xbf16>
    %728 = vector.extract_strided_slice %725 {offsets = [0, 0], sizes = [16, 8], strides = [1, 1]} : vector<16x32xbf16> to vector<16x8xbf16>
    %729 = vector.extract_strided_slice %726 {offsets = [0, 0], sizes = [16, 8], strides = [1, 1]} : vector<16x32xbf16> to vector<16x8xbf16>
    %cst_270 = arith.constant dense<0.000000e+00> : vector<8x16xf32>
    %730 = tpu.matmul %727, %728, %cst_270 {dimension_numbers = #tpu.dot_dimension_numbers<[1], [1], [0], [0], [0, 0, 1, 0], [], []>} : vector<8x8xbf16>, vector<16x8xbf16>, vector<8x16xf32> -> vector<8x16xf32>
    %731 = arith.addf %730, %21 : vector<8x16xf32>
    %cst_271 = arith.constant dense<0xFF800000> : vector<8xf32>
    %732 = vector.multi_reduction <maximumf>, %731, %cst_271 [1] : vector<8x16xf32> to vector<8xf32>
    %733 = vector.shape_cast %732 : vector<8xf32> to vector<8x1xf32>
    %734 = vector.broadcast %733 : vector<8x1xf32> to vector<8x16xf32>
    %735 = arith.subf %731, %734 : vector<8x16xf32>
    %736 = math.exp %735 : vector<8x16xf32>
    %cst_272 = arith.constant dense<0.000000e+00> : vector<8xf32>
    %737 = vector.multi_reduction <add>, %736, %cst_272 [1] : vector<8x16xf32> to vector<8xf32>
    %738 = vector.shape_cast %737 : vector<8xf32> to vector<8x1xf32>
    %739 = tpu.reciprocal %738 {approx = true} : vector<8x1xf32> -> vector<8x1xf32>
    %740 = vector.broadcast %739 : vector<8x1xf32> to vector<8x16xf32>
    %741 = arith.mulf %736, %740 : vector<8x16xf32>
    %742 = arith.truncf %741 : vector<8x16xf32> to vector<8x16xbf16>
    %cst_273 = arith.constant dense<0.000000e+00> : vector<8x8xf32>
    %743 = tpu.matmul %742, %729, %cst_273 {dimension_numbers = #tpu.dot_dimension_numbers<[1], [0], [0], [1], [0, 0, 1, 1], [], []>} : vector<8x16xbf16>, vector<16x8xbf16>, vector<8x8xf32> -> vector<8x8xf32>
    %744 = vector.extract_strided_slice %724 {offsets = [0, 8], sizes = [8, 8], strides = [1, 1]} : vector<8x32xbf16> to vector<8x8xbf16>
    %745 = vector.extract_strided_slice %725 {offsets = [0, 8], sizes = [16, 8], strides = [1, 1]} : vector<16x32xbf16> to vector<16x8xbf16>
    %746 = vector.extract_strided_slice %726 {offsets = [0, 8], sizes = [16, 8], strides = [1, 1]} : vector<16x32xbf16> to vector<16x8xbf16>
    %cst_274 = arith.constant dense<0.000000e+00> : vector<8x16xf32>
    %747 = tpu.matmul %744, %745, %cst_274 {dimension_numbers = #tpu.dot_dimension_numbers<[1], [1], [0], [0], [0, 0, 1, 0], [], []>} : vector<8x8xbf16>, vector<16x8xbf16>, vector<8x16xf32> -> vector<8x16xf32>
    %748 = arith.addf %747, %21 : vector<8x16xf32>
    %cst_275 = arith.constant dense<0xFF800000> : vector<8xf32>
    %749 = vector.multi_reduction <maximumf>, %748, %cst_275 [1] : vector<8x16xf32> to vector<8xf32>
    %750 = vector.shape_cast %749 : vector<8xf32> to vector<8x1xf32>
    %751 = vector.broadcast %750 : vector<8x1xf32> to vector<8x16xf32>
    %752 = arith.subf %748, %751 : vector<8x16xf32>
    %753 = math.exp %752 : vector<8x16xf32>
    %cst_276 = arith.constant dense<0.000000e+00> : vector<8xf32>
    %754 = vector.multi_reduction <add>, %753, %cst_276 [1] : vector<8x16xf32> to vector<8xf32>
    %755 = vector.shape_cast %754 : vector<8xf32> to vector<8x1xf32>
    %756 = tpu.reciprocal %755 {approx = true} : vector<8x1xf32> -> vector<8x1xf32>
    %757 = vector.broadcast %756 : vector<8x1xf32> to vector<8x16xf32>
    %758 = arith.mulf %753, %757 : vector<8x16xf32>
    %759 = arith.truncf %758 : vector<8x16xf32> to vector<8x16xbf16>
    %cst_277 = arith.constant dense<0.000000e+00> : vector<8x8xf32>
    %760 = tpu.matmul %759, %746, %cst_277 {dimension_numbers = #tpu.dot_dimension_numbers<[1], [0], [0], [1], [0, 0, 1, 1], [], []>} : vector<8x16xbf16>, vector<16x8xbf16>, vector<8x8xf32> -> vector<8x8xf32>
    %761 = vector.extract_strided_slice %724 {offsets = [0, 16], sizes = [8, 8], strides = [1, 1]} : vector<8x32xbf16> to vector<8x8xbf16>
    %762 = vector.extract_strided_slice %725 {offsets = [0, 16], sizes = [16, 8], strides = [1, 1]} : vector<16x32xbf16> to vector<16x8xbf16>
    %763 = vector.extract_strided_slice %726 {offsets = [0, 16], sizes = [16, 8], strides = [1, 1]} : vector<16x32xbf16> to vector<16x8xbf16>
    %cst_278 = arith.constant dense<0.000000e+00> : vector<8x16xf32>
    %764 = tpu.matmul %761, %762, %cst_278 {dimension_numbers = #tpu.dot_dimension_numbers<[1], [1], [0], [0], [0, 0, 1, 0], [], []>} : vector<8x8xbf16>, vector<16x8xbf16>, vector<8x16xf32> -> vector<8x16xf32>
    %765 = arith.addf %764, %21 : vector<8x16xf32>
    %cst_279 = arith.constant dense<0xFF800000> : vector<8xf32>
    %766 = vector.multi_reduction <maximumf>, %765, %cst_279 [1] : vector<8x16xf32> to vector<8xf32>
    %767 = vector.shape_cast %766 : vector<8xf32> to vector<8x1xf32>
    %768 = vector.broadcast %767 : vector<8x1xf32> to vector<8x16xf32>
    %769 = arith.subf %765, %768 : vector<8x16xf32>
    %770 = math.exp %769 : vector<8x16xf32>
    %cst_280 = arith.constant dense<0.000000e+00> : vector<8xf32>
    %771 = vector.multi_reduction <add>, %770, %cst_280 [1] : vector<8x16xf32> to vector<8xf32>
    %772 = vector.shape_cast %771 : vector<8xf32> to vector<8x1xf32>
    %773 = tpu.reciprocal %772 {approx = true} : vector<8x1xf32> -> vector<8x1xf32>
    %774 = vector.broadcast %773 : vector<8x1xf32> to vector<8x16xf32>
    %775 = arith.mulf %770, %774 : vector<8x16xf32>
    %776 = arith.truncf %775 : vector<8x16xf32> to vector<8x16xbf16>
    %cst_281 = arith.constant dense<0.000000e+00> : vector<8x8xf32>
    %777 = tpu.matmul %776, %763, %cst_281 {dimension_numbers = #tpu.dot_dimension_numbers<[1], [0], [0], [1], [0, 0, 1, 1], [], []>} : vector<8x16xbf16>, vector<16x8xbf16>, vector<8x8xf32> -> vector<8x8xf32>
    %778 = vector.extract_strided_slice %724 {offsets = [0, 24], sizes = [8, 8], strides = [1, 1]} : vector<8x32xbf16> to vector<8x8xbf16>
    %779 = vector.extract_strided_slice %725 {offsets = [0, 24], sizes = [16, 8], strides = [1, 1]} : vector<16x32xbf16> to vector<16x8xbf16>
    %780 = vector.extract_strided_slice %726 {offsets = [0, 24], sizes = [16, 8], strides = [1, 1]} : vector<16x32xbf16> to vector<16x8xbf16>
    %cst_282 = arith.constant dense<0.000000e+00> : vector<8x16xf32>
    %781 = tpu.matmul %778, %779, %cst_282 {dimension_numbers = #tpu.dot_dimension_numbers<[1], [1], [0], [0], [0, 0, 1, 0], [], []>} : vector<8x8xbf16>, vector<16x8xbf16>, vector<8x16xf32> -> vector<8x16xf32>
    %782 = arith.addf %781, %21 : vector<8x16xf32>
    %cst_283 = arith.constant dense<0xFF800000> : vector<8xf32>
    %783 = vector.multi_reduction <maximumf>, %782, %cst_283 [1] : vector<8x16xf32> to vector<8xf32>
    %784 = vector.shape_cast %783 : vector<8xf32> to vector<8x1xf32>
    %785 = vector.broadcast %784 : vector<8x1xf32> to vector<8x16xf32>
    %786 = arith.subf %782, %785 : vector<8x16xf32>
    %787 = math.exp %786 : vector<8x16xf32>
    %cst_284 = arith.constant dense<0.000000e+00> : vector<8xf32>
    %788 = vector.multi_reduction <add>, %787, %cst_284 [1] : vector<8x16xf32> to vector<8xf32>
    %789 = vector.shape_cast %788 : vector<8xf32> to vector<8x1xf32>
    %790 = tpu.reciprocal %789 {approx = true} : vector<8x1xf32> -> vector<8x1xf32>
    %791 = vector.broadcast %790 : vector<8x1xf32> to vector<8x16xf32>
    %792 = arith.mulf %787, %791 : vector<8x16xf32>
    %793 = arith.truncf %792 : vector<8x16xf32> to vector<8x16xbf16>
    %cst_285 = arith.constant dense<0.000000e+00> : vector<8x8xf32>
    %794 = tpu.matmul %793, %780, %cst_285 {dimension_numbers = #tpu.dot_dimension_numbers<[1], [0], [0], [1], [0, 0, 1, 1], [], []>} : vector<8x16xbf16>, vector<16x8xbf16>, vector<8x8xf32> -> vector<8x8xf32>
    %795 = tpu.concatenate %743, %760, %777, %794 in 1 : vector<8x8xf32>, vector<8x8xf32>, vector<8x8xf32>, vector<8x8xf32> -> vector<8x32xf32>
    %c0_286 = arith.constant 0 : index
    %c0_287 = arith.constant 0 : index
    %796 = vector.load %arg59[%c0_286, %c0_287] : memref<32x32xbf16, #tpu.memory_space<vmem>>, vector<32x32xbf16>
    %797 = arith.truncf %795 : vector<8x32xf32> to vector<8x32xbf16>
    %cst_288 = arith.constant dense<0.000000e+00> : vector<8x32xf32>
    %798 = tpu.matmul %797, %796, %cst_288 {dimension_numbers = #tpu.dot_dimension_numbers<[1], [0], [0], [1], [0, 0, 1, 1], [], []>} : vector<8x32xbf16>, vector<32x32xbf16>, vector<8x32xf32> -> vector<8x32xf32>
    %c0_289 = arith.constant 0 : index
    %c0_290 = arith.constant 0 : index
    %799 = vector.load %arg60[%c0_289, %c0_290] : memref<1x32xf32, #tpu.memory_space<vmem>>, vector<1x32xf32>
    %800 = vector.broadcast %799 : vector<1x32xf32> to vector<8x32xf32>
    %801 = arith.addf %798, %800 : vector<8x32xf32>
    %802 = arith.addf %801, %709 : vector<8x32xf32>
    %c0_291 = arith.constant 0 : index
    %c0_292 = arith.constant 0 : index
    %803 = vector.load %arg61[%c0_291, %c0_292] : memref<1x32xf32, #tpu.memory_space<vmem>>, vector<1x32xf32>
    %c0_293 = arith.constant 0 : index
    %c0_294 = arith.constant 0 : index
    %804 = vector.load %arg62[%c0_293, %c0_294] : memref<1x32xf32, #tpu.memory_space<vmem>>, vector<1x32xf32>
    %cst_295 = arith.constant dense<0.000000e+00> : vector<8xf32>
    %805 = vector.multi_reduction <add>, %802, %cst_295 [1] : vector<8x32xf32> to vector<8xf32>
    %806 = vector.shape_cast %805 : vector<8xf32> to vector<8x1xf32>
    %cst_296 = arith.constant 3.200000e+01 : f32
    %807 = vector.broadcast %cst_296 : f32 to vector<8x1xf32>
    %808 = arith.divf %806, %807 : vector<8x1xf32>
    %809 = vector.broadcast %808 : vector<8x1xf32> to vector<8x32xf32>
    %810 = arith.subf %802, %809 : vector<8x32xf32>
    %811 = arith.mulf %810, %810 : vector<8x32xf32>
    %cst_297 = arith.constant dense<0.000000e+00> : vector<8xf32>
    %812 = vector.multi_reduction <add>, %811, %cst_297 [1] : vector<8x32xf32> to vector<8xf32>
    %813 = vector.shape_cast %812 : vector<8xf32> to vector<8x1xf32>
    %cst_298 = arith.constant 3.200000e+01 : f32
    %814 = vector.broadcast %cst_298 : f32 to vector<8x1xf32>
    %815 = arith.divf %813, %814 : vector<8x1xf32>
    %cst_299 = arith.constant 9.99999974E-6 : f32
    %816 = vector.broadcast %cst_299 : f32 to vector<8x1xf32>
    %817 = arith.addf %815, %816 : vector<8x1xf32>
    %818 = math.rsqrt %817 : vector<8x1xf32>
    %819 = vector.broadcast %818 : vector<8x1xf32> to vector<8x32xf32>
    %820 = arith.mulf %810, %819 : vector<8x32xf32>
    %821 = vector.broadcast %803 : vector<1x32xf32> to vector<8x32xf32>
    %822 = arith.mulf %820, %821 : vector<8x32xf32>
    %823 = vector.broadcast %804 : vector<1x32xf32> to vector<8x32xf32>
    %824 = arith.addf %822, %823 : vector<8x32xf32>
    %c0_300 = arith.constant 0 : index
    %c0_301 = arith.constant 0 : index
    %825 = vector.load %arg63[%c0_300, %c0_301] : memref<32x64xbf16, #tpu.memory_space<vmem>>, vector<32x64xbf16>
    %826 = arith.truncf %824 : vector<8x32xf32> to vector<8x32xbf16>
    %cst_302 = arith.constant dense<0.000000e+00> : vector<8x64xf32>
    %827 = tpu.matmul %826, %825, %cst_302 {dimension_numbers = #tpu.dot_dimension_numbers<[1], [0], [0], [1], [0, 0, 1, 1], [], []>} : vector<8x32xbf16>, vector<32x64xbf16>, vector<8x64xf32> -> vector<8x64xf32>
    %c0_303 = arith.constant 0 : index
    %c0_304 = arith.constant 0 : index
    %828 = vector.load %arg64[%c0_303, %c0_304] : memref<1x64xf32, #tpu.memory_space<vmem>>, vector<1x64xf32>
    %829 = vector.broadcast %828 : vector<1x64xf32> to vector<8x64xf32>
    %830 = arith.addf %827, %829 : vector<8x64xf32>
    %cst_305 = arith.constant 0.000000e+00 : f32
    %831 = vector.broadcast %cst_305 : f32 to vector<8x64xf32>
    %832 = arith.maximumf %830, %831 : vector<8x64xf32>
    %c0_306 = arith.constant 0 : index
    %c0_307 = arith.constant 0 : index
    %833 = vector.load %arg65[%c0_306, %c0_307] : memref<64x32xbf16, #tpu.memory_space<vmem>>, vector<64x32xbf16>
    %834 = arith.truncf %832 : vector<8x64xf32> to vector<8x64xbf16>
    %cst_308 = arith.constant dense<0.000000e+00> : vector<8x32xf32>
    %835 = tpu.matmul %834, %833, %cst_308 {dimension_numbers = #tpu.dot_dimension_numbers<[1], [0], [0], [1], [0, 0, 1, 1], [], []>} : vector<8x64xbf16>, vector<64x32xbf16>, vector<8x32xf32> -> vector<8x32xf32>
    %c0_309 = arith.constant 0 : index
    %c0_310 = arith.constant 0 : index
    %836 = vector.load %arg66[%c0_309, %c0_310] : memref<1x32xf32, #tpu.memory_space<vmem>>, vector<1x32xf32>
    %837 = vector.broadcast %836 : vector<1x32xf32> to vector<8x32xf32>
    %838 = arith.addf %835, %837 : vector<8x32xf32>
    %839 = arith.addf %838, %824 : vector<8x32xf32>
    %c0_311 = arith.constant 0 : index
    %c0_312 = arith.constant 0 : index
    %840 = vector.load %arg67[%c0_311, %c0_312] : memref<1x32xf32, #tpu.memory_space<vmem>>, vector<1x32xf32>
    %c0_313 = arith.constant 0 : index
    %c0_314 = arith.constant 0 : index
    %841 = vector.load %arg68[%c0_313, %c0_314] : memref<1x32xf32, #tpu.memory_space<vmem>>, vector<1x32xf32>
    %cst_315 = arith.constant dense<0.000000e+00> : vector<8xf32>
    %842 = vector.multi_reduction <add>, %839, %cst_315 [1] : vector<8x32xf32> to vector<8xf32>
    %843 = vector.shape_cast %842 : vector<8xf32> to vector<8x1xf32>
    %cst_316 = arith.constant 3.200000e+01 : f32
    %844 = vector.broadcast %cst_316 : f32 to vector<8x1xf32>
    %845 = arith.divf %843, %844 : vector<8x1xf32>
    %846 = vector.broadcast %845 : vector<8x1xf32> to vector<8x32xf32>
    %847 = arith.subf %839, %846 : vector<8x32xf32>
    %848 = arith.mulf %847, %847 : vector<8x32xf32>
    %cst_317 = arith.constant dense<0.000000e+00> : vector<8xf32>
    %849 = vector.multi_reduction <add>, %848, %cst_317 [1] : vector<8x32xf32> to vector<8xf32>
    %850 = vector.shape_cast %849 : vector<8xf32> to vector<8x1xf32>
    %cst_318 = arith.constant 3.200000e+01 : f32
    %851 = vector.broadcast %cst_318 : f32 to vector<8x1xf32>
    %852 = arith.divf %850, %851 : vector<8x1xf32>
    %cst_319 = arith.constant 9.99999974E-6 : f32
    %853 = vector.broadcast %cst_319 : f32 to vector<8x1xf32>
    %854 = arith.addf %852, %853 : vector<8x1xf32>
    %855 = math.rsqrt %854 : vector<8x1xf32>
    %856 = vector.broadcast %855 : vector<8x1xf32> to vector<8x32xf32>
    %857 = arith.mulf %847, %856 : vector<8x32xf32>
    %858 = vector.broadcast %840 : vector<1x32xf32> to vector<8x32xf32>
    %859 = arith.mulf %857, %858 : vector<8x32xf32>
    %860 = vector.broadcast %841 : vector<1x32xf32> to vector<8x32xf32>
    %861 = arith.addf %859, %860 : vector<8x32xf32>
    %c0_320 = arith.constant 0 : index
    %c0_321 = arith.constant 0 : index
    %862 = vector.load %arg69[%c0_320, %c0_321] : memref<1x32xf32, #tpu.memory_space<vmem>>, vector<1x32xf32>
    %c0_322 = arith.constant 0 : index
    %c0_323 = arith.constant 0 : index
    %863 = vector.load %arg70[%c0_322, %c0_323] : memref<1x32xf32, #tpu.memory_space<vmem>>, vector<1x32xf32>
    %cst_324 = arith.constant dense<0.000000e+00> : vector<8xf32>
    %864 = vector.multi_reduction <add>, %861, %cst_324 [1] : vector<8x32xf32> to vector<8xf32>
    %865 = vector.shape_cast %864 : vector<8xf32> to vector<8x1xf32>
    %cst_325 = arith.constant 3.200000e+01 : f32
    %866 = vector.broadcast %cst_325 : f32 to vector<8x1xf32>
    %867 = arith.divf %865, %866 : vector<8x1xf32>
    %868 = vector.broadcast %867 : vector<8x1xf32> to vector<8x32xf32>
    %869 = arith.subf %861, %868 : vector<8x32xf32>
    %870 = arith.mulf %869, %869 : vector<8x32xf32>
    %cst_326 = arith.constant dense<0.000000e+00> : vector<8xf32>
    %871 = vector.multi_reduction <add>, %870, %cst_326 [1] : vector<8x32xf32> to vector<8xf32>
    %872 = vector.shape_cast %871 : vector<8xf32> to vector<8x1xf32>
    %cst_327 = arith.constant 3.200000e+01 : f32
    %873 = vector.broadcast %cst_327 : f32 to vector<8x1xf32>
    %874 = arith.divf %872, %873 : vector<8x1xf32>
    %cst_328 = arith.constant 9.99999974E-6 : f32
    %875 = vector.broadcast %cst_328 : f32 to vector<8x1xf32>
    %876 = arith.addf %874, %875 : vector<8x1xf32>
    %877 = math.rsqrt %876 : vector<8x1xf32>
    %878 = vector.broadcast %877 : vector<8x1xf32> to vector<8x32xf32>
    %879 = arith.mulf %869, %878 : vector<8x32xf32>
    %880 = vector.broadcast %862 : vector<1x32xf32> to vector<8x32xf32>
    %881 = arith.mulf %879, %880 : vector<8x32xf32>
    %882 = vector.broadcast %863 : vector<1x32xf32> to vector<8x32xf32>
    %883 = arith.addf %881, %882 : vector<8x32xf32>
    %c0_329 = arith.constant 0 : index
    %c0_330 = arith.constant 0 : index
    %884 = vector.load %arg71[%c0_329, %c0_330] : memref<32x128xbf16, #tpu.memory_space<vmem>>, vector<32x128xbf16>
    %885 = arith.truncf %883 : vector<8x32xf32> to vector<8x32xbf16>
    %cst_331 = arith.constant dense<0.000000e+00> : vector<8x128xf32>
    %886 = tpu.matmul %885, %884, %cst_331 {dimension_numbers = #tpu.dot_dimension_numbers<[1], [0], [0], [1], [0, 0, 1, 1], [], []>} : vector<8x32xbf16>, vector<32x128xbf16>, vector<8x128xf32> -> vector<8x128xf32>
    %c0_332 = arith.constant 0 : index
    %c0_333 = arith.constant 0 : index
    %887 = vector.load %arg72[%c0_332, %c0_333] : memref<1x128xf32, #tpu.memory_space<vmem>>, vector<1x128xf32>
    %888 = vector.broadcast %887 : vector<1x128xf32> to vector<8x128xf32>
    %889 = arith.addf %886, %888 : vector<8x128xf32>
    %c0_334 = arith.constant 0 : index
    %c0_335 = arith.constant 0 : index
    %c0_336 = arith.constant 0 : index
    %890 = vector.load %arg73[%c0_334, %c0_335, %c0_336] : memref<1x8x128xf32, #tpu.memory_space<vmem>>, vector<1x8x128xf32>
    %891 = vector.shape_cast %890 : vector<1x8x128xf32> to vector<8x128xf32>
    %892 = vector.shape_cast %889 : vector<8x128xf32> to vector<1x8x128xf32>
    tpu.vector_store %arg73[%c0_334, %c0_335, %c0_336], %892 {strides = array<i32>} : memref<1x8x128xf32, #tpu.memory_space<vmem>>, vector<1x8x128xf32>,
    return
  }
  func.func @transform_0(%arg0: i32) -> (i32, i32, i32) {
    %c0_i32 = arith.constant 0 : i32
    %c0_i32_0 = arith.constant 0 : i32
    %c0_i32_1 = arith.constant 0 : i32
    return %arg0, %c0_i32, %c0_i32_0 : i32, i32, i32
  }
  func.func @transform_1(%arg0: i32) -> (i32, i32, i32) {
    %c0_i32 = arith.constant 0 : i32
    %c0_i32_0 = arith.constant 0 : i32
    %c0_i32_1 = arith.constant 0 : i32
    return %arg0, %c0_i32, %c0_i32_0 : i32, i32, i32
  }
  func.func @transform_2(%arg0: i32) -> (i32, i32) {
    %c0_i32 = arith.constant 0 : i32
    %c0_i32_0 = arith.constant 0 : i32
    %c0_i32_1 = arith.constant 0 : i32
    return %c0_i32, %c0_i32_0 : i32, i32
  }
  func.func @transform_3(%arg0: i32) -> (i32, i32) {
    %c0_i32 = arith.constant 0 : i32
    %c0_i32_0 = arith.constant 0 : i32
    %c0_i32_1 = arith.constant 0 : i32
    return %c0_i32, %c0_i32_0 : i32, i32
  }
  func.func @transform_4(%arg0: i32) -> (i32, i32) {
    %c0_i32 = arith.constant 0 : i32
    %c0_i32_0 = arith.constant 0 : i32
    %c0_i32_1 = arith.constant 0 : i32
    return %c0_i32, %c0_i32_0 : i32, i32
  }
  func.func @transform_5(%arg0: i32) -> (i32, i32) {
    %c0_i32 = arith.constant 0 : i32
    %c0_i32_0 = arith.constant 0 : i32
    %c0_i32_1 = arith.constant 0 : i32
    return %c0_i32, %c0_i32_0 : i32, i32
  }
  func.func @transform_6(%arg0: i32) -> (i32, i32) {
    %c0_i32 = arith.constant 0 : i32
    %c0_i32_0 = arith.constant 0 : i32
    %c0_i32_1 = arith.constant 0 : i32
    return %c0_i32, %c0_i32_0 : i32, i32
  }
  func.func @transform_7(%arg0: i32) -> (i32, i32) {
    %c0_i32 = arith.constant 0 : i32
    %c0_i32_0 = arith.constant 0 : i32
    %c0_i32_1 = arith.constant 0 : i32
    return %c0_i32, %c0_i32_0 : i32, i32
  }
  func.func @transform_8(%arg0: i32) -> (i32, i32) {
    %c0_i32 = arith.constant 0 : i32
    %c0_i32_0 = arith.constant 0 : i32
    %c0_i32_1 = arith.constant 0 : i32
    return %c0_i32, %c0_i32_0 : i32, i32
  }
  func.func @transform_9(%arg0: i32) -> (i32, i32) {
    %c0_i32 = arith.constant 0 : i32
    %c0_i32_0 = arith.constant 0 : i32
    %c0_i32_1 = arith.constant 0 : i32
    return %c0_i32, %c0_i32_0 : i32, i32
  }
  func.func @transform_10(%arg0: i32) -> (i32, i32) {
    %c0_i32 = arith.constant 0 : i32
    %c0_i32_0 = arith.constant 0 : i32
    %c0_i32_1 = arith.constant 0 : i32
    return %c0_i32, %c0_i32_0 : i32, i32
  }
  func.func @transform_11(%arg0: i32) -> (i32, i32) {
    %c0_i32 = arith.constant 0 : i32
    %c0_i32_0 = arith.constant 0 : i32
    %c0_i32_1 = arith.constant 0 : i32
    return %c0_i32, %c0_i32_0 : i32, i32
  }
  func.func @transform_12(%arg0: i32) -> (i32, i32) {
    %c0_i32 = arith.constant 0 : i32
    %c0_i32_0 = arith.constant 0 : i32
    %c0_i32_1 = arith.constant 0 : i32
    return %c0_i32, %c0_i32_0 : i32, i32
  }
  func.func @transform_13(%arg0: i32) -> (i32, i32) {
    %c0_i32 = arith.constant 0 : i32
    %c0_i32_0 = arith.constant 0 : i32
    %c0_i32_1 = arith.constant 0 : i32
    return %c0_i32, %c0_i32_0 : i32, i32
  }
  func.func @transform_14(%arg0: i32) -> (i32, i32) {
    %c0_i32 = arith.constant 0 : i32
    %c0_i32_0 = arith.constant 0 : i32
    %c0_i32_1 = arith.constant 0 : i32
    return %c0_i32, %c0_i32_0 : i32, i32
  }
  func.func @transform_15(%arg0: i32) -> (i32, i32) {
    %c0_i32 = arith.constant 0 : i32
    %c0_i32_0 = arith.constant 0 : i32
    %c0_i32_1 = arith.constant 0 : i32
    return %c0_i32, %c0_i32_0 : i32, i32
  }
  func.func @transform_16(%arg0: i32) -> (i32, i32) {
    %c0_i32 = arith.constant 0 : i32
    %c0_i32_0 = arith.constant 0 : i32
    %c0_i32_1 = arith.constant 0 : i32
    return %c0_i32, %c0_i32_0 : i32, i32
  }
  func.func @transform_17(%arg0: i32) -> (i32, i32) {
    %c0_i32 = arith.constant 0 : i32
    %c0_i32_0 = arith.constant 0 : i32
    %c0_i32_1 = arith.constant 0 : i32
    return %c0_i32, %c0_i32_0 : i32, i32
  }
  func.func @transform_18(%arg0: i32) -> (i32, i32) {
    %c0_i32 = arith.constant 0 : i32
    %c0_i32_0 = arith.constant 0 : i32
    %c0_i32_1 = arith.constant 0 : i32
    return %c0_i32, %c0_i32_0 : i32, i32
  }
  func.func @transform_19(%arg0: i32) -> (i32, i32) {
    %c0_i32 = arith.constant 0 : i32
    %c0_i32_0 = arith.constant 0 : i32
    %c0_i32_1 = arith.constant 0 : i32
    return %c0_i32, %c0_i32_0 : i32, i32
  }
  func.func @transform_20(%arg0: i32) -> (i32, i32) {
    %c0_i32 = arith.constant 0 : i32
    %c0_i32_0 = arith.constant 0 : i32
    %c0_i32_1 = arith.constant 0 : i32
    return %c0_i32, %c0_i32_0 : i32, i32
  }
  func.func @transform_21(%arg0: i32) -> (i32, i32) {
    %c0_i32 = arith.constant 0 : i32
    %c0_i32_0 = arith.constant 0 : i32
    %c0_i32_1 = arith.constant 0 : i32
    return %c0_i32, %c0_i32_0 : i32, i32
  }
  func.func @transform_22(%arg0: i32) -> (i32, i32) {
    %c0_i32 = arith.constant 0 : i32
    %c0_i32_0 = arith.constant 0 : i32
    %c0_i32_1 = arith.constant 0 : i32
    return %c0_i32, %c0_i32_0 : i32, i32
  }
  func.func @transform_23(%arg0: i32) -> (i32, i32) {
    %c0_i32 = arith.constant 0 : i32
    %c0_i32_0 = arith.constant 0 : i32
    %c0_i32_1 = arith.constant 0 : i32
    return %c0_i32, %c0_i32_0 : i32, i32
  }
  func.func @transform_24(%arg0: i32) -> (i32, i32) {
    %c0_i32 = arith.constant 0 : i32
    %c0_i32_0 = arith.constant 0 : i32
    %c0_i32_1 = arith.constant 0 : i32
    return %c0_i32, %c0_i32_0 : i32, i32
  }
  func.func @transform_25(%arg0: i32) -> (i32, i32) {
    %c0_i32 = arith.constant 0 : i32
    %c0_i32_0 = arith.constant 0 : i32
    %c0_i32_1 = arith.constant 0 : i32
    return %c0_i32, %c0_i32_0 : i32, i32
  }
  func.func @transform_26(%arg0: i32) -> (i32, i32) {
    %c0_i32 = arith.constant 0 : i32
    %c0_i32_0 = arith.constant 0 : i32
    %c0_i32_1 = arith.constant 0 : i32
    return %c0_i32, %c0_i32_0 : i32, i32
  }
  func.func @transform_27(%arg0: i32) -> (i32, i32) {
    %c0_i32 = arith.constant 0 : i32
    %c0_i32_0 = arith.constant 0 : i32
    %c0_i32_1 = arith.constant 0 : i32
    return %c0_i32, %c0_i32_0 : i32, i32
  }
  func.func @transform_28(%arg0: i32) -> (i32, i32) {
    %c0_i32 = arith.constant 0 : i32
    %c0_i32_0 = arith.constant 0 : i32
    %c0_i32_1 = arith.constant 0 : i32
    return %c0_i32, %c0_i32_0 : i32, i32
  }
  func.func @transform_29(%arg0: i32) -> (i32, i32) {
    %c0_i32 = arith.constant 0 : i32
    %c0_i32_0 = arith.constant 0 : i32
    %c0_i32_1 = arith.constant 0 : i32
    return %c0_i32, %c0_i32_0 : i32, i32
  }
  func.func @transform_30(%arg0: i32) -> (i32, i32) {
    %c0_i32 = arith.constant 0 : i32
    %c0_i32_0 = arith.constant 0 : i32
    %c0_i32_1 = arith.constant 0 : i32
    return %c0_i32, %c0_i32_0 : i32, i32
  }
  func.func @transform_31(%arg0: i32) -> (i32, i32) {
    %c0_i32 = arith.constant 0 : i32
    %c0_i32_0 = arith.constant 0 : i32
    %c0_i32_1 = arith.constant 0 : i32
    return %c0_i32, %c0_i32_0 : i32, i32
  }
  func.func @transform_32(%arg0: i32) -> (i32, i32) {
    %c0_i32 = arith.constant 0 : i32
    %c0_i32_0 = arith.constant 0 : i32
    %c0_i32_1 = arith.constant 0 : i32
    return %c0_i32, %c0_i32_0 : i32, i32
  }
  func.func @transform_33(%arg0: i32) -> (i32, i32) {
    %c0_i32 = arith.constant 0 : i32
    %c0_i32_0 = arith.constant 0 : i32
    %c0_i32_1 = arith.constant 0 : i32
    return %c0_i32, %c0_i32_0 : i32, i32
  }
  func.func @transform_34(%arg0: i32) -> (i32, i32) {
    %c0_i32 = arith.constant 0 : i32
    %c0_i32_0 = arith.constant 0 : i32
    %c0_i32_1 = arith.constant 0 : i32
    return %c0_i32, %c0_i32_0 : i32, i32
  }
  func.func @transform_35(%arg0: i32) -> (i32, i32) {
    %c0_i32 = arith.constant 0 : i32
    %c0_i32_0 = arith.constant 0 : i32
    %c0_i32_1 = arith.constant 0 : i32
    return %c0_i32, %c0_i32_0 : i32, i32
  }
  func.func @transform_36(%arg0: i32) -> (i32, i32) {
    %c0_i32 = arith.constant 0 : i32
    %c0_i32_0 = arith.constant 0 : i32
    %c0_i32_1 = arith.constant 0 : i32
    return %c0_i32, %c0_i32_0 : i32, i32
  }
  func.func @transform_37(%arg0: i32) -> (i32, i32) {
    %c0_i32 = arith.constant 0 : i32
    %c0_i32_0 = arith.constant 0 : i32
    %c0_i32_1 = arith.constant 0 : i32
    return %c0_i32, %c0_i32_0 : i32, i32
  }
  func.func @transform_38(%arg0: i32) -> (i32, i32) {
    %c0_i32 = arith.constant 0 : i32
    %c0_i32_0 = arith.constant 0 : i32
    %c0_i32_1 = arith.constant 0 : i32
    return %c0_i32, %c0_i32_0 : i32, i32
  }
  func.func @transform_39(%arg0: i32) -> (i32, i32) {
    %c0_i32 = arith.constant 0 : i32
    %c0_i32_0 = arith.constant 0 : i32
    %c0_i32_1 = arith.constant 0 : i32
    return %c0_i32, %c0_i32_0 : i32, i32
  }
  func.func @transform_40(%arg0: i32) -> (i32, i32) {
    %c0_i32 = arith.constant 0 : i32
    %c0_i32_0 = arith.constant 0 : i32
    %c0_i32_1 = arith.constant 0 : i32
    return %c0_i32, %c0_i32_0 : i32, i32
  }
  func.func @transform_41(%arg0: i32) -> (i32, i32) {
    %c0_i32 = arith.constant 0 : i32
    %c0_i32_0 = arith.constant 0 : i32
    %c0_i32_1 = arith.constant 0 : i32
    return %c0_i32, %c0_i32_0 : i32, i32
  }
  func.func @transform_42(%arg0: i32) -> (i32, i32) {
    %c0_i32 = arith.constant 0 : i32
    %c0_i32_0 = arith.constant 0 : i32
    %c0_i32_1 = arith.constant 0 : i32
    return %c0_i32, %c0_i32_0 : i32, i32
  }
  func.func @transform_43(%arg0: i32) -> (i32, i32) {
    %c0_i32 = arith.constant 0 : i32
    %c0_i32_0 = arith.constant 0 : i32
    %c0_i32_1 = arith.constant 0 : i32
    return %c0_i32, %c0_i32_0 : i32, i32
  }
  func.func @transform_44(%arg0: i32) -> (i32, i32) {
    %c0_i32 = arith.constant 0 : i32
    %c0_i32_0 = arith.constant 0 : i32
    %c0_i32_1 = arith.constant 0 : i32
    return %c0_i32, %c0_i32_0 : i32, i32
  }
  func.func @transform_45(%arg0: i32) -> (i32, i32) {
    %c0_i32 = arith.constant 0 : i32
    %c0_i32_0 = arith.constant 0 : i32
    %c0_i32_1 = arith.constant 0 : i32
    return %c0_i32, %c0_i32_0 : i32, i32
  }
  func.func @transform_46(%arg0: i32) -> (i32, i32) {
    %c0_i32 = arith.constant 0 : i32
    %c0_i32_0 = arith.constant 0 : i32
    %c0_i32_1 = arith.constant 0 : i32
    return %c0_i32, %c0_i32_0 : i32, i32
  }
  func.func @transform_47(%arg0: i32) -> (i32, i32) {
    %c0_i32 = arith.constant 0 : i32
    %c0_i32_0 = arith.constant 0 : i32
    %c0_i32_1 = arith.constant 0 : i32
    return %c0_i32, %c0_i32_0 : i32, i32
  }
  func.func @transform_48(%arg0: i32) -> (i32, i32) {
    %c0_i32 = arith.constant 0 : i32
    %c0_i32_0 = arith.constant 0 : i32
    %c0_i32_1 = arith.constant 0 : i32
    return %c0_i32, %c0_i32_0 : i32, i32
  }
  func.func @transform_49(%arg0: i32) -> (i32, i32) {
    %c0_i32 = arith.constant 0 : i32
    %c0_i32_0 = arith.constant 0 : i32
    %c0_i32_1 = arith.constant 0 : i32
    return %c0_i32, %c0_i32_0 : i32, i32
  }
  func.func @transform_50(%arg0: i32) -> (i32, i32) {
    %c0_i32 = arith.constant 0 : i32
    %c0_i32_0 = arith.constant 0 : i32
    %c0_i32_1 = arith.constant 0 : i32
    return %c0_i32, %c0_i32_0 : i32, i32
  }
  func.func @transform_51(%arg0: i32) -> (i32, i32) {
    %c0_i32 = arith.constant 0 : i32
    %c0_i32_0 = arith.constant 0 : i32
    %c0_i32_1 = arith.constant 0 : i32
    return %c0_i32, %c0_i32_0 : i32, i32
  }
  func.func @transform_52(%arg0: i32) -> (i32, i32) {
    %c0_i32 = arith.constant 0 : i32
    %c0_i32_0 = arith.constant 0 : i32
    %c0_i32_1 = arith.constant 0 : i32
    return %c0_i32, %c0_i32_0 : i32, i32
  }
  func.func @transform_53(%arg0: i32) -> (i32, i32) {
    %c0_i32 = arith.constant 0 : i32
    %c0_i32_0 = arith.constant 0 : i32
    %c0_i32_1 = arith.constant 0 : i32
    return %c0_i32, %c0_i32_0 : i32, i32
  }
  func.func @transform_54(%arg0: i32) -> (i32, i32) {
    %c0_i32 = arith.constant 0 : i32
    %c0_i32_0 = arith.constant 0 : i32
    %c0_i32_1 = arith.constant 0 : i32
    return %c0_i32, %c0_i32_0 : i32, i32
  }
  func.func @transform_55(%arg0: i32) -> (i32, i32) {
    %c0_i32 = arith.constant 0 : i32
    %c0_i32_0 = arith.constant 0 : i32
    %c0_i32_1 = arith.constant 0 : i32
    return %c0_i32, %c0_i32_0 : i32, i32
  }
  func.func @transform_56(%arg0: i32) -> (i32, i32) {
    %c0_i32 = arith.constant 0 : i32
    %c0_i32_0 = arith.constant 0 : i32
    %c0_i32_1 = arith.constant 0 : i32
    return %c0_i32, %c0_i32_0 : i32, i32
  }
  func.func @transform_57(%arg0: i32) -> (i32, i32) {
    %c0_i32 = arith.constant 0 : i32
    %c0_i32_0 = arith.constant 0 : i32
    %c0_i32_1 = arith.constant 0 : i32
    return %c0_i32, %c0_i32_0 : i32, i32
  }
  func.func @transform_58(%arg0: i32) -> (i32, i32) {
    %c0_i32 = arith.constant 0 : i32
    %c0_i32_0 = arith.constant 0 : i32
    %c0_i32_1 = arith.constant 0 : i32
    return %c0_i32, %c0_i32_0 : i32, i32
  }
  func.func @transform_59(%arg0: i32) -> (i32, i32) {
    %c0_i32 = arith.constant 0 : i32
    %c0_i32_0 = arith.constant 0 : i32
    %c0_i32_1 = arith.constant 0 : i32
    return %c0_i32, %c0_i32_0 : i32, i32
  }
  func.func @transform_60(%arg0: i32) -> (i32, i32) {
    %c0_i32 = arith.constant 0 : i32
    %c0_i32_0 = arith.constant 0 : i32
    %c0_i32_1 = arith.constant 0 : i32
    return %c0_i32, %c0_i32_0 : i32, i32
  }
  func.func @transform_61(%arg0: i32) -> (i32, i32) {
    %c0_i32 = arith.constant 0 : i32
    %c0_i32_0 = arith.constant 0 : i32
    %c0_i32_1 = arith.constant 0 : i32
    return %c0_i32, %c0_i32_0 : i32, i32
  }
  func.func @transform_62(%arg0: i32) -> (i32, i32) {
    %c0_i32 = arith.constant 0 : i32
    %c0_i32_0 = arith.constant 0 : i32
    %c0_i32_1 = arith.constant 0 : i32
    return %c0_i32, %c0_i32_0 : i32, i32
  }
  func.func @transform_63(%arg0: i32) -> (i32, i32) {
    %c0_i32 = arith.constant 0 : i32
    %c0_i32_0 = arith.constant 0 : i32
    %c0_i32_1 = arith.constant 0 : i32
    return %c0_i32, %c0_i32_0 : i32, i32
  }
  func.func @transform_64(%arg0: i32) -> (i32, i32) {
    %c0_i32 = arith.constant 0 : i32
    %c0_i32_0 = arith.constant 0 : i32
    %c0_i32_1 = arith.constant 0 : i32
    return %c0_i32, %c0_i32_0 : i32, i32
  }
  func.func @transform_65(%arg0: i32) -> (i32, i32) {
    %c0_i32 = arith.constant 0 : i32
    %c0_i32_0 = arith.constant 0 : i32
    %c0_i32_1 = arith.constant 0 : i32
    return %c0_i32, %c0_i32_0 : i32, i32
  }
  func.func @transform_66(%arg0: i32) -> (i32, i32) {
    %c0_i32 = arith.constant 0 : i32
    %c0_i32_0 = arith.constant 0 : i32
    %c0_i32_1 = arith.constant 0 : i32
    return %c0_i32, %c0_i32_0 : i32, i32
  }
  func.func @transform_67(%arg0: i32) -> (i32, i32) {
    %c0_i32 = arith.constant 0 : i32
    %c0_i32_0 = arith.constant 0 : i32
    %c0_i32_1 = arith.constant 0 : i32
    return %c0_i32, %c0_i32_0 : i32, i32
  }
  func.func @transform_68(%arg0: i32) -> (i32, i32) {
    %c0_i32 = arith.constant 0 : i32
    %c0_i32_0 = arith.constant 0 : i32
    %c0_i32_1 = arith.constant 0 : i32
    return %c0_i32, %c0_i32_0 : i32, i32
  }
  func.func @transform_69(%arg0: i32) -> (i32, i32) {
    %c0_i32 = arith.constant 0 : i32
    %c0_i32_0 = arith.constant 0 : i32
    %c0_i32_1 = arith.constant 0 : i32
    return %c0_i32, %c0_i32_0 : i32, i32
  }
  func.func @transform_70(%arg0: i32) -> (i32, i32) {
    %c0_i32 = arith.constant 0 : i32
    %c0_i32_0 = arith.constant 0 : i32
    %c0_i32_1 = arith.constant 0 : i32
    return %c0_i32, %c0_i32_0 : i32, i32
  }
  func.func @transform_71(%arg0: i32) -> (i32, i32) {
    %c0_i32 = arith.constant 0 : i32
    %c0_i32_0 = arith.constant 0 : i32
    %c0_i32_1 = arith.constant 0 : i32
    return %c0_i32, %c0_i32_0 : i32, i32
  }
  func.func @transform_72(%arg0: i32) -> (i32, i32, i32) {
    %c0_i32 = arith.constant 0 : i32
    %c0_i32_0 = arith.constant 0 : i32
    %c0_i32_1 = arith.constant 0 : i32
    return %arg0, %c0_i32, %c0_i32_0 : i32, i32, i32
  }
}

</mosaic_0001>

<llo_original>
// kernel: transformer_decoder_model_forward.1
$region0: #{transformer_decoder_model_forward.1}
  #allocation0 [shape = 'u32[]', space=smem, size = 0x4, offset = 0x4, fixed_abs, tag = 'smem constant byte address 0x4 - core index']
  #allocation1 [shape = 'u32[144,128]{1,0:T(1,128)}', space=vmem, size = 0x12000, scoped, tag = 'internal scratch']
  %s0 = inlined_call_operand.smem [shape: u32[73], index: -1, kind: input, shape index: {}]
  %s1 = sld [smem:[%s0]]
  %s2 = scalar_lea.smem %s0, 1
  %s3 = sld [smem:[%s2]]
  %s4 = scalar_lea.smem %s0, 2
  %s5 = sld [smem:[%s4]]
  %s6 = scalar_lea.smem %s0, 3
  %s7 = sld [smem:[%s6]]
  %s8 = scalar_lea.smem %s0, 4
  %s9 = sld [smem:[%s8]]
  %s10 = scalar_lea.smem %s0, 5
  %s11 = sld [smem:[%s10]]
  %s12 = scalar_lea.smem %s0, 6
  %s13 = sld [smem:[%s12]]
  %s14 = scalar_lea.smem %s0, 7
  %s15 = sld [smem:[%s14]]
  %s16 = scalar_lea.smem %s0, 8
  %s17 = sld [smem:[%s16]]
  %s18 = scalar_lea.smem %s0, 9
  %s19 = sld [smem:[%s18]]
  %s20 = scalar_lea.smem %s0, 10
  %s21 = sld [smem:[%s20]]
  %s22 = scalar_lea.smem %s0, 11
  %s23 = sld [smem:[%s22]]
  %s24 = scalar_lea.smem %s0, 12
  %s25 = sld [smem:[%s24]]
  %s26 = scalar_lea.smem %s0, 13
  %s27 = sld [smem:[%s26]]
  %s28 = scalar_lea.smem %s0, 14
  %s29 = sld [smem:[%s28]]
  %s30 = scalar_lea.smem %s0, 15
  %s31 = sld [smem:[%s30]]
  %s32 = scalar_lea.smem %s0, 16
  %s33 = sld [smem:[%s32]]
  %s34 = scalar_lea.smem %s0, 17
  %s35 = sld [smem:[%s34]]
  %s36 = scalar_lea.smem %s0, 18
  %s37 = sld [smem:[%s36]]
  %s38 = scalar_lea.smem %s0, 19
  %s39 = sld [smem:[%s38]]
  %s40 = scalar_lea.smem %s0, 20
  %s41 = sld [smem:[%s40]]
  %s42 = scalar_lea.smem %s0, 21
  %s43 = sld [smem:[%s42]]
  %s44 = scalar_lea.smem %s0, 22
  %s45 = sld [smem:[%s44]]
  %s46 = scalar_lea.smem %s0, 23
  %s47 = sld [smem:[%s46]]
  %s48 = scalar_lea.smem %s0, 24
  %s49 = sld [smem:[%s48]]
  %s50 = scalar_lea.smem %s0, 25
  %s51 = sld [smem:[%s50]]
  %s52 = scalar_lea.smem %s0, 26
  %s53 = sld [smem:[%s52]]
  %s54 = scalar_lea.smem %s0, 27
  %s55 = sld [smem:[%s54]]
  %s56 = scalar_lea.smem %s0, 28
  %s57 = sld [smem:[%s56]]
  %s58 = scalar_lea.smem %s0, 29
  %s59 = sld [smem:[%s58]]
  %s60 = scalar_lea.smem %s0, 30
  %s61 = sld [smem:[%s60]]
  %s62 = scalar_lea.smem %s0, 31
  %s63 = sld [smem:[%s62]]
  %s64 = scalar_lea.smem %s0, 32
  %s65 = sld [smem:[%s64]]
  %s66 = scalar_lea.smem %s0, 33
  %s67 = sld [smem:[%s66]]
  %s68 = scalar_lea.smem %s0, 34
  %s69 = sld [smem:[%s68]]
  %s70 = scalar_lea.smem %s0, 35
  %s71 = sld [smem:[%s70]]
  %s72 = scalar_lea.smem %s0, 36
  %s73 = sld [smem:[%s72]]
  %s74 = scalar_lea.smem %s0, 37
  %s75 = sld [smem:[%s74]]
  %s76 = scalar_lea.smem %s0, 38
  %s77 = sld [smem:[%s76]]
  %s78 = scalar_lea.smem %s0, 39
  %s79 = sld [smem:[%s78]]
  %s80 = scalar_lea.smem %s0, 40
  %s81 = sld [smem:[%s80]]
  %s82 = scalar_lea.smem %s0, 41
  %s83 = sld [smem:[%s82]]
  %s84 = scalar_lea.smem %s0, 42
  %s85 = sld [smem:[%s84]]
  %s86 = scalar_lea.smem %s0, 43
  %s87 = sld [smem:[%s86]]
  %s88 = scalar_lea.smem %s0, 44
  %s89 = sld [smem:[%s88]]
  %s90 = scalar_lea.smem %s0, 45
  %s91 = sld [smem:[%s90]]
  %s92 = scalar_lea.smem %s0, 46
  %s93 = sld [smem:[%s92]]
  %s94 = scalar_lea.smem %s0, 47
  %s95 = sld [smem:[%s94]]
  %s96 = scalar_lea.smem %s0, 48
  %s97 = sld [smem:[%s96]]
  %s98 = scalar_lea.smem %s0, 49
  %s99 = sld [smem:[%s98]]
  %s100 = scalar_lea.smem %s0, 50
  %s101 = sld [smem:[%s100]]
  %s102 = scalar_lea.smem %s0, 51
  %s103 = sld [smem:[%s102]]
  %s104 = scalar_lea.smem %s0, 52
  %s105 = sld [smem:[%s104]]
  %s106 = scalar_lea.smem %s0, 53
  %s107 = sld [smem:[%s106]]
  %s108 = scalar_lea.smem %s0, 54
  %s109 = sld [smem:[%s108]]
  %s110 = scalar_lea.smem %s0, 55
  %s111 = sld [smem:[%s110]]
  %s112 = scalar_lea.smem %s0, 56
  %s113 = sld [smem:[%s112]]
  %s114 = scalar_lea.smem %s0, 57
  %s115 = sld [smem:[%s114]]
  %s116 = scalar_lea.smem %s0, 58
  %s117 = sld [smem:[%s116]]
  %s118 = scalar_lea.smem %s0, 59
  %s119 = sld [smem:[%s118]]
  %s120 = scalar_lea.smem %s0, 60
  %s121 = sld [smem:[%s120]]
  %s122 = scalar_lea.smem %s0, 61
  %s123 = sld [smem:[%s122]]
  %s124 = scalar_lea.smem %s0, 62
  %s125 = sld [smem:[%s124]]
  %s126 = scalar_lea.smem %s0, 63
  %s127 = sld [smem:[%s126]]
  %s128 = scalar_lea.smem %s0, 64
  %s129 = sld [smem:[%s128]]
  %s130 = scalar_lea.smem %s0, 65
  %s131 = sld [smem:[%s130]]
  %s132 = scalar_lea.smem %s0, 66
  %s133 = sld [smem:[%s132]]
  %s134 = scalar_lea.smem %s0, 67
  %s135 = sld [smem:[%s134]]
  %s136 = scalar_lea.smem %s0, 68
  %s137 = sld [smem:[%s136]]
  %s138 = scalar_lea.smem %s0, 69
  %s139 = sld [smem:[%s138]]
  %s140 = scalar_lea.smem %s0, 70
  %s141 = sld [smem:[%s140]]
  %s142 = scalar_lea.smem %s0, 71
  %s143 = sld [smem:[%s142]]
  %s144 = scalar_lea.smem %s0, 72
  %s145 = sld [smem:[%s144]]
  %s146 = sld [smem:[#allocation0]]
  $region445: #{transformer_decoder_model_forward.1} parent=0
    _
  %s148 = ssub.s32 1, %s146
  %s149 = scalar_select 0, %s148, %s146
  $region1: #{transformer_decoder_model_forward.1} parent=0
    #allocation2 [shape = 'u8[512]{0}', space=vmem, size = 0x400, scoped, tag = 'input window, operand 26, single buffered']
    #allocation3 [shape = 's32[2]{0}', space=sflag, size = 0x8, scoped, tag = 'scoped memory for transformer_decoder_model_forward.1']
    #allocation4 [shape = 'u8[512]{0}', space=vmem, size = 0x400, scoped, tag = 'input window, operand 27, single buffered']
    #allocation5 [shape = 's32[1]{0}', space=sflag, size = 0x4, scoped, tag = 'scoped memory for transformer_decoder_model_forward.1']
    #allocation6 [shape = 'u8[512]{0}', space=vmem, size = 0x400, scoped, tag = 'input window, operand 29, single buffered']
    #allocation7 [shape = 'u8[512]{0}', space=vmem, size = 0x400, scoped, tag = 'input window, operand 31, single buffered']
    #allocation8 [shape = 's32[1]{0}', space=sflag, size = 0x4, scoped, tag = 'scoped memory for transformer_decoder_model_forward.1']
    #allocation9 [shape = 'u8[512]{0}', space=vmem, size = 0x400, scoped, tag = 'input window, operand 32, single buffered']
    #allocation10 [shape = 'u8[512]{0}', space=vmem, size = 0x400, scoped, tag = 'input window, operand 33, single buffered']
    #allocation11 [shape = 's32[1]{0}', space=sflag, size = 0x4, scoped, tag = 'scoped memory for transformer_decoder_model_forward.1']
    #allocation12 [shape = 'u8[512]{0}', space=vmem, size = 0x400, scoped, tag = 'input window, operand 35, single buffered']
    #allocation13 [shape = 'u8[512]{0}', space=vmem, size = 0x400, scoped, tag = 'input window, operand 37, single buffered']
    #allocation14 [shape = 's32[1]{0}', space=sflag, size = 0x4, scoped, tag = 'scoped memory for transformer_decoder_model_forward.1']
    #allocation15 [shape = 'u8[512]{0}', space=vmem, size = 0x400, scoped, tag = 'input window, operand 39, single buffered']
    #allocation16 [shape = 'u8[512]{0}', space=vmem, size = 0x400, scoped, tag = 'input window, operand 40, single buffered']
    #allocation17 [shape = 's32[1]{0}', space=sflag, size = 0x4, scoped, tag = 'scoped memory for transformer_decoder_model_forward.1']
    #allocation18 [shape = 'u8[512]{0}', space=vmem, size = 0x400, scoped, tag = 'input window, operand 41, single buffered']
    #allocation19 [shape = 'u8[512]{0}', space=vmem, size = 0x400, scoped, tag = 'input window, operand 43, single buffered']
    #allocation20 [shape = 's32[1]{0}', space=sflag, size = 0x4, scoped, tag = 'scoped memory for transformer_decoder_model_forward.1']
    #allocation21 [shape = 'u8[512]{0}', space=vmem, size = 0x400, scoped, tag = 'input window, operand 45, single buffered']
    #allocation22 [shape = 'u8[512]{0}', space=vmem, size = 0x400, scoped, tag = 'input window, operand 46, single buffered']
    #allocation23 [shape = 's32[1]{0}', space=sflag, size = 0x4, scoped, tag = 'scoped memory for transformer_decoder_model_forward.1']
    #allocation24 [shape = 'u8[512]{0}', space=vmem, size = 0x400, scoped, tag = 'input window, operand 47, single buffered']
    #allocation25 [shape = 'u8[512]{0}', space=vmem, size = 0x400, scoped, tag = 'input window, operand 49, single buffered']
    #allocation26 [shape = 's32[1]{0}', space=sflag, size = 0x4, scoped, tag = 'scoped memory for transformer_decoder_model_forward.1']
    #allocation27 [shape = 'u8[512]{0}', space=vmem, size = 0x400, scoped, tag = 'input window, operand 51, single buffered']
    #allocation28 [shape = 'u8[512]{0}', space=vmem, size = 0x400, scoped, tag = 'input window, operand 52, single buffered']
    #allocation29 [shape = 's32[1]{0}', space=sflag, size = 0x4, scoped, tag = 'scoped memory for transformer_decoder_model_forward.1']
    #allocation30 [shape = 'u8[512]{0}', space=vmem, size = 0x400, scoped, tag = 'input window, operand 53, single buffered']
    #allocation31 [shape = 'u8[512]{0}', space=vmem, size = 0x400, scoped, tag = 'input window, operand 55, single buffered']
    #allocation32 [shape = 's32[1]{0}', space=sflag, size = 0x4, scoped, tag = 'scoped memory for transformer_decoder_model_forward.1']
    #allocation33 [shape = 'u8[512]{0}', space=vmem, size = 0x400, scoped, tag = 'input window, operand 57, single buffered']
    #allocation34 [shape = 'u8[512]{0}', space=vmem, size = 0x400, scoped, tag = 'input window, operand 59, single buffered']
    #allocation35 [shape = 's32[1]{0}', space=sflag, size = 0x4, scoped, tag = 'scoped memory for transformer_decoder_model_forward.1']
    #allocation36 [shape = 'u8[512]{0}', space=vmem, size = 0x400, scoped, tag = 'input window, operand 60, single buffered']
    #allocation37 [shape = 'u8[512]{0}', space=vmem, size = 0x400, scoped, tag = 'input window, operand 61, single buffered']
    #allocation38 [shape = 's32[1]{0}', space=sflag, size = 0x4, scoped, tag = 'scoped memory for transformer_decoder_model_forward.1']
    #allocation39 [shape = 'u8[512]{0}', space=vmem, size = 0x400, scoped, tag = 'input window, operand 63, single buffered']
    #allocation40 [shape = 'u8[512]{0}', space=vmem, size = 0x400, scoped, tag = 'input window, operand 65, single buffered']
    #allocation41 [shape = 's32[1]{0}', space=sflag, size = 0x4, scoped, tag = 'scoped memory for transformer_decoder_model_forward.1']
    #allocation42 [shape = 'u8[512]{0}', space=vmem, size = 0x400, scoped, tag = 'input window, operand 66, single buffered']
    #allocation43 [shape = 'u8[512]{0}', space=vmem, size = 0x400, scoped, tag = 'input window, operand 67, single buffered']
    #allocation44 [shape = 's32[1]{0}', space=sflag, size = 0x4, scoped, tag = 'scoped memory for transformer_decoder_model_forward.1']
    #allocation45 [shape = 'u8[512]{0}', space=vmem, size = 0x400, scoped, tag = 'input window, operand 68, single buffered']
    #allocation46 [shape = 'u8[512]{0}', space=vmem, size = 0x400, scoped, tag = 'input window, operand 69, single buffered']
    #allocation47 [shape = 's32[1]{0}', space=sflag, size = 0x4, scoped, tag = 'scoped memory for transformer_decoder_model_forward.1']
    #allocation48 [shape = 'u8[512]{0}', space=vmem, size = 0x400, scoped, tag = 'input window, operand 71, single buffered']
    %150 = vsyncpa [#allocation3], 0
    %151 = vsyncpa [#allocation5], 0
    %152 = vsyncpa [#allocation8], 0
    %153 = vsyncpa [#allocation11], 0
    %154 = vsyncpa [#allocation14], 0
    %155 = vsyncpa [#allocation17], 0
    %156 = vsyncpa [#allocation20], 0
    %157 = vsyncpa [#allocation23], 0
    %158 = vsyncpa [#allocation26], 0
    %159 = vsyncpa [#allocation29], 0
    %160 = vsyncpa [#allocation32], 0
    %161 = vsyncpa [#allocation35], 0
    %162 = vsyncpa [#allocation38], 0
    %163 = vsyncpa [#allocation41], 0
    %164 = vsyncpa [#allocation44], 0
    %165 = vsyncpa [#allocation47], 0
    loop: start=0, step=1, limit=4
    $region2: #{transformer_decoder_model_forward.1} parent=1 // loop_pre_header
      _
    $region3: #{transformer_decoder_model_forward.1} parent=1 // loop_header
      %s167 = sphi 0, %s171
      %p168 = scmp.ge.s32.totalorder %s167, 4
      %s177 = sphi 0, %s179
      %s180 = sphi 0, %s177
      %s181 = sphi 0, %s180
      %s197 = sphi 0, %s181
      %s203 = sphi 0, %s205
      %s206 = sphi 0, %s203
      %s207 = sphi 0, %s206
      %s223 = sphi 0, %s207
      %s227 = sphi 0, %s227
      %s229 = sphi 0, %s227
      %s230 = sphi 0, %s229
      %s244 = sphi 0, %s230
      %s248 = sphi 0, %s248
      %s250 = sphi 0, %s248
      %s251 = sphi 0, %s250
      %s265 = sphi 0, %s251
      %s269 = sphi 0, %s269
      %s271 = sphi 0, %s269
      %s272 = sphi 0, %s271
      %s286 = sphi 0, %s272
      %s290 = sphi 0, %s290
      %s292 = sphi 0, %s290
      %s293 = sphi 0, %s292
      %s307 = sphi 0, %s293
      %s311 = sphi 0, %s311
      %s313 = sphi 0, %s311
      %s314 = sphi 0, %s313
      %s328 = sphi 0, %s314
      %s332 = sphi 0, %s332
      %s334 = sphi 0, %s332
      %s335 = sphi 0, %s334
      %s349 = sphi 0, %s335
      %s353 = sphi 0, %s353
      %s355 = sphi 0, %s353
      %s356 = sphi 0, %s355
      %s370 = sphi 0, %s356
      %s374 = sphi 0, %s374
      %s376 = sphi 0, %s374
      %s377 = sphi 0, %s376
      %s391 = sphi 0, %s377
      %s395 = sphi 0, %s395
      %s397 = sphi 0, %s395
      %s398 = sphi 0, %s397
      %s412 = sphi 0, %s398
      %s416 = sphi 0, %s416
      %s418 = sphi 0, %s416
      %s419 = sphi 0, %s418
      %s433 = sphi 0, %s419
      %s437 = sphi 0, %s437
      %s439 = sphi 0, %s437
      %s440 = sphi 0, %s439
      %s454 = sphi 0, %s440
      %s458 = sphi 0, %s458
      %s460 = sphi 0, %s458
      %s461 = sphi 0, %s460
      %s475 = sphi 0, %s461
      %s479 = sphi 0, %s479
      %s481 = sphi 0, %s479
      %s482 = sphi 0, %s481
      %s496 = sphi 0, %s482
      %s500 = sphi 0, %s500
      %s502 = sphi 0, %s500
      %s503 = sphi 0, %s502
      %s517 = sphi 0, %s503
      %s521 = sphi 0, %s521
      %s523 = sphi 0, %s521
      %s524 = sphi 0, %s523
      %s538 = sphi 0, %s524
      %s542 = sphi 0, %s542
      %s544 = sphi 0, %s542
      %s545 = sphi 0, %s544
      %s559 = sphi 0, %s545
      %s563 = sphi 0, %s563
      %s565 = sphi 0, %s563
      %s566 = sphi 0, %s565
      %s580 = sphi 0, %s566
      %s584 = sphi 0, %s584
      %s586 = sphi 0, %s584
      %s587 = sphi 0, %s586
      %s601 = sphi 0, %s587
      %s605 = sphi 0, %s605
      %s607 = sphi 0, %s605
      %s608 = sphi 0, %s607
      %s622 = sphi 0, %s608
      %s626 = sphi 0, %s626
      %s628 = sphi 0, %s626
      %s629 = sphi 0, %s628
      %s643 = sphi 0, %s629
      %s647 = sphi 0, %s647
      %s649 = sphi 0, %s647
      %s650 = sphi 0, %s649
      %s664 = sphi 0, %s650
      %s668 = sphi 0, %s668
      %s670 = sphi 0, %s668
      %s671 = sphi 0, %s670
      %s685 = sphi 0, %s671
      %s689 = sphi 0, %s689
      %s691 = sphi 0, %s689
      %s692 = sphi 0, %s691
      %s706 = sphi 0, %s692
      %s710 = sphi 0, %s710
      %s712 = sphi 0, %s710
      %s713 = sphi 0, %s712
      %s727 = sphi 0, %s713
      %s731 = sphi 0, %s731
      %s733 = sphi 0, %s731
      %s734 = sphi 0, %s733
      %s748 = sphi 0, %s734
      %s752 = sphi 0, %s752
      %s754 = sphi 0, %s752
      %s755 = sphi 0, %s754
      %s769 = sphi 0, %s755
      %s773 = sphi 0, %s773
      %s775 = sphi 0, %s773
      %s776 = sphi 0, %s775
      %s790 = sphi 0, %s776
      %s794 = sphi 0, %s794
      %s796 = sphi 0, %s794
      %s797 = sphi 0, %s796
      %s811 = sphi 0, %s797
      %s815 = sphi 0, %s815
      %s817 = sphi 0, %s815
      %s818 = sphi 0, %s817
      %s832 = sphi 0, %s818
      %s836 = sphi 0, %s836
      %s838 = sphi 0, %s836
      %s839 = sphi 0, %s838
      %s853 = sphi 0, %s839
      %s857 = sphi 0, %s857
      %s859 = sphi 0, %s857
      %s860 = sphi 0, %s859
      %s874 = sphi 0, %s860
      %s878 = sphi 0, %s878
      %s880 = sphi 0, %s878
      %s881 = sphi 0, %s880
      %s895 = sphi 0, %s881
      %s899 = sphi 0, %s899
      %s901 = sphi 0, %s899
      %s902 = sphi 0, %s901
      %s916 = sphi 0, %s902
      %s920 = sphi 0, %s920
      %s922 = sphi 0, %s920
      %s923 = sphi 0, %s922
      %s937 = sphi 0, %s923
      %s941 = sphi 0, %s941
      %s943 = sphi 0, %s941
      %s944 = sphi 0, %s943
      %s958 = sphi 0, %s944
      %s962 = sphi 0, %s962
      %s964 = sphi 0, %s962
      %s965 = sphi 0, %s964
      %s979 = sphi 0, %s965
      %s983 = sphi 0, %s983
      %s985 = sphi 0, %s983
      %s986 = sphi 0, %s985
      %s1000 = sphi 0, %s986
      %s1004 = sphi 0, %s1004
      %s1006 = sphi 0, %s1004
      %s1007 = sphi 0, %s1006
      %s1021 = sphi 0, %s1007
      %s1025 = sphi 0, %s1025
      %s1027 = sphi 0, %s1025
      %s1028 = sphi 0, %s1027
      %s1042 = sphi 0, %s1028
      %s1046 = sphi 0, %s1046
      %s1048 = sphi 0, %s1046
      %s1049 = sphi 0, %s1048
      %s1063 = sphi 0, %s1049
      %s1067 = sphi 0, %s1067
      %s1069 = sphi 0, %s1067
      %s1070 = sphi 0, %s1069
      %s1084 = sphi 0, %s1070
      %s1088 = sphi 0, %s1088
      %s1090 = sphi 0, %s1088
      %s1091 = sphi 0, %s1090
      %s1105 = sphi 0, %s1091
      %s1109 = sphi 0, %s1109
      %s1111 = sphi 0, %s1109
      %s1112 = sphi 0, %s1111
      %s1126 = sphi 0, %s1112
      %s1130 = sphi 0, %s1130
      %s1132 = sphi 0, %s1130
      %s1133 = sphi 0, %s1132
      %s1147 = sphi 0, %s1133
      %s1151 = sphi 0, %s1151
      %s1153 = sphi 0, %s1151
      %s1154 = sphi 0, %s1153
      %s1168 = sphi 0, %s1154
      %s1172 = sphi 0, %s1172
      %s1174 = sphi 0, %s1172
      %s1175 = sphi 0, %s1174
      %s1189 = sphi 0, %s1175
      %s1193 = sphi 0, %s1193
      %s1195 = sphi 0, %s1193
      %s1196 = sphi 0, %s1195
      %s1210 = sphi 0, %s1196
      %s1214 = sphi 0, %s1214
      %s1216 = sphi 0, %s1214
      %s1217 = sphi 0, %s1216
      %s1231 = sphi 0, %s1217
      %s1235 = sphi 0, %s1235
      %s1237 = sphi 0, %s1235
      %s1238 = sphi 0, %s1237
      %s1252 = sphi 0, %s1238
      %s1256 = sphi 0, %s1256
      %s1258 = sphi 0, %s1256
      %s1259 = sphi 0, %s1258
      %s1273 = sphi 0, %s1259
      %s1277 = sphi 0, %s1277
      %s1279 = sphi 0, %s1277
      %s1280 = sphi 0, %s1279
      %s1294 = sphi 0, %s1280
      %s1298 = sphi 0, %s1298
      %s1300 = sphi 0, %s1298
      %s1301 = sphi 0, %s1300
      %s1315 = sphi 0, %s1301
      %s1319 = sphi 0, %s1319
      %s1321 = sphi 0, %s1319
      %s1322 = sphi 0, %s1321
      %s1336 = sphi 0, %s1322
      %s1340 = sphi 0, %s1340
      %s1342 = sphi 0, %s1340
      %s1343 = sphi 0, %s1342
      %s1357 = sphi 0, %s1343
      %s1361 = sphi 0, %s1361
      %s1363 = sphi 0, %s1361
      %s1364 = sphi 0, %s1363
      %s1378 = sphi 0, %s1364
      %s1382 = sphi 0, %s1382
      %s1384 = sphi 0, %s1382
      %s1385 = sphi 0, %s1384
      %s1399 = sphi 0, %s1385
      %s1403 = sphi 0, %s1403
      %s1405 = sphi 0, %s1403
      %s1406 = sphi 0, %s1405
      %s1420 = sphi 0, %s1406
      %s1424 = sphi 0, %s1424
      %s1426 = sphi 0, %s1424
      %s1427 = sphi 0, %s1426
      %s1441 = sphi 0, %s1427
      %s1445 = sphi 0, %s1445
      %s1447 = sphi 0, %s1445
      %s1448 = sphi 0, %s1447
      %s1462 = sphi 0, %s1448
      %s1466 = sphi 0, %s1466
      %s1468 = sphi 0, %s1466
      %s1469 = sphi 0, %s1468
      %s1483 = sphi 0, %s1469
      %s1487 = sphi 0, %s1487
      %s1489 = sphi 0, %s1487
      %s1490 = sphi 0, %s1489
      %s1504 = sphi 0, %s1490
      %s1508 = sphi 0, %s1508
      %s1510 = sphi 0, %s1508
      %s1511 = sphi 0, %s1510
      %s1525 = sphi 0, %s1511
      %s1529 = sphi 0, %s1529
      %s1531 = sphi 0, %s1529
      %s1532 = sphi 0, %s1531
      %s1546 = sphi 0, %s1532
      %s1550 = sphi 0, %s1550
      %s1552 = sphi 0, %s1550
      %s1553 = sphi 0, %s1552
      %s1567 = sphi 0, %s1553
      %s1571 = sphi 0, %s1571
      %s1573 = sphi 0, %s1571
      %s1574 = sphi 0, %s1573
      %s1588 = sphi 0, %s1574
      %s1592 = sphi 0, %s1592
      %s1594 = sphi 0, %s1592
      %s1595 = sphi 0, %s1594
      %s1609 = sphi 0, %s1595
      %s1613 = sphi 0, %s1613
      %s1615 = sphi 0, %s1613
      %s1616 = sphi 0, %s1615
      %s1630 = sphi 0, %s1616
      %s1634 = sphi 0, %s1634
      %s1636 = sphi 0, %s1634
      %s1637 = sphi 0, %s1636
      %s1651 = sphi 0, %s1637
      %s1655 = sphi 0, %s1655
      %s1657 = sphi 0, %s1655
      %s1658 = sphi 0, %s1657
      %s1672 = sphi 0, %s1658
      %s1676 = sphi 0, %s1676
      %s1678 = sphi 0, %s1676
      %s1679 = sphi 0, %s1678
      %s1693 = sphi 0, %s1679
      %s1699 = sphi 0, %s1701
      %s1702 = sphi 0, %s1699
      %s1703 = sphi 0, %s1702
      %s1719 = sphi 0, %s1703
    $region4: #{transformer_decoder_model_forward.1} parent=1 // loop_header_branch
      %170 = sbr.rel (%p168) target = $region8
    $region5: #{transformer_decoder_model_forward.1} parent=1 // loop_body
      %s172 = ssub.s32 %s167, 1
      %s173 = ssub.s32 %s167, 2
      %s174 = sadd.s32 %s167, 1
      %s175 = ssub.s32 %s167, %s174
      %p176 = scmp.eq.s32.totalorder %s175, 0
      %s178 = sadd.s32 %s177, 1
      %s179 = scalar_select %p176, %s177, %s178
      %p182 = pneg %p176
      %p183 = scmp.eq.s32.totalorder %s167, 1
      %p184 = por %p182, %p183
      %p185 = scmp.ne.s32.totalorder %s177, %s180
      %p186 = scmp.eq.s32.totalorder %s167, 0
      %p187 = por %p185, %p186
      %p188 = scmp.ne.s32.totalorder %s177, %s180
      %p189 = scmp.eq.s32.totalorder %s172, 1
      %p190 = por %p188, %p189
      %p191 = scmp.ne.s32.totalorder %s180, %s181
      %p192 = scmp.eq.s32.totalorder %s172, 0
      %p193 = por %p191, %p192
      %p194 = scmp.ne.s32.totalorder %s180, %s181
      %p195 = scmp.eq.s32.totalorder %s173, 1
      %p196 = por %p194, %p195
      %p198 = scmp.ne.s32.totalorder %s181, %s197
      %p199 = scmp.eq.s32.totalorder %s173, 0
      %p200 = por %p198, %p199
      %s201 = ssub.s32 %s167, %s174
      %p202 = scmp.eq.s32.totalorder %s201, 0
      %s204 = sadd.s32 %s203, 1
      %s205 = scalar_select %p202, %s203, %s204
      %p208 = pneg %p202
      %p209 = scmp.eq.s32.totalorder %s167, 1
      %p210 = por %p208, %p209
      %p211 = scmp.ne.s32.totalorder %s203, %s206
      %p212 = scmp.eq.s32.totalorder %s167, 0
      %p213 = por %p211, %p212
      %p214 = scmp.ne.s32.totalorder %s203, %s206
      %p215 = scmp.eq.s32.totalorder %s172, 1
      %p216 = por %p214, %p215
      %p217 = scmp.ne.s32.totalorder %s206, %s207
      %p218 = scmp.eq.s32.totalorder %s172, 0
      %p219 = por %p217, %p218
      %p220 = scmp.ne.s32.totalorder %s206, %s207
      %p221 = scmp.eq.s32.totalorder %s173, 1
      %p222 = por %p220, %p221
      %p224 = scmp.ne.s32.totalorder %s207, %s223
      %p225 = scmp.eq.s32.totalorder %s173, 0
      %p226 = por %p224, %p225
      %s228 = sadd.s32 %s227, 1
      %p231 = scmp.eq.s32.totalorder %s167, 1
      %p232 = scmp.ne.s32.totalorder %s227, %s229
      %p233 = scmp.eq.s32.totalorder %s167, 0
      %p234 = por %p232, %p233
      %p235 = scmp.ne.s32.totalorder %s227, %s229
      %p236 = scmp.eq.s32.totalorder %s172, 1
      %p237 = por %p235, %p236
      %p238 = scmp.ne.s32.totalorder %s229, %s230
      %p239 = scmp.eq.s32.totalorder %s172, 0
      %p240 = por %p238, %p239
      %p241 = scmp.ne.s32.totalorder %s229, %s230
      %p242 = scmp.eq.s32.totalorder %s173, 1
      %p243 = por %p241, %p242
      %p245 = scmp.ne.s32.totalorder %s230, %s244
      %p246 = scmp.eq.s32.totalorder %s173, 0
      %p247 = por %p245, %p246
      %s249 = sadd.s32 %s248, 1
      %p252 = scmp.eq.s32.totalorder %s167, 1
      %p253 = scmp.ne.s32.totalorder %s248, %s250
      %p254 = scmp.eq.s32.totalorder %s167, 0
      %p255 = por %p253, %p254
      %p256 = scmp.ne.s32.totalorder %s248, %s250
      %p257 = scmp.eq.s32.totalorder %s172, 1
      %p258 = por %p256, %p257
      %p259 = scmp.ne.s32.totalorder %s250, %s251
      %p260 = scmp.eq.s32.totalorder %s172, 0
      %p261 = por %p259, %p260
      %p262 = scmp.ne.s32.totalorder %s250, %s251
      %p263 = scmp.eq.s32.totalorder %s173, 1
      %p264 = por %p262, %p263
      %p266 = scmp.ne.s32.totalorder %s251, %s265
      %p267 = scmp.eq.s32.totalorder %s173, 0
      %p268 = por %p266, %p267
      %s270 = sadd.s32 %s269, 1
      %p273 = scmp.eq.s32.totalorder %s167, 1
      %p274 = scmp.ne.s32.totalorder %s269, %s271
      %p275 = scmp.eq.s32.totalorder %s167, 0
      %p276 = por %p274, %p275
      %p277 = scmp.ne.s32.totalorder %s269, %s271
      %p278 = scmp.eq.s32.totalorder %s172, 1
      %p279 = por %p277, %p278
      %p280 = scmp.ne.s32.totalorder %s271, %s272
      %p281 = scmp.eq.s32.totalorder %s172, 0
      %p282 = por %p280, %p281
      %p283 = scmp.ne.s32.totalorder %s271, %s272
      %p284 = scmp.eq.s32.totalorder %s173, 1
      %p285 = por %p283, %p284
      %p287 = scmp.ne.s32.totalorder %s272, %s286
      %p288 = scmp.eq.s32.totalorder %s173, 0
      %p289 = por %p287, %p288
      %s291 = sadd.s32 %s290, 1
      %p294 = scmp.eq.s32.totalorder %s167, 1
      %p295 = scmp.ne.s32.totalorder %s290, %s292
      %p296 = scmp.eq.s32.totalorder %s167, 0
      %p297 = por %p295, %p296
      %p298 = scmp.ne.s32.totalorder %s290, %s292
      %p299 = scmp.eq.s32.totalorder %s172, 1
      %p300 = por %p298, %p299
      %p301 = scmp.ne.s32.totalorder %s292, %s293
      %p302 = scmp.eq.s32.totalorder %s172, 0
      %p303 = por %p301, %p302
      %p304 = scmp.ne.s32.totalorder %s292, %s293
      %p305 = scmp.eq.s32.totalorder %s173, 1
      %p306 = por %p304, %p305
      %p308 = scmp.ne.s32.totalorder %s293, %s307
      %p309 = scmp.eq.s32.totalorder %s173, 0
      %p310 = por %p308, %p309
      %s312 = sadd.s32 %s311, 1
      %p315 = scmp.eq.s32.totalorder %s167, 1
      %p316 = scmp.ne.s32.totalorder %s311, %s313
      %p317 = scmp.eq.s32.totalorder %s167, 0
      %p318 = por %p316, %p317
      %p319 = scmp.ne.s32.totalorder %s311, %s313
      %p320 = scmp.eq.s32.totalorder %s172, 1
      %p321 = por %p319, %p320
      %p322 = scmp.ne.s32.totalorder %s313, %s314
      %p323 = scmp.eq.s32.totalorder %s172, 0
      %p324 = por %p322, %p323
      %p325 = scmp.ne.s32.totalorder %s313, %s314
      %p326 = scmp.eq.s32.totalorder %s173, 1
      %p327 = por %p325, %p326
      %p329 = scmp.ne.s32.totalorder %s314, %s328
      %p330 = scmp.eq.s32.totalorder %s173, 0
      %p331 = por %p329, %p330
      %s333 = sadd.s32 %s332, 1
      %p336 = scmp.eq.s32.totalorder %s167, 1
      %p337 = scmp.ne.s32.totalorder %s332, %s334
      %p338 = scmp.eq.s32.totalorder %s167, 0
      %p339 = por %p337, %p338
      %p340 = scmp.ne.s32.totalorder %s332, %s334
      %p341 = scmp.eq.s32.totalorder %s172, 1
      %p342 = por %p340, %p341
      %p343 = scmp.ne.s32.totalorder %s334, %s335
      %p344 = scmp.eq.s32.totalorder %s172, 0
      %p345 = por %p343, %p344
      %p346 = scmp.ne.s32.totalorder %s334, %s335
      %p347 = scmp.eq.s32.totalorder %s173, 1
      %p348 = por %p346, %p347
      %p350 = scmp.ne.s32.totalorder %s335, %s349
      %p351 = scmp.eq.s32.totalorder %s173, 0
      %p352 = por %p350, %p351
      %s354 = sadd.s32 %s353, 1
      %p357 = scmp.eq.s32.totalorder %s167, 1
      %p358 = scmp.ne.s32.totalorder %s353, %s355
      %p359 = scmp.eq.s32.totalorder %s167, 0
      %p360 = por %p358, %p359
      %p361 = scmp.ne.s32.totalorder %s353, %s355
      %p362 = scmp.eq.s32.totalorder %s172, 1
      %p363 = por %p361, %p362
      %p364 = scmp.ne.s32.totalorder %s355, %s356
      %p365 = scmp.eq.s32.totalorder %s172, 0
      %p366 = por %p364, %p365
      %p367 = scmp.ne.s32.totalorder %s355, %s356
      %p368 = scmp.eq.s32.totalorder %s173, 1
      %p369 = por %p367, %p368
      %p371 = scmp.ne.s32.totalorder %s356, %s370
      %p372 = scmp.eq.s32.totalorder %s173, 0
      %p373 = por %p371, %p372
      %s375 = sadd.s32 %s374, 1
      %p378 = scmp.eq.s32.totalorder %s167, 1
      %p379 = scmp.ne.s32.totalorder %s374, %s376
      %p380 = scmp.eq.s32.totalorder %s167, 0
      %p381 = por %p379, %p380
      %p382 = scmp.ne.s32.totalorder %s374, %s376
      %p383 = scmp.eq.s32.totalorder %s172, 1
      %p384 = por %p382, %p383
      %p385 = scmp.ne.s32.totalorder %s376, %s377
      %p386 = scmp.eq.s32.totalorder %s172, 0
      %p387 = por %p385, %p386
      %p388 = scmp.ne.s32.totalorder %s376, %s377
      %p389 = scmp.eq.s32.totalorder %s173, 1
      %p390 = por %p388, %p389
      %p392 = scmp.ne.s32.totalorder %s377, %s391
      %p393 = scmp.eq.s32.totalorder %s173, 0
      %p394 = por %p392, %p393
      %s396 = sadd.s32 %s395, 1
      %p399 = scmp.eq.s32.totalorder %s167, 1
      %p400 = scmp.ne.s32.totalorder %s395, %s397
      %p401 = scmp.eq.s32.totalorder %s167, 0
      %p402 = por %p400, %p401
      %p403 = scmp.ne.s32.totalorder %s395, %s397
      %p404 = scmp.eq.s32.totalorder %s172, 1
      %p405 = por %p403, %p404
      %p406 = scmp.ne.s32.totalorder %s397, %s398
      %p407 = scmp.eq.s32.totalorder %s172, 0
      %p408 = por %p406, %p407
      %p409 = scmp.ne.s32.totalorder %s397, %s398
      %p410 = scmp.eq.s32.totalorder %s173, 1
      %p411 = por %p409, %p410
      %p413 = scmp.ne.s32.totalorder %s398, %s412
      %p414 = scmp.eq.s32.totalorder %s173, 0
      %p415 = por %p413, %p414
      %s417 = sadd.s32 %s416, 1
      %p420 = scmp.eq.s32.totalorder %s167, 1
      %p421 = scmp.ne.s32.totalorder %s416, %s418
      %p422 = scmp.eq.s32.totalorder %s167, 0
      %p423 = por %p421, %p422
      %p424 = scmp.ne.s32.totalorder %s416, %s418
      %p425 = scmp.eq.s32.totalorder %s172, 1
      %p426 = por %p424, %p425
      %p427 = scmp.ne.s32.totalorder %s418, %s419
      %p428 = scmp.eq.s32.totalorder %s172, 0
      %p429 = por %p427, %p428
      %p430 = scmp.ne.s32.totalorder %s418, %s419
      %p431 = scmp.eq.s32.totalorder %s173, 1
      %p432 = por %p430, %p431
      %p434 = scmp.ne.s32.totalorder %s419, %s433
      %p435 = scmp.eq.s32.totalorder %s173, 0
      %p436 = por %p434, %p435
      %s438 = sadd.s32 %s437, 1
      %p441 = scmp.eq.s32.totalorder %s167, 1
      %p442 = scmp.ne.s32.totalorder %s437, %s439
      %p443 = scmp.eq.s32.totalorder %s167, 0
      %p444 = por %p442, %p443
      %p445 = scmp.ne.s32.totalorder %s437, %s439
      %p446 = scmp.eq.s32.totalorder %s172, 1
      %p447 = por %p445, %p446
      %p448 = scmp.ne.s32.totalorder %s439, %s440
      %p449 = scmp.eq.s32.totalorder %s172, 0
      %p450 = por %p448, %p449
      %p451 = scmp.ne.s32.totalorder %s439, %s440
      %p452 = scmp.eq.s32.totalorder %s173, 1
      %p453 = por %p451, %p452
      %p455 = scmp.ne.s32.totalorder %s440, %s454
      %p456 = scmp.eq.s32.totalorder %s173, 0
      %p457 = por %p455, %p456
      %s459 = sadd.s32 %s458, 1
      %p462 = scmp.eq.s32.totalorder %s167, 1
      %p463 = scmp.ne.s32.totalorder %s458, %s460
      %p464 = scmp.eq.s32.totalorder %s167, 0
      %p465 = por %p463, %p464
      %p466 = scmp.ne.s32.totalorder %s458, %s460
      %p467 = scmp.eq.s32.totalorder %s172, 1
      %p468 = por %p466, %p467
      %p469 = scmp.ne.s32.totalorder %s460, %s461
      %p470 = scmp.eq.s32.totalorder %s172, 0
      %p471 = por %p469, %p470
      %p472 = scmp.ne.s32.totalorder %s460, %s461
      %p473 = scmp.eq.s32.totalorder %s173, 1
      %p474 = por %p472, %p473
      %p476 = scmp.ne.s32.totalorder %s461, %s475
      %p477 = scmp.eq.s32.totalorder %s173, 0
      %p478 = por %p476, %p477
      %s480 = sadd.s32 %s479, 1
      %p483 = scmp.eq.s32.totalorder %s167, 1
      %p484 = scmp.ne.s32.totalorder %s479, %s481
      %p485 = scmp.eq.s32.totalorder %s167, 0
      %p486 = por %p484, %p485
      %p487 = scmp.ne.s32.totalorder %s479, %s481
      %p488 = scmp.eq.s32.totalorder %s172, 1
      %p489 = por %p487, %p488
      %p490 = scmp.ne.s32.totalorder %s481, %s482
      %p491 = scmp.eq.s32.totalorder %s172, 0
      %p492 = por %p490, %p491
      %p493 = scmp.ne.s32.totalorder %s481, %s482
      %p494 = scmp.eq.s32.totalorder %s173, 1
      %p495 = por %p493, %p494
      %p497 = scmp.ne.s32.totalorder %s482, %s496
      %p498 = scmp.eq.s32.totalorder %s173, 0
      %p499 = por %p497, %p498
      %s501 = sadd.s32 %s500, 1
      %p504 = scmp.eq.s32.totalorder %s167, 1
      %p505 = scmp.ne.s32.totalorder %s500, %s502
      %p506 = scmp.eq.s32.totalorder %s167, 0
      %p507 = por %p505, %p506
      %p508 = scmp.ne.s32.totalorder %s500, %s502
      %p509 = scmp.eq.s32.totalorder %s172, 1
      %p510 = por %p508, %p509
      %p511 = scmp.ne.s32.totalorder %s502, %s503
      %p512 = scmp.eq.s32.totalorder %s172, 0
      %p513 = por %p511, %p512
      %p514 = scmp.ne.s32.totalorder %s502, %s503
      %p515 = scmp.eq.s32.totalorder %s173, 1
      %p516 = por %p514, %p515
      %p518 = scmp.ne.s32.totalorder %s503, %s517
      %p519 = scmp.eq.s32.totalorder %s173, 0
      %p520 = por %p518, %p519
      %s522 = sadd.s32 %s521, 1
      %p525 = scmp.eq.s32.totalorder %s167, 1
      %p526 = scmp.ne.s32.totalorder %s521, %s523
      %p527 = scmp.eq.s32.totalorder %s167, 0
      %p528 = por %p526, %p527
      %p529 = scmp.ne.s32.totalorder %s521, %s523
      %p530 = scmp.eq.s32.totalorder %s172, 1
      %p531 = por %p529, %p530
      %p532 = scmp.ne.s32.totalorder %s523, %s524
      %p533 = scmp.eq.s32.totalorder %s172, 0
      %p534 = por %p532, %p533
      %p535 = scmp.ne.s32.totalorder %s523, %s524
      %p536 = scmp.eq.s32.totalorder %s173, 1
      %p537 = por %p535, %p536
      %p539 = scmp.ne.s32.totalorder %s524, %s538
      %p540 = scmp.eq.s32.totalorder %s173, 0
      %p541 = por %p539, %p540
      %s543 = sadd.s32 %s542, 1
      %p546 = scmp.eq.s32.totalorder %s167, 1
      %p547 = scmp.ne.s32.totalorder %s542, %s544
      %p548 = scmp.eq.s32.totalorder %s167, 0
      %p549 = por %p547, %p548
      %p550 = scmp.ne.s32.totalorder %s542, %s544
      %p551 = scmp.eq.s32.totalorder %s172, 1
      %p552 = por %p550, %p551
      %p553 = scmp.ne.s32.totalorder %s544, %s545
      %p554 = scmp.eq.s32.totalorder %s172, 0
      %p555 = por %p553, %p554
      %p556 = scmp.ne.s32.totalorder %s544, %s545
      %p557 = scmp.eq.s32.totalorder %s173, 1
      %p558 = por %p556, %p557
      %p560 = scmp.ne.s32.totalorder %s545, %s559
      %p561 = scmp.eq.s32.totalorder %s173, 0
      %p562 = por %p560, %p561
      %s564 = sadd.s32 %s563, 1
      %p567 = scmp.eq.s32.totalorder %s167, 1
      %p568 = scmp.ne.s32.totalorder %s563, %s565
      %p569 = scmp.eq.s32.totalorder %s167, 0
      %p570 = por %p568, %p569
      %p571 = scmp.ne.s32.totalorder %s563, %s565
      %p572 = scmp.eq.s32.totalorder %s172, 1
      %p573 = por %p571, %p572
      %p574 = scmp.ne.s32.totalorder %s565, %s566
      %p575 = scmp.eq.s32.totalorder %s172, 0
      %p576 = por %p574, %p575
      %p577 = scmp.ne.s32.totalorder %s565, %s566
      %p578 = scmp.eq.s32.totalorder %s173, 1
      %p579 = por %p577, %p578
      %p581 = scmp.ne.s32.totalorder %s566, %s580
      %p582 = scmp.eq.s32.totalorder %s173, 0
      %p583 = por %p581, %p582
      %s585 = sadd.s32 %s584, 1
      %p588 = scmp.eq.s32.totalorder %s167, 1
      %p589 = scmp.ne.s32.totalorder %s584, %s586
      %p590 = scmp.eq.s32.totalorder %s167, 0
      %p591 = por %p589, %p590
      %p592 = scmp.ne.s32.totalorder %s584, %s586
      %p593 = scmp.eq.s32.totalorder %s172, 1
      %p594 = por %p592, %p593
      %p595 = scmp.ne.s32.totalorder %s586, %s587
      %p596 = scmp.eq.s32.totalorder %s172, 0
      %p597 = por %p595, %p596
      %p598 = scmp.ne.s32.totalorder %s586, %s587
      %p599 = scmp.eq.s32.totalorder %s173, 1
      %p600 = por %p598, %p599
      %p602 = scmp.ne.s32.totalorder %s587, %s601
      %p603 = scmp.eq.s32.totalorder %s173, 0
      %p604 = por %p602, %p603
      %s606 = sadd.s32 %s605, 1
      %p609 = scmp.eq.s32.totalorder %s167, 1
      %p610 = scmp.ne.s32.totalorder %s605, %s607
      %p611 = scmp.eq.s32.totalorder %s167, 0
      %p612 = por %p610, %p611
      %p613 = scmp.ne.s32.totalorder %s605, %s607
      %p614 = scmp.eq.s32.totalorder %s172, 1
      %p615 = por %p613, %p614
      %p616 = scmp.ne.s32.totalorder %s607, %s608
      %p617 = scmp.eq.s32.totalorder %s172, 0
      %p618 = por %p616, %p617
      %p619 = scmp.ne.s32.totalorder %s607, %s608
      %p620 = scmp.eq.s32.totalorder %s173, 1
      %p621 = por %p619, %p620
      %p623 = scmp.ne.s32.totalorder %s608, %s622
      %p624 = scmp.eq.s32.totalorder %s173, 0
      %p625 = por %p623, %p624
      %s627 = sadd.s32 %s626, 1
      %p630 = scmp.eq.s32.totalorder %s167, 1
      %p631 = scmp.ne.s32.totalorder %s626, %s628
      %p632 = scmp.eq.s32.totalorder %s167, 0
      %p633 = por %p631, %p632
      %p634 = scmp.ne.s32.totalorder %s626, %s628
      %p635 = scmp.eq.s32.totalorder %s172, 1
      %p636 = por %p634, %p635
      %p637 = scmp.ne.s32.totalorder %s628, %s629
      %p638 = scmp.eq.s32.totalorder %s172, 0
      %p639 = por %p637, %p638
      %p640 = scmp.ne.s32.totalorder %s628, %s629
      %p641 = scmp.eq.s32.totalorder %s173, 1
      %p642 = por %p640, %p641
      %p644 = scmp.ne.s32.totalorder %s629, %s643
      %p645 = scmp.eq.s32.totalorder %s173, 0
      %p646 = por %p644, %p645
      %s648 = sadd.s32 %s647, 1
      %p651 = scmp.eq.s32.totalorder %s167, 1
      %p652 = scmp.ne.s32.totalorder %s647, %s649
      %p653 = scmp.eq.s32.totalorder %s167, 0
      %p654 = por %p652, %p653
      %p655 = scmp.ne.s32.totalorder %s647, %s649
      %p656 = scmp.eq.s32.totalorder %s172, 1
      %p657 = por %p655, %p656
      %p658 = scmp.ne.s32.totalorder %s649, %s650
      %p659 = scmp.eq.s32.totalorder %s172, 0
      %p660 = por %p658, %p659
      %p661 = scmp.ne.s32.totalorder %s649, %s650
      %p662 = scmp.eq.s32.totalorder %s173, 1
      %p663 = por %p661, %p662
      %p665 = scmp.ne.s32.totalorder %s650, %s664
      %p666 = scmp.eq.s32.totalorder %s173, 0
      %p667 = por %p665, %p666
      %s669 = sadd.s32 %s668, 1
      %p672 = scmp.eq.s32.totalorder %s167, 1
      %p673 = scmp.ne.s32.totalorder %s668, %s670
      %p674 = scmp.eq.s32.totalorder %s167, 0
      %p675 = por %p673, %p674
      %p676 = scmp.ne.s32.totalorder %s668, %s670
      %p677 = scmp.eq.s32.totalorder %s172, 1
      %p678 = por %p676, %p677
      %p679 = scmp.ne.s32.totalorder %s670, %s671
      %p680 = scmp.eq.s32.totalorder %s172, 0
      %p681 = por %p679, %p680
      %p682 = scmp.ne.s32.totalorder %s670, %s671
      %p683 = scmp.eq.s32.totalorder %s173, 1
      %p684 = por %p682, %p683
      %p686 = scmp.ne.s32.totalorder %s671, %s685
      %p687 = scmp.eq.s32.totalorder %s173, 0
      %p688 = por %p686, %p687
      %s690 = sadd.s32 %s689, 1
      %p693 = scmp.eq.s32.totalorder %s167, 1
      %p694 = scmp.ne.s32.totalorder %s689, %s691
      %p695 = scmp.eq.s32.totalorder %s167, 0
      %p696 = por %p694, %p695
      %p697 = scmp.ne.s32.totalorder %s689, %s691
      %p698 = scmp.eq.s32.totalorder %s172, 1
      %p699 = por %p697, %p698
      %p700 = scmp.ne.s32.totalorder %s691, %s692
      %p701 = scmp.eq.s32.totalorder %s172, 0
      %p702 = por %p700, %p701
      %p703 = scmp.ne.s32.totalorder %s691, %s692
      %p704 = scmp.eq.s32.totalorder %s173, 1
      %p705 = por %p703, %p704
      %p707 = scmp.ne.s32.totalorder %s692, %s706
      %p708 = scmp.eq.s32.totalorder %s173, 0
      %p709 = por %p707, %p708
      %s711 = sadd.s32 %s710, 1
      %p714 = scmp.eq.s32.totalorder %s167, 1
      %p715 = scmp.ne.s32.totalorder %s710, %s712
      %p716 = scmp.eq.s32.totalorder %s167, 0
      %p717 = por %p715, %p716
      %p718 = scmp.ne.s32.totalorder %s710, %s712
      %p719 = scmp.eq.s32.totalorder %s172, 1
      %p720 = por %p718, %p719
      %p721 = scmp.ne.s32.totalorder %s712, %s713
      %p722 = scmp.eq.s32.totalorder %s172, 0
      %p723 = por %p721, %p722
      %p724 = scmp.ne.s32.totalorder %s712, %s713
      %p725 = scmp.eq.s32.totalorder %s173, 1
      %p726 = por %p724, %p725
      %p728 = scmp.ne.s32.totalorder %s713, %s727
      %p729 = scmp.eq.s32.totalorder %s173, 0
      %p730 = por %p728, %p729
      %s732 = sadd.s32 %s731, 1
      %p735 = scmp.eq.s32.totalorder %s167, 1
      %p736 = scmp.ne.s32.totalorder %s731, %s733
      %p737 = scmp.eq.s32.totalorder %s167, 0
      %p738 = por %p736, %p737
      %p739 = scmp.ne.s32.totalorder %s731, %s733
      %p740 = scmp.eq.s32.totalorder %s172, 1
      %p741 = por %p739, %p740
      %p742 = scmp.ne.s32.totalorder %s733, %s734
      %p743 = scmp.eq.s32.totalorder %s172, 0
      %p744 = por %p742, %p743
      %p745 = scmp.ne.s32.totalorder %s733, %s734
      %p746 = scmp.eq.s32.totalorder %s173, 1
      %p747 = por %p745, %p746
      %p749 = scmp.ne.s32.totalorder %s734, %s748
      %p750 = scmp.eq.s32.totalorder %s173, 0
      %p751 = por %p749, %p750
      %s753 = sadd.s32 %s752, 1
      %p756 = scmp.eq.s32.totalorder %s167, 1
      %p757 = scmp.ne.s32.totalorder %s752, %s754
      %p758 = scmp.eq.s32.totalorder %s167, 0
      %p759 = por %p757, %p758
      %p760 = scmp.ne.s32.totalorder %s752, %s754
      %p761 = scmp.eq.s32.totalorder %s172, 1
      %p762 = por %p760, %p761
      %p763 = scmp.ne.s32.totalorder %s754, %s755
      %p764 = scmp.eq.s32.totalorder %s172, 0
      %p765 = por %p763, %p764
      %p766 = scmp.ne.s32.totalorder %s754, %s755
      %p767 = scmp.eq.s32.totalorder %s173, 1
      %p768 = por %p766, %p767
      %p770 = scmp.ne.s32.totalorder %s755, %s769
      %p771 = scmp.eq.s32.totalorder %s173, 0
      %p772 = por %p770, %p771
      %s774 = sadd.s32 %s773, 1
      %p777 = scmp.eq.s32.totalorder %s167, 1
      %p778 = scmp.ne.s32.totalorder %s773, %s775
      %p779 = scmp.eq.s32.totalorder %s167, 0
      %p780 = por %p778, %p779
      %p781 = scmp.ne.s32.totalorder %s773, %s775
      %p782 = scmp.eq.s32.totalorder %s172, 1
      %p783 = por %p781, %p782
      %p784 = scmp.ne.s32.totalorder %s775, %s776
      %p785 = scmp.eq.s32.totalorder %s172, 0
      %p786 = por %p784, %p785
      %p787 = scmp.ne.s32.totalorder %s775, %s776
      %p788 = scmp.eq.s32.totalorder %s173, 1
      %p789 = por %p787, %p788
      %p791 = scmp.ne.s32.totalorder %s776, %s790
      %p792 = scmp.eq.s32.totalorder %s173, 0
      %p793 = por %p791, %p792
      %s795 = sadd.s32 %s794, 1
      %p798 = scmp.eq.s32.totalorder %s167, 1
      %p799 = scmp.ne.s32.totalorder %s794, %s796
      %p800 = scmp.eq.s32.totalorder %s167, 0
      %p801 = por %p799, %p800
      %p802 = scmp.ne.s32.totalorder %s794, %s796
      %p803 = scmp.eq.s32.totalorder %s172, 1
      %p804 = por %p802, %p803
      %p805 = scmp.ne.s32.totalorder %s796, %s797
      %p806 = scmp.eq.s32.totalorder %s172, 0
      %p807 = por %p805, %p806
      %p808 = scmp.ne.s32.totalorder %s796, %s797
      %p809 = scmp.eq.s32.totalorder %s173, 1
      %p810 = por %p808, %p809
      %p812 = scmp.ne.s32.totalorder %s797, %s811
      %p813 = scmp.eq.s32.totalorder %s173, 0
      %p814 = por %p812, %p813
      %s816 = sadd.s32 %s815, 1
      %p819 = scmp.eq.s32.totalorder %s167, 1
      %p820 = scmp.ne.s32.totalorder %s815, %s817
      %p821 = scmp.eq.s32.totalorder %s167, 0
      %p822 = por %p820, %p821
      %p823 = scmp.ne.s32.totalorder %s815, %s817
      %p824 = scmp.eq.s32.totalorder %s172, 1
      %p825 = por %p823, %p824
      %p826 = scmp.ne.s32.totalorder %s817, %s818
      %p827 = scmp.eq.s32.totalorder %s172, 0
      %p828 = por %p826, %p827
      %p829 = scmp.ne.s32.totalorder %s817, %s818
      %p830 = scmp.eq.s32.totalorder %s173, 1
      %p831 = por %p829, %p830
      %p833 = scmp.ne.s32.totalorder %s818, %s832
      %p834 = scmp.eq.s32.totalorder %s173, 0
      %p835 = por %p833, %p834
      %s837 = sadd.s32 %s836, 1
      %p840 = scmp.eq.s32.totalorder %s167, 1
      %p841 = scmp.ne.s32.totalorder %s836, %s838
      %p842 = scmp.eq.s32.totalorder %s167, 0
      %p843 = por %p841, %p842
      %p844 = scmp.ne.s32.totalorder %s836, %s838
      %p845 = scmp.eq.s32.totalorder %s172, 1
      %p846 = por %p844, %p845
      %p847 = scmp.ne.s32.totalorder %s838, %s839
      %p848 = scmp.eq.s32.totalorder %s172, 0
      %p849 = por %p847, %p848
      %p850 = scmp.ne.s32.totalorder %s838, %s839
      %p851 = scmp.eq.s32.totalorder %s173, 1
      %p852 = por %p850, %p851
      %p854 = scmp.ne.s32.totalorder %s839, %s853
      %p855 = scmp.eq.s32.totalorder %s173, 0
      %p856 = por %p854, %p855
      %s858 = sadd.s32 %s857, 1
      %p861 = scmp.eq.s32.totalorder %s167, 1
      %p862 = scmp.ne.s32.totalorder %s857, %s859
      %p863 = scmp.eq.s32.totalorder %s167, 0
      %p864 = por %p862, %p863
      %p865 = scmp.ne.s32.totalorder %s857, %s859
      %p866 = scmp.eq.s32.totalorder %s172, 1
      %p867 = por %p865, %p866
      %p868 = scmp.ne.s32.totalorder %s859, %s860
      %p869 = scmp.eq.s32.totalorder %s172, 0
      %p870 = por %p868, %p869
      %p871 = scmp.ne.s32.totalorder %s859, %s860
      %p872 = scmp.eq.s32.totalorder %s173, 1
      %p873 = por %p871, %p872
      %p875 = scmp.ne.s32.totalorder %s860, %s874
      %p876 = scmp.eq.s32.totalorder %s173, 0
      %p877 = por %p875, %p876
      %s879 = sadd.s32 %s878, 1
      %p882 = scmp.eq.s32.totalorder %s167, 1
      %p883 = scmp.ne.s32.totalorder %s878, %s880
      %p884 = scmp.eq.s32.totalorder %s167, 0
      %p885 = por %p883, %p884
      %p886 = scmp.ne.s32.totalorder %s878, %s880
      %p887 = scmp.eq.s32.totalorder %s172, 1
      %p888 = por %p886, %p887
      %p889 = scmp.ne.s32.totalorder %s880, %s881
      %p890 = scmp.eq.s32.totalorder %s172, 0
      %p891 = por %p889, %p890
      %p892 = scmp.ne.s32.totalorder %s880, %s881
      %p893 = scmp.eq.s32.totalorder %s173, 1
      %p894 = por %p892, %p893
      %p896 = scmp.ne.s32.totalorder %s881, %s895
      %p897 = scmp.eq.s32.totalorder %s173, 0
      %p898 = por %p896, %p897
      %s900 = sadd.s32 %s899, 1
      %p903 = scmp.eq.s32.totalorder %s167, 1
      %p904 = scmp.ne.s32.totalorder %s899, %s901
      %p905 = scmp.eq.s32.totalorder %s167, 0
      %p906 = por %p904, %p905
      %p907 = scmp.ne.s32.totalorder %s899, %s901
      %p908 = scmp.eq.s32.totalorder %s172, 1
      %p909 = por %p907, %p908
      %p910 = scmp.ne.s32.totalorder %s901, %s902
      %p911 = scmp.eq.s32.totalorder %s172, 0
      %p912 = por %p910, %p911
      %p913 = scmp.ne.s32.totalorder %s901, %s902
      %p914 = scmp.eq.s32.totalorder %s173, 1
      %p915 = por %p913, %p914
      %p917 = scmp.ne.s32.totalorder %s902, %s916
      %p918 = scmp.eq.s32.totalorder %s173, 0
      %p919 = por %p917, %p918
      %s921 = sadd.s32 %s920, 1
      %p924 = scmp.eq.s32.totalorder %s167, 1
      %p925 = scmp.ne.s32.totalorder %s920, %s922
      %p926 = scmp.eq.s32.totalorder %s167, 0
      %p927 = por %p925, %p926
      %p928 = scmp.ne.s32.totalorder %s920, %s922
      %p929 = scmp.eq.s32.totalorder %s172, 1
      %p930 = por %p928, %p929
      %p931 = scmp.ne.s32.totalorder %s922, %s923
      %p932 = scmp.eq.s32.totalorder %s172, 0
      %p933 = por %p931, %p932
      %p934 = scmp.ne.s32.totalorder %s922, %s923
      %p935 = scmp.eq.s32.totalorder %s173, 1
      %p936 = por %p934, %p935
      %p938 = scmp.ne.s32.totalorder %s923, %s937
      %p939 = scmp.eq.s32.totalorder %s173, 0
      %p940 = por %p938, %p939
      %s942 = sadd.s32 %s941, 1
      %p945 = scmp.eq.s32.totalorder %s167, 1
      %p946 = scmp.ne.s32.totalorder %s941, %s943
      %p947 = scmp.eq.s32.totalorder %s167, 0
      %p948 = por %p946, %p947
      %p949 = scmp.ne.s32.totalorder %s941, %s943
      %p950 = scmp.eq.s32.totalorder %s172, 1
      %p951 = por %p949, %p950
      %p952 = scmp.ne.s32.totalorder %s943, %s944
      %p953 = scmp.eq.s32.totalorder %s172, 0
      %p954 = por %p952, %p953
      %p955 = scmp.ne.s32.totalorder %s943, %s944
      %p956 = scmp.eq.s32.totalorder %s173, 1
      %p957 = por %p955, %p956
      %p959 = scmp.ne.s32.totalorder %s944, %s958
      %p960 = scmp.eq.s32.totalorder %s173, 0
      %p961 = por %p959, %p960
      %s963 = sadd.s32 %s962, 1
      %p966 = scmp.eq.s32.totalorder %s167, 1
      %p967 = scmp.ne.s32.totalorder %s962, %s964
      %p968 = scmp.eq.s32.totalorder %s167, 0
      %p969 = por %p967, %p968
      %p970 = scmp.ne.s32.totalorder %s962, %s964
      %p971 = scmp.eq.s32.totalorder %s172, 1
      %p972 = por %p970, %p971
      %p973 = scmp.ne.s32.totalorder %s964, %s965
      %p974 = scmp.eq.s32.totalorder %s172, 0
      %p975 = por %p973, %p974
      %p976 = scmp.ne.s32.totalorder %s964, %s965
      %p977 = scmp.eq.s32.totalorder %s173, 1
      %p978 = por %p976, %p977
      %p980 = scmp.ne.s32.totalorder %s965, %s979
      %p981 = scmp.eq.s32.totalorder %s173, 0
      %p982 = por %p980, %p981
      %s984 = sadd.s32 %s983, 1
      %p987 = scmp.eq.s32.totalorder %s167, 1
      %p988 = scmp.ne.s32.totalorder %s983, %s985
      %p989 = scmp.eq.s32.totalorder %s167, 0
      %p990 = por %p988, %p989
      %p991 = scmp.ne.s32.totalorder %s983, %s985
      %p992 = scmp.eq.s32.totalorder %s172, 1
      %p993 = por %p991, %p992
      %p994 = scmp.ne.s32.totalorder %s985, %s986
      %p995 = scmp.eq.s32.totalorder %s172, 0
      %p996 = por %p994, %p995
      %p997 = scmp.ne.s32.totalorder %s985, %s986
      %p998 = scmp.eq.s32.totalorder %s173, 1
      %p999 = por %p997, %p998
      %p1001 = scmp.ne.s32.totalorder %s986, %s1000
      %p1002 = scmp.eq.s32.totalorder %s173, 0
      %p1003 = por %p1001, %p1002
      %s1005 = sadd.s32 %s1004, 1
      %p1008 = scmp.eq.s32.totalorder %s167, 1
      %p1009 = scmp.ne.s32.totalorder %s1004, %s1006
      %p1010 = scmp.eq.s32.totalorder %s167, 0
      %p1011 = por %p1009, %p1010
      %p1012 = scmp.ne.s32.totalorder %s1004, %s1006
      %p1013 = scmp.eq.s32.totalorder %s172, 1
      %p1014 = por %p1012, %p1013
      %p1015 = scmp.ne.s32.totalorder %s1006, %s1007
      %p1016 = scmp.eq.s32.totalorder %s172, 0
      %p1017 = por %p1015, %p1016
      %p1018 = scmp.ne.s32.totalorder %s1006, %s1007
      %p1019 = scmp.eq.s32.totalorder %s173, 1
      %p1020 = por %p1018, %p1019
      %p1022 = scmp.ne.s32.totalorder %s1007, %s1021
      %p1023 = scmp.eq.s32.totalorder %s173, 0
      %p1024 = por %p1022, %p1023
      %s1026 = sadd.s32 %s1025, 1
      %p1029 = scmp.eq.s32.totalorder %s167, 1
      %p1030 = scmp.ne.s32.totalorder %s1025, %s1027
      %p1031 = scmp.eq.s32.totalorder %s167, 0
      %p1032 = por %p1030, %p1031
      %p1033 = scmp.ne.s32.totalorder %s1025, %s1027
      %p1034 = scmp.eq.s32.totalorder %s172, 1
      %p1035 = por %p1033, %p1034
      %p1036 = scmp.ne.s32.totalorder %s1027, %s1028
      %p1037 = scmp.eq.s32.totalorder %s172, 0
      %p1038 = por %p1036, %p1037
      %p1039 = scmp.ne.s32.totalorder %s1027, %s1028
      %p1040 = scmp.eq.s32.totalorder %s173, 1
      %p1041 = por %p1039, %p1040
      %p1043 = scmp.ne.s32.totalorder %s1028, %s1042
      %p1044 = scmp.eq.s32.totalorder %s173, 0
      %p1045 = por %p1043, %p1044
      %s1047 = sadd.s32 %s1046, 1
      %p1050 = scmp.eq.s32.totalorder %s167, 1
      %p1051 = scmp.ne.s32.totalorder %s1046, %s1048
      %p1052 = scmp.eq.s32.totalorder %s167, 0
      %p1053 = por %p1051, %p1052
      %p1054 = scmp.ne.s32.totalorder %s1046, %s1048
      %p1055 = scmp.eq.s32.totalorder %s172, 1
      %p1056 = por %p1054, %p1055
      %p1057 = scmp.ne.s32.totalorder %s1048, %s1049
      %p1058 = scmp.eq.s32.totalorder %s172, 0
      %p1059 = por %p1057, %p1058
      %p1060 = scmp.ne.s32.totalorder %s1048, %s1049
      %p1061 = scmp.eq.s32.totalorder %s173, 1
      %p1062 = por %p1060, %p1061
      %p1064 = scmp.ne.s32.totalorder %s1049, %s1063
      %p1065 = scmp.eq.s32.totalorder %s173, 0
      %p1066 = por %p1064, %p1065
      %s1068 = sadd.s32 %s1067, 1
      %p1071 = scmp.eq.s32.totalorder %s167, 1
      %p1072 = scmp.ne.s32.totalorder %s1067, %s1069
      %p1073 = scmp.eq.s32.totalorder %s167, 0
      %p1074 = por %p1072, %p1073
      %p1075 = scmp.ne.s32.totalorder %s1067, %s1069
      %p1076 = scmp.eq.s32.totalorder %s172, 1
      %p1077 = por %p1075, %p1076
      %p1078 = scmp.ne.s32.totalorder %s1069, %s1070
      %p1079 = scmp.eq.s32.totalorder %s172, 0
      %p1080 = por %p1078, %p1079
      %p1081 = scmp.ne.s32.totalorder %s1069, %s1070
      %p1082 = scmp.eq.s32.totalorder %s173, 1
      %p1083 = por %p1081, %p1082
      %p1085 = scmp.ne.s32.totalorder %s1070, %s1084
      %p1086 = scmp.eq.s32.totalorder %s173, 0
      %p1087 = por %p1085, %p1086
      %s1089 = sadd.s32 %s1088, 1
      %p1092 = scmp.eq.s32.totalorder %s167, 1
      %p1093 = scmp.ne.s32.totalorder %s1088, %s1090
      %p1094 = scmp.eq.s32.totalorder %s167, 0
      %p1095 = por %p1093, %p1094
      %p1096 = scmp.ne.s32.totalorder %s1088, %s1090
      %p1097 = scmp.eq.s32.totalorder %s172, 1
      %p1098 = por %p1096, %p1097
      %p1099 = scmp.ne.s32.totalorder %s1090, %s1091
      %p1100 = scmp.eq.s32.totalorder %s172, 0
      %p1101 = por %p1099, %p1100
      %p1102 = scmp.ne.s32.totalorder %s1090, %s1091
      %p1103 = scmp.eq.s32.totalorder %s173, 1
      %p1104 = por %p1102, %p1103
      %p1106 = scmp.ne.s32.totalorder %s1091, %s1105
      %p1107 = scmp.eq.s32.totalorder %s173, 0
      %p1108 = por %p1106, %p1107
      %s1110 = sadd.s32 %s1109, 1
      %p1113 = scmp.eq.s32.totalorder %s167, 1
      %p1114 = scmp.ne.s32.totalorder %s1109, %s1111
      %p1115 = scmp.eq.s32.totalorder %s167, 0
      %p1116 = por %p1114, %p1115
      %p1117 = scmp.ne.s32.totalorder %s1109, %s1111
      %p1118 = scmp.eq.s32.totalorder %s172, 1
      %p1119 = por %p1117, %p1118
      %p1120 = scmp.ne.s32.totalorder %s1111, %s1112
      %p1121 = scmp.eq.s32.totalorder %s172, 0
      %p1122 = por %p1120, %p1121
      %p1123 = scmp.ne.s32.totalorder %s1111, %s1112
      %p1124 = scmp.eq.s32.totalorder %s173, 1
      %p1125 = por %p1123, %p1124
      %p1127 = scmp.ne.s32.totalorder %s1112, %s1126
      %p1128 = scmp.eq.s32.totalorder %s173, 0
      %p1129 = por %p1127, %p1128
      %s1131 = sadd.s32 %s1130, 1
      %p1134 = scmp.eq.s32.totalorder %s167, 1
      %p1135 = scmp.ne.s32.totalorder %s1130, %s1132
      %p1136 = scmp.eq.s32.totalorder %s167, 0
      %p1137 = por %p1135, %p1136
      %p1138 = scmp.ne.s32.totalorder %s1130, %s1132
      %p1139 = scmp.eq.s32.totalorder %s172, 1
      %p1140 = por %p1138, %p1139
      %p1141 = scmp.ne.s32.totalorder %s1132, %s1133
      %p1142 = scmp.eq.s32.totalorder %s172, 0
      %p1143 = por %p1141, %p1142
      %p1144 = scmp.ne.s32.totalorder %s1132, %s1133
      %p1145 = scmp.eq.s32.totalorder %s173, 1
      %p1146 = por %p1144, %p1145
      %p1148 = scmp.ne.s32.totalorder %s1133, %s1147
      %p1149 = scmp.eq.s32.totalorder %s173, 0
      %p1150 = por %p1148, %p1149
      %s1152 = sadd.s32 %s1151, 1
      %p1155 = scmp.eq.s32.totalorder %s167, 1
      %p1156 = scmp.ne.s32.totalorder %s1151, %s1153
      %p1157 = scmp.eq.s32.totalorder %s167, 0
      %p1158 = por %p1156, %p1157
      %p1159 = scmp.ne.s32.totalorder %s1151, %s1153
      %p1160 = scmp.eq.s32.totalorder %s172, 1
      %p1161 = por %p1159, %p1160
      %p1162 = scmp.ne.s32.totalorder %s1153, %s1154
      %p1163 = scmp.eq.s32.totalorder %s172, 0
      %p1164 = por %p1162, %p1163
      %p1165 = scmp.ne.s32.totalorder %s1153, %s1154
      %p1166 = scmp.eq.s32.totalorder %s173, 1
      %p1167 = por %p1165, %p1166
      %p1169 = scmp.ne.s32.totalorder %s1154, %s1168
      %p1170 = scmp.eq.s32.totalorder %s173, 0
      %p1171 = por %p1169, %p1170
      %s1173 = sadd.s32 %s1172, 1
      %p1176 = scmp.eq.s32.totalorder %s167, 1
      %p1177 = scmp.ne.s32.totalorder %s1172, %s1174
      %p1178 = scmp.eq.s32.totalorder %s167, 0
      %p1179 = por %p1177, %p1178
      %p1180 = scmp.ne.s32.totalorder %s1172, %s1174
      %p1181 = scmp.eq.s32.totalorder %s172, 1
      %p1182 = por %p1180, %p1181
      %p1183 = scmp.ne.s32.totalorder %s1174, %s1175
      %p1184 = scmp.eq.s32.totalorder %s172, 0
      %p1185 = por %p1183, %p1184
      %p1186 = scmp.ne.s32.totalorder %s1174, %s1175
      %p1187 = scmp.eq.s32.totalorder %s173, 1
      %p1188 = por %p1186, %p1187
      %p1190 = scmp.ne.s32.totalorder %s1175, %s1189
      %p1191 = scmp.eq.s32.totalorder %s173, 0
      %p1192 = por %p1190, %p1191
      %s1194 = sadd.s32 %s1193, 1
      %p1197 = scmp.eq.s32.totalorder %s167, 1
      %p1198 = scmp.ne.s32.totalorder %s1193, %s1195
      %p1199 = scmp.eq.s32.totalorder %s167, 0
      %p1200 = por %p1198, %p1199
      %p1201 = scmp.ne.s32.totalorder %s1193, %s1195
      %p1202 = scmp.eq.s32.totalorder %s172, 1
      %p1203 = por %p1201, %p1202
      %p1204 = scmp.ne.s32.totalorder %s1195, %s1196
      %p1205 = scmp.eq.s32.totalorder %s172, 0
      %p1206 = por %p1204, %p1205
      %p1207 = scmp.ne.s32.totalorder %s1195, %s1196
      %p1208 = scmp.eq.s32.totalorder %s173, 1
      %p1209 = por %p1207, %p1208
      %p1211 = scmp.ne.s32.totalorder %s1196, %s1210
      %p1212 = scmp.eq.s32.totalorder %s173, 0
      %p1213 = por %p1211, %p1212
      %s1215 = sadd.s32 %s1214, 1
      %p1218 = scmp.eq.s32.totalorder %s167, 1
      %p1219 = scmp.ne.s32.totalorder %s1214, %s1216
      %p1220 = scmp.eq.s32.totalorder %s167, 0
      %p1221 = por %p1219, %p1220
      %p1222 = scmp.ne.s32.totalorder %s1214, %s1216
      %p1223 = scmp.eq.s32.totalorder %s172, 1
      %p1224 = por %p1222, %p1223
      %p1225 = scmp.ne.s32.totalorder %s1216, %s1217
      %p1226 = scmp.eq.s32.totalorder %s172, 0
      %p1227 = por %p1225, %p1226
      %p1228 = scmp.ne.s32.totalorder %s1216, %s1217
      %p1229 = scmp.eq.s32.totalorder %s173, 1
      %p1230 = por %p1228, %p1229
      %p1232 = scmp.ne.s32.totalorder %s1217, %s1231
      %p1233 = scmp.eq.s32.totalorder %s173, 0
      %p1234 = por %p1232, %p1233
      %s1236 = sadd.s32 %s1235, 1
      %p1239 = scmp.eq.s32.totalorder %s167, 1
      %p1240 = scmp.ne.s32.totalorder %s1235, %s1237
      %p1241 = scmp.eq.s32.totalorder %s167, 0
      %p1242 = por %p1240, %p1241
      %p1243 = scmp.ne.s32.totalorder %s1235, %s1237
      %p1244 = scmp.eq.s32.totalorder %s172, 1
      %p1245 = por %p1243, %p1244
      %p1246 = scmp.ne.s32.totalorder %s1237, %s1238
      %p1247 = scmp.eq.s32.totalorder %s172, 0
      %p1248 = por %p1246, %p1247
      %p1249 = scmp.ne.s32.totalorder %s1237, %s1238
      %p1250 = scmp.eq.s32.totalorder %s173, 1
      %p1251 = por %p1249, %p1250
      %p1253 = scmp.ne.s32.totalorder %s1238, %s1252
      %p1254 = scmp.eq.s32.totalorder %s173, 0
      %p1255 = por %p1253, %p1254
      %s1257 = sadd.s32 %s1256, 1
      %p1260 = scmp.eq.s32.totalorder %s167, 1
      %p1261 = scmp.ne.s32.totalorder %s1256, %s1258
      %p1262 = scmp.eq.s32.totalorder %s167, 0
      %p1263 = por %p1261, %p1262
      %p1264 = scmp.ne.s32.totalorder %s1256, %s1258
      %p1265 = scmp.eq.s32.totalorder %s172, 1
      %p1266 = por %p1264, %p1265
      %p1267 = scmp.ne.s32.totalorder %s1258, %s1259
      %p1268 = scmp.eq.s32.totalorder %s172, 0
      %p1269 = por %p1267, %p1268
      %p1270 = scmp.ne.s32.totalorder %s1258, %s1259
      %p1271 = scmp.eq.s32.totalorder %s173, 1
      %p1272 = por %p1270, %p1271
      %p1274 = scmp.ne.s32.totalorder %s1259, %s1273
      %p1275 = scmp.eq.s32.totalorder %s173, 0
      %p1276 = por %p1274, %p1275
      %s1278 = sadd.s32 %s1277, 1
      %p1281 = scmp.eq.s32.totalorder %s167, 1
      %p1282 = scmp.ne.s32.totalorder %s1277, %s1279
      %p1283 = scmp.eq.s32.totalorder %s167, 0
      %p1284 = por %p1282, %p1283
      %p1285 = scmp.ne.s32.totalorder %s1277, %s1279
      %p1286 = scmp.eq.s32.totalorder %s172, 1
      %p1287 = por %p1285, %p1286
      %p1288 = scmp.ne.s32.totalorder %s1279, %s1280
      %p1289 = scmp.eq.s32.totalorder %s172, 0
      %p1290 = por %p1288, %p1289
      %p1291 = scmp.ne.s32.totalorder %s1279, %s1280
      %p1292 = scmp.eq.s32.totalorder %s173, 1
      %p1293 = por %p1291, %p1292
      %p1295 = scmp.ne.s32.totalorder %s1280, %s1294
      %p1296 = scmp.eq.s32.totalorder %s173, 0
      %p1297 = por %p1295, %p1296
      %s1299 = sadd.s32 %s1298, 1
      %p1302 = scmp.eq.s32.totalorder %s167, 1
      %p1303 = scmp.ne.s32.totalorder %s1298, %s1300
      %p1304 = scmp.eq.s32.totalorder %s167, 0
      %p1305 = por %p1303, %p1304
      %p1306 = scmp.ne.s32.totalorder %s1298, %s1300
      %p1307 = scmp.eq.s32.totalorder %s172, 1
      %p1308 = por %p1306, %p1307
      %p1309 = scmp.ne.s32.totalorder %s1300, %s1301
      %p1310 = scmp.eq.s32.totalorder %s172, 0
      %p1311 = por %p1309, %p1310
      %p1312 = scmp.ne.s32.totalorder %s1300, %s1301
      %p1313 = scmp.eq.s32.totalorder %s173, 1
      %p1314 = por %p1312, %p1313
      %p1316 = scmp.ne.s32.totalorder %s1301, %s1315
      %p1317 = scmp.eq.s32.totalorder %s173, 0
      %p1318 = por %p1316, %p1317
      %s1320 = sadd.s32 %s1319, 1
      %p1323 = scmp.eq.s32.totalorder %s167, 1
      %p1324 = scmp.ne.s32.totalorder %s1319, %s1321
      %p1325 = scmp.eq.s32.totalorder %s167, 0
      %p1326 = por %p1324, %p1325
      %p1327 = scmp.ne.s32.totalorder %s1319, %s1321
      %p1328 = scmp.eq.s32.totalorder %s172, 1
      %p1329 = por %p1327, %p1328
      %p1330 = scmp.ne.s32.totalorder %s1321, %s1322
      %p1331 = scmp.eq.s32.totalorder %s172, 0
      %p1332 = por %p1330, %p1331
      %p1333 = scmp.ne.s32.totalorder %s1321, %s1322
      %p1334 = scmp.eq.s32.totalorder %s173, 1
      %p1335 = por %p1333, %p1334
      %p1337 = scmp.ne.s32.totalorder %s1322, %s1336
      %p1338 = scmp.eq.s32.totalorder %s173, 0
      %p1339 = por %p1337, %p1338
      %s1341 = sadd.s32 %s1340, 1
      %p1344 = scmp.eq.s32.totalorder %s167, 1
      %p1345 = scmp.ne.s32.totalorder %s1340, %s1342
      %p1346 = scmp.eq.s32.totalorder %s167, 0
      %p1347 = por %p1345, %p1346
      %p1348 = scmp.ne.s32.totalorder %s1340, %s1342
      %p1349 = scmp.eq.s32.totalorder %s172, 1
      %p1350 = por %p1348, %p1349
      %p1351 = scmp.ne.s32.totalorder %s1342, %s1343
      %p1352 = scmp.eq.s32.totalorder %s172, 0
      %p1353 = por %p1351, %p1352
      %p1354 = scmp.ne.s32.totalorder %s1342, %s1343
      %p1355 = scmp.eq.s32.totalorder %s173, 1
      %p1356 = por %p1354, %p1355
      %p1358 = scmp.ne.s32.totalorder %s1343, %s1357
      %p1359 = scmp.eq.s32.totalorder %s173, 0
      %p1360 = por %p1358, %p1359
      %s1362 = sadd.s32 %s1361, 1
      %p1365 = scmp.eq.s32.totalorder %s167, 1
      %p1366 = scmp.ne.s32.totalorder %s1361, %s1363
      %p1367 = scmp.eq.s32.totalorder %s167, 0
      %p1368 = por %p1366, %p1367
      %p1369 = scmp.ne.s32.totalorder %s1361, %s1363
      %p1370 = scmp.eq.s32.totalorder %s172, 1
      %p1371 = por %p1369, %p1370
      %p1372 = scmp.ne.s32.totalorder %s1363, %s1364
      %p1373 = scmp.eq.s32.totalorder %s172, 0
      %p1374 = por %p1372, %p1373
      %p1375 = scmp.ne.s32.totalorder %s1363, %s1364
      %p1376 = scmp.eq.s32.totalorder %s173, 1
      %p1377 = por %p1375, %p1376
      %p1379 = scmp.ne.s32.totalorder %s1364, %s1378
      %p1380 = scmp.eq.s32.totalorder %s173, 0
      %p1381 = por %p1379, %p1380
      %s1383 = sadd.s32 %s1382, 1
      %p1386 = scmp.eq.s32.totalorder %s167, 1
      %p1387 = scmp.ne.s32.totalorder %s1382, %s1384
      %p1388 = scmp.eq.s32.totalorder %s167, 0
      %p1389 = por %p1387, %p1388
      %p1390 = scmp.ne.s32.totalorder %s1382, %s1384
      %p1391 = scmp.eq.s32.totalorder %s172, 1
      %p1392 = por %p1390, %p1391
      %p1393 = scmp.ne.s32.totalorder %s1384, %s1385
      %p1394 = scmp.eq.s32.totalorder %s172, 0
      %p1395 = por %p1393, %p1394
      %p1396 = scmp.ne.s32.totalorder %s1384, %s1385
      %p1397 = scmp.eq.s32.totalorder %s173, 1
      %p1398 = por %p1396, %p1397
      %p1400 = scmp.ne.s32.totalorder %s1385, %s1399
      %p1401 = scmp.eq.s32.totalorder %s173, 0
      %p1402 = por %p1400, %p1401
      %s1404 = sadd.s32 %s1403, 1
      %p1407 = scmp.eq.s32.totalorder %s167, 1
      %p1408 = scmp.ne.s32.totalorder %s1403, %s1405
      %p1409 = scmp.eq.s32.totalorder %s167, 0
      %p1410 = por %p1408, %p1409
      %p1411 = scmp.ne.s32.totalorder %s1403, %s1405
      %p1412 = scmp.eq.s32.totalorder %s172, 1
      %p1413 = por %p1411, %p1412
      %p1414 = scmp.ne.s32.totalorder %s1405, %s1406
      %p1415 = scmp.eq.s32.totalorder %s172, 0
      %p1416 = por %p1414, %p1415
      %p1417 = scmp.ne.s32.totalorder %s1405, %s1406
      %p1418 = scmp.eq.s32.totalorder %s173, 1
      %p1419 = por %p1417, %p1418
      %p1421 = scmp.ne.s32.totalorder %s1406, %s1420
      %p1422 = scmp.eq.s32.totalorder %s173, 0
      %p1423 = por %p1421, %p1422
      %s1425 = sadd.s32 %s1424, 1
      %p1428 = scmp.eq.s32.totalorder %s167, 1
      %p1429 = scmp.ne.s32.totalorder %s1424, %s1426
      %p1430 = scmp.eq.s32.totalorder %s167, 0
      %p1431 = por %p1429, %p1430
      %p1432 = scmp.ne.s32.totalorder %s1424, %s1426
      %p1433 = scmp.eq.s32.totalorder %s172, 1
      %p1434 = por %p1432, %p1433
      %p1435 = scmp.ne.s32.totalorder %s1426, %s1427
      %p1436 = scmp.eq.s32.totalorder %s172, 0
      %p1437 = por %p1435, %p1436
      %p1438 = scmp.ne.s32.totalorder %s1426, %s1427
      %p1439 = scmp.eq.s32.totalorder %s173, 1
      %p1440 = por %p1438, %p1439
      %p1442 = scmp.ne.s32.totalorder %s1427, %s1441
      %p1443 = scmp.eq.s32.totalorder %s173, 0
      %p1444 = por %p1442, %p1443
      %s1446 = sadd.s32 %s1445, 1
      %p1449 = scmp.eq.s32.totalorder %s167, 1
      %p1450 = scmp.ne.s32.totalorder %s1445, %s1447
      %p1451 = scmp.eq.s32.totalorder %s167, 0
      %p1452 = por %p1450, %p1451
      %p1453 = scmp.ne.s32.totalorder %s1445, %s1447
      %p1454 = scmp.eq.s32.totalorder %s172, 1
      %p1455 = por %p1453, %p1454
      %p1456 = scmp.ne.s32.totalorder %s1447, %s1448
      %p1457 = scmp.eq.s32.totalorder %s172, 0
      %p1458 = por %p1456, %p1457
      %p1459 = scmp.ne.s32.totalorder %s1447, %s1448
      %p1460 = scmp.eq.s32.totalorder %s173, 1
      %p1461 = por %p1459, %p1460
      %p1463 = scmp.ne.s32.totalorder %s1448, %s1462
      %p1464 = scmp.eq.s32.totalorder %s173, 0
      %p1465 = por %p1463, %p1464
      %s1467 = sadd.s32 %s1466, 1
      %p1470 = scmp.eq.s32.totalorder %s167, 1
      %p1471 = scmp.ne.s32.totalorder %s1466, %s1468
      %p1472 = scmp.eq.s32.totalorder %s167, 0
      %p1473 = por %p1471, %p1472
      %p1474 = scmp.ne.s32.totalorder %s1466, %s1468
      %p1475 = scmp.eq.s32.totalorder %s172, 1
      %p1476 = por %p1474, %p1475
      %p1477 = scmp.ne.s32.totalorder %s1468, %s1469
      %p1478 = scmp.eq.s32.totalorder %s172, 0
      %p1479 = por %p1477, %p1478
      %p1480 = scmp.ne.s32.totalorder %s1468, %s1469
      %p1481 = scmp.eq.s32.totalorder %s173, 1
      %p1482 = por %p1480, %p1481
      %p1484 = scmp.ne.s32.totalorder %s1469, %s1483
      %p1485 = scmp.eq.s32.totalorder %s173, 0
      %p1486 = por %p1484, %p1485
      %s1488 = sadd.s32 %s1487, 1
      %p1491 = scmp.eq.s32.totalorder %s167, 1
      %p1492 = scmp.ne.s32.totalorder %s1487, %s1489
      %p1493 = scmp.eq.s32.totalorder %s167, 0
      %p1494 = por %p1492, %p1493
      %p1495 = scmp.ne.s32.totalorder %s1487, %s1489
      %p1496 = scmp.eq.s32.totalorder %s172, 1
      %p1497 = por %p1495, %p1496
      %p1498 = scmp.ne.s32.totalorder %s1489, %s1490
      %p1499 = scmp.eq.s32.totalorder %s172, 0
      %p1500 = por %p1498, %p1499
      %p1501 = scmp.ne.s32.totalorder %s1489, %s1490
      %p1502 = scmp.eq.s32.totalorder %s173, 1
      %p1503 = por %p1501, %p1502
      %p1505 = scmp.ne.s32.totalorder %s1490, %s1504
      %p1506 = scmp.eq.s32.totalorder %s173, 0
      %p1507 = por %p1505, %p1506
      %s1509 = sadd.s32 %s1508, 1
      %p1512 = scmp.eq.s32.totalorder %s167, 1
      %p1513 = scmp.ne.s32.totalorder %s1508, %s1510
      %p1514 = scmp.eq.s32.totalorder %s167, 0
      %p1515 = por %p1513, %p1514
      %p1516 = scmp.ne.s32.totalorder %s1508, %s1510
      %p1517 = scmp.eq.s32.totalorder %s172, 1
      %p1518 = por %p1516, %p1517
      %p1519 = scmp.ne.s32.totalorder %s1510, %s1511
      %p1520 = scmp.eq.s32.totalorder %s172, 0
      %p1521 = por %p1519, %p1520
      %p1522 = scmp.ne.s32.totalorder %s1510, %s1511
      %p1523 = scmp.eq.s32.totalorder %s173, 1
      %p1524 = por %p1522, %p1523
      %p1526 = scmp.ne.s32.totalorder %s1511, %s1525
      %p1527 = scmp.eq.s32.totalorder %s173, 0
      %p1528 = por %p1526, %p1527
      %s1530 = sadd.s32 %s1529, 1
      %p1533 = scmp.eq.s32.totalorder %s167, 1
      %p1534 = scmp.ne.s32.totalorder %s1529, %s1531
      %p1535 = scmp.eq.s32.totalorder %s167, 0
      %p1536 = por %p1534, %p1535
      %p1537 = scmp.ne.s32.totalorder %s1529, %s1531
      %p1538 = scmp.eq.s32.totalorder %s172, 1
      %p1539 = por %p1537, %p1538
      %p1540 = scmp.ne.s32.totalorder %s1531, %s1532
      %p1541 = scmp.eq.s32.totalorder %s172, 0
      %p1542 = por %p1540, %p1541
      %p1543 = scmp.ne.s32.totalorder %s1531, %s1532
      %p1544 = scmp.eq.s32.totalorder %s173, 1
      %p1545 = por %p1543, %p1544
      %p1547 = scmp.ne.s32.totalorder %s1532, %s1546
      %p1548 = scmp.eq.s32.totalorder %s173, 0
      %p1549 = por %p1547, %p1548
      %s1551 = sadd.s32 %s1550, 1
      %p1554 = scmp.eq.s32.totalorder %s167, 1
      %p1555 = scmp.ne.s32.totalorder %s1550, %s1552
      %p1556 = scmp.eq.s32.totalorder %s167, 0
      %p1557 = por %p1555, %p1556
      %p1558 = scmp.ne.s32.totalorder %s1550, %s1552
      %p1559 = scmp.eq.s32.totalorder %s172, 1
      %p1560 = por %p1558, %p1559
      %p1561 = scmp.ne.s32.totalorder %s1552, %s1553
      %p1562 = scmp.eq.s32.totalorder %s172, 0
      %p1563 = por %p1561, %p1562
      %p1564 = scmp.ne.s32.totalorder %s1552, %s1553
      %p1565 = scmp.eq.s32.totalorder %s173, 1
      %p1566 = por %p1564, %p1565
      %p1568 = scmp.ne.s32.totalorder %s1553, %s1567
      %p1569 = scmp.eq.s32.totalorder %s173, 0
      %p1570 = por %p1568, %p1569
      %s1572 = sadd.s32 %s1571, 1
      %p1575 = scmp.eq.s32.totalorder %s167, 1
      %p1576 = scmp.ne.s32.totalorder %s1571, %s1573
      %p1577 = scmp.eq.s32.totalorder %s167, 0
      %p1578 = por %p1576, %p1577
      %p1579 = scmp.ne.s32.totalorder %s1571, %s1573
      %p1580 = scmp.eq.s32.totalorder %s172, 1
      %p1581 = por %p1579, %p1580
      %p1582 = scmp.ne.s32.totalorder %s1573, %s1574
      %p1583 = scmp.eq.s32.totalorder %s172, 0
      %p1584 = por %p1582, %p1583
      %p1585 = scmp.ne.s32.totalorder %s1573, %s1574
      %p1586 = scmp.eq.s32.totalorder %s173, 1
      %p1587 = por %p1585, %p1586
      %p1589 = scmp.ne.s32.totalorder %s1574, %s1588
      %p1590 = scmp.eq.s32.totalorder %s173, 0
      %p1591 = por %p1589, %p1590
      %s1593 = sadd.s32 %s1592, 1
      %p1596 = scmp.eq.s32.totalorder %s167, 1
      %p1597 = scmp.ne.s32.totalorder %s1592, %s1594
      %p1598 = scmp.eq.s32.totalorder %s167, 0
      %p1599 = por %p1597, %p1598
      %p1600 = scmp.ne.s32.totalorder %s1592, %s1594
      %p1601 = scmp.eq.s32.totalorder %s172, 1
      %p1602 = por %p1600, %p1601
      %p1603 = scmp.ne.s32.totalorder %s1594, %s1595
      %p1604 = scmp.eq.s32.totalorder %s172, 0
      %p1605 = por %p1603, %p1604
      %p1606 = scmp.ne.s32.totalorder %s1594, %s1595
      %p1607 = scmp.eq.s32.totalorder %s173, 1
      %p1608 = por %p1606, %p1607
      %p1610 = scmp.ne.s32.totalorder %s1595, %s1609
      %p1611 = scmp.eq.s32.totalorder %s173, 0
      %p1612 = por %p1610, %p1611
      %s1614 = sadd.s32 %s1613, 1
      %p1617 = scmp.eq.s32.totalorder %s167, 1
      %p1618 = scmp.ne.s32.totalorder %s1613, %s1615
      %p1619 = scmp.eq.s32.totalorder %s167, 0
      %p1620 = por %p1618, %p1619
      %p1621 = scmp.ne.s32.totalorder %s1613, %s1615
      %p1622 = scmp.eq.s32.totalorder %s172, 1
      %p1623 = por %p1621, %p1622
      %p1624 = scmp.ne.s32.totalorder %s1615, %s1616
      %p1625 = scmp.eq.s32.totalorder %s172, 0
      %p1626 = por %p1624, %p1625
      %p1627 = scmp.ne.s32.totalorder %s1615, %s1616
      %p1628 = scmp.eq.s32.totalorder %s173, 1
      %p1629 = por %p1627, %p1628
      %p1631 = scmp.ne.s32.totalorder %s1616, %s1630
      %p1632 = scmp.eq.s32.totalorder %s173, 0
      %p1633 = por %p1631, %p1632
      %s1635 = sadd.s32 %s1634, 1
      %p1638 = scmp.eq.s32.totalorder %s167, 1
      %p1639 = scmp.ne.s32.totalorder %s1634, %s1636
      %p1640 = scmp.eq.s32.totalorder %s167, 0
      %p1641 = por %p1639, %p1640
      %p1642 = scmp.ne.s32.totalorder %s1634, %s1636
      %p1643 = scmp.eq.s32.totalorder %s172, 1
      %p1644 = por %p1642, %p1643
      %p1645 = scmp.ne.s32.totalorder %s1636, %s1637
      %p1646 = scmp.eq.s32.totalorder %s172, 0
      %p1647 = por %p1645, %p1646
      %p1648 = scmp.ne.s32.totalorder %s1636, %s1637
      %p1649 = scmp.eq.s32.totalorder %s173, 1
      %p1650 = por %p1648, %p1649
      %p1652 = scmp.ne.s32.totalorder %s1637, %s1651
      %p1653 = scmp.eq.s32.totalorder %s173, 0
      %p1654 = por %p1652, %p1653
      %s1656 = sadd.s32 %s1655, 1
      %p1659 = scmp.eq.s32.totalorder %s167, 1
      %p1660 = scmp.ne.s32.totalorder %s1655, %s1657
      %p1661 = scmp.eq.s32.totalorder %s167, 0
      %p1662 = por %p1660, %p1661
      %p1663 = scmp.ne.s32.totalorder %s1655, %s1657
      %p1664 = scmp.eq.s32.totalorder %s172, 1
      %p1665 = por %p1663, %p1664
      %p1666 = scmp.ne.s32.totalorder %s1657, %s1658
      %p1667 = scmp.eq.s32.totalorder %s172, 0
      %p1668 = por %p1666, %p1667
      %p1669 = scmp.ne.s32.totalorder %s1657, %s1658
      %p1670 = scmp.eq.s32.totalorder %s173, 1
      %p1671 = por %p1669, %p1670
      %p1673 = scmp.ne.s32.totalorder %s1658, %s1672
      %p1674 = scmp.eq.s32.totalorder %s173, 0
      %p1675 = por %p1673, %p1674
      %s1677 = sadd.s32 %s1676, 1
      %p1680 = scmp.eq.s32.totalorder %s167, 1
      %p1681 = scmp.ne.s32.totalorder %s1676, %s1678
      %p1682 = scmp.eq.s32.totalorder %s167, 0
      %p1683 = por %p1681, %p1682
      %p1684 = scmp.ne.s32.totalorder %s1676, %s1678
      %p1685 = scmp.eq.s32.totalorder %s172, 1
      %p1686 = por %p1684, %p1685
      %p1687 = scmp.ne.s32.totalorder %s1678, %s1679
      %p1688 = scmp.eq.s32.totalorder %s172, 0
      %p1689 = por %p1687, %p1688
      %p1690 = scmp.ne.s32.totalorder %s1678, %s1679
      %p1691 = scmp.eq.s32.totalorder %s173, 1
      %p1692 = por %p1690, %p1691
      %p1694 = scmp.ne.s32.totalorder %s1679, %s1693
      %p1695 = scmp.eq.s32.totalorder %s173, 0
      %p1696 = por %p1694, %p1695
      %s1697 = ssub.s32 %s167, %s174
      %p1698 = scmp.eq.s32.totalorder %s1697, 0
      %s1700 = sadd.s32 %s1699, 1
      %s1701 = scalar_select %p1698, %s1699, %s1700
      %p1704 = pneg %p1698
      %p1705 = scmp.eq.s32.totalorder %s167, 1
      %p1706 = por %p1704, %p1705
      %p1707 = scmp.ne.s32.totalorder %s1699, %s1702
      %p1708 = scmp.eq.s32.totalorder %s167, 0
      %p1709 = por %p1707, %p1708
      %p1710 = scmp.ne.s32.totalorder %s1699, %s1702
      %p1711 = scmp.eq.s32.totalorder %s172, 1
      %p1712 = por %p1710, %p1711
      %p1713 = scmp.ne.s32.totalorder %s1702, %s1703
      %p1714 = scmp.eq.s32.totalorder %s172, 0
      %p1715 = por %p1713, %p1714
      %p1716 = scmp.ne.s32.totalorder %s1702, %s1703
      %p1717 = scmp.eq.s32.totalorder %s173, 1
      %p1718 = por %p1716, %p1717
      %p1720 = scmp.ne.s32.totalorder %s1703, %s1719
      %p1721 = scmp.eq.s32.totalorder %s173, 0
      %p1722 = por %p1720, %p1721
      %p1723 = scmp.le.s32.totalorder 1, %s167
      %p1724 = scmp.lt.s32.totalorder %s167, 3
      %p1725 = pnand %p1723, %p1724
      %p1726 = pneg %p1725
      // Predicated region
      $region9: #{transformer_decoder_model_forward.1} parent=5 // pred_check
        _
      $region10: #{transformer_decoder_model_forward.1} parent=5 // pred_check_branch
        %1728 = sbr.rel (%p1725) target = $region12
      $region11: #{transformer_decoder_model_forward.1} parent=5 // pred_region
        %s1729 = ssub.s32 %s167, 1
        // Predicated region
        $region13: #{transformer_decoder_model_forward.1} parent=11 // pred_check
          %p1730 = pneg %p240
        $region14: #{transformer_decoder_model_forward.1} parent=11 // pred_check_branch
          %1732 = sbr.rel (%p1730) target = $region16
        $region15: #{transformer_decoder_model_forward.1} parent=11 // pred_region
          _
        $region16: #{transformer_decoder_model_forward.1} parent=11 // pred_fallthru
          _
        // Predicated region
        $region17: #{transformer_decoder_model_forward.1} parent=11 // pred_check
          %p1733 = pneg %p261
        $region18: #{transformer_decoder_model_forward.1} parent=11 // pred_check_branch
          %1735 = sbr.rel (%p1733) target = $region20
        $region19: #{transformer_decoder_model_forward.1} parent=11 // pred_region
          _
        $region20: #{transformer_decoder_model_forward.1} parent=11 // pred_fallthru
          _
        // Predicated region
        $region21: #{transformer_decoder_model_forward.1} parent=11 // pred_check
          %p1736 = pneg %p282
        $region22: #{transformer_decoder_model_forward.1} parent=11 // pred_check_branch
          %1738 = sbr.rel (%p1736) target = $region24
        $region23: #{transformer_decoder_model_forward.1} parent=11 // pred_region
          _
        $region24: #{transformer_decoder_model_forward.1} parent=11 // pred_fallthru
          _
        // Predicated region
        $region25: #{transformer_decoder_model_forward.1} parent=11 // pred_check
          %p1739 = pneg %p303
        $region26: #{transformer_decoder_model_forward.1} parent=11 // pred_check_branch
          %1741 = sbr.rel (%p1739) target = $region28
        $region27: #{transformer_decoder_model_forward.1} parent=11 // pred_region
          _
        $region28: #{transformer_decoder_model_forward.1} parent=11 // pred_fallthru
          _
        // Predicated region
        $region29: #{transformer_decoder_model_forward.1} parent=11 // pred_check
          %p1742 = pneg %p324
        $region30: #{transformer_decoder_model_forward.1} parent=11 // pred_check_branch
          %1744 = sbr.rel (%p1742) target = $region32
        $region31: #{transformer_decoder_model_forward.1} parent=11 // pred_region
          _
        $region32: #{transformer_decoder_model_forward.1} parent=11 // pred_fallthru
          _
        // Predicated region
        $region33: #{transformer_decoder_model_forward.1} parent=11 // pred_check
          %p1745 = pneg %p345
        $region34: #{transformer_decoder_model_forward.1} parent=11 // pred_check_branch
          %1747 = sbr.rel (%p1745) target = $region36
        $region35: #{transformer_decoder_model_forward.1} parent=11 // pred_region
          _
        $region36: #{transformer_decoder_model_forward.1} parent=11 // pred_fallthru
          _
        // Predicated region
        $region37: #{transformer_decoder_model_forward.1} parent=11 // pred_check
          %p1748 = pneg %p366
        $region38: #{transformer_decoder_model_forward.1} parent=11 // pred_check_branch
          %1750 = sbr.rel (%p1748) target = $region40
        $region39: #{transformer_decoder_model_forward.1} parent=11 // pred_region
          _
        $region40: #{transformer_decoder_model_forward.1} parent=11 // pred_fallthru
          _
        // Predicated region
        $region41: #{transformer_decoder_model_forward.1} parent=11 // pred_check
          %p1751 = pneg %p387
        $region42: #{transformer_decoder_model_forward.1} parent=11 // pred_check_branch
          %1753 = sbr.rel (%p1751) target = $region44
        $region43: #{transformer_decoder_model_forward.1} parent=11 // pred_region
          _
        $region44: #{transformer_decoder_model_forward.1} parent=11 // pred_fallthru
          _
        // Predicated region
        $region45: #{transformer_decoder_model_forward.1} parent=11 // pred_check
          %p1754 = pneg %p408
        $region46: #{transformer_decoder_model_forward.1} parent=11 // pred_check_branch
          %1756 = sbr.rel (%p1754) target = $region48
        $region47: #{transformer_decoder_model_forward.1} parent=11 // pred_region
          _
        $region48: #{transformer_decoder_model_forward.1} parent=11 // pred_fallthru
          _
        // Predicated region
        $region49: #{transformer_decoder_model_forward.1} parent=11 // pred_check
          %p1757 = pneg %p429
        $region50: #{transformer_decoder_model_forward.1} parent=11 // pred_check_branch
          %1759 = sbr.rel (%p1757) target = $region52
        $region51: #{transformer_decoder_model_forward.1} parent=11 // pred_region
          _
        $region52: #{transformer_decoder_model_forward.1} parent=11 // pred_fallthru
          _
        // Predicated region
        $region53: #{transformer_decoder_model_forward.1} parent=11 // pred_check
          %p1760 = pneg %p450
        $region54: #{transformer_decoder_model_forward.1} parent=11 // pred_check_branch
          %1762 = sbr.rel (%p1760) target = $region56
        $region55: #{transformer_decoder_model_forward.1} parent=11 // pred_region
          _
        $region56: #{transformer_decoder_model_forward.1} parent=11 // pred_fallthru
          _
        // Predicated region
        $region57: #{transformer_decoder_model_forward.1} parent=11 // pred_check
          %p1763 = pneg %p471
        $region58: #{transformer_decoder_model_forward.1} parent=11 // pred_check_branch
          %1765 = sbr.rel (%p1763) target = $region60
        $region59: #{transformer_decoder_model_forward.1} parent=11 // pred_region
          _
        $region60: #{transformer_decoder_model_forward.1} parent=11 // pred_fallthru
          _
        // Predicated region
        $region61: #{transformer_decoder_model_forward.1} parent=11 // pred_check
          %p1766 = pneg %p492
        $region62: #{transformer_decoder_model_forward.1} parent=11 // pred_check_branch
          %1768 = sbr.rel (%p1766) target = $region64
        $region63: #{transformer_decoder_model_forward.1} parent=11 // pred_region
          _
        $region64: #{transformer_decoder_model_forward.1} parent=11 // pred_fallthru
          _
        // Predicated region
        $region65: #{transformer_decoder_model_forward.1} parent=11 // pred_check
          %p1769 = pneg %p513
        $region66: #{transformer_decoder_model_forward.1} parent=11 // pred_check_branch
          %1771 = sbr.rel (%p1769) target = $region68
        $region67: #{transformer_decoder_model_forward.1} parent=11 // pred_region
          _
        $region68: #{transformer_decoder_model_forward.1} parent=11 // pred_fallthru
          _
        // Predicated region
        $region69: #{transformer_decoder_model_forward.1} parent=11 // pred_check
          %p1772 = pneg %p534
        $region70: #{transformer_decoder_model_forward.1} parent=11 // pred_check_branch
          %1774 = sbr.rel (%p1772) target = $region72
        $region71: #{transformer_decoder_model_forward.1} parent=11 // pred_region
          _
        $region72: #{transformer_decoder_model_forward.1} parent=11 // pred_fallthru
          _
        // Predicated region
        $region73: #{transformer_decoder_model_forward.1} parent=11 // pred_check
          %p1775 = pneg %p555
        $region74: #{transformer_decoder_model_forward.1} parent=11 // pred_check_branch
          %1777 = sbr.rel (%p1775) target = $region76
        $region75: #{transformer_decoder_model_forward.1} parent=11 // pred_region
          _
        $region76: #{transformer_decoder_model_forward.1} parent=11 // pred_fallthru
          _
        // Predicated region
        $region77: #{transformer_decoder_model_forward.1} parent=11 // pred_check
          %p1778 = pneg %p576
        $region78: #{transformer_decoder_model_forward.1} parent=11 // pred_check_branch
          %1780 = sbr.rel (%p1778) target = $region80
        $region79: #{transformer_decoder_model_forward.1} parent=11 // pred_region
          _
        $region80: #{transformer_decoder_model_forward.1} parent=11 // pred_fallthru
          _
        // Predicated region
        $region81: #{transformer_decoder_model_forward.1} parent=11 // pred_check
          %p1781 = pneg %p597
        $region82: #{transformer_decoder_model_forward.1} parent=11 // pred_check_branch
          %1783 = sbr.rel (%p1781) target = $region84
        $region83: #{transformer_decoder_model_forward.1} parent=11 // pred_region
          _
        $region84: #{transformer_decoder_model_forward.1} parent=11 // pred_fallthru
          _
        // Predicated region
        $region85: #{transformer_decoder_model_forward.1} parent=11 // pred_check
          %p1784 = pneg %p618
        $region86: #{transformer_decoder_model_forward.1} parent=11 // pred_check_branch
          %1786 = sbr.rel (%p1784) target = $region88
        $region87: #{transformer_decoder_model_forward.1} parent=11 // pred_region
          _
        $region88: #{transformer_decoder_model_forward.1} parent=11 // pred_fallthru
          _
        // Predicated region
        $region89: #{transformer_decoder_model_forward.1} parent=11 // pred_check
          %p1787 = pneg %p639
        $region90: #{transformer_decoder_model_forward.1} parent=11 // pred_check_branch
          %1789 = sbr.rel (%p1787) target = $region92
        $region91: #{transformer_decoder_model_forward.1} parent=11 // pred_region
          _
        $region92: #{transformer_decoder_model_forward.1} parent=11 // pred_fallthru
          _
        // Predicated region
        $region93: #{transformer_decoder_model_forward.1} parent=11 // pred_check
          %p1790 = pneg %p660
        $region94: #{transformer_decoder_model_forward.1} parent=11 // pred_check_branch
          %1792 = sbr.rel (%p1790) target = $region96
        $region95: #{transformer_decoder_model_forward.1} parent=11 // pred_region
          _
        $region96: #{transformer_decoder_model_forward.1} parent=11 // pred_fallthru
          _
        // Predicated region
        $region97: #{transformer_decoder_model_forward.1} parent=11 // pred_check
          %p1793 = pneg %p681
        $region98: #{transformer_decoder_model_forward.1} parent=11 // pred_check_branch
          %1795 = sbr.rel (%p1793) target = $region100
        $region99: #{transformer_decoder_model_forward.1} parent=11 // pred_region
          _
        $region100: #{transformer_decoder_model_forward.1} parent=11 // pred_fallthru
          _
        // Predicated region
        $region101: #{transformer_decoder_model_forward.1} parent=11 // pred_check
          %p1796 = pneg %p702
        $region102: #{transformer_decoder_model_forward.1} parent=11 // pred_check_branch
          %1798 = sbr.rel (%p1796) target = $region104
        $region103: #{transformer_decoder_model_forward.1} parent=11 // pred_region
          _
        $region104: #{transformer_decoder_model_forward.1} parent=11 // pred_fallthru
          _
        // Predicated region
        $region105: #{transformer_decoder_model_forward.1} parent=11 // pred_check
          %p1799 = pneg %p723
        $region106: #{transformer_decoder_model_forward.1} parent=11 // pred_check_branch
          %1801 = sbr.rel (%p1799) target = $region108
        $region107: #{transformer_decoder_model_forward.1} parent=11 // pred_region
          _
        $region108: #{transformer_decoder_model_forward.1} parent=11 // pred_fallthru
          _
        // Predicated region
        $region109: #{transformer_decoder_model_forward.1} parent=11 // pred_check
          %p1802 = pneg %p744
        $region110: #{transformer_decoder_model_forward.1} parent=11 // pred_check_branch
          %1804 = sbr.rel (%p1802) target = $region112
        $region111: #{transformer_decoder_model_forward.1} parent=11 // pred_region
          %s1806 = ssub.s32 16, 16
          %1807 = vsyncadd [#allocation3], %s1806
          %s1809 = sshll.u32 [#allocation2], 4
          %s1810 = int_to_ptr.vmem [resolvable:$true] %s1809
          %1812 = dma.hbm_to_vmem [thread:$0]  %s53, 16, %s1810, [#allocation3]
        $region112: #{transformer_decoder_model_forward.1} parent=11 // pred_fallthru
          _
        // Predicated region
        $region113: #{transformer_decoder_model_forward.1} parent=11 // pred_check
          %p1813 = pneg %p765
        $region114: #{transformer_decoder_model_forward.1} parent=11 // pred_check_branch
          %1815 = sbr.rel (%p1813) target = $region116
        $region115: #{transformer_decoder_model_forward.1} parent=11 // pred_region
          %s1817 = ssub.s32 16, 16
          %1818 = vsyncadd [#allocation5], %s1817
          %s1820 = sshll.u32 [#allocation4], 4
          %s1821 = int_to_ptr.vmem [resolvable:$true] %s1820
          %1823 = dma.hbm_to_vmem [thread:$0]  %s55, 16, %s1821, [#allocation5]
        $region116: #{transformer_decoder_model_forward.1} parent=11 // pred_fallthru
          _
        // Predicated region
        $region117: #{transformer_decoder_model_forward.1} parent=11 // pred_check
          %p1824 = pneg %p786
        $region118: #{transformer_decoder_model_forward.1} parent=11 // pred_check_branch
          %1826 = sbr.rel (%p1824) target = $region120
        $region119: #{transformer_decoder_model_forward.1} parent=11 // pred_region
          _
        $region120: #{transformer_decoder_model_forward.1} parent=11 // pred_fallthru
          _
        // Predicated region
        $region121: #{transformer_decoder_model_forward.1} parent=11 // pred_check
          %p1827 = pneg %p807
        $region122: #{transformer_decoder_model_forward.1} parent=11 // pred_check_branch
          %1829 = sbr.rel (%p1827) target = $region124
        $region123: #{transformer_decoder_model_forward.1} parent=11 // pred_region
          %s1831 = ssub.s32 16, 16
          %1832 = vsyncadd [#allocation5], %s1831
          %s1834 = sshll.u32 [#allocation6], 4
          %s1835 = int_to_ptr.vmem [resolvable:$true] %s1834
          %1837 = dma.hbm_to_vmem [thread:$0]  %s59, 16, %s1835, [#allocation5]
        $region124: #{transformer_decoder_model_forward.1} parent=11 // pred_fallthru
          _
        // Predicated region
        $region125: #{transformer_decoder_model_forward.1} parent=11 // pred_check
          %p1838 = pneg %p828
        $region126: #{transformer_decoder_model_forward.1} parent=11 // pred_check_branch
          %1840 = sbr.rel (%p1838) target = $region128
        $region127: #{transformer_decoder_model_forward.1} parent=11 // pred_region
          _
        $region128: #{transformer_decoder_model_forward.1} parent=11 // pred_fallthru
          _
        // Predicated region
        $region129: #{transformer_decoder_model_forward.1} parent=11 // pred_check
          %p1841 = pneg %p849
        $region130: #{transformer_decoder_model_forward.1} parent=11 // pred_check_branch
          %1843 = sbr.rel (%p1841) target = $region132
        $region131: #{transformer_decoder_model_forward.1} parent=11 // pred_region
          %s1845 = ssub.s32 16, 16
          %1846 = vsyncadd [#allocation8], %s1845
          %s1848 = sshll.u32 [#allocation7], 4
          %s1849 = int_to_ptr.vmem [resolvable:$true] %s1848
          %1851 = dma.hbm_to_vmem [thread:$0]  %s63, 16, %s1849, [#allocation8]
        $region132: #{transformer_decoder_model_forward.1} parent=11 // pred_fallthru
          _
        // Predicated region
        $region133: #{transformer_decoder_model_forward.1} parent=11 // pred_check
          %p1852 = pneg %p870
        $region134: #{transformer_decoder_model_forward.1} parent=11 // pred_check_branch
          %1854 = sbr.rel (%p1852) target = $region136
        $region135: #{transformer_decoder_model_forward.1} parent=11 // pred_region
          %s1856 = ssub.s32 16, 16
          %1857 = vsyncadd [#allocation8], %s1856
          %s1859 = sshll.u32 [#allocation9], 4
          %s1860 = int_to_ptr.vmem [resolvable:$true] %s1859
          %1862 = dma.hbm_to_vmem [thread:$0]  %s65, 16, %s1860, [#allocation8]
        $region136: #{transformer_decoder_model_forward.1} parent=11 // pred_fallthru
          _
        // Predicated region
        $region137: #{transformer_decoder_model_forward.1} parent=11 // pred_check
          %p1863 = pneg %p891
        $region138: #{transformer_decoder_model_forward.1} parent=11 // pred_check_branch
          %1865 = sbr.rel (%p1863) target = $region140
        $region139: #{transformer_decoder_model_forward.1} parent=11 // pred_region
          %s1867 = ssub.s32 16, 16
          %1868 = vsyncadd [#allocation11], %s1867
          %s1870 = sshll.u32 [#allocation10], 4
          %s1871 = int_to_ptr.vmem [resolvable:$true] %s1870
          %1873 = dma.hbm_to_vmem [thread:$0]  %s67, 16, %s1871, [#allocation11]
        $region140: #{transformer_decoder_model_forward.1} parent=11 // pred_fallthru
          _
        // Predicated region
        $region141: #{transformer_decoder_model_forward.1} parent=11 // pred_check
          %p1874 = pneg %p912
        $region142: #{transformer_decoder_model_forward.1} parent=11 // pred_check_branch
          %1876 = sbr.rel (%p1874) target = $region144
        $region143: #{transformer_decoder_model_forward.1} parent=11 // pred_region
          _
        $region144: #{transformer_decoder_model_forward.1} parent=11 // pred_fallthru
          _
        // Predicated region
        $region145: #{transformer_decoder_model_forward.1} parent=11 // pred_check
          %p1877 = pneg %p933
        $region146: #{transformer_decoder_model_forward.1} parent=11 // pred_check_branch
          %1879 = sbr.rel (%p1877) target = $region148
        $region147: #{transformer_decoder_model_forward.1} parent=11 // pred_region
          %s1881 = ssub.s32 16, 16
          %1882 = vsyncadd [#allocation11], %s1881
          %s1884 = sshll.u32 [#allocation12], 4
          %s1885 = int_to_ptr.vmem [resolvable:$true] %s1884
          %1887 = dma.hbm_to_vmem [thread:$0]  %s71, 16, %s1885, [#allocation11]
        $region148: #{transformer_decoder_model_forward.1} parent=11 // pred_fallthru
          _
        // Predicated region
        $region149: #{transformer_decoder_model_forward.1} parent=11 // pred_check
          %p1888 = pneg %p954
        $region150: #{transformer_decoder_model_forward.1} parent=11 // pred_check_branch
          %1890 = sbr.rel (%p1888) target = $region152
        $region151: #{transformer_decoder_model_forward.1} parent=11 // pred_region
          _
        $region152: #{transformer_decoder_model_forward.1} parent=11 // pred_fallthru
          _
        // Predicated region
        $region153: #{transformer_decoder_model_forward.1} parent=11 // pred_check
          %p1891 = pneg %p975
        $region154: #{transformer_decoder_model_forward.1} parent=11 // pred_check_branch
          %1893 = sbr.rel (%p1891) target = $region156
        $region155: #{transformer_decoder_model_forward.1} parent=11 // pred_region
          %s1895 = ssub.s32 16, 16
          %1896 = vsyncadd [#allocation14], %s1895
          %s1898 = sshll.u32 [#allocation13], 4
          %s1899 = int_to_ptr.vmem [resolvable:$true] %s1898
          %1901 = dma.hbm_to_vmem [thread:$0]  %s75, 16, %s1899, [#allocation14]
        $region156: #{transformer_decoder_model_forward.1} parent=11 // pred_fallthru
          _
        // Predicated region
        $region157: #{transformer_decoder_model_forward.1} parent=11 // pred_check
          %p1902 = pneg %p996
        $region158: #{transformer_decoder_model_forward.1} parent=11 // pred_check_branch
          %1904 = sbr.rel (%p1902) target = $region160
        $region159: #{transformer_decoder_model_forward.1} parent=11 // pred_region
          _
        $region160: #{transformer_decoder_model_forward.1} parent=11 // pred_fallthru
          _
        // Predicated region
        $region161: #{transformer_decoder_model_forward.1} parent=11 // pred_check
          %p1905 = pneg %p1017
        $region162: #{transformer_decoder_model_forward.1} parent=11 // pred_check_branch
          %1907 = sbr.rel (%p1905) target = $region164
        $region163: #{transformer_decoder_model_forward.1} parent=11 // pred_region
          %s1909 = ssub.s32 16, 16
          %1910 = vsyncadd [#allocation14], %s1909
          %s1912 = sshll.u32 [#allocation15], 4
          %s1913 = int_to_ptr.vmem [resolvable:$true] %s1912
          %1915 = dma.hbm_to_vmem [thread:$0]  %s79, 16, %s1913, [#allocation14]
        $region164: #{transformer_decoder_model_forward.1} parent=11 // pred_fallthru
          _
        // Predicated region
        $region165: #{transformer_decoder_model_forward.1} parent=11 // pred_check
          %p1916 = pneg %p1038
        $region166: #{transformer_decoder_model_forward.1} parent=11 // pred_check_branch
          %1918 = sbr.rel (%p1916) target = $region168
        $region167: #{transformer_decoder_model_forward.1} parent=11 // pred_region
          %s1920 = ssub.s32 16, 16
          %1921 = vsyncadd [#allocation17], %s1920
          %s1923 = sshll.u32 [#allocation16], 4
          %s1924 = int_to_ptr.vmem [resolvable:$true] %s1923
          %1926 = dma.hbm_to_vmem [thread:$0]  %s81, 16, %s1924, [#allocation17]
        $region168: #{transformer_decoder_model_forward.1} parent=11 // pred_fallthru
          _
        // Predicated region
        $region169: #{transformer_decoder_model_forward.1} parent=11 // pred_check
          %p1927 = pneg %p1059
        $region170: #{transformer_decoder_model_forward.1} parent=11 // pred_check_branch
          %1929 = sbr.rel (%p1927) target = $region172
        $region171: #{transformer_decoder_model_forward.1} parent=11 // pred_region
          %s1931 = ssub.s32 16, 16
          %1932 = vsyncadd [#allocation17], %s1931
          %s1934 = sshll.u32 [#allocation18], 4
          %s1935 = int_to_ptr.vmem [resolvable:$true] %s1934
          %1937 = dma.hbm_to_vmem [thread:$0]  %s83, 16, %s1935, [#allocation17]
        $region172: #{transformer_decoder_model_forward.1} parent=11 // pred_fallthru
          _
        // Predicated region
        $region173: #{transformer_decoder_model_forward.1} parent=11 // pred_check
          %p1938 = pneg %p1080
        $region174: #{transformer_decoder_model_forward.1} parent=11 // pred_check_branch
          %1940 = sbr.rel (%p1938) target = $region176
        $region175: #{transformer_decoder_model_forward.1} parent=11 // pred_region
          _
        $region176: #{transformer_decoder_model_forward.1} parent=11 // pred_fallthru
          _
        // Predicated region
        $region177: #{transformer_decoder_model_forward.1} parent=11 // pred_check
          %p1941 = pneg %p1101
        $region178: #{transformer_decoder_model_forward.1} parent=11 // pred_check_branch
          %1943 = sbr.rel (%p1941) target = $region180
        $region179: #{transformer_decoder_model_forward.1} parent=11 // pred_region
          %s1945 = ssub.s32 16, 16
          %1946 = vsyncadd [#allocation20], %s1945
          %s1948 = sshll.u32 [#allocation19], 4
          %s1949 = int_to_ptr.vmem [resolvable:$true] %s1948
          %1951 = dma.hbm_to_vmem [thread:$0]  %s87, 16, %s1949, [#allocation20]
        $region180: #{transformer_decoder_model_forward.1} parent=11 // pred_fallthru
          _
        // Predicated region
        $region181: #{transformer_decoder_model_forward.1} parent=11 // pred_check
          %p1952 = pneg %p1122
        $region182: #{transformer_decoder_model_forward.1} parent=11 // pred_check_branch
          %1954 = sbr.rel (%p1952) target = $region184
        $region183: #{transformer_decoder_model_forward.1} parent=11 // pred_region
          _
        $region184: #{transformer_decoder_model_forward.1} parent=11 // pred_fallthru
          _
        // Predicated region
        $region185: #{transformer_decoder_model_forward.1} parent=11 // pred_check
          %p1955 = pneg %p1143
        $region186: #{transformer_decoder_model_forward.1} parent=11 // pred_check_branch
          %1957 = sbr.rel (%p1955) target = $region188
        $region187: #{transformer_decoder_model_forward.1} parent=11 // pred_region
          %s1959 = ssub.s32 16, 16
          %1960 = vsyncadd [#allocation20], %s1959
          %s1962 = sshll.u32 [#allocation21], 4
          %s1963 = int_to_ptr.vmem [resolvable:$true] %s1962
          %1965 = dma.hbm_to_vmem [thread:$0]  %s91, 16, %s1963, [#allocation20]
        $region188: #{transformer_decoder_model_forward.1} parent=11 // pred_fallthru
          _
        // Predicated region
        $region189: #{transformer_decoder_model_forward.1} parent=11 // pred_check
          %p1966 = pneg %p1164
        $region190: #{transformer_decoder_model_forward.1} parent=11 // pred_check_branch
          %1968 = sbr.rel (%p1966) target = $region192
        $region191: #{transformer_decoder_model_forward.1} parent=11 // pred_region
          %s1970 = ssub.s32 16, 16
          %1971 = vsyncadd [#allocation23], %s1970
          %s1973 = sshll.u32 [#allocation22], 4
          %s1974 = int_to_ptr.vmem [resolvable:$true] %s1973
          %1976 = dma.hbm_to_vmem [thread:$0]  %s93, 16, %s1974, [#allocation23]
        $region192: #{transformer_decoder_model_forward.1} parent=11 // pred_fallthru
          _
        // Predicated region
        $region193: #{transformer_decoder_model_forward.1} parent=11 // pred_check
          %p1977 = pneg %p1185
        $region194: #{transformer_decoder_model_forward.1} parent=11 // pred_check_branch
          %1979 = sbr.rel (%p1977) target = $region196
        $region195: #{transformer_decoder_model_forward.1} parent=11 // pred_region
          %s1981 = ssub.s32 16, 16
          %1982 = vsyncadd [#allocation23], %s1981
          %s1984 = sshll.u32 [#allocation24], 4
          %s1985 = int_to_ptr.vmem [resolvable:$true] %s1984
          %1987 = dma.hbm_to_vmem [thread:$0]  %s95, 16, %s1985, [#allocation23]
        $region196: #{transformer_decoder_model_forward.1} parent=11 // pred_fallthru
          _
        // Predicated region
        $region197: #{transformer_decoder_model_forward.1} parent=11 // pred_check
          %p1988 = pneg %p1206
        $region198: #{transformer_decoder_model_forward.1} parent=11 // pred_check_branch
          %1990 = sbr.rel (%p1988) target = $region200
        $region199: #{transformer_decoder_model_forward.1} parent=11 // pred_region
          _
        $region200: #{transformer_decoder_model_forward.1} parent=11 // pred_fallthru
          _
        // Predicated region
        $region201: #{transformer_decoder_model_forward.1} parent=11 // pred_check
          %p1991 = pneg %p1227
        $region202: #{transformer_decoder_model_forward.1} parent=11 // pred_check_branch
          %1993 = sbr.rel (%p1991) target = $region204
        $region203: #{transformer_decoder_model_forward.1} parent=11 // pred_region
          %s1995 = ssub.s32 16, 16
          %1996 = vsyncadd [#allocation26], %s1995
          %s1998 = sshll.u32 [#allocation25], 4
          %s1999 = int_to_ptr.vmem [resolvable:$true] %s1998
          %2001 = dma.hbm_to_vmem [thread:$0]  %s99, 16, %s1999, [#allocation26]
        $region204: #{transformer_decoder_model_forward.1} parent=11 // pred_fallthru
          _
        // Predicated region
        $region205: #{transformer_decoder_model_forward.1} parent=11 // pred_check
          %p2002 = pneg %p1248
        $region206: #{transformer_decoder_model_forward.1} parent=11 // pred_check_branch
          %2004 = sbr.rel (%p2002) target = $region208
        $region207: #{transformer_decoder_model_forward.1} parent=11 // pred_region
          _
        $region208: #{transformer_decoder_model_forward.1} parent=11 // pred_fallthru
          _
        // Predicated region
        $region209: #{transformer_decoder_model_forward.1} parent=11 // pred_check
          %p2005 = pneg %p1269
        $region210: #{transformer_decoder_model_forward.1} parent=11 // pred_check_branch
          %2007 = sbr.rel (%p2005) target = $region212
        $region211: #{transformer_decoder_model_forward.1} parent=11 // pred_region
          %s2009 = ssub.s32 16, 16
          %2010 = vsyncadd [#allocation26], %s2009
          %s2012 = sshll.u32 [#allocation27], 4
          %s2013 = int_to_ptr.vmem [resolvable:$true] %s2012
          %2015 = dma.hbm_to_vmem [thread:$0]  %s103, 16, %s2013, [#allocation26]
        $region212: #{transformer_decoder_model_forward.1} parent=11 // pred_fallthru
          _
        // Predicated region
        $region213: #{transformer_decoder_model_forward.1} parent=11 // pred_check
          %p2016 = pneg %p1290
        $region214: #{transformer_decoder_model_forward.1} parent=11 // pred_check_branch
          %2018 = sbr.rel (%p2016) target = $region216
        $region215: #{transformer_decoder_model_forward.1} parent=11 // pred_region
          %s2020 = ssub.s32 16, 16
          %2021 = vsyncadd [#allocation29], %s2020
          %s2023 = sshll.u32 [#allocation28], 4
          %s2024 = int_to_ptr.vmem [resolvable:$true] %s2023
          %2026 = dma.hbm_to_vmem [thread:$0]  %s105, 16, %s2024, [#allocation29]
        $region216: #{transformer_decoder_model_forward.1} parent=11 // pred_fallthru
          _
        // Predicated region
        $region217: #{transformer_decoder_model_forward.1} parent=11 // pred_check
          %p2027 = pneg %p1311
        $region218: #{transformer_decoder_model_forward.1} parent=11 // pred_check_branch
          %2029 = sbr.rel (%p2027) target = $region220
        $region219: #{transformer_decoder_model_forward.1} parent=11 // pred_region
          %s2031 = ssub.s32 16, 16
          %2032 = vsyncadd [#allocation29], %s2031
          %s2034 = sshll.u32 [#allocation30], 4
          %s2035 = int_to_ptr.vmem [resolvable:$true] %s2034
          %2037 = dma.hbm_to_vmem [thread:$0]  %s107, 16, %s2035, [#allocation29]
        $region220: #{transformer_decoder_model_forward.1} parent=11 // pred_fallthru
          _
        // Predicated region
        $region221: #{transformer_decoder_model_forward.1} parent=11 // pred_check
          %p2038 = pneg %p1332
        $region222: #{transformer_decoder_model_forward.1} parent=11 // pred_check_branch
          %2040 = sbr.rel (%p2038) target = $region224
        $region223: #{transformer_decoder_model_forward.1} parent=11 // pred_region
          _
        $region224: #{transformer_decoder_model_forward.1} parent=11 // pred_fallthru
          _
        // Predicated region
        $region225: #{transformer_decoder_model_forward.1} parent=11 // pred_check
          %p2041 = pneg %p1353
        $region226: #{transformer_decoder_model_forward.1} parent=11 // pred_check_branch
          %2043 = sbr.rel (%p2041) target = $region228
        $region227: #{transformer_decoder_model_forward.1} parent=11 // pred_region
          %s2045 = ssub.s32 16, 16
          %2046 = vsyncadd [#allocation32], %s2045
          %s2048 = sshll.u32 [#allocation31], 4
          %s2049 = int_to_ptr.vmem [resolvable:$true] %s2048
          %2051 = dma.hbm_to_vmem [thread:$0]  %s111, 16, %s2049, [#allocation32]
        $region228: #{transformer_decoder_model_forward.1} parent=11 // pred_fallthru
          _
        // Predicated region
        $region229: #{transformer_decoder_model_forward.1} parent=11 // pred_check
          %p2052 = pneg %p1374
        $region230: #{transformer_decoder_model_forward.1} parent=11 // pred_check_branch
          %2054 = sbr.rel (%p2052) target = $region232
        $region231: #{transformer_decoder_model_forward.1} parent=11 // pred_region
          _
        $region232: #{transformer_decoder_model_forward.1} parent=11 // pred_fallthru
          _
        // Predicated region
        $region233: #{transformer_decoder_model_forward.1} parent=11 // pred_check
          %p2055 = pneg %p1395
        $region234: #{transformer_decoder_model_forward.1} parent=11 // pred_check_branch
          %2057 = sbr.rel (%p2055) target = $region236
        $region235: #{transformer_decoder_model_forward.1} parent=11 // pred_region
          %s2059 = ssub.s32 16, 16
          %2060 = vsyncadd [#allocation32], %s2059
          %s2062 = sshll.u32 [#allocation33], 4
          %s2063 = int_to_ptr.vmem [resolvable:$true] %s2062
          %2065 = dma.hbm_to_vmem [thread:$0]  %s115, 16, %s2063, [#allocation32]
        $region236: #{transformer_decoder_model_forward.1} parent=11 // pred_fallthru
          _
        // Predicated region
        $region237: #{transformer_decoder_model_forward.1} parent=11 // pred_check
          %p2066 = pneg %p1416
        $region238: #{transformer_decoder_model_forward.1} parent=11 // pred_check_branch
          %2068 = sbr.rel (%p2066) target = $region240
        $region239: #{transformer_decoder_model_forward.1} parent=11 // pred_region
          _
        $region240: #{transformer_decoder_model_forward.1} parent=11 // pred_fallthru
          _
        // Predicated region
        $region241: #{transformer_decoder_model_forward.1} parent=11 // pred_check
          %p2069 = pneg %p1437
        $region242: #{transformer_decoder_model_forward.1} parent=11 // pred_check_branch
          %2071 = sbr.rel (%p2069) target = $region244
        $region243: #{transformer_decoder_model_forward.1} parent=11 // pred_region
          %s2073 = ssub.s32 16, 16
          %2074 = vsyncadd [#allocation35], %s2073
          %s2076 = sshll.u32 [#allocation34], 4
          %s2077 = int_to_ptr.vmem [resolvable:$true] %s2076
          %2079 = dma.hbm_to_vmem [thread:$0]  %s119, 16, %s2077, [#allocation35]
        $region244: #{transformer_decoder_model_forward.1} parent=11 // pred_fallthru
          _
        // Predicated region
        $region245: #{transformer_decoder_model_forward.1} parent=11 // pred_check
          %p2080 = pneg %p1458
        $region246: #{transformer_decoder_model_forward.1} parent=11 // pred_check_branch
          %2082 = sbr.rel (%p2080) target = $region248
        $region247: #{transformer_decoder_model_forward.1} parent=11 // pred_region
          %s2084 = ssub.s32 16, 16
          %2085 = vsyncadd [#allocation35], %s2084
          %s2087 = sshll.u32 [#allocation36], 4
          %s2088 = int_to_ptr.vmem [resolvable:$true] %s2087
          %2090 = dma.hbm_to_vmem [thread:$0]  %s121, 16, %s2088, [#allocation35]
        $region248: #{transformer_decoder_model_forward.1} parent=11 // pred_fallthru
          _
        // Predicated region
        $region249: #{transformer_decoder_model_forward.1} parent=11 // pred_check
          %p2091 = pneg %p1479
        $region250: #{transformer_decoder_model_forward.1} parent=11 // pred_check_branch
          %2093 = sbr.rel (%p2091) target = $region252
        $region251: #{transformer_decoder_model_forward.1} parent=11 // pred_region
          %s2095 = ssub.s32 16, 16
          %2096 = vsyncadd [#allocation38], %s2095
          %s2098 = sshll.u32 [#allocation37], 4
          %s2099 = int_to_ptr.vmem [resolvable:$true] %s2098
          %2101 = dma.hbm_to_vmem [thread:$0]  %s123, 16, %s2099, [#allocation38]
        $region252: #{transformer_decoder_model_forward.1} parent=11 // pred_fallthru
          _
        // Predicated region
        $region253: #{transformer_decoder_model_forward.1} parent=11 // pred_check
          %p2102 = pneg %p1500
        $region254: #{transformer_decoder_model_forward.1} parent=11 // pred_check_branch
          %2104 = sbr.rel (%p2102) target = $region256
        $region255: #{transformer_decoder_model_forward.1} parent=11 // pred_region
          _
        $region256: #{transformer_decoder_model_forward.1} parent=11 // pred_fallthru
          _
        // Predicated region
        $region257: #{transformer_decoder_model_forward.1} parent=11 // pred_check
          %p2105 = pneg %p1521
        $region258: #{transformer_decoder_model_forward.1} parent=11 // pred_check_branch
          %2107 = sbr.rel (%p2105) target = $region260
        $region259: #{transformer_decoder_model_forward.1} parent=11 // pred_region
          %s2109 = ssub.s32 16, 16
          %2110 = vsyncadd [#allocation38], %s2109
          %s2112 = sshll.u32 [#allocation39], 4
          %s2113 = int_to_ptr.vmem [resolvable:$true] %s2112
          %2115 = dma.hbm_to_vmem [thread:$0]  %s127, 16, %s2113, [#allocation38]
        $region260: #{transformer_decoder_model_forward.1} parent=11 // pred_fallthru
          _
        // Predicated region
        $region261: #{transformer_decoder_model_forward.1} parent=11 // pred_check
          %p2116 = pneg %p1542
        $region262: #{transformer_decoder_model_forward.1} parent=11 // pred_check_branch
          %2118 = sbr.rel (%p2116) target = $region264
        $region263: #{transformer_decoder_model_forward.1} parent=11 // pred_region
          _
        $region264: #{transformer_decoder_model_forward.1} parent=11 // pred_fallthru
          _
        // Predicated region
        $region265: #{transformer_decoder_model_forward.1} parent=11 // pred_check
          %p2119 = pneg %p1563
        $region266: #{transformer_decoder_model_forward.1} parent=11 // pred_check_branch
          %2121 = sbr.rel (%p2119) target = $region268
        $region267: #{transformer_decoder_model_forward.1} parent=11 // pred_region
          %s2123 = ssub.s32 16, 16
          %2124 = vsyncadd [#allocation41], %s2123
          %s2126 = sshll.u32 [#allocation40], 4
          %s2127 = int_to_ptr.vmem [resolvable:$true] %s2126
          %2129 = dma.hbm_to_vmem [thread:$0]  %s131, 16, %s2127, [#allocation41]
        $region268: #{transformer_decoder_model_forward.1} parent=11 // pred_fallthru
          _
        // Predicated region
        $region269: #{transformer_decoder_model_forward.1} parent=11 // pred_check
          %p2130 = pneg %p1584
        $region270: #{transformer_decoder_model_forward.1} parent=11 // pred_check_branch
          %2132 = sbr.rel (%p2130) target = $region272
        $region271: #{transformer_decoder_model_forward.1} parent=11 // pred_region
          %s2134 = ssub.s32 16, 16
          %2135 = vsyncadd [#allocation41], %s2134
          %s2137 = sshll.u32 [#allocation42], 4
          %s2138 = int_to_ptr.vmem [resolvable:$true] %s2137
          %2140 = dma.hbm_to_vmem [thread:$0]  %s133, 16, %s2138, [#allocation41]
        $region272: #{transformer_decoder_model_forward.1} parent=11 // pred_fallthru
          _
        // Predicated region
        $region273: #{transformer_decoder_model_forward.1} parent=11 // pred_check
          %p2141 = pneg %p1605
        $region274: #{transformer_decoder_model_forward.1} parent=11 // pred_check_branch
          %2143 = sbr.rel (%p2141) target = $region276
        $region275: #{transformer_decoder_model_forward.1} parent=11 // pred_region
          %s2145 = ssub.s32 16, 16
          %2146 = vsyncadd [#allocation44], %s2145
          %s2148 = sshll.u32 [#allocation43], 4
          %s2149 = int_to_ptr.vmem [resolvable:$true] %s2148
          %2151 = dma.hbm_to_vmem [thread:$0]  %s135, 16, %s2149, [#allocation44]
        $region276: #{transformer_decoder_model_forward.1} parent=11 // pred_fallthru
          _
        // Predicated region
        $region277: #{transformer_decoder_model_forward.1} parent=11 // pred_check
          %p2152 = pneg %p1626
        $region278: #{transformer_decoder_model_forward.1} parent=11 // pred_check_branch
          %2154 = sbr.rel (%p2152) target = $region280
        $region279: #{transformer_decoder_model_forward.1} parent=11 // pred_region
          %s2156 = ssub.s32 16, 16
          %2157 = vsyncadd [#allocation44], %s2156
          %s2159 = sshll.u32 [#allocation45], 4
          %s2160 = int_to_ptr.vmem [resolvable:$true] %s2159
          %2162 = dma.hbm_to_vmem [thread:$0]  %s137, 16, %s2160, [#allocation44]
        $region280: #{transformer_decoder_model_forward.1} parent=11 // pred_fallthru
          _
        // Predicated region
        $region281: #{transformer_decoder_model_forward.1} parent=11 // pred_check
          %p2163 = pneg %p1647
        $region282: #{transformer_decoder_model_forward.1} parent=11 // pred_check_branch
          %2165 = sbr.rel (%p2163) target = $region284
        $region283: #{transformer_decoder_model_forward.1} parent=11 // pred_region
          %s2167 = ssub.s32 16, 16
          %2168 = vsyncadd [#allocation47], %s2167
          %s2170 = sshll.u32 [#allocation46], 4
          %s2171 = int_to_ptr.vmem [resolvable:$true] %s2170
          %2173 = dma.hbm_to_vmem [thread:$0]  %s139, 16, %s2171, [#allocation47]
        $region284: #{transformer_decoder_model_forward.1} parent=11 // pred_fallthru
          _
        // Predicated region
        $region285: #{transformer_decoder_model_forward.1} parent=11 // pred_check
          %p2174 = pneg %p1668
        $region286: #{transformer_decoder_model_forward.1} parent=11 // pred_check_branch
          %2176 = sbr.rel (%p2174) target = $region288
        $region287: #{transformer_decoder_model_forward.1} parent=11 // pred_region
          _
        $region288: #{transformer_decoder_model_forward.1} parent=11 // pred_fallthru
          _
        // Predicated region
        $region289: #{transformer_decoder_model_forward.1} parent=11 // pred_check
          %p2177 = pneg %p1689
        $region290: #{transformer_decoder_model_forward.1} parent=11 // pred_check_branch
          %2179 = sbr.rel (%p2177) target = $region292
        $region291: #{transformer_decoder_model_forward.1} parent=11 // pred_region
          %s2181 = ssub.s32 16, 16
          %2182 = vsyncadd [#allocation47], %s2181
          %s2184 = sshll.u32 [#allocation48], 4
          %s2185 = int_to_ptr.vmem [resolvable:$true] %s2184
          %2187 = dma.hbm_to_vmem [thread:$0]  %s143, 16, %s2185, [#allocation47]
        $region292: #{transformer_decoder_model_forward.1} parent=11 // pred_fallthru
          _
      $region12: #{transformer_decoder_model_forward.1} parent=5 // pred_fallthru
        _
      %p2188 = scmp.lt.s32.totalorder %s167, 2
      // Predicated region
      $region293: #{transformer_decoder_model_forward.1} parent=5 // pred_check
        %p2189 = pneg %p2188
      $region294: #{transformer_decoder_model_forward.1} parent=5 // pred_check_branch
        %2191 = sbr.rel (%p2189) target = $region296
      $region295: #{transformer_decoder_model_forward.1} parent=5 // pred_region
        // Predicated region
        $region297: #{transformer_decoder_model_forward.1} parent=295 // pred_check
          %p2192 = pneg %p187
        $region298: #{transformer_decoder_model_forward.1} parent=295 // pred_check_branch
          %2194 = sbr.rel (%p2192) target = $region300
        $region299: #{transformer_decoder_model_forward.1} parent=295 // pred_region
          %p2195 = scmp.lt.s32.totalorder %s167, 1
          %s2196 = scalar_select %p2195, %s167, 1
          %s2197 = smul.addr %s2196, 2
          %s2198 = smul.addr %s2197, 8
          %s2199 = scalar_lea.vmem %s1, %s2198
        $region300: #{transformer_decoder_model_forward.1} parent=295 // pred_fallthru
          _
        // Predicated region
        $region301: #{transformer_decoder_model_forward.1} parent=295 // pred_check
          %p2200 = pneg %p213
        $region302: #{transformer_decoder_model_forward.1} parent=295 // pred_check_branch
          %2202 = sbr.rel (%p2200) target = $region304
        $region303: #{transformer_decoder_model_forward.1} parent=295 // pred_region
          %p2203 = scmp.lt.s32.totalorder %s167, 1
          %s2204 = scalar_select %p2203, %s167, 1
          %s2205 = smul.addr %s2204, 8
          %s2206 = scalar_lea.vmem %s3, %s2205
        $region304: #{transformer_decoder_model_forward.1} parent=295 // pred_fallthru
          _
      $region296: #{transformer_decoder_model_forward.1} parent=5 // pred_fallthru
        _
      %p2207 = scmp.le.s32.totalorder 1, %s167
      %p2208 = scmp.lt.s32.totalorder %s167, 3
      %p2209 = pnand %p2207, %p2208
      %p2210 = pneg %p2209
      // Predicated region
      $region305: #{transformer_decoder_model_forward.1} parent=5 // pred_check
        _
      $region306: #{transformer_decoder_model_forward.1} parent=5 // pred_check_branch
        %2212 = sbr.rel (%p2209) target = $region308
      $region307: #{transformer_decoder_model_forward.1} parent=5 // pred_region
        %s2213 = ssub.s32 %s167, 1
        // Predicated region
        $region309: #{transformer_decoder_model_forward.1} parent=307 // pred_check
          %p2214 = pneg %p744
        $region310: #{transformer_decoder_model_forward.1} parent=307 // pred_check_branch
          %2216 = sbr.rel (%p2214) target = $region312
        $region311: #{transformer_decoder_model_forward.1} parent=307 // pred_region
          %2217 = dma.done [#allocation3], 16
        $region312: #{transformer_decoder_model_forward.1} parent=307 // pred_fallthru
          _
        // Predicated region
        $region313: #{transformer_decoder_model_forward.1} parent=307 // pred_check
          %p2218 = pneg %p765
        $region314: #{transformer_decoder_model_forward.1} parent=307 // pred_check_branch
          %2220 = sbr.rel (%p2218) target = $region316
        $region315: #{transformer_decoder_model_forward.1} parent=307 // pred_region
          %2221 = dma.done [#allocation5], 16
        $region316: #{transformer_decoder_model_forward.1} parent=307 // pred_fallthru
          _
        // Predicated region
        $region317: #{transformer_decoder_model_forward.1} parent=307 // pred_check
          %p2222 = pneg %p807
        $region318: #{transformer_decoder_model_forward.1} parent=307 // pred_check_branch
          %2224 = sbr.rel (%p2222) target = $region320
        $region319: #{transformer_decoder_model_forward.1} parent=307 // pred_region
          %2225 = dma.done [#allocation5], 16
        $region320: #{transformer_decoder_model_forward.1} parent=307 // pred_fallthru
          _
        // Predicated region
        $region321: #{transformer_decoder_model_forward.1} parent=307 // pred_check
          %p2226 = pneg %p849
        $region322: #{transformer_decoder_model_forward.1} parent=307 // pred_check_branch
          %2228 = sbr.rel (%p2226) target = $region324
        $region323: #{transformer_decoder_model_forward.1} parent=307 // pred_region
          %2229 = dma.done [#allocation8], 16
        $region324: #{transformer_decoder_model_forward.1} parent=307 // pred_fallthru
          _
        // Predicated region
        $region325: #{transformer_decoder_model_forward.1} parent=307 // pred_check
          %p2230 = pneg %p870
        $region326: #{transformer_decoder_model_forward.1} parent=307 // pred_check_branch
          %2232 = sbr.rel (%p2230) target = $region328
        $region327: #{transformer_decoder_model_forward.1} parent=307 // pred_region
          %2233 = dma.done [#allocation8], 16
        $region328: #{transformer_decoder_model_forward.1} parent=307 // pred_fallthru
          _
        // Predicated region
        $region329: #{transformer_decoder_model_forward.1} parent=307 // pred_check
          %p2234 = pneg %p891
        $region330: #{transformer_decoder_model_forward.1} parent=307 // pred_check_branch
          %2236 = sbr.rel (%p2234) target = $region332
        $region331: #{transformer_decoder_model_forward.1} parent=307 // pred_region
          %2237 = dma.done [#allocation11], 16
        $region332: #{transformer_decoder_model_forward.1} parent=307 // pred_fallthru
          _
        // Predicated region
        $region333: #{transformer_decoder_model_forward.1} parent=307 // pred_check
          %p2238 = pneg %p933
        $region334: #{transformer_decoder_model_forward.1} parent=307 // pred_check_branch
          %2240 = sbr.rel (%p2238) target = $region336
        $region335: #{transformer_decoder_model_forward.1} parent=307 // pred_region
          %2241 = dma.done [#allocation11], 16
        $region336: #{transformer_decoder_model_forward.1} parent=307 // pred_fallthru
          _
        // Predicated region
        $region337: #{transformer_decoder_model_forward.1} parent=307 // pred_check
          %p2242 = pneg %p975
        $region338: #{transformer_decoder_model_forward.1} parent=307 // pred_check_branch
          %2244 = sbr.rel (%p2242) target = $region340
        $region339: #{transformer_decoder_model_forward.1} parent=307 // pred_region
          %2245 = dma.done [#allocation14], 16
        $region340: #{transformer_decoder_model_forward.1} parent=307 // pred_fallthru
          _
        // Predicated region
        $region341: #{transformer_decoder_model_forward.1} parent=307 // pred_check
          %p2246 = pneg %p1017
        $region342: #{transformer_decoder_model_forward.1} parent=307 // pred_check_branch
          %2248 = sbr.rel (%p2246) target = $region344
        $region343: #{transformer_decoder_model_forward.1} parent=307 // pred_region
          %2249 = dma.done [#allocation14], 16
        $region344: #{transformer_decoder_model_forward.1} parent=307 // pred_fallthru
          _
        // Predicated region
        $region345: #{transformer_decoder_model_forward.1} parent=307 // pred_check
          %p2250 = pneg %p1038
        $region346: #{transformer_decoder_model_forward.1} parent=307 // pred_check_branch
          %2252 = sbr.rel (%p2250) target = $region348
        $region347: #{transformer_decoder_model_forward.1} parent=307 // pred_region
          %2253 = dma.done [#allocation17], 16
        $region348: #{transformer_decoder_model_forward.1} parent=307 // pred_fallthru
          _
        // Predicated region
        $region349: #{transformer_decoder_model_forward.1} parent=307 // pred_check
          %p2254 = pneg %p1059
        $region350: #{transformer_decoder_model_forward.1} parent=307 // pred_check_branch
          %2256 = sbr.rel (%p2254) target = $region352
        $region351: #{transformer_decoder_model_forward.1} parent=307 // pred_region
          %2257 = dma.done [#allocation17], 16
        $region352: #{transformer_decoder_model_forward.1} parent=307 // pred_fallthru
          _
        // Predicated region
        $region353: #{transformer_decoder_model_forward.1} parent=307 // pred_check
          %p2258 = pneg %p1101
        $region354: #{transformer_decoder_model_forward.1} parent=307 // pred_check_branch
          %2260 = sbr.rel (%p2258) target = $region356
        $region355: #{transformer_decoder_model_forward.1} parent=307 // pred_region
          %2261 = dma.done [#allocation20], 16
        $region356: #{transformer_decoder_model_forward.1} parent=307 // pred_fallthru
          _
        // Predicated region
        $region357: #{transformer_decoder_model_forward.1} parent=307 // pred_check
          %p2262 = pneg %p1143
        $region358: #{transformer_decoder_model_forward.1} parent=307 // pred_check_branch
          %2264 = sbr.rel (%p2262) target = $region360
        $region359: #{transformer_decoder_model_forward.1} parent=307 // pred_region
          %2265 = dma.done [#allocation20], 16
        $region360: #{transformer_decoder_model_forward.1} parent=307 // pred_fallthru
          _
        // Predicated region
        $region361: #{transformer_decoder_model_forward.1} parent=307 // pred_check
          %p2266 = pneg %p1164
        $region362: #{transformer_decoder_model_forward.1} parent=307 // pred_check_branch
          %2268 = sbr.rel (%p2266) target = $region364
        $region363: #{transformer_decoder_model_forward.1} parent=307 // pred_region
          %2269 = dma.done [#allocation23], 16
        $region364: #{transformer_decoder_model_forward.1} parent=307 // pred_fallthru
          _
        // Predicated region
        $region365: #{transformer_decoder_model_forward.1} parent=307 // pred_check
          %p2270 = pneg %p1185
        $region366: #{transformer_decoder_model_forward.1} parent=307 // pred_check_branch
          %2272 = sbr.rel (%p2270) target = $region368
        $region367: #{transformer_decoder_model_forward.1} parent=307 // pred_region
          %2273 = dma.done [#allocation23], 16
        $region368: #{transformer_decoder_model_forward.1} parent=307 // pred_fallthru
          _
        // Predicated region
        $region369: #{transformer_decoder_model_forward.1} parent=307 // pred_check
          %p2274 = pneg %p1227
        $region370: #{transformer_decoder_model_forward.1} parent=307 // pred_check_branch
          %2276 = sbr.rel (%p2274) target = $region372
        $region371: #{transformer_decoder_model_forward.1} parent=307 // pred_region
          %2277 = dma.done [#allocation26], 16
        $region372: #{transformer_decoder_model_forward.1} parent=307 // pred_fallthru
          _
        // Predicated region
        $region373: #{transformer_decoder_model_forward.1} parent=307 // pred_check
          %p2278 = pneg %p1269
        $region374: #{transformer_decoder_model_forward.1} parent=307 // pred_check_branch
          %2280 = sbr.rel (%p2278) target = $region376
        $region375: #{transformer_decoder_model_forward.1} parent=307 // pred_region
          %2281 = dma.done [#allocation26], 16
        $region376: #{transformer_decoder_model_forward.1} parent=307 // pred_fallthru
          _
        // Predicated region
        $region377: #{transformer_decoder_model_forward.1} parent=307 // pred_check
          %p2282 = pneg %p1290
        $region378: #{transformer_decoder_model_forward.1} parent=307 // pred_check_branch
          %2284 = sbr.rel (%p2282) target = $region380
        $region379: #{transformer_decoder_model_forward.1} parent=307 // pred_region
          %2285 = dma.done [#allocation29], 16
        $region380: #{transformer_decoder_model_forward.1} parent=307 // pred_fallthru
          _
        // Predicated region
        $region381: #{transformer_decoder_model_forward.1} parent=307 // pred_check
          %p2286 = pneg %p1311
        $region382: #{transformer_decoder_model_forward.1} parent=307 // pred_check_branch
          %2288 = sbr.rel (%p2286) target = $region384
        $region383: #{transformer_decoder_model_forward.1} parent=307 // pred_region
          %2289 = dma.done [#allocation29], 16
        $region384: #{transformer_decoder_model_forward.1} parent=307 // pred_fallthru
          _
        // Predicated region
        $region385: #{transformer_decoder_model_forward.1} parent=307 // pred_check
          %p2290 = pneg %p1353
        $region386: #{transformer_decoder_model_forward.1} parent=307 // pred_check_branch
          %2292 = sbr.rel (%p2290) target = $region388
        $region387: #{transformer_decoder_model_forward.1} parent=307 // pred_region
          %2293 = dma.done [#allocation32], 16
        $region388: #{transformer_decoder_model_forward.1} parent=307 // pred_fallthru
          _
        // Predicated region
        $region389: #{transformer_decoder_model_forward.1} parent=307 // pred_check
          %p2294 = pneg %p1395
        $region390: #{transformer_decoder_model_forward.1} parent=307 // pred_check_branch
          %2296 = sbr.rel (%p2294) target = $region392
        $region391: #{transformer_decoder_model_forward.1} parent=307 // pred_region
          %2297 = dma.done [#allocation32], 16
        $region392: #{transformer_decoder_model_forward.1} parent=307 // pred_fallthru
          _
        // Predicated region
        $region393: #{transformer_decoder_model_forward.1} parent=307 // pred_check
          %p2298 = pneg %p1437
        $region394: #{transformer_decoder_model_forward.1} parent=307 // pred_check_branch
          %2300 = sbr.rel (%p2298) target = $region396
        $region395: #{transformer_decoder_model_forward.1} parent=307 // pred_region
          %2301 = dma.done [#allocation35], 16
        $region396: #{transformer_decoder_model_forward.1} parent=307 // pred_fallthru
          _
        // Predicated region
        $region397: #{transformer_decoder_model_forward.1} parent=307 // pred_check
          %p2302 = pneg %p1458
        $region398: #{transformer_decoder_model_forward.1} parent=307 // pred_check_branch
          %2304 = sbr.rel (%p2302) target = $region400
        $region399: #{transformer_decoder_model_forward.1} parent=307 // pred_region
          %2305 = dma.done [#allocation35], 16
        $region400: #{transformer_decoder_model_forward.1} parent=307 // pred_fallthru
          _
        // Predicated region
        $region401: #{transformer_decoder_model_forward.1} parent=307 // pred_check
          %p2306 = pneg %p1479
        $region402: #{transformer_decoder_model_forward.1} parent=307 // pred_check_branch
          %2308 = sbr.rel (%p2306) target = $region404
        $region403: #{transformer_decoder_model_forward.1} parent=307 // pred_region
          %2309 = dma.done [#allocation38], 16
        $region404: #{transformer_decoder_model_forward.1} parent=307 // pred_fallthru
          _
        // Predicated region
        $region405: #{transformer_decoder_model_forward.1} parent=307 // pred_check
          %p2310 = pneg %p1521
        $region406: #{transformer_decoder_model_forward.1} parent=307 // pred_check_branch
          %2312 = sbr.rel (%p2310) target = $region408
        $region407: #{transformer_decoder_model_forward.1} parent=307 // pred_region
          %2313 = dma.done [#allocation38], 16
        $region408: #{transformer_decoder_model_forward.1} parent=307 // pred_fallthru
          _
        // Predicated region
        $region409: #{transformer_decoder_model_forward.1} parent=307 // pred_check
          %p2314 = pneg %p1563
        $region410: #{transformer_decoder_model_forward.1} parent=307 // pred_check_branch
          %2316 = sbr.rel (%p2314) target = $region412
        $region411: #{transformer_decoder_model_forward.1} parent=307 // pred_region
          %2317 = dma.done [#allocation41], 16
        $region412: #{transformer_decoder_model_forward.1} parent=307 // pred_fallthru
          _
        // Predicated region
        $region413: #{transformer_decoder_model_forward.1} parent=307 // pred_check
          %p2318 = pneg %p1584
        $region414: #{transformer_decoder_model_forward.1} parent=307 // pred_check_branch
          %2320 = sbr.rel (%p2318) target = $region416
        $region415: #{transformer_decoder_model_forward.1} parent=307 // pred_region
          %2321 = dma.done [#allocation41], 16
        $region416: #{transformer_decoder_model_forward.1} parent=307 // pred_fallthru
          _
        // Predicated region
        $region417: #{transformer_decoder_model_forward.1} parent=307 // pred_check
          %p2322 = pneg %p1605
        $region418: #{transformer_decoder_model_forward.1} parent=307 // pred_check_branch
          %2324 = sbr.rel (%p2322) target = $region420
        $region419: #{transformer_decoder_model_forward.1} parent=307 // pred_region
          %2325 = dma.done [#allocation44], 16
        $region420: #{transformer_decoder_model_forward.1} parent=307 // pred_fallthru
          _
        // Predicated region
        $region421: #{transformer_decoder_model_forward.1} parent=307 // pred_check
          %p2326 = pneg %p1626
        $region422: #{transformer_decoder_model_forward.1} parent=307 // pred_check_branch
          %2328 = sbr.rel (%p2326) target = $region424
        $region423: #{transformer_decoder_model_forward.1} parent=307 // pred_region
          %2329 = dma.done [#allocation44], 16
        $region424: #{transformer_decoder_model_forward.1} parent=307 // pred_fallthru
          _
        // Predicated region
        $region425: #{transformer_decoder_model_forward.1} parent=307 // pred_check
          %p2330 = pneg %p1647
        $region426: #{transformer_decoder_model_forward.1} parent=307 // pred_check_branch
          %2332 = sbr.rel (%p2330) target = $region428
        $region427: #{transformer_decoder_model_forward.1} parent=307 // pred_region
          %2333 = dma.done [#allocation47], 16
        $region428: #{transformer_decoder_model_forward.1} parent=307 // pred_fallthru
          _
        // Predicated region
        $region429: #{transformer_decoder_model_forward.1} parent=307 // pred_check
          %p2334 = pneg %p1689
        $region430: #{transformer_decoder_model_forward.1} parent=307 // pred_check_branch
          %2336 = sbr.rel (%p2334) target = $region432
        $region431: #{transformer_decoder_model_forward.1} parent=307 // pred_region
          %2337 = dma.done [#allocation47], 16
        $region432: #{transformer_decoder_model_forward.1} parent=307 // pred_fallthru
          _
        %p2338 = scmp.lt.s32.totalorder %s172, 1
        %s2339 = scalar_select %p2338, %s172, 1
        %s2340 = smul.addr %s2339, 2
        %s2341 = smul.addr %s2340, 8
        %s2342 = scalar_lea.vmem %s1, %s2341
        %p2343 = pneg %p193
        %p2344 = pneg %p190
        %p2345 = scmp.lt.s32.totalorder %s172, 1
        %s2346 = scalar_select %p2345, %s172, 1
        %s2347 = smul.addr %s2346, 8
        %s2348 = scalar_lea.vmem %s3, %s2347
        %p2349 = pneg %p219
        %p2350 = pneg %p216
        %p2351 = pneg %p240
        %p2352 = pneg %p237
        %p2353 = pneg %p261
        %p2354 = pneg %p258
        %p2355 = pneg %p282
        %p2356 = pneg %p279
        %p2357 = pneg %p303
        %p2358 = pneg %p300
        %p2359 = pneg %p324
        %p2360 = pneg %p321
        %p2361 = pneg %p345
        %p2362 = pneg %p342
        %p2363 = pneg %p366
        %p2364 = pneg %p363
        %p2365 = pneg %p387
        %p2366 = pneg %p384
        %p2367 = pneg %p408
        %p2368 = pneg %p405
        %p2369 = pneg %p429
        %p2370 = pneg %p426
        %p2371 = pneg %p450
        %p2372 = pneg %p447
        %p2373 = pneg %p471
        %p2374 = pneg %p468
        %p2375 = pneg %p492
        %p2376 = pneg %p489
        %p2377 = pneg %p513
        %p2378 = pneg %p510
        %p2379 = pneg %p534
        %p2380 = pneg %p531
        %p2381 = pneg %p555
        %p2382 = pneg %p552
        %p2383 = pneg %p576
        %p2384 = pneg %p573
        %p2385 = pneg %p597
        %p2386 = pneg %p594
        %p2387 = pneg %p618
        %p2388 = pneg %p615
        %p2389 = pneg %p639
        %p2390 = pneg %p636
        %p2391 = pneg %p660
        %p2392 = pneg %p657
        %p2393 = pneg %p681
        %p2394 = pneg %p678
        %p2395 = pneg %p702
        %p2396 = pneg %p699
        %p2397 = pneg %p723
        %p2398 = pneg %p720
        %p2399 = pneg %p744
        %p2400 = pneg %p741
        %p2401 = pneg %p765
        %p2402 = pneg %p762
        %p2403 = pneg %p786
        %p2404 = pneg %p783
        %p2405 = pneg %p807
        %p2406 = pneg %p804
        %p2407 = pneg %p828
        %p2408 = pneg %p825
        %p2409 = pneg %p849
        %p2410 = pneg %p846
        %p2411 = pneg %p870
        %p2412 = pneg %p867
        %p2413 = pneg %p891
        %p2414 = pneg %p888
        %p2415 = pneg %p912
        %p2416 = pneg %p909
        %p2417 = pneg %p933
        %p2418 = pneg %p930
        %p2419 = pneg %p954
        %p2420 = pneg %p951
        %p2421 = pneg %p975
        %p2422 = pneg %p972
        %p2423 = pneg %p996
        %p2424 = pneg %p993
        %p2425 = pneg %p1017
        %p2426 = pneg %p1014
        %p2427 = pneg %p1038
        %p2428 = pneg %p1035
        %p2429 = pneg %p1059
        %p2430 = pneg %p1056
        %p2431 = pneg %p1080
        %p2432 = pneg %p1077
        %p2433 = pneg %p1101
        %p2434 = pneg %p1098
        %p2435 = pneg %p1122
        %p2436 = pneg %p1119
        %p2437 = pneg %p1143
        %p2438 = pneg %p1140
        %p2439 = pneg %p1164
        %p2440 = pneg %p1161
        %p2441 = pneg %p1185
        %p2442 = pneg %p1182
        %p2443 = pneg %p1206
        %p2444 = pneg %p1203
        %p2445 = pneg %p1227
        %p2446 = pneg %p1224
        %p2447 = pneg %p1248
        %p2448 = pneg %p1245
        %p2449 = pneg %p1269
        %p2450 = pneg %p1266
        %p2451 = pneg %p1290
        %p2452 = pneg %p1287
        %p2453 = pneg %p1311
        %p2454 = pneg %p1308
        %p2455 = pneg %p1332
        %p2456 = pneg %p1329
        %p2457 = pneg %p1353
        %p2458 = pneg %p1350
        %p2459 = pneg %p1374
        %p2460 = pneg %p1371
        %p2461 = pneg %p1395
        %p2462 = pneg %p1392
        %p2463 = pneg %p1416
        %p2464 = pneg %p1413
        %p2465 = pneg %p1437
        %p2466 = pneg %p1434
        %p2467 = pneg %p1458
        %p2468 = pneg %p1455
        %p2469 = pneg %p1479
        %p2470 = pneg %p1476
        %p2471 = pneg %p1500
        %p2472 = pneg %p1497
        %p2473 = pneg %p1521
        %p2474 = pneg %p1518
        %p2475 = pneg %p1542
        %p2476 = pneg %p1539
        %p2477 = pneg %p1563
        %p2478 = pneg %p1560
        %p2479 = pneg %p1584
        %p2480 = pneg %p1581
        %p2481 = pneg %p1605
        %p2482 = pneg %p1602
        %p2483 = pneg %p1626
        %p2484 = pneg %p1623
        %p2485 = pneg %p1647
        %p2486 = pneg %p1644
        %p2487 = pneg %p1668
        %p2488 = pneg %p1665
        %p2489 = pneg %p1689
        %p2490 = pneg %p1686
        %p2491 = pneg %p1715
        %p2492 = pneg %p1712
        %p2493 = scmp.lt.s32.totalorder %s172, 1
        %s2494 = scalar_select %p2493, %s172, 1
        %s2495 = smul.addr %s2494, 8
        %s2496 = scalar_lea.vmem %s145, %s2495
        %p2497 = scmp.lt.s32.totalorder %s172, 1
        %s2498 = scalar_select %p2497, %s172, 1
        %s2499 = smul.addr %s2498, 2
        %s2500 = smul.addr %s2499, 8
        %s2501 = scalar_lea.vmem %s1, %s2500
        %p2502 = scmp.lt.s32.totalorder %s172, 1
        %s2503 = scalar_select %p2502, %s172, 1
        %s2504 = smul.addr %s2503, 8
        %s2505 = scalar_lea.vmem %s3, %s2504
        %p2506 = scmp.lt.s32.totalorder %s172, 1
        %s2507 = scalar_select %p2506, %s172, 1
        %s2508 = smul.addr %s2507, 8
        %s2509 = scalar_lea.vmem %s145, %s2508
        %v2511 = vld [vmem:[%s2501] sm:$0xff]
        %v2512 = vld [vmem:[%s2501 + $0x8] sm:$0xff]
        %v2513 = vld [vmem:[%s2505] sm:$0xff]
        %v2514 = vlaneseq
        %v2515 = vand.u32 %v2514, 127
        %vm2516 = vcmp.lt.s32.totalorder %v2515, 10
        %v2517 = vsel %vm2516, 0.0, -1e+30
        %v2518 = vlaneseq
        %v2519 = vshrl.u32 %v2518, 7
        %vm2520 = vcmp.le.s32.totalorder %v2515, %v2519
        %v2521 = vsel %vm2520, 0.0, -1e+30
        %v2522 = vld [vmem:[%s5] sm:$0xf]
        %v2523 = vld [vmem:[%s5 + $0x4] sm:$0xf]
        %v2524 = vld [vmem:[%s5 + $0x8] sm:$0xf]
        %v2525 = vld [vmem:[%s5 + $0xc] sm:$0xf]
        %v2526 = vpack.c.bf16 %v2512, %v2511
        %v2527 = vld [vmem:[%s7] sm:$0x1]
        %v2529 = vlaneseq
        %v2530 = vshrl.u32 %v2529, 7
        %v2531 = vsub.s32 0, %v2530
        %v2532 = vrot.slane %v2527, %v2531
        %v2538 = vunpack.c.l.b16 %v2522
        %v2539 = vunpack.c.l.b16 %v2523
        %v2540 = vunpack.c.l.b16 %v2524
        %v2541 = vunpack.c.l.b16 %v2525
        %v2542 = vpack.c.b16 %v2539, %v2538
        %v2543 = vpack.c.b16 %v2541, %v2540
        %vm2546 = vcmask 261120
        %v2548 = vsel %vm2546, %v2526, 0
        %2550 = vmatprep.subr.bf16.mxu0 0
        %2551 = vmatpush1.bf16.msra.mxu0 %v2542
        %2552 = vmatprep.subr.bf16.mxu0 0
        %2553 = vmatpush1.bf16.msra.mxu0 %v2543
        %2554 = vmatprep.subr.bf16.mxu0 0
        %2555 = vmatpush1.bf16.msra.mxu0 0
        %2556 = vmatprep.subr.bf16.mxu0 0
        %2557 = vmatpush1.bf16.msra.mxu0 0
        %2558 = vmatprep.subr.bf16.mxu0 0
        %2559 = vmatpush1.bf16.msra.mxu0 0
        %2560 = vmatprep.subr.bf16.mxu0 0
        %2561 = vmatpush1.bf16.msra.mxu0 0
        %2562 = vmatprep.subr.bf16.mxu0 0
        %2563 = vmatpush1.bf16.msra.mxu0 0
        %2564 = vmatprep.subr.bf16.mxu0 0
        %2565 = vmatpush1.bf16.msra.mxu0 0
        %2566 = vmatprep.subr.bf16.mxu0 0
        %2567 = vmatpush1.bf16.msra.mxu0 0
        %2568 = vmatprep.subr.bf16.mxu0 0
        %2569 = vmatpush1.bf16.msra.mxu0 0
        %2570 = vmatprep.subr.bf16.mxu0 0
        %2571 = vmatpush1.bf16.msra.mxu0 0
        %2572 = vmatprep.subr.bf16.mxu0 0
        %2573 = vmatpush1.bf16.msra.mxu0 0
        %2574 = vmatprep.subr.bf16.mxu0 0
        %2575 = vmatpush1.bf16.msra.mxu0 0
        %2576 = vmatprep.subr.bf16.mxu0 0
        %2577 = vmatpush1.bf16.msra.mxu0 0
        %2578 = vmatprep.subr.bf16.mxu0 0
        %2579 = vmatpush1.bf16.msra.mxu0 0
        %2580 = vmatprep.subr.bf16.mxu0 0
        %2581 = vmatpush1.bf16.msra.mxu0 0
        %2582 = vmatprep.mubr.bf16.mxu0 0
        %2583 = vmatmul.mubr.bf16.gmra.mrb[0].mxu0 %v2548
        %v2584 = vpop.f32.mrb[0].mxu0
        %v2585 = vadd.f32 %v2532, %v2584
        %v2586 = vpop.f32.mrb[0].mxu0
        %v2587 = vpop.f32.mrb[0].mxu0
        %v2588 = vadd.f32 %v2532, %v2587
        %v2589 = vpop.f32.mrb[0].mxu0
        %2590 = vdwg.mxu0
        %v2591 = vpack.c.bf16 %v2588, %v2585
        %2593 = vrot.lane.b32.xlu0 %v2591, 96
        %v2594 = vpop.permute.xlu0 %2593
        %vm2595 = vcmask 64512
        %v2597 = vsel %vm2595, %v2591, 0
        %v2600 = vsel %vm2595, %v2594, 0
        %2602 = vmatprep.subr.bf16.mxu0 0
        %2603 = vmatpush1.bf16.xpose.msra.mxu0 %v2600
        %2604 = vmatprep.subr.bf16.mxu0 0
        %2605 = vmatpush1.bf16.xpose.msra.mxu0 0
        %2606 = vmatprep.subr.bf16.mxu0 0
        %2607 = vmatpush1.bf16.xpose.msra.mxu0 0
        %2608 = vmatprep.subr.bf16.mxu0 0
        %2609 = vmatpush1.bf16.xpose.msra.mxu0 0
        %2610 = vmatprep.subr.bf16.mxu0 0
        %2611 = vmatpush1.bf16.xpose.msra.mxu0 0
        %2612 = vmatprep.subr.bf16.mxu0 0
        %2613 = vmatpush1.bf16.xpose.msra.mxu0 0
        %2614 = vmatprep.subr.bf16.mxu0 0
        %2615 = vmatpush1.bf16.xpose.msra.mxu0 0
        %2616 = vmatprep.subr.bf16.mxu0 0
        %2617 = vmatpush1.bf16.xpose.msra.mxu0 0
        %2618 = vmatprep.subr.bf16.mxu0 0
        %2619 = vmatpush1.bf16.xpose.msra.mxu0 0
        %2620 = vmatprep.subr.bf16.mxu0 0
        %2621 = vmatpush1.bf16.xpose.msra.mxu0 0
        %2622 = vmatprep.subr.bf16.mxu0 0
        %2623 = vmatpush1.bf16.xpose.msra.mxu0 0
        %2624 = vmatprep.subr.bf16.mxu0 0
        %2625 = vmatpush1.bf16.xpose.msra.mxu0 0
        %2626 = vmatprep.subr.bf16.mxu0 0
        %2627 = vmatpush1.bf16.xpose.msra.mxu0 0
        %2628 = vmatprep.subr.bf16.mxu0 0
        %2629 = vmatpush1.bf16.xpose.msra.mxu0 0
        %2630 = vmatprep.subr.bf16.mxu0 0
        %2631 = vmatpush1.bf16.xpose.msra.mxu0 0
        %2632 = vmatprep.subr.bf16.mxu0 0
        %2633 = vmatpush1.bf16.xpose.msra.mxu0 0
        %2634 = vmatprep.mubr.bf16.mxu0 0
        %2635 = vmatmul.mubr.bf16.gmra.mrb[0].mxu0 %v2597
        %v2636 = vpop.f32.mrb[0].mxu0
        %v2637 = vadd.f32 %v2517, %v2636
        %v2638 = vpop.f32.mrb[0].mxu0
        %v2639 = vpop.f32.mrb[0].mxu0
        %v2640 = vadd.f32 %v2517, %v2639
        %v2641 = vpop.f32.mrb[0].mxu0
        %2642 = vdwg.mxu0
        %vm2643 = vcmask 130048
        %v2644 = vsel %vm2643, %v2637, -inf
        %2645 = vmax.xlane.f32.xlu0 %v2644
        %v2646 = vpop.xlane.xlu0 %2645
        %v2647 = vsel %vm2643, %v2640, -inf
        %2648 = vmax.xlane.f32.xlu0 %v2647
        %v2649 = vpop.xlane.xlu0 %2648
        %v2650 = vsub.f32 %v2637, %v2646
        %v2651 = vsub.f32 %v2640, %v2649
        %v2652 = vmul.f32 %v2650, 1.442695
        %v2653 = vpow.pop %v2652
        %v2654 = vmul.f32 %v2651, 1.442695
        %v2655 = vpow.pop %v2654
        %v2656 = vsel %vm2643, %v2653, 0.0
        %2657 = vadd.xlane.f32.xlu0 %v2656
        %v2658 = vpop.xlane.xlu0 %2657
        %v2659 = vsel %vm2643, %v2655, 0.0
        %2660 = vadd.xlane.f32.xlu0 %v2659
        %v2661 = vpop.xlane.xlu0 %2660
        %v2662 = vrcp.pop %v2658
        %v2663 = vrcp.pop %v2661
        %v2664 = vmul.f32 %v2653, %v2662
        %v2665 = vmul.f32 %v2655, %v2663
        %v2666 = vpack.c.bf16 %v2665, %v2664
        %2667 = vrot.lane.b32.xlu0 %v2591, 64
        %v2668 = vpop.permute.xlu0 %2667
        %v2671 = vsel %vm2643, %v2666, 0
        %2673 = vmatprep.subr.bf16.mxu0 0
        %2674 = vmatpush1.bf16.msra.mxu0 %v2668
        %2675 = vmatprep.subr.bf16.mxu0 0
        %2676 = vmatpush1.bf16.msra.mxu0 0
        %2677 = vmatprep.subr.bf16.mxu0 0
        %2678 = vmatpush1.bf16.msra.mxu0 0
        %2679 = vmatprep.subr.bf16.mxu0 0
        %2680 = vmatpush1.bf16.msra.mxu0 0
        %2681 = vmatprep.subr.bf16.mxu0 0
        %2682 = vmatpush1.bf16.msra.mxu0 0
        %2683 = vmatprep.subr.bf16.mxu0 0
        %2684 = vmatpush1.bf16.msra.mxu0 0
        %2685 = vmatprep.subr.bf16.mxu0 0
        %2686 = vmatpush1.bf16.msra.mxu0 0
        %2687 = vmatprep.subr.bf16.mxu0 0
        %2688 = vmatpush1.bf16.msra.mxu0 0
        %2689 = vmatprep.subr.bf16.mxu0 0
        %2690 = vmatpush1.bf16.msra.mxu0 0
        %2691 = vmatprep.subr.bf16.mxu0 0
        %2692 = vmatpush1.bf16.msra.mxu0 0
        %2693 = vmatprep.subr.bf16.mxu0 0
        %2694 = vmatpush1.bf16.msra.mxu0 0
        %2695 = vmatprep.subr.bf16.mxu0 0
        %2696 = vmatpush1.bf16.msra.mxu0 0
        %2697 = vmatprep.subr.bf16.mxu0 0
        %2698 = vmatpush1.bf16.msra.mxu0 0
        %2699 = vmatprep.subr.bf16.mxu0 0
        %2700 = vmatpush1.bf16.msra.mxu0 0
        %2701 = vmatprep.subr.bf16.mxu0 0
        %2702 = vmatpush1.bf16.msra.mxu0 0
        %2703 = vmatprep.subr.bf16.mxu0 0
        %2704 = vmatpush1.bf16.msra.mxu0 0
        %2705 = vmatprep.mubr.bf16.mxu0 0
        %2706 = vmatmul.mubr.bf16.gmra.mrb[0].mxu0 %v2671
        %v2707 = vpop.f32.mrb[0].mxu0
        %v2708 = vadd.f32 0.0, %v2707
        %v2709 = vpop.f32.mrb[0].mxu0
        %v2710 = vpop.f32.mrb[0].mxu0
        %v2711 = vadd.f32 0.0, %v2710
        %v2712 = vpop.f32.mrb[0].mxu0
        %2713 = vdwg.mxu0
        %2714 = vrot.lane.b32.xlu0 %v2591, 120
        %v2715 = vpop.permute.xlu0 %2714
        %2716 = vrot.lane.b32.xlu0 %v2591, 88
        %v2717 = vpop.permute.xlu0 %2716
        %v2719 = vsel %vm2595, %v2715, 0
        %v2722 = vsel %vm2595, %v2717, 0
        %2724 = vmatprep.subr.bf16.mxu0 0
        %2725 = vmatpush1.bf16.xpose.msra.mxu0 %v2722
        %2726 = vmatprep.subr.bf16.mxu0 0
        %2727 = vmatpush1.bf16.xpose.msra.mxu0 0
        %2728 = vmatprep.subr.bf16.mxu0 0
        %2729 = vmatpush1.bf16.xpose.msra.mxu0 0
        %2730 = vmatprep.subr.bf16.mxu0 0
        %2731 = vmatpush1.bf16.xpose.msra.mxu0 0
        %2732 = vmatprep.subr.bf16.mxu0 0
        %2733 = vmatpush1.bf16.xpose.msra.mxu0 0
        %2734 = vmatprep.subr.bf16.mxu0 0
        %2735 = vmatpush1.bf16.xpose.msra.mxu0 0
        %2736 = vmatprep.subr.bf16.mxu0 0
        %2737 = vmatpush1.bf16.xpose.msra.mxu0 0
        %2738 = vmatprep.subr.bf16.mxu0 0
        %2739 = vmatpush1.bf16.xpose.msra.mxu0 0
        %2740 = vmatprep.subr.bf16.mxu0 0
        %2741 = vmatpush1.bf16.xpose.msra.mxu0 0
        %2742 = vmatprep.subr.bf16.mxu0 0
        %2743 = vmatpush1.bf16.xpose.msra.mxu0 0
        %2744 = vmatprep.subr.bf16.mxu0 0
        %2745 = vmatpush1.bf16.xpose.msra.mxu0 0
        %2746 = vmatprep.subr.bf16.mxu0 0
        %2747 = vmatpush1.bf16.xpose.msra.mxu0 0
        %2748 = vmatprep.subr.bf16.mxu0 0
        %2749 = vmatpush1.bf16.xpose.msra.mxu0 0
        %2750 = vmatprep.subr.bf16.mxu0 0
        %2751 = vmatpush1.bf16.xpose.msra.mxu0 0
        %2752 = vmatprep.subr.bf16.mxu0 0
        %2753 = vmatpush1.bf16.xpose.msra.mxu0 0
        %2754 = vmatprep.subr.bf16.mxu0 0
        %2755 = vmatpush1.bf16.xpose.msra.mxu0 0
        %2756 = vmatprep.mubr.bf16.mxu0 0
        %2757 = vmatmul.mubr.bf16.gmra.mrb[0].mxu0 %v2719
        %v2758 = vpop.f32.mrb[0].mxu0
        %v2759 = vadd.f32 %v2517, %v2758
        %v2760 = vpop.f32.mrb[0].mxu0
        %v2761 = vpop.f32.mrb[0].mxu0
        %v2762 = vadd.f32 %v2517, %v2761
        %v2763 = vpop.f32.mrb[0].mxu0
        %2764 = vdwg.mxu0
        %v2765 = vsel %vm2643, %v2759, -inf
        %2766 = vmax.xlane.f32.xlu0 %v2765
        %v2767 = vpop.xlane.xlu0 %2766
        %v2768 = vsel %vm2643, %v2762, -inf
        %2769 = vmax.xlane.f32.xlu0 %v2768
        %v2770 = vpop.xlane.xlu0 %2769
        %v2771 = vsub.f32 %v2759, %v2767
        %v2772 = vsub.f32 %v2762, %v2770
        %v2773 = vmul.f32 %v2771, 1.442695
        %v2774 = vpow.pop %v2773
        %v2775 = vmul.f32 %v2772, 1.442695
        %v2776 = vpow.pop %v2775
        %v2777 = vsel %vm2643, %v2774, 0.0
        %2778 = vadd.xlane.f32.xlu0 %v2777
        %v2779 = vpop.xlane.xlu0 %2778
        %v2780 = vsel %vm2643, %v2776, 0.0
        %2781 = vadd.xlane.f32.xlu0 %v2780
        %v2782 = vpop.xlane.xlu0 %2781
        %v2783 = vrcp.pop %v2779
        %v2784 = vrcp.pop %v2782
        %v2785 = vmul.f32 %v2774, %v2783
        %v2786 = vmul.f32 %v2776, %v2784
        %v2787 = vpack.c.bf16 %v2786, %v2785
        %2788 = vrot.lane.b32.xlu0 %v2591, 56
        %v2789 = vpop.permute.xlu0 %2788
        %v2792 = vsel %vm2643, %v2787, 0
        %2794 = vmatprep.subr.bf16.mxu0 0
        %2795 = vmatpush1.bf16.msra.mxu0 %v2789
        %2796 = vmatprep.subr.bf16.mxu0 0
        %2797 = vmatpush1.bf16.msra.mxu0 0
        %2798 = vmatprep.subr.bf16.mxu0 0
        %2799 = vmatpush1.bf16.msra.mxu0 0
        %2800 = vmatprep.subr.bf16.mxu0 0
        %2801 = vmatpush1.bf16.msra.mxu0 0
        %2802 = vmatprep.subr.bf16.mxu0 0
        %2803 = vmatpush1.bf16.msra.mxu0 0
        %2804 = vmatprep.subr.bf16.mxu0 0
        %2805 = vmatpush1.bf16.msra.mxu0 0
        %2806 = vmatprep.subr.bf16.mxu0 0
        %2807 = vmatpush1.bf16.msra.mxu0 0
        %2808 = vmatprep.subr.bf16.mxu0 0
        %2809 = vmatpush1.bf16.msra.mxu0 0
        %2810 = vmatprep.subr.bf16.mxu0 0
        %2811 = vmatpush1.bf16.msra.mxu0 0
        %2812 = vmatprep.subr.bf16.mxu0 0
        %2813 = vmatpush1.bf16.msra.mxu0 0
        %2814 = vmatprep.subr.bf16.mxu0 0
        %2815 = vmatpush1.bf16.msra.mxu0 0
        %2816 = vmatprep.subr.bf16.mxu0 0
        %2817 = vmatpush1.bf16.msra.mxu0 0
        %2818 = vmatprep.subr.bf16.mxu0 0
        %2819 = vmatpush1.bf16.msra.mxu0 0
        %2820 = vmatprep.subr.bf16.mxu0 0
        %2821 = vmatpush1.bf16.msra.mxu0 0
        %2822 = vmatprep.subr.bf16.mxu0 0
        %2823 = vmatpush1.bf16.msra.mxu0 0
        %2824 = vmatprep.subr.bf16.mxu0 0
        %2825 = vmatpush1.bf16.msra.mxu0 0
        %2826 = vmatprep.mubr.bf16.mxu0 0
        %2827 = vmatmul.mubr.bf16.gmra.mrb[0].mxu0 %v2792
        %v2828 = vpop.f32.mrb[0].mxu0
        %v2829 = vadd.f32 0.0, %v2828
        %v2830 = vpop.f32.mrb[0].mxu0
        %v2831 = vpop.f32.mrb[0].mxu0
        %v2832 = vadd.f32 0.0, %v2831
        %v2833 = vpop.f32.mrb[0].mxu0
        %2834 = vdwg.mxu0
        %2835 = vrot.lane.b32.xlu0 %v2591, 112
        %v2836 = vpop.permute.xlu0 %2835
        %2837 = vrot.lane.b32.xlu0 %v2591, 80
        %v2838 = vpop.permute.xlu0 %2837
        %v2840 = vsel %vm2595, %v2836, 0
        %v2843 = vsel %vm2595, %v2838, 0
        %2845 = vmatprep.subr.bf16.mxu0 0
        %2846 = vmatpush1.bf16.xpose.msra.mxu0 %v2843
        %2847 = vmatprep.subr.bf16.mxu0 0
        %2848 = vmatpush1.bf16.xpose.msra.mxu0 0
        %2849 = vmatprep.subr.bf16.mxu0 0
        %2850 = vmatpush1.bf16.xpose.msra.mxu0 0
        %2851 = vmatprep.subr.bf16.mxu0 0
        %2852 = vmatpush1.bf16.xpose.msra.mxu0 0
        %2853 = vmatprep.subr.bf16.mxu0 0
        %2854 = vmatpush1.bf16.xpose.msra.mxu0 0
        %2855 = vmatprep.subr.bf16.mxu0 0
        %2856 = vmatpush1.bf16.xpose.msra.mxu0 0
        %2857 = vmatprep.subr.bf16.mxu0 0
        %2858 = vmatpush1.bf16.xpose.msra.mxu0 0
        %2859 = vmatprep.subr.bf16.mxu0 0
        %2860 = vmatpush1.bf16.xpose.msra.mxu0 0
        %2861 = vmatprep.subr.bf16.mxu0 0
        %2862 = vmatpush1.bf16.xpose.msra.mxu0 0
        %2863 = vmatprep.subr.bf16.mxu0 0
        %2864 = vmatpush1.bf16.xpose.msra.mxu0 0
        %2865 = vmatprep.subr.bf16.mxu0 0
        %2866 = vmatpush1.bf16.xpose.msra.mxu0 0
        %2867 = vmatprep.subr.bf16.mxu0 0
        %2868 = vmatpush1.bf16.xpose.msra.mxu0 0
        %2869 = vmatprep.subr.bf16.mxu0 0
        %2870 = vmatpush1.bf16.xpose.msra.mxu0 0
        %2871 = vmatprep.subr.bf16.mxu0 0
        %2872 = vmatpush1.bf16.xpose.msra.mxu0 0
        %2873 = vmatprep.subr.bf16.mxu0 0
        %2874 = vmatpush1.bf16.xpose.msra.mxu0 0
        %2875 = vmatprep.subr.bf16.mxu0 0
        %2876 = vmatpush1.bf16.xpose.msra.mxu0 0
        %2877 = vmatprep.mubr.bf16.mxu0 0
        %2878 = vmatmul.mubr.bf16.gmra.mrb[0].mxu0 %v2840
        %v2879 = vpop.f32.mrb[0].mxu0
        %v2880 = vadd.f32 %v2517, %v2879
        %v2881 = vpop.f32.mrb[0].mxu0
        %v2882 = vpop.f32.mrb[0].mxu0
        %v2883 = vadd.f32 %v2517, %v2882
        %v2884 = vpop.f32.mrb[0].mxu0
        %2885 = vdwg.mxu0
        %v2886 = vsel %vm2643, %v2880, -inf
        %2887 = vmax.xlane.f32.xlu0 %v2886
        %v2888 = vpop.xlane.xlu0 %2887
        %v2889 = vsel %vm2643, %v2883, -inf
        %2890 = vmax.xlane.f32.xlu0 %v2889
        %v2891 = vpop.xlane.xlu0 %2890
        %v2892 = vsub.f32 %v2880, %v2888
        %v2893 = vsub.f32 %v2883, %v2891
        %v2894 = vmul.f32 %v2892, 1.442695
        %v2895 = vpow.pop %v2894
        %v2896 = vmul.f32 %v2893, 1.442695
        %v2897 = vpow.pop %v2896
        %v2898 = vsel %vm2643, %v2895, 0.0
        %2899 = vadd.xlane.f32.xlu0 %v2898
        %v2900 = vpop.xlane.xlu0 %2899
        %v2901 = vsel %vm2643, %v2897, 0.0
        %2902 = vadd.xlane.f32.xlu0 %v2901
        %v2903 = vpop.xlane.xlu0 %2902
        %v2904 = vrcp.pop %v2900
        %v2905 = vrcp.pop %v2903
        %v2906 = vmul.f32 %v2895, %v2904
        %v2907 = vmul.f32 %v2897, %v2905
        %v2908 = vpack.c.bf16 %v2907, %v2906
        %2909 = vrot.lane.b32.xlu0 %v2591, 48
        %v2910 = vpop.permute.xlu0 %2909
        %v2913 = vsel %vm2643, %v2908, 0
        %2915 = vmatprep.subr.bf16.mxu0 0
        %2916 = vmatpush1.bf16.msra.mxu0 %v2910
        %2917 = vmatprep.subr.bf16.mxu0 0
        %2918 = vmatpush1.bf16.msra.mxu0 0
        %2919 = vmatprep.subr.bf16.mxu0 0
        %2920 = vmatpush1.bf16.msra.mxu0 0
        %2921 = vmatprep.subr.bf16.mxu0 0
        %2922 = vmatpush1.bf16.msra.mxu0 0
        %2923 = vmatprep.subr.bf16.mxu0 0
        %2924 = vmatpush1.bf16.msra.mxu0 0
        %2925 = vmatprep.subr.bf16.mxu0 0
        %2926 = vmatpush1.bf16.msra.mxu0 0
        %2927 = vmatprep.subr.bf16.mxu0 0
        %2928 = vmatpush1.bf16.msra.mxu0 0
        %2929 = vmatprep.subr.bf16.mxu0 0
        %2930 = vmatpush1.bf16.msra.mxu0 0
        %2931 = vmatprep.subr.bf16.mxu0 0
        %2932 = vmatpush1.bf16.msra.mxu0 0
        %2933 = vmatprep.subr.bf16.mxu0 0
        %2934 = vmatpush1.bf16.msra.mxu0 0
        %2935 = vmatprep.subr.bf16.mxu0 0
        %2936 = vmatpush1.bf16.msra.mxu0 0
        %2937 = vmatprep.subr.bf16.mxu0 0
        %2938 = vmatpush1.bf16.msra.mxu0 0
        %2939 = vmatprep.subr.bf16.mxu0 0
        %2940 = vmatpush1.bf16.msra.mxu0 0
        %2941 = vmatprep.subr.bf16.mxu0 0
        %2942 = vmatpush1.bf16.msra.mxu0 0
        %2943 = vmatprep.subr.bf16.mxu0 0
        %2944 = vmatpush1.bf16.msra.mxu0 0
        %2945 = vmatprep.subr.bf16.mxu0 0
        %2946 = vmatpush1.bf16.msra.mxu0 0
        %2947 = vmatprep.mubr.bf16.mxu0 0
        %2948 = vmatmul.mubr.bf16.gmra.mrb[0].mxu0 %v2913
        %v2949 = vpop.f32.mrb[0].mxu0
        %v2950 = vadd.f32 0.0, %v2949
        %v2951 = vpop.f32.mrb[0].mxu0
        %v2952 = vpop.f32.mrb[0].mxu0
        %v2953 = vadd.f32 0.0, %v2952
        %v2954 = vpop.f32.mrb[0].mxu0
        %2955 = vdwg.mxu0
        %2956 = vrot.lane.b32.xlu0 %v2591, 104
        %v2957 = vpop.permute.xlu0 %2956
        %2958 = vrot.lane.b32.xlu0 %v2591, 72
        %v2959 = vpop.permute.xlu0 %2958
        %v2961 = vsel %vm2595, %v2957, 0
        %v2964 = vsel %vm2595, %v2959, 0
        %2966 = vmatprep.subr.bf16.mxu0 0
        %2967 = vmatpush1.bf16.xpose.msra.mxu0 %v2964
        %2968 = vmatprep.subr.bf16.mxu0 0
        %2969 = vmatpush1.bf16.xpose.msra.mxu0 0
        %2970 = vmatprep.subr.bf16.mxu0 0
        %2971 = vmatpush1.bf16.xpose.msra.mxu0 0
        %2972 = vmatprep.subr.bf16.mxu0 0
        %2973 = vmatpush1.bf16.xpose.msra.mxu0 0
        %2974 = vmatprep.subr.bf16.mxu0 0
        %2975 = vmatpush1.bf16.xpose.msra.mxu0 0
        %2976 = vmatprep.subr.bf16.mxu0 0
        %2977 = vmatpush1.bf16.xpose.msra.mxu0 0
        %2978 = vmatprep.subr.bf16.mxu0 0
        %2979 = vmatpush1.bf16.xpose.msra.mxu0 0
        %2980 = vmatprep.subr.bf16.mxu0 0
        %2981 = vmatpush1.bf16.xpose.msra.mxu0 0
        %2982 = vmatprep.subr.bf16.mxu0 0
        %2983 = vmatpush1.bf16.xpose.msra.mxu0 0
        %2984 = vmatprep.subr.bf16.mxu0 0
        %2985 = vmatpush1.bf16.xpose.msra.mxu0 0
        %2986 = vmatprep.subr.bf16.mxu0 0
        %2987 = vmatpush1.bf16.xpose.msra.mxu0 0
        %2988 = vmatprep.subr.bf16.mxu0 0
        %2989 = vmatpush1.bf16.xpose.msra.mxu0 0
        %2990 = vmatprep.subr.bf16.mxu0 0
        %2991 = vmatpush1.bf16.xpose.msra.mxu0 0
        %2992 = vmatprep.subr.bf16.mxu0 0
        %2993 = vmatpush1.bf16.xpose.msra.mxu0 0
        %2994 = vmatprep.subr.bf16.mxu0 0
        %2995 = vmatpush1.bf16.xpose.msra.mxu0 0
        %2996 = vmatprep.subr.bf16.mxu0 0
        %2997 = vmatpush1.bf16.xpose.msra.mxu0 0
        %2998 = vmatprep.mubr.bf16.mxu0 0
        %2999 = vmatmul.mubr.bf16.gmra.mrb[0].mxu0 %v2961
        %v3000 = vpop.f32.mrb[0].mxu0
        %v3001 = vadd.f32 %v2517, %v3000
        %v3002 = vpop.f32.mrb[0].mxu0
        %v3003 = vpop.f32.mrb[0].mxu0
        %v3004 = vadd.f32 %v2517, %v3003
        %v3005 = vpop.f32.mrb[0].mxu0
        %3006 = vdwg.mxu0
        %v3007 = vsel %vm2643, %v3001, -inf
        %3008 = vmax.xlane.f32.xlu0 %v3007
        %v3009 = vpop.xlane.xlu0 %3008
        %v3010 = vsel %vm2643, %v3004, -inf
        %3011 = vmax.xlane.f32.xlu0 %v3010
        %v3012 = vpop.xlane.xlu0 %3011
        %v3013 = vsub.f32 %v3001, %v3009
        %v3014 = vsub.f32 %v3004, %v3012
        %v3015 = vmul.f32 %v3013, 1.442695
        %v3016 = vpow.pop %v3015
        %v3017 = vmul.f32 %v3014, 1.442695
        %v3018 = vpow.pop %v3017
        %v3019 = vsel %vm2643, %v3016, 0.0
        %3020 = vadd.xlane.f32.xlu0 %v3019
        %v3021 = vpop.xlane.xlu0 %3020
        %v3022 = vsel %vm2643, %v3018, 0.0
        %3023 = vadd.xlane.f32.xlu0 %v3022
        %v3024 = vpop.xlane.xlu0 %3023
        %v3025 = vrcp.pop %v3021
        %v3026 = vrcp.pop %v3024
        %v3027 = vmul.f32 %v3016, %v3025
        %v3028 = vmul.f32 %v3018, %v3026
        %v3029 = vpack.c.bf16 %v3028, %v3027
        %3030 = vrot.lane.b32.xlu0 %v2591, 40
        %v3031 = vpop.permute.xlu0 %3030
        %v3034 = vsel %vm2643, %v3029, 0
        %3036 = vmatprep.subr.bf16.mxu0 0
        %3037 = vmatpush1.bf16.msra.mxu0 %v3031
        %3038 = vmatprep.subr.bf16.mxu0 0
        %3039 = vmatpush1.bf16.msra.mxu0 0
        %3040 = vmatprep.subr.bf16.mxu0 0
        %3041 = vmatpush1.bf16.msra.mxu0 0
        %3042 = vmatprep.subr.bf16.mxu0 0
        %3043 = vmatpush1.bf16.msra.mxu0 0
        %3044 = vmatprep.subr.bf16.mxu0 0
        %3045 = vmatpush1.bf16.msra.mxu0 0
        %3046 = vmatprep.subr.bf16.mxu0 0
        %3047 = vmatpush1.bf16.msra.mxu0 0
        %3048 = vmatprep.subr.bf16.mxu0 0
        %3049 = vmatpush1.bf16.msra.mxu0 0
        %3050 = vmatprep.subr.bf16.mxu0 0
        %3051 = vmatpush1.bf16.msra.mxu0 0
        %3052 = vmatprep.subr.bf16.mxu0 0
        %3053 = vmatpush1.bf16.msra.mxu0 0
        %3054 = vmatprep.subr.bf16.mxu0 0
        %3055 = vmatpush1.bf16.msra.mxu0 0
        %3056 = vmatprep.subr.bf16.mxu0 0
        %3057 = vmatpush1.bf16.msra.mxu0 0
        %3058 = vmatprep.subr.bf16.mxu0 0
        %3059 = vmatpush1.bf16.msra.mxu0 0
        %3060 = vmatprep.subr.bf16.mxu0 0
        %3061 = vmatpush1.bf16.msra.mxu0 0
        %3062 = vmatprep.subr.bf16.mxu0 0
        %3063 = vmatpush1.bf16.msra.mxu0 0
        %3064 = vmatprep.subr.bf16.mxu0 0
        %3065 = vmatpush1.bf16.msra.mxu0 0
        %3066 = vmatprep.subr.bf16.mxu0 0
        %3067 = vmatpush1.bf16.msra.mxu0 0
        %3068 = vmatprep.mubr.bf16.mxu0 0
        %3069 = vmatmul.mubr.bf16.gmra.mrb[0].mxu0 %v3034
        %v3070 = vpop.f32.mrb[0].mxu0
        %v3071 = vadd.f32 0.0, %v3070
        %v3072 = vpop.f32.mrb[0].mxu0
        %v3073 = vpop.f32.mrb[0].mxu0
        %v3074 = vadd.f32 0.0, %v3073
        %v3075 = vpop.f32.mrb[0].mxu0
        %3076 = vdwg.mxu0
        %3079 = vrot.lane.b32.xlu0 %v2829, 8
        %v3080 = vpop.permute.xlu0 %3079
        %3081 = vrot.lane.b32.xlu0 %v2832, 8
        %v3082 = vpop.permute.xlu0 %3081
        %3087 = vrot.lane.b32.xlu0 %v2950, 16
        %v3088 = vpop.permute.xlu0 %3087
        %3089 = vrot.lane.b32.xlu0 %v2953, 16
        %v3090 = vpop.permute.xlu0 %3089
        %3095 = vrot.lane.b32.xlu0 %v3071, 24
        %v3096 = vpop.permute.xlu0 %3095
        %3097 = vrot.lane.b32.xlu0 %v3074, 24
        %v3098 = vpop.permute.xlu0 %3097
        %v3101 = vsel %vm2595, %v2708, %v3080
        %v3102 = vsel %vm2595, %v2711, %v3082
        %v3103 = vsel %vm2643, %v3101, %v3088
        %v3104 = vsel %vm2643, %v3102, %v3090
        %vm3105 = vcmask 195584
        %v3106 = vsel %vm3105, %v3103, %v3096
        %v3107 = vsel %vm3105, %v3104, %v3098
        %v3108 = vld [vmem:[%s9] sm:$0xf]
        %v3109 = vld [vmem:[%s9 + $0x4] sm:$0xf]
        %v3110 = vld [vmem:[%s9 + $0x8] sm:$0xf]
        %v3111 = vld [vmem:[%s9 + $0xc] sm:$0xf]
        %v3112 = vpack.c.bf16 %v3107, %v3106
        %v3113 = vld [vmem:[%s11] sm:$0x1]
        %v3115 = vlaneseq
        %v3116 = vshrl.u32 %v3115, 7
        %v3117 = vsub.s32 0, %v3116
        %v3118 = vrot.slane %v3113, %v3117
        %v3124 = vunpack.c.l.b16 %v3108
        %v3125 = vunpack.c.l.b16 %v3109
        %v3126 = vunpack.c.l.b16 %v3110
        %v3127 = vunpack.c.l.b16 %v3111
        %v3128 = vpack.c.b16 %v3125, %v3124
        %v3129 = vpack.c.b16 %v3127, %v3126
        %v3133 = vsel %vm2546, %v3112, 0
        %3135 = vmatprep.subr.bf16.mxu0 0
        %3136 = vmatpush1.bf16.msra.mxu0 %v3128
        %3137 = vmatprep.subr.bf16.mxu0 0
        %3138 = vmatpush1.bf16.msra.mxu0 %v3129
        %3139 = vmatprep.subr.bf16.mxu0 0
        %3140 = vmatpush1.bf16.msra.mxu0 0
        %3141 = vmatprep.subr.bf16.mxu0 0
        %3142 = vmatpush1.bf16.msra.mxu0 0
        %3143 = vmatprep.subr.bf16.mxu0 0
        %3144 = vmatpush1.bf16.msra.mxu0 0
        %3145 = vmatprep.subr.bf16.mxu0 0
        %3146 = vmatpush1.bf16.msra.mxu0 0
        %3147 = vmatprep.subr.bf16.mxu0 0
        %3148 = vmatpush1.bf16.msra.mxu0 0
        %3149 = vmatprep.subr.bf16.mxu0 0
        %3150 = vmatpush1.bf16.msra.mxu0 0
        %3151 = vmatprep.subr.bf16.mxu0 0
        %3152 = vmatpush1.bf16.msra.mxu0 0
        %3153 = vmatprep.subr.bf16.mxu0 0
        %3154 = vmatpush1.bf16.msra.mxu0 0
        %3155 = vmatprep.subr.bf16.mxu0 0
        %3156 = vmatpush1.bf16.msra.mxu0 0
        %3157 = vmatprep.subr.bf16.mxu0 0
        %3158 = vmatpush1.bf16.msra.mxu0 0
        %3159 = vmatprep.subr.bf16.mxu0 0
        %3160 = vmatpush1.bf16.msra.mxu0 0
        %3161 = vmatprep.subr.bf16.mxu0 0
        %3162 = vmatpush1.bf16.msra.mxu0 0
        %3163 = vmatprep.subr.bf16.mxu0 0
        %3164 = vmatpush1.bf16.msra.mxu0 0
        %3165 = vmatprep.subr.bf16.mxu0 0
        %3166 = vmatpush1.bf16.msra.mxu0 0
        %3167 = vmatprep.mubr.bf16.mxu0 0
        %3168 = vmatmul.mubr.bf16.gmra.mrb[0].mxu0 %v3133
        %v3169 = vpop.f32.mrb[0].mxu0
        %v3170 = vadd.f32 %v3118, %v3169
        %v3171 = vpop.f32.mrb[0].mxu0
        %v3172 = vpop.f32.mrb[0].mxu0
        %v3173 = vadd.f32 %v3118, %v3172
        %v3174 = vpop.f32.mrb[0].mxu0
        %3175 = vdwg.mxu0
        %v3176 = vadd.f32 %v3170, %v2511
        %v3177 = vadd.f32 %v3173, %v2512
        %v3178 = vld [vmem:[%s13] sm:$0x1]
        %v3179 = vld [vmem:[%s15] sm:$0x1]
        %v3180 = vsel %vm2546, %v3176, 0.0
        %3181 = vadd.xlane.f32.xlu0 %v3180
        %v3182 = vpop.xlane.xlu0 %3181
        %v3183 = vsel %vm2546, %v3177, 0.0
        %3184 = vadd.xlane.f32.xlu0 %v3183
        %v3185 = vpop.xlane.xlu0 %3184
        %v3186 = vrcp.pop 32.0
        %v3187 = vmul.f32 %v3182, %v3186
        %v3188 = vmul.f32 %v3185, %v3186
        %v3189 = vsub.f32 %v3176, %v3187
        %v3190 = vsub.f32 %v3177, %v3188
        %v3191 = vmul.f32 %v3189, %v3189
        %v3192 = vmul.f32 %v3190, %v3190
        %v3193 = vsel %vm2546, %v3191, 0.0
        %3194 = vadd.xlane.f32.xlu0 %v3193
        %v3195 = vpop.xlane.xlu0 %3194
        %v3196 = vsel %vm2546, %v3192, 0.0
        %3197 = vadd.xlane.f32.xlu0 %v3196
        %v3198 = vpop.xlane.xlu0 %3197
        %v3199 = vmul.f32 %v3195, %v3186
        %v3200 = vmul.f32 %v3198, %v3186
        %v3201 = vadd.f32 %v3199, 1e-05
        %v3202 = vadd.f32 %v3200, 1e-05
        %v3203 = vrsqrt.pop %v3201
        %v3204 = vrsqrt.pop %v3202
        %v3205 = vmul.f32 %v3189, %v3203
        %v3206 = vmul.f32 %v3190, %v3204
        %v3208 = vlaneseq
        %v3209 = vshrl.u32 %v3208, 7
        %v3210 = vsub.s32 0, %v3209
        %v3211 = vrot.slane %v3178, %v3210
        %v3213 = vmul.f32 %v3205, %v3211
        %v3214 = vmul.f32 %v3206, %v3211
        %v3216 = vlaneseq
        %v3217 = vshrl.u32 %v3216, 7
        %v3218 = vsub.s32 0, %v3217
        %v3219 = vrot.slane %v3179, %v3218
        %v3221 = vadd.f32 %v3213, %v3219
        %v3222 = vadd.f32 %v3214, %v3219
        %v3223 = vld [vmem:[%s17] sm:$0xf]
        %v3224 = vld [vmem:[%s17 + $0x4] sm:$0xf]
        %v3225 = vld [vmem:[%s17 + $0x8] sm:$0xf]
        %v3226 = vld [vmem:[%s17 + $0xc] sm:$0xf]
        %v3227 = vpack.c.bf16 %v3222, %v3221
        %v3228 = vld [vmem:[%s19] sm:$0x1]
        %v3230 = vlaneseq
        %v3231 = vshrl.u32 %v3230, 7
        %v3232 = vsub.s32 0, %v3231
        %v3233 = vrot.slane %v3228, %v3232
        %v3239 = vunpack.c.l.b16 %v3223
        %v3240 = vunpack.c.l.b16 %v3224
        %v3241 = vunpack.c.l.b16 %v3225
        %v3242 = vunpack.c.l.b16 %v3226
        %v3243 = vpack.c.b16 %v3240, %v3239
        %v3244 = vpack.c.b16 %v3242, %v3241
        %v3248 = vsel %vm2546, %v3227, 0
        %3250 = vmatprep.subr.bf16.mxu0 0
        %3251 = vmatpush1.bf16.msra.mxu0 %v3243
        %3252 = vmatprep.subr.bf16.mxu0 0
        %3253 = vmatpush1.bf16.msra.mxu0 %v3244
        %3254 = vmatprep.subr.bf16.mxu0 0
        %3255 = vmatpush1.bf16.msra.mxu0 0
        %3256 = vmatprep.subr.bf16.mxu0 0
        %3257 = vmatpush1.bf16.msra.mxu0 0
        %3258 = vmatprep.subr.bf16.mxu0 0
        %3259 = vmatpush1.bf16.msra.mxu0 0
        %3260 = vmatprep.subr.bf16.mxu0 0
        %3261 = vmatpush1.bf16.msra.mxu0 0
        %3262 = vmatprep.subr.bf16.mxu0 0
        %3263 = vmatpush1.bf16.msra.mxu0 0
        %3264 = vmatprep.subr.bf16.mxu0 0
        %3265 = vmatpush1.bf16.msra.mxu0 0
        %3266 = vmatprep.subr.bf16.mxu0 0
        %3267 = vmatpush1.bf16.msra.mxu0 0
        %3268 = vmatprep.subr.bf16.mxu0 0
        %3269 = vmatpush1.bf16.msra.mxu0 0
        %3270 = vmatprep.subr.bf16.mxu0 0
        %3271 = vmatpush1.bf16.msra.mxu0 0
        %3272 = vmatprep.subr.bf16.mxu0 0
        %3273 = vmatpush1.bf16.msra.mxu0 0
        %3274 = vmatprep.subr.bf16.mxu0 0
        %3275 = vmatpush1.bf16.msra.mxu0 0
        %3276 = vmatprep.subr.bf16.mxu0 0
        %3277 = vmatpush1.bf16.msra.mxu0 0
        %3278 = vmatprep.subr.bf16.mxu0 0
        %3279 = vmatpush1.bf16.msra.mxu0 0
        %3280 = vmatprep.subr.bf16.mxu0 0
        %3281 = vmatpush1.bf16.msra.mxu0 0
        %3282 = vmatprep.mubr.bf16.mxu0 0
        %3283 = vmatmul.mubr.bf16.gmra.mrb[0].mxu0 %v3248
        %v3284 = vpop.f32.mrb[0].mxu0
        %v3285 = vadd.f32 %v3233, %v3284
        %v3286 = vpop.f32.mrb[0].mxu0
        %v3287 = vpop.f32.mrb[0].mxu0
        %v3288 = vadd.f32 %v3233, %v3287
        %v3289 = vpop.f32.mrb[0].mxu0
        %3290 = vdwg.mxu0
        %v3291 = vmax.f32 %v3285, 0.0
        %v3292 = vmax.f32 %v3288, 0.0
        %v3293 = vld [vmem:[%s21] sm:$0xf]
        %v3294 = vld [vmem:[%s21 + $0x4] sm:$0xf]
        %v3295 = vld [vmem:[%s21 + $0x8] sm:$0xf]
        %v3296 = vld [vmem:[%s21 + $0xc] sm:$0xf]
        %v3297 = vld [vmem:[%s21 + $0x10] sm:$0xf]
        %v3298 = vld [vmem:[%s21 + $0x14] sm:$0xf]
        %v3299 = vld [vmem:[%s21 + $0x18] sm:$0xf]
        %v3300 = vld [vmem:[%s21 + $0x1c] sm:$0xf]
        %v3301 = vpack.c.bf16 %v3292, %v3291
        %v3302 = vld [vmem:[%s23] sm:$0x1]
        %v3304 = vlaneseq
        %v3305 = vshrl.u32 %v3304, 7
        %v3306 = vsub.s32 0, %v3305
        %v3307 = vrot.slane %v3302, %v3306
        %v3317 = vunpack.c.l.b16 %v3293
        %v3318 = vunpack.c.l.b16 %v3294
        %v3319 = vunpack.c.l.b16 %v3295
        %v3320 = vunpack.c.l.b16 %v3296
        %v3321 = vunpack.c.l.b16 %v3297
        %v3322 = vunpack.c.l.b16 %v3298
        %v3323 = vunpack.c.l.b16 %v3299
        %v3324 = vunpack.c.l.b16 %v3300
        %v3325 = vpack.c.b16 %v3318, %v3317
        %v3326 = vpack.c.b16 %v3320, %v3319
        %v3327 = vpack.c.b16 %v3322, %v3321
        %v3328 = vpack.c.b16 %v3324, %v3323
        %vm3333 = vcmask 523264
        %v3335 = vsel %vm3333, %v3301, 0
        %3337 = vmatprep.subr.bf16.mxu0 0
        %3338 = vmatpush1.bf16.msra.mxu0 %v3325
        %3339 = vmatprep.subr.bf16.mxu0 0
        %3340 = vmatpush1.bf16.msra.mxu0 %v3326
        %3341 = vmatprep.subr.bf16.mxu0 0
        %3342 = vmatpush1.bf16.msra.mxu0 %v3327
        %3343 = vmatprep.subr.bf16.mxu0 0
        %3344 = vmatpush1.bf16.msra.mxu0 %v3328
        %3345 = vmatprep.subr.bf16.mxu0 0
        %3346 = vmatpush1.bf16.msra.mxu0 0
        %3347 = vmatprep.subr.bf16.mxu0 0
        %3348 = vmatpush1.bf16.msra.mxu0 0
        %3349 = vmatprep.subr.bf16.mxu0 0
        %3350 = vmatpush1.bf16.msra.mxu0 0
        %3351 = vmatprep.subr.bf16.mxu0 0
        %3352 = vmatpush1.bf16.msra.mxu0 0
        %3353 = vmatprep.subr.bf16.mxu0 0
        %3354 = vmatpush1.bf16.msra.mxu0 0
        %3355 = vmatprep.subr.bf16.mxu0 0
        %3356 = vmatpush1.bf16.msra.mxu0 0
        %3357 = vmatprep.subr.bf16.mxu0 0
        %3358 = vmatpush1.bf16.msra.mxu0 0
        %3359 = vmatprep.subr.bf16.mxu0 0
        %3360 = vmatpush1.bf16.msra.mxu0 0
        %3361 = vmatprep.subr.bf16.mxu0 0
        %3362 = vmatpush1.bf16.msra.mxu0 0
        %3363 = vmatprep.subr.bf16.mxu0 0
        %3364 = vmatpush1.bf16.msra.mxu0 0
        %3365 = vmatprep.subr.bf16.mxu0 0
        %3366 = vmatpush1.bf16.msra.mxu0 0
        %3367 = vmatprep.subr.bf16.mxu0 0
        %3368 = vmatpush1.bf16.msra.mxu0 0
        %3369 = vmatprep.mubr.bf16.mxu0 0
        %3370 = vmatmul.mubr.bf16.gmra.mrb[0].mxu0 %v3335
        %v3371 = vpop.f32.mrb[0].mxu0
        %v3372 = vadd.f32 %v3307, %v3371
        %v3373 = vpop.f32.mrb[0].mxu0
        %v3374 = vpop.f32.mrb[0].mxu0
        %v3375 = vadd.f32 %v3307, %v3374
        %v3376 = vpop.f32.mrb[0].mxu0
        %3377 = vdwg.mxu0
        %v3378 = vadd.f32 %v3372, %v3221
        %v3379 = vadd.f32 %v3375, %v3222
        %v3380 = vld [vmem:[%s25] sm:$0x1]
        %v3381 = vld [vmem:[%s27] sm:$0x1]
        %v3382 = vsel %vm2546, %v3378, 0.0
        %3383 = vadd.xlane.f32.xlu0 %v3382
        %v3384 = vpop.xlane.xlu0 %3383
        %v3385 = vsel %vm2546, %v3379, 0.0
        %3386 = vadd.xlane.f32.xlu0 %v3385
        %v3387 = vpop.xlane.xlu0 %3386
        %v3388 = vmul.f32 %v3384, %v3186
        %v3389 = vmul.f32 %v3387, %v3186
        %v3390 = vsub.f32 %v3378, %v3388
        %v3391 = vsub.f32 %v3379, %v3389
        %v3392 = vmul.f32 %v3390, %v3390
        %v3393 = vmul.f32 %v3391, %v3391
        %v3394 = vsel %vm2546, %v3392, 0.0
        %3395 = vadd.xlane.f32.xlu0 %v3394
        %v3396 = vpop.xlane.xlu0 %3395
        %v3397 = vsel %vm2546, %v3393, 0.0
        %3398 = vadd.xlane.f32.xlu0 %v3397
        %v3399 = vpop.xlane.xlu0 %3398
        %v3400 = vmul.f32 %v3396, %v3186
        %v3401 = vmul.f32 %v3399, %v3186
        %v3402 = vadd.f32 %v3400, 1e-05
        %v3403 = vadd.f32 %v3401, 1e-05
        %v3404 = vrsqrt.pop %v3402
        %v3405 = vrsqrt.pop %v3403
        %v3406 = vmul.f32 %v3390, %v3404
        %v3407 = vmul.f32 %v3391, %v3405
        %v3409 = vlaneseq
        %v3410 = vshrl.u32 %v3409, 7
        %v3411 = vsub.s32 0, %v3410
        %v3412 = vrot.slane %v3380, %v3411
        %v3414 = vmul.f32 %v3406, %v3412
        %v3415 = vmul.f32 %v3407, %v3412
        %v3417 = vlaneseq
        %v3418 = vshrl.u32 %v3417, 7
        %v3419 = vsub.s32 0, %v3418
        %v3420 = vrot.slane %v3381, %v3419
        %v3422 = vadd.f32 %v3414, %v3420
        %v3423 = vadd.f32 %v3415, %v3420
        %v3424 = vld [vmem:[%s29] sm:$0xf]
        %v3425 = vld [vmem:[%s29 + $0x4] sm:$0xf]
        %v3426 = vld [vmem:[%s29 + $0x8] sm:$0xf]
        %v3427 = vld [vmem:[%s29 + $0xc] sm:$0xf]
        %v3428 = vpack.c.bf16 %v3423, %v3422
        %v3429 = vld [vmem:[%s31] sm:$0x1]
        %v3431 = vlaneseq
        %v3432 = vshrl.u32 %v3431, 7
        %v3433 = vsub.s32 0, %v3432
        %v3434 = vrot.slane %v3429, %v3433
        %v3440 = vunpack.c.l.b16 %v3424
        %v3441 = vunpack.c.l.b16 %v3425
        %v3442 = vunpack.c.l.b16 %v3426
        %v3443 = vunpack.c.l.b16 %v3427
        %v3444 = vpack.c.b16 %v3441, %v3440
        %v3445 = vpack.c.b16 %v3443, %v3442
        %v3449 = vsel %vm2546, %v3428, 0
        %3451 = vmatprep.subr.bf16.mxu0 0
        %3452 = vmatpush1.bf16.msra.mxu0 %v3444
        %3453 = vmatprep.subr.bf16.mxu0 0
        %3454 = vmatpush1.bf16.msra.mxu0 %v3445
        %3455 = vmatprep.subr.bf16.mxu0 0
        %3456 = vmatpush1.bf16.msra.mxu0 0
        %3457 = vmatprep.subr.bf16.mxu0 0
        %3458 = vmatpush1.bf16.msra.mxu0 0
        %3459 = vmatprep.subr.bf16.mxu0 0
        %3460 = vmatpush1.bf16.msra.mxu0 0
        %3461 = vmatprep.subr.bf16.mxu0 0
        %3462 = vmatpush1.bf16.msra.mxu0 0
        %3463 = vmatprep.subr.bf16.mxu0 0
        %3464 = vmatpush1.bf16.msra.mxu0 0
        %3465 = vmatprep.subr.bf16.mxu0 0
        %3466 = vmatpush1.bf16.msra.mxu0 0
        %3467 = vmatprep.subr.bf16.mxu0 0
        %3468 = vmatpush1.bf16.msra.mxu0 0
        %3469 = vmatprep.subr.bf16.mxu0 0
        %3470 = vmatpush1.bf16.msra.mxu0 0
        %3471 = vmatprep.subr.bf16.mxu0 0
        %3472 = vmatpush1.bf16.msra.mxu0 0
        %3473 = vmatprep.subr.bf16.mxu0 0
        %3474 = vmatpush1.bf16.msra.mxu0 0
        %3475 = vmatprep.subr.bf16.mxu0 0
        %3476 = vmatpush1.bf16.msra.mxu0 0
        %3477 = vmatprep.subr.bf16.mxu0 0
        %3478 = vmatpush1.bf16.msra.mxu0 0
        %3479 = vmatprep.subr.bf16.mxu0 0
        %3480 = vmatpush1.bf16.msra.mxu0 0
        %3481 = vmatprep.subr.bf16.mxu0 0
        %3482 = vmatpush1.bf16.msra.mxu0 0
        %3483 = vmatprep.mubr.bf16.mxu0 0
        %3484 = vmatmul.mubr.bf16.gmra.mrb[0].mxu0 %v3449
        %v3485 = vpop.f32.mrb[0].mxu0
        %v3486 = vadd.f32 %v3434, %v3485
        %v3487 = vpop.f32.mrb[0].mxu0
        %v3488 = vpop.f32.mrb[0].mxu0
        %v3489 = vadd.f32 %v3434, %v3488
        %v3490 = vpop.f32.mrb[0].mxu0
        %3491 = vdwg.mxu0
        %v3492 = vpack.c.bf16 %v3489, %v3486
        %3494 = vrot.lane.b32.xlu0 %v3492, 96
        %v3495 = vpop.permute.xlu0 %3494
        %v3497 = vsel %vm2595, %v3492, 0
        %v3500 = vsel %vm2595, %v3495, 0
        %3502 = vmatprep.subr.bf16.mxu0 0
        %3503 = vmatpush1.bf16.xpose.msra.mxu0 %v3500
        %3504 = vmatprep.subr.bf16.mxu0 0
        %3505 = vmatpush1.bf16.xpose.msra.mxu0 0
        %3506 = vmatprep.subr.bf16.mxu0 0
        %3507 = vmatpush1.bf16.xpose.msra.mxu0 0
        %3508 = vmatprep.subr.bf16.mxu0 0
        %3509 = vmatpush1.bf16.xpose.msra.mxu0 0
        %3510 = vmatprep.subr.bf16.mxu0 0
        %3511 = vmatpush1.bf16.xpose.msra.mxu0 0
        %3512 = vmatprep.subr.bf16.mxu0 0
        %3513 = vmatpush1.bf16.xpose.msra.mxu0 0
        %3514 = vmatprep.subr.bf16.mxu0 0
        %3515 = vmatpush1.bf16.xpose.msra.mxu0 0
        %3516 = vmatprep.subr.bf16.mxu0 0
        %3517 = vmatpush1.bf16.xpose.msra.mxu0 0
        %3518 = vmatprep.subr.bf16.mxu0 0
        %3519 = vmatpush1.bf16.xpose.msra.mxu0 0
        %3520 = vmatprep.subr.bf16.mxu0 0
        %3521 = vmatpush1.bf16.xpose.msra.mxu0 0
        %3522 = vmatprep.subr.bf16.mxu0 0
        %3523 = vmatpush1.bf16.xpose.msra.mxu0 0
        %3524 = vmatprep.subr.bf16.mxu0 0
        %3525 = vmatpush1.bf16.xpose.msra.mxu0 0
        %3526 = vmatprep.subr.bf16.mxu0 0
        %3527 = vmatpush1.bf16.xpose.msra.mxu0 0
        %3528 = vmatprep.subr.bf16.mxu0 0
        %3529 = vmatpush1.bf16.xpose.msra.mxu0 0
        %3530 = vmatprep.subr.bf16.mxu0 0
        %3531 = vmatpush1.bf16.xpose.msra.mxu0 0
        %3532 = vmatprep.subr.bf16.mxu0 0
        %3533 = vmatpush1.bf16.xpose.msra.mxu0 0
        %3534 = vmatprep.mubr.bf16.mxu0 0
        %3535 = vmatmul.mubr.bf16.gmra.mrb[0].mxu0 %v3497
        %v3536 = vpop.f32.mrb[0].mxu0
        %v3537 = vadd.f32 %v2517, %v3536
        %v3538 = vpop.f32.mrb[0].mxu0
        %v3539 = vpop.f32.mrb[0].mxu0
        %v3540 = vadd.f32 %v2517, %v3539
        %v3541 = vpop.f32.mrb[0].mxu0
        %3542 = vdwg.mxu0
        %v3543 = vsel %vm2643, %v3537, -inf
        %3544 = vmax.xlane.f32.xlu0 %v3543
        %v3545 = vpop.xlane.xlu0 %3544
        %v3546 = vsel %vm2643, %v3540, -inf
        %3547 = vmax.xlane.f32.xlu0 %v3546
        %v3548 = vpop.xlane.xlu0 %3547
        %v3549 = vsub.f32 %v3537, %v3545
        %v3550 = vsub.f32 %v3540, %v3548
        %v3551 = vmul.f32 %v3549, 1.442695
        %v3552 = vpow.pop %v3551
        %v3553 = vmul.f32 %v3550, 1.442695
        %v3554 = vpow.pop %v3553
        %v3555 = vsel %vm2643, %v3552, 0.0
        %3556 = vadd.xlane.f32.xlu0 %v3555
        %v3557 = vpop.xlane.xlu0 %3556
        %v3558 = vsel %vm2643, %v3554, 0.0
        %3559 = vadd.xlane.f32.xlu0 %v3558
        %v3560 = vpop.xlane.xlu0 %3559
        %v3561 = vrcp.pop %v3557
        %v3562 = vrcp.pop %v3560
        %v3563 = vmul.f32 %v3552, %v3561
        %v3564 = vmul.f32 %v3554, %v3562
        %v3565 = vpack.c.bf16 %v3564, %v3563
        %3566 = vrot.lane.b32.xlu0 %v3492, 64
        %v3567 = vpop.permute.xlu0 %3566
        %v3570 = vsel %vm2643, %v3565, 0
        %3572 = vmatprep.subr.bf16.mxu0 0
        %3573 = vmatpush1.bf16.msra.mxu0 %v3567
        %3574 = vmatprep.subr.bf16.mxu0 0
        %3575 = vmatpush1.bf16.msra.mxu0 0
        %3576 = vmatprep.subr.bf16.mxu0 0
        %3577 = vmatpush1.bf16.msra.mxu0 0
        %3578 = vmatprep.subr.bf16.mxu0 0
        %3579 = vmatpush1.bf16.msra.mxu0 0
        %3580 = vmatprep.subr.bf16.mxu0 0
        %3581 = vmatpush1.bf16.msra.mxu0 0
        %3582 = vmatprep.subr.bf16.mxu0 0
        %3583 = vmatpush1.bf16.msra.mxu0 0
        %3584 = vmatprep.subr.bf16.mxu0 0
        %3585 = vmatpush1.bf16.msra.mxu0 0
        %3586 = vmatprep.subr.bf16.mxu0 0
        %3587 = vmatpush1.bf16.msra.mxu0 0
        %3588 = vmatprep.subr.bf16.mxu0 0
        %3589 = vmatpush1.bf16.msra.mxu0 0
        %3590 = vmatprep.subr.bf16.mxu0 0
        %3591 = vmatpush1.bf16.msra.mxu0 0
        %3592 = vmatprep.subr.bf16.mxu0 0
        %3593 = vmatpush1.bf16.msra.mxu0 0
        %3594 = vmatprep.subr.bf16.mxu0 0
        %3595 = vmatpush1.bf16.msra.mxu0 0
        %3596 = vmatprep.subr.bf16.mxu0 0
        %3597 = vmatpush1.bf16.msra.mxu0 0
        %3598 = vmatprep.subr.bf16.mxu0 0
        %3599 = vmatpush1.bf16.msra.mxu0 0
        %3600 = vmatprep.subr.bf16.mxu0 0
        %3601 = vmatpush1.bf16.msra.mxu0 0
        %3602 = vmatprep.subr.bf16.mxu0 0
        %3603 = vmatpush1.bf16.msra.mxu0 0
        %3604 = vmatprep.mubr.bf16.mxu0 0
        %3605 = vmatmul.mubr.bf16.gmra.mrb[0].mxu0 %v3570
        %v3606 = vpop.f32.mrb[0].mxu0
        %v3607 = vadd.f32 0.0, %v3606
        %v3608 = vpop.f32.mrb[0].mxu0
        %v3609 = vpop.f32.mrb[0].mxu0
        %v3610 = vadd.f32 0.0, %v3609
        %v3611 = vpop.f32.mrb[0].mxu0
        %3612 = vdwg.mxu0
        %3613 = vrot.lane.b32.xlu0 %v3492, 120
        %v3614 = vpop.permute.xlu0 %3613
        %3615 = vrot.lane.b32.xlu0 %v3492, 88
        %v3616 = vpop.permute.xlu0 %3615
        %v3618 = vsel %vm2595, %v3614, 0
        %v3621 = vsel %vm2595, %v3616, 0
        %3623 = vmatprep.subr.bf16.mxu0 0
        %3624 = vmatpush1.bf16.xpose.msra.mxu0 %v3621
        %3625 = vmatprep.subr.bf16.mxu0 0
        %3626 = vmatpush1.bf16.xpose.msra.mxu0 0
        %3627 = vmatprep.subr.bf16.mxu0 0
        %3628 = vmatpush1.bf16.xpose.msra.mxu0 0
        %3629 = vmatprep.subr.bf16.mxu0 0
        %3630 = vmatpush1.bf16.xpose.msra.mxu0 0
        %3631 = vmatprep.subr.bf16.mxu0 0
        %3632 = vmatpush1.bf16.xpose.msra.mxu0 0
        %3633 = vmatprep.subr.bf16.mxu0 0
        %3634 = vmatpush1.bf16.xpose.msra.mxu0 0
        %3635 = vmatprep.subr.bf16.mxu0 0
        %3636 = vmatpush1.bf16.xpose.msra.mxu0 0
        %3637 = vmatprep.subr.bf16.mxu0 0
        %3638 = vmatpush1.bf16.xpose.msra.mxu0 0
        %3639 = vmatprep.subr.bf16.mxu0 0
        %3640 = vmatpush1.bf16.xpose.msra.mxu0 0
        %3641 = vmatprep.subr.bf16.mxu0 0
        %3642 = vmatpush1.bf16.xpose.msra.mxu0 0
        %3643 = vmatprep.subr.bf16.mxu0 0
        %3644 = vmatpush1.bf16.xpose.msra.mxu0 0
        %3645 = vmatprep.subr.bf16.mxu0 0
        %3646 = vmatpush1.bf16.xpose.msra.mxu0 0
        %3647 = vmatprep.subr.bf16.mxu0 0
        %3648 = vmatpush1.bf16.xpose.msra.mxu0 0
        %3649 = vmatprep.subr.bf16.mxu0 0
        %3650 = vmatpush1.bf16.xpose.msra.mxu0 0
        %3651 = vmatprep.subr.bf16.mxu0 0
        %3652 = vmatpush1.bf16.xpose.msra.mxu0 0
        %3653 = vmatprep.subr.bf16.mxu0 0
        %3654 = vmatpush1.bf16.xpose.msra.mxu0 0
        %3655 = vmatprep.mubr.bf16.mxu0 0
        %3656 = vmatmul.mubr.bf16.gmra.mrb[0].mxu0 %v3618
        %v3657 = vpop.f32.mrb[0].mxu0
        %v3658 = vadd.f32 %v2517, %v3657
        %v3659 = vpop.f32.mrb[0].mxu0
        %v3660 = vpop.f32.mrb[0].mxu0
        %v3661 = vadd.f32 %v2517, %v3660
        %v3662 = vpop.f32.mrb[0].mxu0
        %3663 = vdwg.mxu0
        %v3664 = vsel %vm2643, %v3658, -inf
        %3665 = vmax.xlane.f32.xlu0 %v3664
        %v3666 = vpop.xlane.xlu0 %3665
        %v3667 = vsel %vm2643, %v3661, -inf
        %3668 = vmax.xlane.f32.xlu0 %v3667
        %v3669 = vpop.xlane.xlu0 %3668
        %v3670 = vsub.f32 %v3658, %v3666
        %v3671 = vsub.f32 %v3661, %v3669
        %v3672 = vmul.f32 %v3670, 1.442695
        %v3673 = vpow.pop %v3672
        %v3674 = vmul.f32 %v3671, 1.442695
        %v3675 = vpow.pop %v3674
        %v3676 = vsel %vm2643, %v3673, 0.0
        %3677 = vadd.xlane.f32.xlu0 %v3676
        %v3678 = vpop.xlane.xlu0 %3677
        %v3679 = vsel %vm2643, %v3675, 0.0
        %3680 = vadd.xlane.f32.xlu0 %v3679
        %v3681 = vpop.xlane.xlu0 %3680
        %v3682 = vrcp.pop %v3678
        %v3683 = vrcp.pop %v3681
        %v3684 = vmul.f32 %v3673, %v3682
        %v3685 = vmul.f32 %v3675, %v3683
        %v3686 = vpack.c.bf16 %v3685, %v3684
        %3687 = vrot.lane.b32.xlu0 %v3492, 56
        %v3688 = vpop.permute.xlu0 %3687
        %v3691 = vsel %vm2643, %v3686, 0
        %3693 = vmatprep.subr.bf16.mxu0 0
        %3694 = vmatpush1.bf16.msra.mxu0 %v3688
        %3695 = vmatprep.subr.bf16.mxu0 0
        %3696 = vmatpush1.bf16.msra.mxu0 0
        %3697 = vmatprep.subr.bf16.mxu0 0
        %3698 = vmatpush1.bf16.msra.mxu0 0
        %3699 = vmatprep.subr.bf16.mxu0 0
        %3700 = vmatpush1.bf16.msra.mxu0 0
        %3701 = vmatprep.subr.bf16.mxu0 0
        %3702 = vmatpush1.bf16.msra.mxu0 0
        %3703 = vmatprep.subr.bf16.mxu0 0
        %3704 = vmatpush1.bf16.msra.mxu0 0
        %3705 = vmatprep.subr.bf16.mxu0 0
        %3706 = vmatpush1.bf16.msra.mxu0 0
        %3707 = vmatprep.subr.bf16.mxu0 0
        %3708 = vmatpush1.bf16.msra.mxu0 0
        %3709 = vmatprep.subr.bf16.mxu0 0
        %3710 = vmatpush1.bf16.msra.mxu0 0
        %3711 = vmatprep.subr.bf16.mxu0 0
        %3712 = vmatpush1.bf16.msra.mxu0 0
        %3713 = vmatprep.subr.bf16.mxu0 0
        %3714 = vmatpush1.bf16.msra.mxu0 0
        %3715 = vmatprep.subr.bf16.mxu0 0
        %3716 = vmatpush1.bf16.msra.mxu0 0
        %3717 = vmatprep.subr.bf16.mxu0 0
        %3718 = vmatpush1.bf16.msra.mxu0 0
        %3719 = vmatprep.subr.bf16.mxu0 0
        %3720 = vmatpush1.bf16.msra.mxu0 0
        %3721 = vmatprep.subr.bf16.mxu0 0
        %3722 = vmatpush1.bf16.msra.mxu0 0
        %3723 = vmatprep.subr.bf16.mxu0 0
        %3724 = vmatpush1.bf16.msra.mxu0 0
        %3725 = vmatprep.mubr.bf16.mxu0 0
        %3726 = vmatmul.mubr.bf16.gmra.mrb[0].mxu0 %v3691
        %v3727 = vpop.f32.mrb[0].mxu0
        %v3728 = vadd.f32 0.0, %v3727
        %v3729 = vpop.f32.mrb[0].mxu0
        %v3730 = vpop.f32.mrb[0].mxu0
        %v3731 = vadd.f32 0.0, %v3730
        %v3732 = vpop.f32.mrb[0].mxu0
        %3733 = vdwg.mxu0
        %3734 = vrot.lane.b32.xlu0 %v3492, 112
        %v3735 = vpop.permute.xlu0 %3734
        %3736 = vrot.lane.b32.xlu0 %v3492, 80
        %v3737 = vpop.permute.xlu0 %3736
        %v3739 = vsel %vm2595, %v3735, 0
        %v3742 = vsel %vm2595, %v3737, 0
        %3744 = vmatprep.subr.bf16.mxu0 0
        %3745 = vmatpush1.bf16.xpose.msra.mxu0 %v3742
        %3746 = vmatprep.subr.bf16.mxu0 0
        %3747 = vmatpush1.bf16.xpose.msra.mxu0 0
        %3748 = vmatprep.subr.bf16.mxu0 0
        %3749 = vmatpush1.bf16.xpose.msra.mxu0 0
        %3750 = vmatprep.subr.bf16.mxu0 0
        %3751 = vmatpush1.bf16.xpose.msra.mxu0 0
        %3752 = vmatprep.subr.bf16.mxu0 0
        %3753 = vmatpush1.bf16.xpose.msra.mxu0 0
        %3754 = vmatprep.subr.bf16.mxu0 0
        %3755 = vmatpush1.bf16.xpose.msra.mxu0 0
        %3756 = vmatprep.subr.bf16.mxu0 0
        %3757 = vmatpush1.bf16.xpose.msra.mxu0 0
        %3758 = vmatprep.subr.bf16.mxu0 0
        %3759 = vmatpush1.bf16.xpose.msra.mxu0 0
        %3760 = vmatprep.subr.bf16.mxu0 0
        %3761 = vmatpush1.bf16.xpose.msra.mxu0 0
        %3762 = vmatprep.subr.bf16.mxu0 0
        %3763 = vmatpush1.bf16.xpose.msra.mxu0 0
        %3764 = vmatprep.subr.bf16.mxu0 0
        %3765 = vmatpush1.bf16.xpose.msra.mxu0 0
        %3766 = vmatprep.subr.bf16.mxu0 0
        %3767 = vmatpush1.bf16.xpose.msra.mxu0 0
        %3768 = vmatprep.subr.bf16.mxu0 0
        %3769 = vmatpush1.bf16.xpose.msra.mxu0 0
        %3770 = vmatprep.subr.bf16.mxu0 0
        %3771 = vmatpush1.bf16.xpose.msra.mxu0 0
        %3772 = vmatprep.subr.bf16.mxu0 0
        %3773 = vmatpush1.bf16.xpose.msra.mxu0 0
        %3774 = vmatprep.subr.bf16.mxu0 0
        %3775 = vmatpush1.bf16.xpose.msra.mxu0 0
        %3776 = vmatprep.mubr.bf16.mxu0 0
        %3777 = vmatmul.mubr.bf16.gmra.mrb[0].mxu0 %v3739
        %v3778 = vpop.f32.mrb[0].mxu0
        %v3779 = vadd.f32 %v2517, %v3778
        %v3780 = vpop.f32.mrb[0].mxu0
        %v3781 = vpop.f32.mrb[0].mxu0
        %v3782 = vadd.f32 %v2517, %v3781
        %v3783 = vpop.f32.mrb[0].mxu0
        %3784 = vdwg.mxu0
        %v3785 = vsel %vm2643, %v3779, -inf
        %3786 = vmax.xlane.f32.xlu0 %v3785
        %v3787 = vpop.xlane.xlu0 %3786
        %v3788 = vsel %vm2643, %v3782, -inf
        %3789 = vmax.xlane.f32.xlu0 %v3788
        %v3790 = vpop.xlane.xlu0 %3789
        %v3791 = vsub.f32 %v3779, %v3787
        %v3792 = vsub.f32 %v3782, %v3790
        %v3793 = vmul.f32 %v3791, 1.442695
        %v3794 = vpow.pop %v3793
        %v3795 = vmul.f32 %v3792, 1.442695
        %v3796 = vpow.pop %v3795
        %v3797 = vsel %vm2643, %v3794, 0.0
        %3798 = vadd.xlane.f32.xlu0 %v3797
        %v3799 = vpop.xlane.xlu0 %3798
        %v3800 = vsel %vm2643, %v3796, 0.0
        %3801 = vadd.xlane.f32.xlu0 %v3800
        %v3802 = vpop.xlane.xlu0 %3801
        %v3803 = vrcp.pop %v3799
        %v3804 = vrcp.pop %v3802
        %v3805 = vmul.f32 %v3794, %v3803
        %v3806 = vmul.f32 %v3796, %v3804
        %v3807 = vpack.c.bf16 %v3806, %v3805
        %3808 = vrot.lane.b32.xlu0 %v3492, 48
        %v3809 = vpop.permute.xlu0 %3808
        %v3812 = vsel %vm2643, %v3807, 0
        %3814 = vmatprep.subr.bf16.mxu0 0
        %3815 = vmatpush1.bf16.msra.mxu0 %v3809
        %3816 = vmatprep.subr.bf16.mxu0 0
        %3817 = vmatpush1.bf16.msra.mxu0 0
        %3818 = vmatprep.subr.bf16.mxu0 0
        %3819 = vmatpush1.bf16.msra.mxu0 0
        %3820 = vmatprep.subr.bf16.mxu0 0
        %3821 = vmatpush1.bf16.msra.mxu0 0
        %3822 = vmatprep.subr.bf16.mxu0 0
        %3823 = vmatpush1.bf16.msra.mxu0 0
        %3824 = vmatprep.subr.bf16.mxu0 0
        %3825 = vmatpush1.bf16.msra.mxu0 0
        %3826 = vmatprep.subr.bf16.mxu0 0
        %3827 = vmatpush1.bf16.msra.mxu0 0
        %3828 = vmatprep.subr.bf16.mxu0 0
        %3829 = vmatpush1.bf16.msra.mxu0 0
        %3830 = vmatprep.subr.bf16.mxu0 0
        %3831 = vmatpush1.bf16.msra.mxu0 0
        %3832 = vmatprep.subr.bf16.mxu0 0
        %3833 = vmatpush1.bf16.msra.mxu0 0
        %3834 = vmatprep.subr.bf16.mxu0 0
        %3835 = vmatpush1.bf16.msra.mxu0 0
        %3836 = vmatprep.subr.bf16.mxu0 0
        %3837 = vmatpush1.bf16.msra.mxu0 0
        %3838 = vmatprep.subr.bf16.mxu0 0
        %3839 = vmatpush1.bf16.msra.mxu0 0
        %3840 = vmatprep.subr.bf16.mxu0 0
        %3841 = vmatpush1.bf16.msra.mxu0 0
        %3842 = vmatprep.subr.bf16.mxu0 0
        %3843 = vmatpush1.bf16.msra.mxu0 0
        %3844 = vmatprep.subr.bf16.mxu0 0
        %3845 = vmatpush1.bf16.msra.mxu0 0
        %3846 = vmatprep.mubr.bf16.mxu0 0
        %3847 = vmatmul.mubr.bf16.gmra.mrb[0].mxu0 %v3812
        %v3848 = vpop.f32.mrb[0].mxu0
        %v3849 = vadd.f32 0.0, %v3848
        %v3850 = vpop.f32.mrb[0].mxu0
        %v3851 = vpop.f32.mrb[0].mxu0
        %v3852 = vadd.f32 0.0, %v3851
        %v3853 = vpop.f32.mrb[0].mxu0
        %3854 = vdwg.mxu0
        %3855 = vrot.lane.b32.xlu0 %v3492, 104
        %v3856 = vpop.permute.xlu0 %3855
        %3857 = vrot.lane.b32.xlu0 %v3492, 72
        %v3858 = vpop.permute.xlu0 %3857
        %v3860 = vsel %vm2595, %v3856, 0
        %v3863 = vsel %vm2595, %v3858, 0
        %3865 = vmatprep.subr.bf16.mxu0 0
        %3866 = vmatpush1.bf16.xpose.msra.mxu0 %v3863
        %3867 = vmatprep.subr.bf16.mxu0 0
        %3868 = vmatpush1.bf16.xpose.msra.mxu0 0
        %3869 = vmatprep.subr.bf16.mxu0 0
        %3870 = vmatpush1.bf16.xpose.msra.mxu0 0
        %3871 = vmatprep.subr.bf16.mxu0 0
        %3872 = vmatpush1.bf16.xpose.msra.mxu0 0
        %3873 = vmatprep.subr.bf16.mxu0 0
        %3874 = vmatpush1.bf16.xpose.msra.mxu0 0
        %3875 = vmatprep.subr.bf16.mxu0 0
        %3876 = vmatpush1.bf16.xpose.msra.mxu0 0
        %3877 = vmatprep.subr.bf16.mxu0 0
        %3878 = vmatpush1.bf16.xpose.msra.mxu0 0
        %3879 = vmatprep.subr.bf16.mxu0 0
        %3880 = vmatpush1.bf16.xpose.msra.mxu0 0
        %3881 = vmatprep.subr.bf16.mxu0 0
        %3882 = vmatpush1.bf16.xpose.msra.mxu0 0
        %3883 = vmatprep.subr.bf16.mxu0 0
        %3884 = vmatpush1.bf16.xpose.msra.mxu0 0
        %3885 = vmatprep.subr.bf16.mxu0 0
        %3886 = vmatpush1.bf16.xpose.msra.mxu0 0
        %3887 = vmatprep.subr.bf16.mxu0 0
        %3888 = vmatpush1.bf16.xpose.msra.mxu0 0
        %3889 = vmatprep.subr.bf16.mxu0 0
        %3890 = vmatpush1.bf16.xpose.msra.mxu0 0
        %3891 = vmatprep.subr.bf16.mxu0 0
        %3892 = vmatpush1.bf16.xpose.msra.mxu0 0
        %3893 = vmatprep.subr.bf16.mxu0 0
        %3894 = vmatpush1.bf16.xpose.msra.mxu0 0
        %3895 = vmatprep.subr.bf16.mxu0 0
        %3896 = vmatpush1.bf16.xpose.msra.mxu0 0
        %3897 = vmatprep.mubr.bf16.mxu0 0
        %3898 = vmatmul.mubr.bf16.gmra.mrb[0].mxu0 %v3860
        %v3899 = vpop.f32.mrb[0].mxu0
        %v3900 = vadd.f32 %v2517, %v3899
        %v3901 = vpop.f32.mrb[0].mxu0
        %v3902 = vpop.f32.mrb[0].mxu0
        %v3903 = vadd.f32 %v2517, %v3902
        %v3904 = vpop.f32.mrb[0].mxu0
        %3905 = vdwg.mxu0
        %v3906 = vsel %vm2643, %v3900, -inf
        %3907 = vmax.xlane.f32.xlu0 %v3906
        %v3908 = vpop.xlane.xlu0 %3907
        %v3909 = vsel %vm2643, %v3903, -inf
        %3910 = vmax.xlane.f32.xlu0 %v3909
        %v3911 = vpop.xlane.xlu0 %3910
        %v3912 = vsub.f32 %v3900, %v3908
        %v3913 = vsub.f32 %v3903, %v3911
        %v3914 = vmul.f32 %v3912, 1.442695
        %v3915 = vpow.pop %v3914
        %v3916 = vmul.f32 %v3913, 1.442695
        %v3917 = vpow.pop %v3916
        %v3918 = vsel %vm2643, %v3915, 0.0
        %3919 = vadd.xlane.f32.xlu0 %v3918
        %v3920 = vpop.xlane.xlu0 %3919
        %v3921 = vsel %vm2643, %v3917, 0.0
        %3922 = vadd.xlane.f32.xlu0 %v3921
        %v3923 = vpop.xlane.xlu0 %3922
        %v3924 = vrcp.pop %v3920
        %v3925 = vrcp.pop %v3923
        %v3926 = vmul.f32 %v3915, %v3924
        %v3927 = vmul.f32 %v3917, %v3925
        %v3928 = vpack.c.bf16 %v3927, %v3926
        %3929 = vrot.lane.b32.xlu0 %v3492, 40
        %v3930 = vpop.permute.xlu0 %3929
        %v3933 = vsel %vm2643, %v3928, 0
        %3935 = vmatprep.subr.bf16.mxu0 0
        %3936 = vmatpush1.bf16.msra.mxu0 %v3930
        %3937 = vmatprep.subr.bf16.mxu0 0
        %3938 = vmatpush1.bf16.msra.mxu0 0
        %3939 = vmatprep.subr.bf16.mxu0 0
        %3940 = vmatpush1.bf16.msra.mxu0 0
        %3941 = vmatprep.subr.bf16.mxu0 0
        %3942 = vmatpush1.bf16.msra.mxu0 0
        %3943 = vmatprep.subr.bf16.mxu0 0
        %3944 = vmatpush1.bf16.msra.mxu0 0
        %3945 = vmatprep.subr.bf16.mxu0 0
        %3946 = vmatpush1.bf16.msra.mxu0 0
        %3947 = vmatprep.subr.bf16.mxu0 0
        %3948 = vmatpush1.bf16.msra.mxu0 0
        %3949 = vmatprep.subr.bf16.mxu0 0
        %3950 = vmatpush1.bf16.msra.mxu0 0
        %3951 = vmatprep.subr.bf16.mxu0 0
        %3952 = vmatpush1.bf16.msra.mxu0 0
        %3953 = vmatprep.subr.bf16.mxu0 0
        %3954 = vmatpush1.bf16.msra.mxu0 0
        %3955 = vmatprep.subr.bf16.mxu0 0
        %3956 = vmatpush1.bf16.msra.mxu0 0
        %3957 = vmatprep.subr.bf16.mxu0 0
        %3958 = vmatpush1.bf16.msra.mxu0 0
        %3959 = vmatprep.subr.bf16.mxu0 0
        %3960 = vmatpush1.bf16.msra.mxu0 0
        %3961 = vmatprep.subr.bf16.mxu0 0
        %3962 = vmatpush1.bf16.msra.mxu0 0
        %3963 = vmatprep.subr.bf16.mxu0 0
        %3964 = vmatpush1.bf16.msra.mxu0 0
        %3965 = vmatprep.subr.bf16.mxu0 0
        %3966 = vmatpush1.bf16.msra.mxu0 0
        %3967 = vmatprep.mubr.bf16.mxu0 0
        %3968 = vmatmul.mubr.bf16.gmra.mrb[0].mxu0 %v3933
        %v3969 = vpop.f32.mrb[0].mxu0
        %v3970 = vadd.f32 0.0, %v3969
        %v3971 = vpop.f32.mrb[0].mxu0
        %v3972 = vpop.f32.mrb[0].mxu0
        %v3973 = vadd.f32 0.0, %v3972
        %v3974 = vpop.f32.mrb[0].mxu0
        %3975 = vdwg.mxu0
        %3978 = vrot.lane.b32.xlu0 %v3728, 8
        %v3979 = vpop.permute.xlu0 %3978
        %3980 = vrot.lane.b32.xlu0 %v3731, 8
        %v3981 = vpop.permute.xlu0 %3980
        %3986 = vrot.lane.b32.xlu0 %v3849, 16
        %v3987 = vpop.permute.xlu0 %3986
        %3988 = vrot.lane.b32.xlu0 %v3852, 16
        %v3989 = vpop.permute.xlu0 %3988
        %3994 = vrot.lane.b32.xlu0 %v3970, 24
        %v3995 = vpop.permute.xlu0 %3994
        %3996 = vrot.lane.b32.xlu0 %v3973, 24
        %v3997 = vpop.permute.xlu0 %3996
        %v4000 = vsel %vm2595, %v3607, %v3979
        %v4001 = vsel %vm2595, %v3610, %v3981
        %v4002 = vsel %vm2643, %v4000, %v3987
        %v4003 = vsel %vm2643, %v4001, %v3989
        %v4004 = vsel %vm3105, %v4002, %v3995
        %v4005 = vsel %vm3105, %v4003, %v3997
        %v4006 = vld [vmem:[%s33] sm:$0xf]
        %v4007 = vld [vmem:[%s33 + $0x4] sm:$0xf]
        %v4008 = vld [vmem:[%s33 + $0x8] sm:$0xf]
        %v4009 = vld [vmem:[%s33 + $0xc] sm:$0xf]
        %v4010 = vpack.c.bf16 %v4005, %v4004
        %v4011 = vld [vmem:[%s35] sm:$0x1]
        %v4013 = vlaneseq
        %v4014 = vshrl.u32 %v4013, 7
        %v4015 = vsub.s32 0, %v4014
        %v4016 = vrot.slane %v4011, %v4015
        %v4022 = vunpack.c.l.b16 %v4006
        %v4023 = vunpack.c.l.b16 %v4007
        %v4024 = vunpack.c.l.b16 %v4008
        %v4025 = vunpack.c.l.b16 %v4009
        %v4026 = vpack.c.b16 %v4023, %v4022
        %v4027 = vpack.c.b16 %v4025, %v4024
        %v4031 = vsel %vm2546, %v4010, 0
        %4033 = vmatprep.subr.bf16.mxu0 0
        %4034 = vmatpush1.bf16.msra.mxu0 %v4026
        %4035 = vmatprep.subr.bf16.mxu0 0
        %4036 = vmatpush1.bf16.msra.mxu0 %v4027
        %4037 = vmatprep.subr.bf16.mxu0 0
        %4038 = vmatpush1.bf16.msra.mxu0 0
        %4039 = vmatprep.subr.bf16.mxu0 0
        %4040 = vmatpush1.bf16.msra.mxu0 0
        %4041 = vmatprep.subr.bf16.mxu0 0
        %4042 = vmatpush1.bf16.msra.mxu0 0
        %4043 = vmatprep.subr.bf16.mxu0 0
        %4044 = vmatpush1.bf16.msra.mxu0 0
        %4045 = vmatprep.subr.bf16.mxu0 0
        %4046 = vmatpush1.bf16.msra.mxu0 0
        %4047 = vmatprep.subr.bf16.mxu0 0
        %4048 = vmatpush1.bf16.msra.mxu0 0
        %4049 = vmatprep.subr.bf16.mxu0 0
        %4050 = vmatpush1.bf16.msra.mxu0 0
        %4051 = vmatprep.subr.bf16.mxu0 0
        %4052 = vmatpush1.bf16.msra.mxu0 0
        %4053 = vmatprep.subr.bf16.mxu0 0
        %4054 = vmatpush1.bf16.msra.mxu0 0
        %4055 = vmatprep.subr.bf16.mxu0 0
        %4056 = vmatpush1.bf16.msra.mxu0 0
        %4057 = vmatprep.subr.bf16.mxu0 0
        %4058 = vmatpush1.bf16.msra.mxu0 0
        %4059 = vmatprep.subr.bf16.mxu0 0
        %4060 = vmatpush1.bf16.msra.mxu0 0
        %4061 = vmatprep.subr.bf16.mxu0 0
        %4062 = vmatpush1.bf16.msra.mxu0 0
        %4063 = vmatprep.subr.bf16.mxu0 0
        %4064 = vmatpush1.bf16.msra.mxu0 0
        %4065 = vmatprep.mubr.bf16.mxu0 0
        %4066 = vmatmul.mubr.bf16.gmra.mrb[0].mxu0 %v4031
        %v4067 = vpop.f32.mrb[0].mxu0
        %v4068 = vadd.f32 %v4016, %v4067
        %v4069 = vpop.f32.mrb[0].mxu0
        %v4070 = vpop.f32.mrb[0].mxu0
        %v4071 = vadd.f32 %v4016, %v4070
        %v4072 = vpop.f32.mrb[0].mxu0
        %4073 = vdwg.mxu0
        %v4074 = vadd.f32 %v4068, %v3422
        %v4075 = vadd.f32 %v4071, %v3423
        %v4076 = vld [vmem:[%s37] sm:$0x1]
        %v4077 = vld [vmem:[%s39] sm:$0x1]
        %v4078 = vsel %vm2546, %v4074, 0.0
        %4079 = vadd.xlane.f32.xlu0 %v4078
        %v4080 = vpop.xlane.xlu0 %4079
        %v4081 = vsel %vm2546, %v4075, 0.0
        %4082 = vadd.xlane.f32.xlu0 %v4081
        %v4083 = vpop.xlane.xlu0 %4082
        %v4084 = vmul.f32 %v4080, %v3186
        %v4085 = vmul.f32 %v4083, %v3186
        %v4086 = vsub.f32 %v4074, %v4084
        %v4087 = vsub.f32 %v4075, %v4085
        %v4088 = vmul.f32 %v4086, %v4086
        %v4089 = vmul.f32 %v4087, %v4087
        %v4090 = vsel %vm2546, %v4088, 0.0
        %4091 = vadd.xlane.f32.xlu0 %v4090
        %v4092 = vpop.xlane.xlu0 %4091
        %v4093 = vsel %vm2546, %v4089, 0.0
        %4094 = vadd.xlane.f32.xlu0 %v4093
        %v4095 = vpop.xlane.xlu0 %4094
        %v4096 = vmul.f32 %v4092, %v3186
        %v4097 = vmul.f32 %v4095, %v3186
        %v4098 = vadd.f32 %v4096, 1e-05
        %v4099 = vadd.f32 %v4097, 1e-05
        %v4100 = vrsqrt.pop %v4098
        %v4101 = vrsqrt.pop %v4099
        %v4102 = vmul.f32 %v4086, %v4100
        %v4103 = vmul.f32 %v4087, %v4101
        %v4105 = vlaneseq
        %v4106 = vshrl.u32 %v4105, 7
        %v4107 = vsub.s32 0, %v4106
        %v4108 = vrot.slane %v4076, %v4107
        %v4110 = vmul.f32 %v4102, %v4108
        %v4111 = vmul.f32 %v4103, %v4108
        %v4113 = vlaneseq
        %v4114 = vshrl.u32 %v4113, 7
        %v4115 = vsub.s32 0, %v4114
        %v4116 = vrot.slane %v4077, %v4115
        %v4118 = vadd.f32 %v4110, %v4116
        %v4119 = vadd.f32 %v4111, %v4116
        %v4120 = vld [vmem:[%s41] sm:$0xf]
        %v4121 = vld [vmem:[%s41 + $0x4] sm:$0xf]
        %v4122 = vld [vmem:[%s41 + $0x8] sm:$0xf]
        %v4123 = vld [vmem:[%s41 + $0xc] sm:$0xf]
        %v4124 = vpack.c.bf16 %v4119, %v4118
        %v4125 = vld [vmem:[%s43] sm:$0x1]
        %v4127 = vlaneseq
        %v4128 = vshrl.u32 %v4127, 7
        %v4129 = vsub.s32 0, %v4128
        %v4130 = vrot.slane %v4125, %v4129
        %v4136 = vunpack.c.l.b16 %v4120
        %v4137 = vunpack.c.l.b16 %v4121
        %v4138 = vunpack.c.l.b16 %v4122
        %v4139 = vunpack.c.l.b16 %v4123
        %v4140 = vpack.c.b16 %v4137, %v4136
        %v4141 = vpack.c.b16 %v4139, %v4138
        %v4145 = vsel %vm2546, %v4124, 0
        %4147 = vmatprep.subr.bf16.mxu0 0
        %4148 = vmatpush1.bf16.msra.mxu0 %v4140
        %4149 = vmatprep.subr.bf16.mxu0 0
        %4150 = vmatpush1.bf16.msra.mxu0 %v4141
        %4151 = vmatprep.subr.bf16.mxu0 0
        %4152 = vmatpush1.bf16.msra.mxu0 0
        %4153 = vmatprep.subr.bf16.mxu0 0
        %4154 = vmatpush1.bf16.msra.mxu0 0
        %4155 = vmatprep.subr.bf16.mxu0 0
        %4156 = vmatpush1.bf16.msra.mxu0 0
        %4157 = vmatprep.subr.bf16.mxu0 0
        %4158 = vmatpush1.bf16.msra.mxu0 0
        %4159 = vmatprep.subr.bf16.mxu0 0
        %4160 = vmatpush1.bf16.msra.mxu0 0
        %4161 = vmatprep.subr.bf16.mxu0 0
        %4162 = vmatpush1.bf16.msra.mxu0 0
        %4163 = vmatprep.subr.bf16.mxu0 0
        %4164 = vmatpush1.bf16.msra.mxu0 0
        %4165 = vmatprep.subr.bf16.mxu0 0
        %4166 = vmatpush1.bf16.msra.mxu0 0
        %4167 = vmatprep.subr.bf16.mxu0 0
        %4168 = vmatpush1.bf16.msra.mxu0 0
        %4169 = vmatprep.subr.bf16.mxu0 0
        %4170 = vmatpush1.bf16.msra.mxu0 0
        %4171 = vmatprep.subr.bf16.mxu0 0
        %4172 = vmatpush1.bf16.msra.mxu0 0
        %4173 = vmatprep.subr.bf16.mxu0 0
        %4174 = vmatpush1.bf16.msra.mxu0 0
        %4175 = vmatprep.subr.bf16.mxu0 0
        %4176 = vmatpush1.bf16.msra.mxu0 0
        %4177 = vmatprep.subr.bf16.mxu0 0
        %4178 = vmatpush1.bf16.msra.mxu0 0
        %4179 = vmatprep.mubr.bf16.mxu0 0
        %4180 = vmatmul.mubr.bf16.gmra.mrb[0].mxu0 %v4145
        %v4181 = vpop.f32.mrb[0].mxu0
        %v4182 = vadd.f32 %v4130, %v4181
        %v4183 = vpop.f32.mrb[0].mxu0
        %v4184 = vpop.f32.mrb[0].mxu0
        %v4185 = vadd.f32 %v4130, %v4184
        %v4186 = vpop.f32.mrb[0].mxu0
        %4187 = vdwg.mxu0
        %v4188 = vmax.f32 %v4182, 0.0
        %v4189 = vmax.f32 %v4185, 0.0
        %v4190 = vld [vmem:[%s45] sm:$0xf]
        %v4191 = vld [vmem:[%s45 + $0x4] sm:$0xf]
        %v4192 = vld [vmem:[%s45 + $0x8] sm:$0xf]
        %v4193 = vld [vmem:[%s45 + $0xc] sm:$0xf]
        %v4194 = vld [vmem:[%s45 + $0x10] sm:$0xf]
        %v4195 = vld [vmem:[%s45 + $0x14] sm:$0xf]
        %v4196 = vld [vmem:[%s45 + $0x18] sm:$0xf]
        %v4197 = vld [vmem:[%s45 + $0x1c] sm:$0xf]
        %v4198 = vpack.c.bf16 %v4189, %v4188
        %v4199 = vld [vmem:[%s47] sm:$0x1]
        %v4201 = vlaneseq
        %v4202 = vshrl.u32 %v4201, 7
        %v4203 = vsub.s32 0, %v4202
        %v4204 = vrot.slane %v4199, %v4203
        %v4214 = vunpack.c.l.b16 %v4190
        %v4215 = vunpack.c.l.b16 %v4191
        %v4216 = vunpack.c.l.b16 %v4192
        %v4217 = vunpack.c.l.b16 %v4193
        %v4218 = vunpack.c.l.b16 %v4194
        %v4219 = vunpack.c.l.b16 %v4195
        %v4220 = vunpack.c.l.b16 %v4196
        %v4221 = vunpack.c.l.b16 %v4197
        %v4222 = vpack.c.b16 %v4215, %v4214
        %v4223 = vpack.c.b16 %v4217, %v4216
        %v4224 = vpack.c.b16 %v4219, %v4218
        %v4225 = vpack.c.b16 %v4221, %v4220
        %v4231 = vsel %vm3333, %v4198, 0
        %4233 = vmatprep.subr.bf16.mxu0 0
        %4234 = vmatpush1.bf16.msra.mxu0 %v4222
        %4235 = vmatprep.subr.bf16.mxu0 0
        %4236 = vmatpush1.bf16.msra.mxu0 %v4223
        %4237 = vmatprep.subr.bf16.mxu0 0
        %4238 = vmatpush1.bf16.msra.mxu0 %v4224
        %4239 = vmatprep.subr.bf16.mxu0 0
        %4240 = vmatpush1.bf16.msra.mxu0 %v4225
        %4241 = vmatprep.subr.bf16.mxu0 0
        %4242 = vmatpush1.bf16.msra.mxu0 0
        %4243 = vmatprep.subr.bf16.mxu0 0
        %4244 = vmatpush1.bf16.msra.mxu0 0
        %4245 = vmatprep.subr.bf16.mxu0 0
        %4246 = vmatpush1.bf16.msra.mxu0 0
        %4247 = vmatprep.subr.bf16.mxu0 0
        %4248 = vmatpush1.bf16.msra.mxu0 0
        %4249 = vmatprep.subr.bf16.mxu0 0
        %4250 = vmatpush1.bf16.msra.mxu0 0
        %4251 = vmatprep.subr.bf16.mxu0 0
        %4252 = vmatpush1.bf16.msra.mxu0 0
        %4253 = vmatprep.subr.bf16.mxu0 0
        %4254 = vmatpush1.bf16.msra.mxu0 0
        %4255 = vmatprep.subr.bf16.mxu0 0
        %4256 = vmatpush1.bf16.msra.mxu0 0
        %4257 = vmatprep.subr.bf16.mxu0 0
        %4258 = vmatpush1.bf16.msra.mxu0 0
        %4259 = vmatprep.subr.bf16.mxu0 0
        %4260 = vmatpush1.bf16.msra.mxu0 0
        %4261 = vmatprep.subr.bf16.mxu0 0
        %4262 = vmatpush1.bf16.msra.mxu0 0
        %4263 = vmatprep.subr.bf16.mxu0 0
        %4264 = vmatpush1.bf16.msra.mxu0 0
        %4265 = vmatprep.mubr.bf16.mxu0 0
        %4266 = vmatmul.mubr.bf16.gmra.mrb[0].mxu0 %v4231
        %v4267 = vpop.f32.mrb[0].mxu0
        %v4268 = vadd.f32 %v4204, %v4267
        %v4269 = vpop.f32.mrb[0].mxu0
        %v4270 = vpop.f32.mrb[0].mxu0
        %v4271 = vadd.f32 %v4204, %v4270
        %v4272 = vpop.f32.mrb[0].mxu0
        %4273 = vdwg.mxu0
        %v4274 = vadd.f32 %v4268, %v4118
        %v4275 = vadd.f32 %v4271, %v4119
        %v4276 = vld [vmem:[%s49] sm:$0x1]
        %v4277 = vld [vmem:[%s51] sm:$0x1]
        %v4278 = vsel %vm2546, %v4274, 0.0
        %4279 = vadd.xlane.f32.xlu0 %v4278
        %v4280 = vpop.xlane.xlu0 %4279
        %v4281 = vsel %vm2546, %v4275, 0.0
        %4282 = vadd.xlane.f32.xlu0 %v4281
        %v4283 = vpop.xlane.xlu0 %4282
        %v4284 = vmul.f32 %v4280, %v3186
        %v4285 = vmul.f32 %v4283, %v3186
        %v4286 = vsub.f32 %v4274, %v4284
        %v4287 = vsub.f32 %v4275, %v4285
        %v4288 = vmul.f32 %v4286, %v4286
        %v4289 = vmul.f32 %v4287, %v4287
        %v4290 = vsel %vm2546, %v4288, 0.0
        %4291 = vadd.xlane.f32.xlu0 %v4290
        %v4292 = vpop.xlane.xlu0 %4291
        %v4293 = vsel %vm2546, %v4289, 0.0
        %4294 = vadd.xlane.f32.xlu0 %v4293
        %v4295 = vpop.xlane.xlu0 %4294
        %v4296 = vmul.f32 %v4292, %v3186
        %v4297 = vmul.f32 %v4295, %v3186
        %v4298 = vadd.f32 %v4296, 1e-05
        %v4299 = vadd.f32 %v4297, 1e-05
        %v4300 = vrsqrt.pop %v4298
        %v4301 = vrsqrt.pop %v4299
        %v4302 = vmul.f32 %v4286, %v4300
        %v4303 = vmul.f32 %v4287, %v4301
        %v4305 = vlaneseq
        %v4306 = vshrl.u32 %v4305, 7
        %v4307 = vsub.s32 0, %v4306
        %v4308 = vrot.slane %v4276, %v4307
        %v4310 = vmul.f32 %v4302, %v4308
        %v4311 = vmul.f32 %v4303, %v4308
        %v4313 = vlaneseq
        %v4314 = vshrl.u32 %v4313, 7
        %v4315 = vsub.s32 0, %v4314
        %v4316 = vrot.slane %v4277, %v4315
        %v4318 = vadd.f32 %v4310, %v4316
        %v4319 = vadd.f32 %v4311, %v4316
        %v4320 = vld [vmem:[#allocation2] sm:$0x1]
        %v4321 = vld [vmem:[#allocation4] sm:$0x1]
        %v4322 = vsel %vm2546, %v4318, 0.0
        %4323 = vadd.xlane.f32.xlu0 %v4322
        %v4324 = vpop.xlane.xlu0 %4323
        %v4325 = vsel %vm2546, %v4319, 0.0
        %4326 = vadd.xlane.f32.xlu0 %v4325
        %v4327 = vpop.xlane.xlu0 %4326
        %v4328 = vmul.f32 %v4324, %v3186
        %v4329 = vmul.f32 %v4327, %v3186
        %v4330 = vsub.f32 %v4318, %v4328
        %v4331 = vsub.f32 %v4319, %v4329
        %v4332 = vmul.f32 %v4330, %v4330
        %v4333 = vmul.f32 %v4331, %v4331
        %v4334 = vsel %vm2546, %v4332, 0.0
        %4335 = vadd.xlane.f32.xlu0 %v4334
        %v4336 = vpop.xlane.xlu0 %4335
        %v4337 = vsel %vm2546, %v4333, 0.0
        %4338 = vadd.xlane.f32.xlu0 %v4337
        %v4339 = vpop.xlane.xlu0 %4338
        %v4340 = vmul.f32 %v4336, %v3186
        %v4341 = vmul.f32 %v4339, %v3186
        %v4342 = vadd.f32 %v4340, 1e-05
        %v4343 = vadd.f32 %v4341, 1e-05
        %v4344 = vrsqrt.pop %v4342
        %v4345 = vrsqrt.pop %v4343
        %v4346 = vmul.f32 %v4330, %v4344
        %v4347 = vmul.f32 %v4331, %v4345
        %v4349 = vlaneseq
        %v4350 = vshrl.u32 %v4349, 7
        %v4351 = vsub.s32 0, %v4350
        %v4352 = vrot.slane %v4320, %v4351
        %v4354 = vmul.f32 %v4346, %v4352
        %v4355 = vmul.f32 %v4347, %v4352
        %v4357 = vlaneseq
        %v4358 = vshrl.u32 %v4357, 7
        %v4359 = vsub.s32 0, %v4358
        %v4360 = vrot.slane %v4321, %v4359
        %v4362 = vadd.f32 %v4354, %v4360
        %v4363 = vadd.f32 %v4355, %v4360
        %v4364 = vld [vmem:[%s57] sm:$0xf]
        %v4365 = vld [vmem:[%s57 + $0x4] sm:$0xf]
        %v4366 = vld [vmem:[%s57 + $0x8] sm:$0xf]
        %v4367 = vld [vmem:[%s57 + $0xc] sm:$0xf]
        %v4368 = vpack.c.bf16 %v2513, %v2513
        %v4369 = vld [vmem:[#allocation6] sm:$0x1]
        %v4371 = vlaneseq
        %v4372 = vshrl.u32 %v4371, 7
        %v4373 = vsub.s32 0, %v4372
        %v4374 = vrot.slane %v4369, %v4373
        %v4380 = vunpack.c.l.b16 %v4364
        %v4381 = vunpack.c.l.b16 %v4365
        %v4382 = vunpack.c.l.b16 %v4366
        %v4383 = vunpack.c.l.b16 %v4367
        %v4384 = vpack.c.b16 %v4381, %v4380
        %v4385 = vpack.c.b16 %v4383, %v4382
        %v4389 = vsel %vm2546, %v4368, 0
        %4391 = vmatprep.subr.bf16.mxu0 0
        %4392 = vmatpush1.bf16.msra.mxu0 %v4384
        %4393 = vmatprep.subr.bf16.mxu0 0
        %4394 = vmatpush1.bf16.msra.mxu0 %v4385
        %4395 = vmatprep.subr.bf16.mxu0 0
        %4396 = vmatpush1.bf16.msra.mxu0 0
        %4397 = vmatprep.subr.bf16.mxu0 0
        %4398 = vmatpush1.bf16.msra.mxu0 0
        %4399 = vmatprep.subr.bf16.mxu0 0
        %4400 = vmatpush1.bf16.msra.mxu0 0
        %4401 = vmatprep.subr.bf16.mxu0 0
        %4402 = vmatpush1.bf16.msra.mxu0 0
        %4403 = vmatprep.subr.bf16.mxu0 0
        %4404 = vmatpush1.bf16.msra.mxu0 0
        %4405 = vmatprep.subr.bf16.mxu0 0
        %4406 = vmatpush1.bf16.msra.mxu0 0
        %4407 = vmatprep.subr.bf16.mxu0 0
        %4408 = vmatpush1.bf16.msra.mxu0 0
        %4409 = vmatprep.subr.bf16.mxu0 0
        %4410 = vmatpush1.bf16.msra.mxu0 0
        %4411 = vmatprep.subr.bf16.mxu0 0
        %4412 = vmatpush1.bf16.msra.mxu0 0
        %4413 = vmatprep.subr.bf16.mxu0 0
        %4414 = vmatpush1.bf16.msra.mxu0 0
        %4415 = vmatprep.subr.bf16.mxu0 0
        %4416 = vmatpush1.bf16.msra.mxu0 0
        %4417 = vmatprep.subr.bf16.mxu0 0
        %4418 = vmatpush1.bf16.msra.mxu0 0
        %4419 = vmatprep.subr.bf16.mxu0 0
        %4420 = vmatpush1.bf16.msra.mxu0 0
        %4421 = vmatprep.subr.bf16.mxu0 0
        %4422 = vmatpush1.bf16.msra.mxu0 0
        %4423 = vmatprep.mubr.bf16.mxu0 0
        %4424 = vmatmul.mubr.bf16.gmra.mrb[0].mxu0 %v4389
        %v4425 = vpop.f32.mrb[0].mxu0
        %v4426 = vadd.f32 %v4374, %v4425
        %v4427 = vpop.f32.mrb[0].mxu0
        %v4428 = vpop.f32.mrb[0].mxu0
        %v4429 = vpop.f32.mrb[0].mxu0
        %4430 = vdwg.mxu0
        %v4431 = vpack.c.bf16 %v4426, %v4426
        %4433 = vrot.lane.b32.xlu0 %v4431, 96
        %v4434 = vpop.permute.xlu0 %4433
        %v4436 = vsel %vm2595, %v4431, 0
        %v4439 = vsel %vm2595, %v4434, 0
        %4441 = vmatprep.subr.bf16.mxu0 0
        %4442 = vmatpush1.bf16.xpose.msra.mxu0 %v4439
        %4443 = vmatprep.subr.bf16.mxu0 0
        %4444 = vmatpush1.bf16.xpose.msra.mxu0 0
        %4445 = vmatprep.subr.bf16.mxu0 0
        %4446 = vmatpush1.bf16.xpose.msra.mxu0 0
        %4447 = vmatprep.subr.bf16.mxu0 0
        %4448 = vmatpush1.bf16.xpose.msra.mxu0 0
        %4449 = vmatprep.subr.bf16.mxu0 0
        %4450 = vmatpush1.bf16.xpose.msra.mxu0 0
        %4451 = vmatprep.subr.bf16.mxu0 0
        %4452 = vmatpush1.bf16.xpose.msra.mxu0 0
        %4453 = vmatprep.subr.bf16.mxu0 0
        %4454 = vmatpush1.bf16.xpose.msra.mxu0 0
        %4455 = vmatprep.subr.bf16.mxu0 0
        %4456 = vmatpush1.bf16.xpose.msra.mxu0 0
        %4457 = vmatprep.subr.bf16.mxu0 0
        %4458 = vmatpush1.bf16.xpose.msra.mxu0 0
        %4459 = vmatprep.subr.bf16.mxu0 0
        %4460 = vmatpush1.bf16.xpose.msra.mxu0 0
        %4461 = vmatprep.subr.bf16.mxu0 0
        %4462 = vmatpush1.bf16.xpose.msra.mxu0 0
        %4463 = vmatprep.subr.bf16.mxu0 0
        %4464 = vmatpush1.bf16.xpose.msra.mxu0 0
        %4465 = vmatprep.subr.bf16.mxu0 0
        %4466 = vmatpush1.bf16.xpose.msra.mxu0 0
        %4467 = vmatprep.subr.bf16.mxu0 0
        %4468 = vmatpush1.bf16.xpose.msra.mxu0 0
        %4469 = vmatprep.subr.bf16.mxu0 0
        %4470 = vmatpush1.bf16.xpose.msra.mxu0 0
        %4471 = vmatprep.subr.bf16.mxu0 0
        %4472 = vmatpush1.bf16.xpose.msra.mxu0 0
        %4473 = vmatprep.mubr.bf16.mxu0 0
        %4474 = vmatmul.mubr.bf16.gmra.mrb[0].mxu0 %v4436
        %v4475 = vpop.f32.mrb[0].mxu0
        %v4476 = vadd.f32 %v2521, %v4475
        %v4477 = vpop.f32.mrb[0].mxu0
        %v4478 = vpop.f32.mrb[0].mxu0
        %v4479 = vpop.f32.mrb[0].mxu0
        %4480 = vdwg.mxu0
        %v4481 = vsel %vm2595, %v4476, -inf
        %4482 = vmax.xlane.f32.xlu0 %v4481
        %v4483 = vpop.xlane.xlu0 %4482
        %v4484 = vsub.f32 %v4476, %v4483
        %v4485 = vmul.f32 %v4484, 1.442695
        %v4486 = vpow.pop %v4485
        %v4487 = vsel %vm2595, %v4486, 0.0
        %4488 = vadd.xlane.f32.xlu0 %v4487
        %v4489 = vpop.xlane.xlu0 %4488
        %v4490 = vrcp.pop %v4489
        %v4491 = vmul.f32 %v4486, %v4490
        %v4492 = vpack.c.bf16 %v4491, %v4491
        %4493 = vrot.lane.b32.xlu0 %v4431, 64
        %v4494 = vpop.permute.xlu0 %4493
        %v4496 = vsel %vm2595, %v4492, 0
        %vm4498 = vcmask 1043456
        %v4500 = vsel %vm4498, %v4494, 0
        %4502 = vmatprep.subr.bf16.mxu0 0
        %4503 = vmatpush1.bf16.msra.mxu0 %v4500
        %4504 = vmatprep.subr.bf16.mxu0 0
        %4505 = vmatpush1.bf16.msra.mxu0 0
        %4506 = vmatprep.subr.bf16.mxu0 0
        %4507 = vmatpush1.bf16.msra.mxu0 0
        %4508 = vmatprep.subr.bf16.mxu0 0
        %4509 = vmatpush1.bf16.msra.mxu0 0
        %4510 = vmatprep.subr.bf16.mxu0 0
        %4511 = vmatpush1.bf16.msra.mxu0 0
        %4512 = vmatprep.subr.bf16.mxu0 0
        %4513 = vmatpush1.bf16.msra.mxu0 0
        %4514 = vmatprep.subr.bf16.mxu0 0
        %4515 = vmatpush1.bf16.msra.mxu0 0
        %4516 = vmatprep.subr.bf16.mxu0 0
        %4517 = vmatpush1.bf16.msra.mxu0 0
        %4518 = vmatprep.subr.bf16.mxu0 0
        %4519 = vmatpush1.bf16.msra.mxu0 0
        %4520 = vmatprep.subr.bf16.mxu0 0
        %4521 = vmatpush1.bf16.msra.mxu0 0
        %4522 = vmatprep.subr.bf16.mxu0 0
        %4523 = vmatpush1.bf16.msra.mxu0 0
        %4524 = vmatprep.subr.bf16.mxu0 0
        %4525 = vmatpush1.bf16.msra.mxu0 0
        %4526 = vmatprep.subr.bf16.mxu0 0
        %4527 = vmatpush1.bf16.msra.mxu0 0
        %4528 = vmatprep.subr.bf16.mxu0 0
        %4529 = vmatpush1.bf16.msra.mxu0 0
        %4530 = vmatprep.subr.bf16.mxu0 0
        %4531 = vmatpush1.bf16.msra.mxu0 0
        %4532 = vmatprep.subr.bf16.mxu0 0
        %4533 = vmatpush1.bf16.msra.mxu0 0
        %4534 = vmatprep.mubr.bf16.mxu0 0
        %4535 = vmatmul.mubr.bf16.gmra.mrb[0].mxu0 %v4496
        %v4536 = vpop.f32.mrb[0].mxu0
        %v4537 = vadd.f32 0.0, %v4536
        %v4538 = vpop.f32.mrb[0].mxu0
        %v4539 = vpop.f32.mrb[0].mxu0
        %v4540 = vpop.f32.mrb[0].mxu0
        %4541 = vdwg.mxu0
        %4542 = vrot.lane.b32.xlu0 %v4431, 120
        %v4543 = vpop.permute.xlu0 %4542
        %4544 = vrot.lane.b32.xlu0 %v4431, 88
        %v4545 = vpop.permute.xlu0 %4544
        %v4547 = vsel %vm2595, %v4543, 0
        %v4550 = vsel %vm2595, %v4545, 0
        %4552 = vmatprep.subr.bf16.mxu0 0
        %4553 = vmatpush1.bf16.xpose.msra.mxu0 %v4550
        %4554 = vmatprep.subr.bf16.mxu0 0
        %4555 = vmatpush1.bf16.xpose.msra.mxu0 0
        %4556 = vmatprep.subr.bf16.mxu0 0
        %4557 = vmatpush1.bf16.xpose.msra.mxu0 0
        %4558 = vmatprep.subr.bf16.mxu0 0
        %4559 = vmatpush1.bf16.xpose.msra.mxu0 0
        %4560 = vmatprep.subr.bf16.mxu0 0
        %4561 = vmatpush1.bf16.xpose.msra.mxu0 0
        %4562 = vmatprep.subr.bf16.mxu0 0
        %4563 = vmatpush1.bf16.xpose.msra.mxu0 0
        %4564 = vmatprep.subr.bf16.mxu0 0
        %4565 = vmatpush1.bf16.xpose.msra.mxu0 0
        %4566 = vmatprep.subr.bf16.mxu0 0
        %4567 = vmatpush1.bf16.xpose.msra.mxu0 0
        %4568 = vmatprep.subr.bf16.mxu0 0
        %4569 = vmatpush1.bf16.xpose.msra.mxu0 0
        %4570 = vmatprep.subr.bf16.mxu0 0
        %4571 = vmatpush1.bf16.xpose.msra.mxu0 0
        %4572 = vmatprep.subr.bf16.mxu0 0
        %4573 = vmatpush1.bf16.xpose.msra.mxu0 0
        %4574 = vmatprep.subr.bf16.mxu0 0
        %4575 = vmatpush1.bf16.xpose.msra.mxu0 0
        %4576 = vmatprep.subr.bf16.mxu0 0
        %4577 = vmatpush1.bf16.xpose.msra.mxu0 0
        %4578 = vmatprep.subr.bf16.mxu0 0
        %4579 = vmatpush1.bf16.xpose.msra.mxu0 0
        %4580 = vmatprep.subr.bf16.mxu0 0
        %4581 = vmatpush1.bf16.xpose.msra.mxu0 0
        %4582 = vmatprep.subr.bf16.mxu0 0
        %4583 = vmatpush1.bf16.xpose.msra.mxu0 0
        %4584 = vmatprep.mubr.bf16.mxu0 0
        %4585 = vmatmul.mubr.bf16.gmra.mrb[0].mxu0 %v4547
        %v4586 = vpop.f32.mrb[0].mxu0
        %v4587 = vadd.f32 %v2521, %v4586
        %v4588 = vpop.f32.mrb[0].mxu0
        %v4589 = vpop.f32.mrb[0].mxu0
        %v4590 = vpop.f32.mrb[0].mxu0
        %4591 = vdwg.mxu0
        %v4592 = vsel %vm2595, %v4587, -inf
        %4593 = vmax.xlane.f32.xlu0 %v4592
        %v4594 = vpop.xlane.xlu0 %4593
        %v4595 = vsub.f32 %v4587, %v4594
        %v4596 = vmul.f32 %v4595, 1.442695
        %v4597 = vpow.pop %v4596
        %v4598 = vsel %vm2595, %v4597, 0.0
        %4599 = vadd.xlane.f32.xlu0 %v4598
        %v4600 = vpop.xlane.xlu0 %4599
        %v4601 = vrcp.pop %v4600
        %v4602 = vmul.f32 %v4597, %v4601
        %v4603 = vpack.c.bf16 %v4602, %v4602
        %4604 = vrot.lane.b32.xlu0 %v4431, 56
        %v4605 = vpop.permute.xlu0 %4604
        %v4607 = vsel %vm2595, %v4603, 0
        %v4610 = vsel %vm4498, %v4605, 0
        %4612 = vmatprep.subr.bf16.mxu0 0
        %4613 = vmatpush1.bf16.msra.mxu0 %v4610
        %4614 = vmatprep.subr.bf16.mxu0 0
        %4615 = vmatpush1.bf16.msra.mxu0 0
        %4616 = vmatprep.subr.bf16.mxu0 0
        %4617 = vmatpush1.bf16.msra.mxu0 0
        %4618 = vmatprep.subr.bf16.mxu0 0
        %4619 = vmatpush1.bf16.msra.mxu0 0
        %4620 = vmatprep.subr.bf16.mxu0 0
        %4621 = vmatpush1.bf16.msra.mxu0 0
        %4622 = vmatprep.subr.bf16.mxu0 0
        %4623 = vmatpush1.bf16.msra.mxu0 0
        %4624 = vmatprep.subr.bf16.mxu0 0
        %4625 = vmatpush1.bf16.msra.mxu0 0
        %4626 = vmatprep.subr.bf16.mxu0 0
        %4627 = vmatpush1.bf16.msra.mxu0 0
        %4628 = vmatprep.subr.bf16.mxu0 0
        %4629 = vmatpush1.bf16.msra.mxu0 0
        %4630 = vmatprep.subr.bf16.mxu0 0
        %4631 = vmatpush1.bf16.msra.mxu0 0
        %4632 = vmatprep.subr.bf16.mxu0 0
        %4633 = vmatpush1.bf16.msra.mxu0 0
        %4634 = vmatprep.subr.bf16.mxu0 0
        %4635 = vmatpush1.bf16.msra.mxu0 0
        %4636 = vmatprep.subr.bf16.mxu0 0
        %4637 = vmatpush1.bf16.msra.mxu0 0
        %4638 = vmatprep.subr.bf16.mxu0 0
        %4639 = vmatpush1.bf16.msra.mxu0 0
        %4640 = vmatprep.subr.bf16.mxu0 0
        %4641 = vmatpush1.bf16.msra.mxu0 0
        %4642 = vmatprep.subr.bf16.mxu0 0
        %4643 = vmatpush1.bf16.msra.mxu0 0
        %4644 = vmatprep.mubr.bf16.mxu0 0
        %4645 = vmatmul.mubr.bf16.gmra.mrb[0].mxu0 %v4607
        %v4646 = vpop.f32.mrb[0].mxu0
        %v4647 = vadd.f32 0.0, %v4646
        %v4648 = vpop.f32.mrb[0].mxu0
        %v4649 = vpop.f32.mrb[0].mxu0
        %v4650 = vpop.f32.mrb[0].mxu0
        %4651 = vdwg.mxu0
        %4652 = vrot.lane.b32.xlu0 %v4431, 112
        %v4653 = vpop.permute.xlu0 %4652
        %4654 = vrot.lane.b32.xlu0 %v4431, 80
        %v4655 = vpop.permute.xlu0 %4654
        %v4657 = vsel %vm2595, %v4653, 0
        %v4660 = vsel %vm2595, %v4655, 0
        %4662 = vmatprep.subr.bf16.mxu0 0
        %4663 = vmatpush1.bf16.xpose.msra.mxu0 %v4660
        %4664 = vmatprep.subr.bf16.mxu0 0
        %4665 = vmatpush1.bf16.xpose.msra.mxu0 0
        %4666 = vmatprep.subr.bf16.mxu0 0
        %4667 = vmatpush1.bf16.xpose.msra.mxu0 0
        %4668 = vmatprep.subr.bf16.mxu0 0
        %4669 = vmatpush1.bf16.xpose.msra.mxu0 0
        %4670 = vmatprep.subr.bf16.mxu0 0
        %4671 = vmatpush1.bf16.xpose.msra.mxu0 0
        %4672 = vmatprep.subr.bf16.mxu0 0
        %4673 = vmatpush1.bf16.xpose.msra.mxu0 0
        %4674 = vmatprep.subr.bf16.mxu0 0
        %4675 = vmatpush1.bf16.xpose.msra.mxu0 0
        %4676 = vmatprep.subr.bf16.mxu0 0
        %4677 = vmatpush1.bf16.xpose.msra.mxu0 0
        %4678 = vmatprep.subr.bf16.mxu0 0
        %4679 = vmatpush1.bf16.xpose.msra.mxu0 0
        %4680 = vmatprep.subr.bf16.mxu0 0
        %4681 = vmatpush1.bf16.xpose.msra.mxu0 0
        %4682 = vmatprep.subr.bf16.mxu0 0
        %4683 = vmatpush1.bf16.xpose.msra.mxu0 0
        %4684 = vmatprep.subr.bf16.mxu0 0
        %4685 = vmatpush1.bf16.xpose.msra.mxu0 0
        %4686 = vmatprep.subr.bf16.mxu0 0
        %4687 = vmatpush1.bf16.xpose.msra.mxu0 0
        %4688 = vmatprep.subr.bf16.mxu0 0
        %4689 = vmatpush1.bf16.xpose.msra.mxu0 0
        %4690 = vmatprep.subr.bf16.mxu0 0
        %4691 = vmatpush1.bf16.xpose.msra.mxu0 0
        %4692 = vmatprep.subr.bf16.mxu0 0
        %4693 = vmatpush1.bf16.xpose.msra.mxu0 0
        %4694 = vmatprep.mubr.bf16.mxu0 0
        %4695 = vmatmul.mubr.bf16.gmra.mrb[0].mxu0 %v4657
        %v4696 = vpop.f32.mrb[0].mxu0
        %v4697 = vadd.f32 %v2521, %v4696
        %v4698 = vpop.f32.mrb[0].mxu0
        %v4699 = vpop.f32.mrb[0].mxu0
        %v4700 = vpop.f32.mrb[0].mxu0
        %4701 = vdwg.mxu0
        %v4702 = vsel %vm2595, %v4697, -inf
        %4703 = vmax.xlane.f32.xlu0 %v4702
        %v4704 = vpop.xlane.xlu0 %4703
        %v4705 = vsub.f32 %v4697, %v4704
        %v4706 = vmul.f32 %v4705, 1.442695
        %v4707 = vpow.pop %v4706
        %v4708 = vsel %vm2595, %v4707, 0.0
        %4709 = vadd.xlane.f32.xlu0 %v4708
        %v4710 = vpop.xlane.xlu0 %4709
        %v4711 = vrcp.pop %v4710
        %v4712 = vmul.f32 %v4707, %v4711
        %v4713 = vpack.c.bf16 %v4712, %v4712
        %4714 = vrot.lane.b32.xlu0 %v4431, 48
        %v4715 = vpop.permute.xlu0 %4714
        %v4717 = vsel %vm2595, %v4713, 0
        %v4720 = vsel %vm4498, %v4715, 0
        %4722 = vmatprep.subr.bf16.mxu0 0
        %4723 = vmatpush1.bf16.msra.mxu0 %v4720
        %4724 = vmatprep.subr.bf16.mxu0 0
        %4725 = vmatpush1.bf16.msra.mxu0 0
        %4726 = vmatprep.subr.bf16.mxu0 0
        %4727 = vmatpush1.bf16.msra.mxu0 0
        %4728 = vmatprep.subr.bf16.mxu0 0
        %4729 = vmatpush1.bf16.msra.mxu0 0
        %4730 = vmatprep.subr.bf16.mxu0 0
        %4731 = vmatpush1.bf16.msra.mxu0 0
        %4732 = vmatprep.subr.bf16.mxu0 0
        %4733 = vmatpush1.bf16.msra.mxu0 0
        %4734 = vmatprep.subr.bf16.mxu0 0
        %4735 = vmatpush1.bf16.msra.mxu0 0
        %4736 = vmatprep.subr.bf16.mxu0 0
        %4737 = vmatpush1.bf16.msra.mxu0 0
        %4738 = vmatprep.subr.bf16.mxu0 0
        %4739 = vmatpush1.bf16.msra.mxu0 0
        %4740 = vmatprep.subr.bf16.mxu0 0
        %4741 = vmatpush1.bf16.msra.mxu0 0
        %4742 = vmatprep.subr.bf16.mxu0 0
        %4743 = vmatpush1.bf16.msra.mxu0 0
        %4744 = vmatprep.subr.bf16.mxu0 0
        %4745 = vmatpush1.bf16.msra.mxu0 0
        %4746 = vmatprep.subr.bf16.mxu0 0
        %4747 = vmatpush1.bf16.msra.mxu0 0
        %4748 = vmatprep.subr.bf16.mxu0 0
        %4749 = vmatpush1.bf16.msra.mxu0 0
        %4750 = vmatprep.subr.bf16.mxu0 0
        %4751 = vmatpush1.bf16.msra.mxu0 0
        %4752 = vmatprep.subr.bf16.mxu0 0
        %4753 = vmatpush1.bf16.msra.mxu0 0
        %4754 = vmatprep.mubr.bf16.mxu0 0
        %4755 = vmatmul.mubr.bf16.gmra.mrb[0].mxu0 %v4717
        %v4756 = vpop.f32.mrb[0].mxu0
        %v4757 = vadd.f32 0.0, %v4756
        %v4758 = vpop.f32.mrb[0].mxu0
        %v4759 = vpop.f32.mrb[0].mxu0
        %v4760 = vpop.f32.mrb[0].mxu0
        %4761 = vdwg.mxu0
        %4762 = vrot.lane.b32.xlu0 %v4431, 104
        %v4763 = vpop.permute.xlu0 %4762
        %4764 = vrot.lane.b32.xlu0 %v4431, 72
        %v4765 = vpop.permute.xlu0 %4764
        %v4767 = vsel %vm2595, %v4763, 0
        %v4770 = vsel %vm2595, %v4765, 0
        %4772 = vmatprep.subr.bf16.mxu0 0
        %4773 = vmatpush1.bf16.xpose.msra.mxu0 %v4770
        %4774 = vmatprep.subr.bf16.mxu0 0
        %4775 = vmatpush1.bf16.xpose.msra.mxu0 0
        %4776 = vmatprep.subr.bf16.mxu0 0
        %4777 = vmatpush1.bf16.xpose.msra.mxu0 0
        %4778 = vmatprep.subr.bf16.mxu0 0
        %4779 = vmatpush1.bf16.xpose.msra.mxu0 0
        %4780 = vmatprep.subr.bf16.mxu0 0
        %4781 = vmatpush1.bf16.xpose.msra.mxu0 0
        %4782 = vmatprep.subr.bf16.mxu0 0
        %4783 = vmatpush1.bf16.xpose.msra.mxu0 0
        %4784 = vmatprep.subr.bf16.mxu0 0
        %4785 = vmatpush1.bf16.xpose.msra.mxu0 0
        %4786 = vmatprep.subr.bf16.mxu0 0
        %4787 = vmatpush1.bf16.xpose.msra.mxu0 0
        %4788 = vmatprep.subr.bf16.mxu0 0
        %4789 = vmatpush1.bf16.xpose.msra.mxu0 0
        %4790 = vmatprep.subr.bf16.mxu0 0
        %4791 = vmatpush1.bf16.xpose.msra.mxu0 0
        %4792 = vmatprep.subr.bf16.mxu0 0
        %4793 = vmatpush1.bf16.xpose.msra.mxu0 0
        %4794 = vmatprep.subr.bf16.mxu0 0
        %4795 = vmatpush1.bf16.xpose.msra.mxu0 0
        %4796 = vmatprep.subr.bf16.mxu0 0
        %4797 = vmatpush1.bf16.xpose.msra.mxu0 0
        %4798 = vmatprep.subr.bf16.mxu0 0
        %4799 = vmatpush1.bf16.xpose.msra.mxu0 0
        %4800 = vmatprep.subr.bf16.mxu0 0
        %4801 = vmatpush1.bf16.xpose.msra.mxu0 0
        %4802 = vmatprep.subr.bf16.mxu0 0
        %4803 = vmatpush1.bf16.xpose.msra.mxu0 0
        %4804 = vmatprep.mubr.bf16.mxu0 0
        %4805 = vmatmul.mubr.bf16.gmra.mrb[0].mxu0 %v4767
        %v4806 = vpop.f32.mrb[0].mxu0
        %v4807 = vadd.f32 %v2521, %v4806
        %v4808 = vpop.f32.mrb[0].mxu0
        %v4809 = vpop.f32.mrb[0].mxu0
        %v4810 = vpop.f32.mrb[0].mxu0
        %4811 = vdwg.mxu0
        %v4812 = vsel %vm2595, %v4807, -inf
        %4813 = vmax.xlane.f32.xlu0 %v4812
        %v4814 = vpop.xlane.xlu0 %4813
        %v4815 = vsub.f32 %v4807, %v4814
        %v4816 = vmul.f32 %v4815, 1.442695
        %v4817 = vpow.pop %v4816
        %v4818 = vsel %vm2595, %v4817, 0.0
        %4819 = vadd.xlane.f32.xlu0 %v4818
        %v4820 = vpop.xlane.xlu0 %4819
        %v4821 = vrcp.pop %v4820
        %v4822 = vmul.f32 %v4817, %v4821
        %v4823 = vpack.c.bf16 %v4822, %v4822
        %4824 = vrot.lane.b32.xlu0 %v4431, 40
        %v4825 = vpop.permute.xlu0 %4824
        %v4827 = vsel %vm2595, %v4823, 0
        %v4830 = vsel %vm4498, %v4825, 0
        %4832 = vmatprep.subr.bf16.mxu0 0
        %4833 = vmatpush1.bf16.msra.mxu0 %v4830
        %4834 = vmatprep.subr.bf16.mxu0 0
        %4835 = vmatpush1.bf16.msra.mxu0 0
        %4836 = vmatprep.subr.bf16.mxu0 0
        %4837 = vmatpush1.bf16.msra.mxu0 0
        %4838 = vmatprep.subr.bf16.mxu0 0
        %4839 = vmatpush1.bf16.msra.mxu0 0
        %4840 = vmatprep.subr.bf16.mxu0 0
        %4841 = vmatpush1.bf16.msra.mxu0 0
        %4842 = vmatprep.subr.bf16.mxu0 0
        %4843 = vmatpush1.bf16.msra.mxu0 0
        %4844 = vmatprep.subr.bf16.mxu0 0
        %4845 = vmatpush1.bf16.msra.mxu0 0
        %4846 = vmatprep.subr.bf16.mxu0 0
        %4847 = vmatpush1.bf16.msra.mxu0 0
        %4848 = vmatprep.subr.bf16.mxu0 0
        %4849 = vmatpush1.bf16.msra.mxu0 0
        %4850 = vmatprep.subr.bf16.mxu0 0
        %4851 = vmatpush1.bf16.msra.mxu0 0
        %4852 = vmatprep.subr.bf16.mxu0 0
        %4853 = vmatpush1.bf16.msra.mxu0 0
        %4854 = vmatprep.subr.bf16.mxu0 0
        %4855 = vmatpush1.bf16.msra.mxu0 0
        %4856 = vmatprep.subr.bf16.mxu0 0
        %4857 = vmatpush1.bf16.msra.mxu0 0
        %4858 = vmatprep.subr.bf16.mxu0 0
        %4859 = vmatpush1.bf16.msra.mxu0 0
        %4860 = vmatprep.subr.bf16.mxu0 0
        %4861 = vmatpush1.bf16.msra.mxu0 0
        %4862 = vmatprep.subr.bf16.mxu0 0
        %4863 = vmatpush1.bf16.msra.mxu0 0
        %4864 = vmatprep.mubr.bf16.mxu0 0
        %4865 = vmatmul.mubr.bf16.gmra.mrb[0].mxu0 %v4827
        %v4866 = vpop.f32.mrb[0].mxu0
        %v4867 = vadd.f32 0.0, %v4866
        %v4868 = vpop.f32.mrb[0].mxu0
        %v4869 = vpop.f32.mrb[0].mxu0
        %v4870 = vpop.f32.mrb[0].mxu0
        %4871 = vdwg.mxu0
        %4873 = vrot.lane.b32.xlu0 %v4647, 8
        %v4874 = vpop.permute.xlu0 %4873
        %4877 = vrot.lane.b32.xlu0 %v4757, 16
        %v4878 = vpop.permute.xlu0 %4877
        %4881 = vrot.lane.b32.xlu0 %v4867, 24
        %v4882 = vpop.permute.xlu0 %4881
        %v4884 = vsel %vm2595, %v4537, %v4874
        %v4885 = vsel %vm2643, %v4884, %v4878
        %v4886 = vsel %vm3105, %v4885, %v4882
        %v4887 = vld [vmem:[%s61] sm:$0xf]
        %v4888 = vld [vmem:[%s61 + $0x4] sm:$0xf]
        %v4889 = vld [vmem:[%s61 + $0x8] sm:$0xf]
        %v4890 = vld [vmem:[%s61 + $0xc] sm:$0xf]
        %v4891 = vpack.c.bf16 %v4886, %v4886
        %v4892 = vld [vmem:[#allocation7] sm:$0x1]
        %v4894 = vlaneseq
        %v4895 = vshrl.u32 %v4894, 7
        %v4896 = vsub.s32 0, %v4895
        %v4897 = vrot.slane %v4892, %v4896
        %v4903 = vunpack.c.l.b16 %v4887
        %v4904 = vunpack.c.l.b16 %v4888
        %v4905 = vunpack.c.l.b16 %v4889
        %v4906 = vunpack.c.l.b16 %v4890
        %v4907 = vpack.c.b16 %v4904, %v4903
        %v4908 = vpack.c.b16 %v4906, %v4905
        %v4912 = vsel %vm2546, %v4891, 0
        %4914 = vmatprep.subr.bf16.mxu0 0
        %4915 = vmatpush1.bf16.msra.mxu0 %v4907
        %4916 = vmatprep.subr.bf16.mxu0 0
        %4917 = vmatpush1.bf16.msra.mxu0 %v4908
        %4918 = vmatprep.subr.bf16.mxu0 0
        %4919 = vmatpush1.bf16.msra.mxu0 0
        %4920 = vmatprep.subr.bf16.mxu0 0
        %4921 = vmatpush1.bf16.msra.mxu0 0
        %4922 = vmatprep.subr.bf16.mxu0 0
        %4923 = vmatpush1.bf16.msra.mxu0 0
        %4924 = vmatprep.subr.bf16.mxu0 0
        %4925 = vmatpush1.bf16.msra.mxu0 0
        %4926 = vmatprep.subr.bf16.mxu0 0
        %4927 = vmatpush1.bf16.msra.mxu0 0
        %4928 = vmatprep.subr.bf16.mxu0 0
        %4929 = vmatpush1.bf16.msra.mxu0 0
        %4930 = vmatprep.subr.bf16.mxu0 0
        %4931 = vmatpush1.bf16.msra.mxu0 0
        %4932 = vmatprep.subr.bf16.mxu0 0
        %4933 = vmatpush1.bf16.msra.mxu0 0
        %4934 = vmatprep.subr.bf16.mxu0 0
        %4935 = vmatpush1.bf16.msra.mxu0 0
        %4936 = vmatprep.subr.bf16.mxu0 0
        %4937 = vmatpush1.bf16.msra.mxu0 0
        %4938 = vmatprep.subr.bf16.mxu0 0
        %4939 = vmatpush1.bf16.msra.mxu0 0
        %4940 = vmatprep.subr.bf16.mxu0 0
        %4941 = vmatpush1.bf16.msra.mxu0 0
        %4942 = vmatprep.subr.bf16.mxu0 0
        %4943 = vmatpush1.bf16.msra.mxu0 0
        %4944 = vmatprep.subr.bf16.mxu0 0
        %4945 = vmatpush1.bf16.msra.mxu0 0
        %4946 = vmatprep.mubr.bf16.mxu0 0
        %4947 = vmatmul.mubr.bf16.gmra.mrb[0].mxu0 %v4912
        %v4948 = vpop.f32.mrb[0].mxu0
        %v4949 = vadd.f32 %v4897, %v4948
        %v4950 = vpop.f32.mrb[0].mxu0
        %v4951 = vpop.f32.mrb[0].mxu0
        %v4952 = vpop.f32.mrb[0].mxu0
        %4953 = vdwg.mxu0
        %v4954 = vadd.f32 %v4949, %v2513
        %v4955 = vld [vmem:[#allocation9] sm:$0x1]
        %v4956 = vld [vmem:[#allocation10] sm:$0x1]
        %v4957 = vsel %vm2546, %v4954, 0.0
        %4958 = vadd.xlane.f32.xlu0 %v4957
        %v4959 = vpop.xlane.xlu0 %4958
        %v4960 = vmul.f32 %v4959, %v3186
        %v4961 = vsub.f32 %v4954, %v4960
        %v4962 = vmul.f32 %v4961, %v4961
        %v4963 = vsel %vm2546, %v4962, 0.0
        %4964 = vadd.xlane.f32.xlu0 %v4963
        %v4965 = vpop.xlane.xlu0 %4964
        %v4966 = vmul.f32 %v4965, %v3186
        %v4967 = vadd.f32 %v4966, 1e-05
        %v4968 = vrsqrt.pop %v4967
        %v4969 = vmul.f32 %v4961, %v4968
        %v4971 = vlaneseq
        %v4972 = vshrl.u32 %v4971, 7
        %v4973 = vsub.s32 0, %v4972
        %v4974 = vrot.slane %v4955, %v4973
        %v4976 = vmul.f32 %v4969, %v4974
        %v4978 = vlaneseq
        %v4979 = vshrl.u32 %v4978, 7
        %v4980 = vsub.s32 0, %v4979
        %v4981 = vrot.slane %v4956, %v4980
        %v4983 = vadd.f32 %v4976, %v4981
        %v4984 = vld [vmem:[%s69] sm:$0xf]
        %v4985 = vld [vmem:[%s69 + $0x4] sm:$0xf]
        %v4986 = vld [vmem:[%s69 + $0x8] sm:$0xf]
        %v4987 = vld [vmem:[%s69 + $0xc] sm:$0xf]
        %v4988 = vpack.c.bf16 %v4983, %v4983
        %v4989 = vld [vmem:[#allocation12] sm:$0x1]
        %v4991 = vlaneseq
        %v4992 = vshrl.u32 %v4991, 7
        %v4993 = vsub.s32 0, %v4992
        %v4994 = vrot.slane %v4989, %v4993
        %v5000 = vunpack.c.l.b16 %v4984
        %v5001 = vunpack.c.l.b16 %v4985
        %v5002 = vunpack.c.l.b16 %v4986
        %v5003 = vunpack.c.l.b16 %v4987
        %v5004 = vpack.c.b16 %v5001, %v5000
        %v5005 = vpack.c.b16 %v5003, %v5002
        %v5009 = vsel %vm2546, %v4988, 0
        %5011 = vmatprep.subr.bf16.mxu0 0
        %5012 = vmatpush1.bf16.msra.mxu0 %v5004
        %5013 = vmatprep.subr.bf16.mxu0 0
        %5014 = vmatpush1.bf16.msra.mxu0 %v5005
        %5015 = vmatprep.subr.bf16.mxu0 0
        %5016 = vmatpush1.bf16.msra.mxu0 0
        %5017 = vmatprep.subr.bf16.mxu0 0
        %5018 = vmatpush1.bf16.msra.mxu0 0
        %5019 = vmatprep.subr.bf16.mxu0 0
        %5020 = vmatpush1.bf16.msra.mxu0 0
        %5021 = vmatprep.subr.bf16.mxu0 0
        %5022 = vmatpush1.bf16.msra.mxu0 0
        %5023 = vmatprep.subr.bf16.mxu0 0
        %5024 = vmatpush1.bf16.msra.mxu0 0
        %5025 = vmatprep.subr.bf16.mxu0 0
        %5026 = vmatpush1.bf16.msra.mxu0 0
        %5027 = vmatprep.subr.bf16.mxu0 0
        %5028 = vmatpush1.bf16.msra.mxu0 0
        %5029 = vmatprep.subr.bf16.mxu0 0
        %5030 = vmatpush1.bf16.msra.mxu0 0
        %5031 = vmatprep.subr.bf16.mxu0 0
        %5032 = vmatpush1.bf16.msra.mxu0 0
        %5033 = vmatprep.subr.bf16.mxu0 0
        %5034 = vmatpush1.bf16.msra.mxu0 0
        %5035 = vmatprep.subr.bf16.mxu0 0
        %5036 = vmatpush1.bf16.msra.mxu0 0
        %5037 = vmatprep.subr.bf16.mxu0 0
        %5038 = vmatpush1.bf16.msra.mxu0 0
        %5039 = vmatprep.subr.bf16.mxu0 0
        %5040 = vmatpush1.bf16.msra.mxu0 0
        %5041 = vmatprep.subr.bf16.mxu0 0
        %5042 = vmatpush1.bf16.msra.mxu0 0
        %5043 = vmatprep.mubr.bf16.mxu0 0
        %5044 = vmatmul.mubr.bf16.gmra.mrb[0].mxu0 %v5009
        %v5045 = vpop.f32.mrb[0].mxu0
        %v5046 = vadd.f32 %v4994, %v5045
        %v5047 = vpop.f32.mrb[0].mxu0
        %v5048 = vpop.f32.mrb[0].mxu0
        %v5049 = vpop.f32.mrb[0].mxu0
        %5050 = vdwg.mxu0
        %v5051 = vld [vmem:[%s73] sm:$0xf]
        %v5052 = vld [vmem:[%s73 + $0x4] sm:$0xf]
        %v5053 = vld [vmem:[%s73 + $0x8] sm:$0xf]
        %v5054 = vld [vmem:[%s73 + $0xc] sm:$0xf]
        %v5055 = vpack.c.bf16 %v4363, %v4362
        %v5056 = vld [vmem:[#allocation13] sm:$0x1]
        %v5058 = vlaneseq
        %v5059 = vshrl.u32 %v5058, 7
        %v5060 = vsub.s32 0, %v5059
        %v5061 = vrot.slane %v5056, %v5060
        %v5067 = vunpack.c.l.b16 %v5051
        %v5068 = vunpack.c.l.b16 %v5052
        %v5069 = vunpack.c.l.b16 %v5053
        %v5070 = vunpack.c.l.b16 %v5054
        %v5071 = vpack.c.b16 %v5068, %v5067
        %v5072 = vpack.c.b16 %v5070, %v5069
        %v5076 = vsel %vm2546, %v5055, 0
        %5078 = vmatprep.subr.bf16.mxu0 0
        %5079 = vmatpush1.bf16.msra.mxu0 %v5071
        %5080 = vmatprep.subr.bf16.mxu0 0
        %5081 = vmatpush1.bf16.msra.mxu0 %v5072
        %5082 = vmatprep.subr.bf16.mxu0 0
        %5083 = vmatpush1.bf16.msra.mxu0 0
        %5084 = vmatprep.subr.bf16.mxu0 0
        %5085 = vmatpush1.bf16.msra.mxu0 0
        %5086 = vmatprep.subr.bf16.mxu0 0
        %5087 = vmatpush1.bf16.msra.mxu0 0
        %5088 = vmatprep.subr.bf16.mxu0 0
        %5089 = vmatpush1.bf16.msra.mxu0 0
        %5090 = vmatprep.subr.bf16.mxu0 0
        %5091 = vmatpush1.bf16.msra.mxu0 0
        %5092 = vmatprep.subr.bf16.mxu0 0
        %5093 = vmatpush1.bf16.msra.mxu0 0
        %5094 = vmatprep.subr.bf16.mxu0 0
        %5095 = vmatpush1.bf16.msra.mxu0 0
        %5096 = vmatprep.subr.bf16.mxu0 0
        %5097 = vmatpush1.bf16.msra.mxu0 0
        %5098 = vmatprep.subr.bf16.mxu0 0
        %5099 = vmatpush1.bf16.msra.mxu0 0
        %5100 = vmatprep.subr.bf16.mxu0 0
        %5101 = vmatpush1.bf16.msra.mxu0 0
        %5102 = vmatprep.subr.bf16.mxu0 0
        %5103 = vmatpush1.bf16.msra.mxu0 0
        %5104 = vmatprep.subr.bf16.mxu0 0
        %5105 = vmatpush1.bf16.msra.mxu0 0
        %5106 = vmatprep.subr.bf16.mxu0 0
        %5107 = vmatpush1.bf16.msra.mxu0 0
        %5108 = vmatprep.subr.bf16.mxu0 0
        %5109 = vmatpush1.bf16.msra.mxu0 0
        %5110 = vmatprep.mubr.bf16.mxu0 0
        %5111 = vmatmul.mubr.bf16.gmra.mrb[0].mxu0 %v5076
        %v5112 = vpop.f32.mrb[0].mxu0
        %v5113 = vadd.f32 %v5061, %v5112
        %v5114 = vpop.f32.mrb[0].mxu0
        %v5115 = vpop.f32.mrb[0].mxu0
        %v5116 = vadd.f32 %v5061, %v5115
        %v5117 = vpop.f32.mrb[0].mxu0
        %5118 = vdwg.mxu0
        %v5119 = vpack.c.bf16 %v5046, %v5046
        %v5120 = vpack.c.bf16 %v5116, %v5113
        %v5122 = vsel %vm2595, %v5119, 0
        %v5125 = vsel %vm2595, %v5120, 0
        %5127 = vmatprep.subr.bf16.mxu0 0
        %5128 = vmatpush1.bf16.xpose.msra.mxu0 %v5125
        %5129 = vmatprep.subr.bf16.mxu0 0
        %5130 = vmatpush1.bf16.xpose.msra.mxu0 0
        %5131 = vmatprep.subr.bf16.mxu0 0
        %5132 = vmatpush1.bf16.xpose.msra.mxu0 0
        %5133 = vmatprep.subr.bf16.mxu0 0
        %5134 = vmatpush1.bf16.xpose.msra.mxu0 0
        %5135 = vmatprep.subr.bf16.mxu0 0
        %5136 = vmatpush1.bf16.xpose.msra.mxu0 0
        %5137 = vmatprep.subr.bf16.mxu0 0
        %5138 = vmatpush1.bf16.xpose.msra.mxu0 0
        %5139 = vmatprep.subr.bf16.mxu0 0
        %5140 = vmatpush1.bf16.xpose.msra.mxu0 0
        %5141 = vmatprep.subr.bf16.mxu0 0
        %5142 = vmatpush1.bf16.xpose.msra.mxu0 0
        %5143 = vmatprep.subr.bf16.mxu0 0
        %5144 = vmatpush1.bf16.xpose.msra.mxu0 0
        %5145 = vmatprep.subr.bf16.mxu0 0
        %5146 = vmatpush1.bf16.xpose.msra.mxu0 0
        %5147 = vmatprep.subr.bf16.mxu0 0
        %5148 = vmatpush1.bf16.xpose.msra.mxu0 0
        %5149 = vmatprep.subr.bf16.mxu0 0
        %5150 = vmatpush1.bf16.xpose.msra.mxu0 0
        %5151 = vmatprep.subr.bf16.mxu0 0
        %5152 = vmatpush1.bf16.xpose.msra.mxu0 0
        %5153 = vmatprep.subr.bf16.mxu0 0
        %5154 = vmatpush1.bf16.xpose.msra.mxu0 0
        %5155 = vmatprep.subr.bf16.mxu0 0
        %5156 = vmatpush1.bf16.xpose.msra.mxu0 0
        %5157 = vmatprep.subr.bf16.mxu0 0
        %5158 = vmatpush1.bf16.xpose.msra.mxu0 0
        %5159 = vmatprep.mubr.bf16.mxu0 0
        %5160 = vmatmul.mubr.bf16.gmra.mrb[0].mxu0 %v5122
        %v5161 = vpop.f32.mrb[0].mxu0
        %v5162 = vadd.f32 %v2517, %v5161
        %v5163 = vpop.f32.mrb[0].mxu0
        %v5164 = vpop.f32.mrb[0].mxu0
        %v5165 = vpop.f32.mrb[0].mxu0
        %5166 = vdwg.mxu0
        %v5167 = vsel %vm2643, %v5162, -inf
        %5168 = vmax.xlane.f32.xlu0 %v5167
        %v5169 = vpop.xlane.xlu0 %5168
        %v5170 = vsub.f32 %v5162, %v5169
        %v5171 = vmul.f32 %v5170, 1.442695
        %v5172 = vpow.pop %v5171
        %v5173 = vsel %vm2643, %v5172, 0.0
        %5174 = vadd.xlane.f32.xlu0 %v5173
        %v5175 = vpop.xlane.xlu0 %5174
        %v5176 = vrcp.pop %v5175
        %v5177 = vmul.f32 %v5172, %v5176
        %v5178 = vpack.c.bf16 %v5177, %v5177
        %5180 = vrot.lane.b32.xlu0 %v5120, 96
        %v5181 = vpop.permute.xlu0 %5180
        %v5184 = vsel %vm2643, %v5178, 0
        %5186 = vmatprep.subr.bf16.mxu0 0
        %5187 = vmatpush1.bf16.msra.mxu0 %v5181
        %5188 = vmatprep.subr.bf16.mxu0 0
        %5189 = vmatpush1.bf16.msra.mxu0 0
        %5190 = vmatprep.subr.bf16.mxu0 0
        %5191 = vmatpush1.bf16.msra.mxu0 0
        %5192 = vmatprep.subr.bf16.mxu0 0
        %5193 = vmatpush1.bf16.msra.mxu0 0
        %5194 = vmatprep.subr.bf16.mxu0 0
        %5195 = vmatpush1.bf16.msra.mxu0 0
        %5196 = vmatprep.subr.bf16.mxu0 0
        %5197 = vmatpush1.bf16.msra.mxu0 0
        %5198 = vmatprep.subr.bf16.mxu0 0
        %5199 = vmatpush1.bf16.msra.mxu0 0
        %5200 = vmatprep.subr.bf16.mxu0 0
        %5201 = vmatpush1.bf16.msra.mxu0 0
        %5202 = vmatprep.subr.bf16.mxu0 0
        %5203 = vmatpush1.bf16.msra.mxu0 0
        %5204 = vmatprep.subr.bf16.mxu0 0
        %5205 = vmatpush1.bf16.msra.mxu0 0
        %5206 = vmatprep.subr.bf16.mxu0 0
        %5207 = vmatpush1.bf16.msra.mxu0 0
        %5208 = vmatprep.subr.bf16.mxu0 0
        %5209 = vmatpush1.bf16.msra.mxu0 0
        %5210 = vmatprep.subr.bf16.mxu0 0
        %5211 = vmatpush1.bf16.msra.mxu0 0
        %5212 = vmatprep.subr.bf16.mxu0 0
        %5213 = vmatpush1.bf16.msra.mxu0 0
        %5214 = vmatprep.subr.bf16.mxu0 0
        %5215 = vmatpush1.bf16.msra.mxu0 0
        %5216 = vmatprep.subr.bf16.mxu0 0
        %5217 = vmatpush1.bf16.msra.mxu0 0
        %5218 = vmatprep.mubr.bf16.mxu0 0
        %5219 = vmatmul.mubr.bf16.gmra.mrb[0].mxu0 %v5184
        %v5220 = vpop.f32.mrb[0].mxu0
        %v5221 = vadd.f32 0.0, %v5220
        %v5222 = vpop.f32.mrb[0].mxu0
        %v5223 = vpop.f32.mrb[0].mxu0
        %v5224 = vpop.f32.mrb[0].mxu0
        %5225 = vdwg.mxu0
        %5227 = vrot.lane.b32.xlu0 %v5119, 120
        %v5228 = vpop.permute.xlu0 %5227
        %5229 = vrot.lane.b32.xlu0 %v5120, 120
        %v5230 = vpop.permute.xlu0 %5229
        %v5232 = vsel %vm2595, %v5228, 0
        %v5235 = vsel %vm2595, %v5230, 0
        %5237 = vmatprep.subr.bf16.mxu0 0
        %5238 = vmatpush1.bf16.xpose.msra.mxu0 %v5235
        %5239 = vmatprep.subr.bf16.mxu0 0
        %5240 = vmatpush1.bf16.xpose.msra.mxu0 0
        %5241 = vmatprep.subr.bf16.mxu0 0
        %5242 = vmatpush1.bf16.xpose.msra.mxu0 0
        %5243 = vmatprep.subr.bf16.mxu0 0
        %5244 = vmatpush1.bf16.xpose.msra.mxu0 0
        %5245 = vmatprep.subr.bf16.mxu0 0
        %5246 = vmatpush1.bf16.xpose.msra.mxu0 0
        %5247 = vmatprep.subr.bf16.mxu0 0
        %5248 = vmatpush1.bf16.xpose.msra.mxu0 0
        %5249 = vmatprep.subr.bf16.mxu0 0
        %5250 = vmatpush1.bf16.xpose.msra.mxu0 0
        %5251 = vmatprep.subr.bf16.mxu0 0
        %5252 = vmatpush1.bf16.xpose.msra.mxu0 0
        %5253 = vmatprep.subr.bf16.mxu0 0
        %5254 = vmatpush1.bf16.xpose.msra.mxu0 0
        %5255 = vmatprep.subr.bf16.mxu0 0
        %5256 = vmatpush1.bf16.xpose.msra.mxu0 0
        %5257 = vmatprep.subr.bf16.mxu0 0
        %5258 = vmatpush1.bf16.xpose.msra.mxu0 0
        %5259 = vmatprep.subr.bf16.mxu0 0
        %5260 = vmatpush1.bf16.xpose.msra.mxu0 0
        %5261 = vmatprep.subr.bf16.mxu0 0
        %5262 = vmatpush1.bf16.xpose.msra.mxu0 0
        %5263 = vmatprep.subr.bf16.mxu0 0
        %5264 = vmatpush1.bf16.xpose.msra.mxu0 0
        %5265 = vmatprep.subr.bf16.mxu0 0
        %5266 = vmatpush1.bf16.xpose.msra.mxu0 0
        %5267 = vmatprep.subr.bf16.mxu0 0
        %5268 = vmatpush1.bf16.xpose.msra.mxu0 0
        %5269 = vmatprep.mubr.bf16.mxu0 0
        %5270 = vmatmul.mubr.bf16.gmra.mrb[0].mxu0 %v5232
        %v5271 = vpop.f32.mrb[0].mxu0
        %v5272 = vadd.f32 %v2517, %v5271
        %v5273 = vpop.f32.mrb[0].mxu0
        %v5274 = vpop.f32.mrb[0].mxu0
        %v5275 = vpop.f32.mrb[0].mxu0
        %5276 = vdwg.mxu0
        %v5277 = vsel %vm2643, %v5272, -inf
        %5278 = vmax.xlane.f32.xlu0 %v5277
        %v5279 = vpop.xlane.xlu0 %5278
        %v5280 = vsub.f32 %v5272, %v5279
        %v5281 = vmul.f32 %v5280, 1.442695
        %v5282 = vpow.pop %v5281
        %v5283 = vsel %vm2643, %v5282, 0.0
        %5284 = vadd.xlane.f32.xlu0 %v5283
        %v5285 = vpop.xlane.xlu0 %5284
        %v5286 = vrcp.pop %v5285
        %v5287 = vmul.f32 %v5282, %v5286
        %v5288 = vpack.c.bf16 %v5287, %v5287
        %5289 = vrot.lane.b32.xlu0 %v5120, 88
        %v5290 = vpop.permute.xlu0 %5289
        %v5293 = vsel %vm2643, %v5288, 0
        %5295 = vmatprep.subr.bf16.mxu0 0
        %5296 = vmatpush1.bf16.msra.mxu0 %v5290
        %5297 = vmatprep.subr.bf16.mxu0 0
        %5298 = vmatpush1.bf16.msra.mxu0 0
        %5299 = vmatprep.subr.bf16.mxu0 0
        %5300 = vmatpush1.bf16.msra.mxu0 0
        %5301 = vmatprep.subr.bf16.mxu0 0
        %5302 = vmatpush1.bf16.msra.mxu0 0
        %5303 = vmatprep.subr.bf16.mxu0 0
        %5304 = vmatpush1.bf16.msra.mxu0 0
        %5305 = vmatprep.subr.bf16.mxu0 0
        %5306 = vmatpush1.bf16.msra.mxu0 0
        %5307 = vmatprep.subr.bf16.mxu0 0
        %5308 = vmatpush1.bf16.msra.mxu0 0
        %5309 = vmatprep.subr.bf16.mxu0 0
        %5310 = vmatpush1.bf16.msra.mxu0 0
        %5311 = vmatprep.subr.bf16.mxu0 0
        %5312 = vmatpush1.bf16.msra.mxu0 0
        %5313 = vmatprep.subr.bf16.mxu0 0
        %5314 = vmatpush1.bf16.msra.mxu0 0
        %5315 = vmatprep.subr.bf16.mxu0 0
        %5316 = vmatpush1.bf16.msra.mxu0 0
        %5317 = vmatprep.subr.bf16.mxu0 0
        %5318 = vmatpush1.bf16.msra.mxu0 0
        %5319 = vmatprep.subr.bf16.mxu0 0
        %5320 = vmatpush1.bf16.msra.mxu0 0
        %5321 = vmatprep.subr.bf16.mxu0 0
        %5322 = vmatpush1.bf16.msra.mxu0 0
        %5323 = vmatprep.subr.bf16.mxu0 0
        %5324 = vmatpush1.bf16.msra.mxu0 0
        %5325 = vmatprep.subr.bf16.mxu0 0
        %5326 = vmatpush1.bf16.msra.mxu0 0
        %5327 = vmatprep.mubr.bf16.mxu0 0
        %5328 = vmatmul.mubr.bf16.gmra.mrb[0].mxu0 %v5293
        %v5329 = vpop.f32.mrb[0].mxu0
        %v5330 = vadd.f32 0.0, %v5329
        %v5331 = vpop.f32.mrb[0].mxu0
        %v5332 = vpop.f32.mrb[0].mxu0
        %v5333 = vpop.f32.mrb[0].mxu0
        %5334 = vdwg.mxu0
        %5335 = vrot.lane.b32.xlu0 %v5119, 112
        %v5336 = vpop.permute.xlu0 %5335
        %5337 = vrot.lane.b32.xlu0 %v5120, 112
        %v5338 = vpop.permute.xlu0 %5337
        %v5340 = vsel %vm2595, %v5336, 0
        %v5343 = vsel %vm2595, %v5338, 0
        %5345 = vmatprep.subr.bf16.mxu0 0
        %5346 = vmatpush1.bf16.xpose.msra.mxu0 %v5343
        %5347 = vmatprep.subr.bf16.mxu0 0
        %5348 = vmatpush1.bf16.xpose.msra.mxu0 0
        %5349 = vmatprep.subr.bf16.mxu0 0
        %5350 = vmatpush1.bf16.xpose.msra.mxu0 0
        %5351 = vmatprep.subr.bf16.mxu0 0
        %5352 = vmatpush1.bf16.xpose.msra.mxu0 0
        %5353 = vmatprep.subr.bf16.mxu0 0
        %5354 = vmatpush1.bf16.xpose.msra.mxu0 0
        %5355 = vmatprep.subr.bf16.mxu0 0
        %5356 = vmatpush1.bf16.xpose.msra.mxu0 0
        %5357 = vmatprep.subr.bf16.mxu0 0
        %5358 = vmatpush1.bf16.xpose.msra.mxu0 0
        %5359 = vmatprep.subr.bf16.mxu0 0
        %5360 = vmatpush1.bf16.xpose.msra.mxu0 0
        %5361 = vmatprep.subr.bf16.mxu0 0
        %5362 = vmatpush1.bf16.xpose.msra.mxu0 0
        %5363 = vmatprep.subr.bf16.mxu0 0
        %5364 = vmatpush1.bf16.xpose.msra.mxu0 0
        %5365 = vmatprep.subr.bf16.mxu0 0
        %5366 = vmatpush1.bf16.xpose.msra.mxu0 0
        %5367 = vmatprep.subr.bf16.mxu0 0
        %5368 = vmatpush1.bf16.xpose.msra.mxu0 0
        %5369 = vmatprep.subr.bf16.mxu0 0
        %5370 = vmatpush1.bf16.xpose.msra.mxu0 0
        %5371 = vmatprep.subr.bf16.mxu0 0
        %5372 = vmatpush1.bf16.xpose.msra.mxu0 0
        %5373 = vmatprep.subr.bf16.mxu0 0
        %5374 = vmatpush1.bf16.xpose.msra.mxu0 0
        %5375 = vmatprep.subr.bf16.mxu0 0
        %5376 = vmatpush1.bf16.xpose.msra.mxu0 0
        %5377 = vmatprep.mubr.bf16.mxu0 0
        %5378 = vmatmul.mubr.bf16.gmra.mrb[0].mxu0 %v5340
        %v5379 = vpop.f32.mrb[0].mxu0
        %v5380 = vadd.f32 %v2517, %v5379
        %v5381 = vpop.f32.mrb[0].mxu0
        %v5382 = vpop.f32.mrb[0].mxu0
        %v5383 = vpop.f32.mrb[0].mxu0
        %5384 = vdwg.mxu0
        %v5385 = vsel %vm2643, %v5380, -inf
        %5386 = vmax.xlane.f32.xlu0 %v5385
        %v5387 = vpop.xlane.xlu0 %5386
        %v5388 = vsub.f32 %v5380, %v5387
        %v5389 = vmul.f32 %v5388, 1.442695
        %v5390 = vpow.pop %v5389
        %v5391 = vsel %vm2643, %v5390, 0.0
        %5392 = vadd.xlane.f32.xlu0 %v5391
        %v5393 = vpop.xlane.xlu0 %5392
        %v5394 = vrcp.pop %v5393
        %v5395 = vmul.f32 %v5390, %v5394
        %v5396 = vpack.c.bf16 %v5395, %v5395
        %5397 = vrot.lane.b32.xlu0 %v5120, 80
        %v5398 = vpop.permute.xlu0 %5397
        %v5401 = vsel %vm2643, %v5396, 0
        %5403 = vmatprep.subr.bf16.mxu0 0
        %5404 = vmatpush1.bf16.msra.mxu0 %v5398
        %5405 = vmatprep.subr.bf16.mxu0 0
        %5406 = vmatpush1.bf16.msra.mxu0 0
        %5407 = vmatprep.subr.bf16.mxu0 0
        %5408 = vmatpush1.bf16.msra.mxu0 0
        %5409 = vmatprep.subr.bf16.mxu0 0
        %5410 = vmatpush1.bf16.msra.mxu0 0
        %5411 = vmatprep.subr.bf16.mxu0 0
        %5412 = vmatpush1.bf16.msra.mxu0 0
        %5413 = vmatprep.subr.bf16.mxu0 0
        %5414 = vmatpush1.bf16.msra.mxu0 0
        %5415 = vmatprep.subr.bf16.mxu0 0
        %5416 = vmatpush1.bf16.msra.mxu0 0
        %5417 = vmatprep.subr.bf16.mxu0 0
        %5418 = vmatpush1.bf16.msra.mxu0 0
        %5419 = vmatprep.subr.bf16.mxu0 0
        %5420 = vmatpush1.bf16.msra.mxu0 0
        %5421 = vmatprep.subr.bf16.mxu0 0
        %5422 = vmatpush1.bf16.msra.mxu0 0
        %5423 = vmatprep.subr.bf16.mxu0 0
        %5424 = vmatpush1.bf16.msra.mxu0 0
        %5425 = vmatprep.subr.bf16.mxu0 0
        %5426 = vmatpush1.bf16.msra.mxu0 0
        %5427 = vmatprep.subr.bf16.mxu0 0
        %5428 = vmatpush1.bf16.msra.mxu0 0
        %5429 = vmatprep.subr.bf16.mxu0 0
        %5430 = vmatpush1.bf16.msra.mxu0 0
        %5431 = vmatprep.subr.bf16.mxu0 0
        %5432 = vmatpush1.bf16.msra.mxu0 0
        %5433 = vmatprep.subr.bf16.mxu0 0
        %5434 = vmatpush1.bf16.msra.mxu0 0
        %5435 = vmatprep.mubr.bf16.mxu0 0
        %5436 = vmatmul.mubr.bf16.gmra.mrb[0].mxu0 %v5401
        %v5437 = vpop.f32.mrb[0].mxu0
        %v5438 = vadd.f32 0.0, %v5437
        %v5439 = vpop.f32.mrb[0].mxu0
        %v5440 = vpop.f32.mrb[0].mxu0
        %v5441 = vpop.f32.mrb[0].mxu0
        %5442 = vdwg.mxu0
        %5443 = vrot.lane.b32.xlu0 %v5119, 104
        %v5444 = vpop.permute.xlu0 %5443
        %5445 = vrot.lane.b32.xlu0 %v5120, 104
        %v5446 = vpop.permute.xlu0 %5445
        %v5448 = vsel %vm2595, %v5444, 0
        %v5451 = vsel %vm2595, %v5446, 0
        %5453 = vmatprep.subr.bf16.mxu0 0
        %5454 = vmatpush1.bf16.xpose.msra.mxu0 %v5451
        %5455 = vmatprep.subr.bf16.mxu0 0
        %5456 = vmatpush1.bf16.xpose.msra.mxu0 0
        %5457 = vmatprep.subr.bf16.mxu0 0
        %5458 = vmatpush1.bf16.xpose.msra.mxu0 0
        %5459 = vmatprep.subr.bf16.mxu0 0
        %5460 = vmatpush1.bf16.xpose.msra.mxu0 0
        %5461 = vmatprep.subr.bf16.mxu0 0
        %5462 = vmatpush1.bf16.xpose.msra.mxu0 0
        %5463 = vmatprep.subr.bf16.mxu0 0
        %5464 = vmatpush1.bf16.xpose.msra.mxu0 0
        %5465 = vmatprep.subr.bf16.mxu0 0
        %5466 = vmatpush1.bf16.xpose.msra.mxu0 0
        %5467 = vmatprep.subr.bf16.mxu0 0
        %5468 = vmatpush1.bf16.xpose.msra.mxu0 0
        %5469 = vmatprep.subr.bf16.mxu0 0
        %5470 = vmatpush1.bf16.xpose.msra.mxu0 0
        %5471 = vmatprep.subr.bf16.mxu0 0
        %5472 = vmatpush1.bf16.xpose.msra.mxu0 0
        %5473 = vmatprep.subr.bf16.mxu0 0
        %5474 = vmatpush1.bf16.xpose.msra.mxu0 0
        %5475 = vmatprep.subr.bf16.mxu0 0
        %5476 = vmatpush1.bf16.xpose.msra.mxu0 0
        %5477 = vmatprep.subr.bf16.mxu0 0
        %5478 = vmatpush1.bf16.xpose.msra.mxu0 0
        %5479 = vmatprep.subr.bf16.mxu0 0
        %5480 = vmatpush1.bf16.xpose.msra.mxu0 0
        %5481 = vmatprep.subr.bf16.mxu0 0
        %5482 = vmatpush1.bf16.xpose.msra.mxu0 0
        %5483 = vmatprep.subr.bf16.mxu0 0
        %5484 = vmatpush1.bf16.xpose.msra.mxu0 0
        %5485 = vmatprep.mubr.bf16.mxu0 0
        %5486 = vmatmul.mubr.bf16.gmra.mrb[0].mxu0 %v5448
        %v5487 = vpop.f32.mrb[0].mxu0
        %v5488 = vadd.f32 %v2517, %v5487
        %v5489 = vpop.f32.mrb[0].mxu0
        %v5490 = vpop.f32.mrb[0].mxu0
        %v5491 = vpop.f32.mrb[0].mxu0
        %5492 = vdwg.mxu0
        %v5493 = vsel %vm2643, %v5488, -inf
        %5494 = vmax.xlane.f32.xlu0 %v5493
        %v5495 = vpop.xlane.xlu0 %5494
        %v5496 = vsub.f32 %v5488, %v5495
        %v5497 = vmul.f32 %v5496, 1.442695
        %v5498 = vpow.pop %v5497
        %v5499 = vsel %vm2643, %v5498, 0.0
        %5500 = vadd.xlane.f32.xlu0 %v5499
        %v5501 = vpop.xlane.xlu0 %5500
        %v5502 = vrcp.pop %v5501
        %v5503 = vmul.f32 %v5498, %v5502
        %v5504 = vpack.c.bf16 %v5503, %v5503
        %5505 = vrot.lane.b32.xlu0 %v5120, 72
        %v5506 = vpop.permute.xlu0 %5505
        %v5509 = vsel %vm2643, %v5504, 0
        %5511 = vmatprep.subr.bf16.mxu0 0
        %5512 = vmatpush1.bf16.msra.mxu0 %v5506
        %5513 = vmatprep.subr.bf16.mxu0 0
        %5514 = vmatpush1.bf16.msra.mxu0 0
        %5515 = vmatprep.subr.bf16.mxu0 0
        %5516 = vmatpush1.bf16.msra.mxu0 0
        %5517 = vmatprep.subr.bf16.mxu0 0
        %5518 = vmatpush1.bf16.msra.mxu0 0
        %5519 = vmatprep.subr.bf16.mxu0 0
        %5520 = vmatpush1.bf16.msra.mxu0 0
        %5521 = vmatprep.subr.bf16.mxu0 0
        %5522 = vmatpush1.bf16.msra.mxu0 0
        %5523 = vmatprep.subr.bf16.mxu0 0
        %5524 = vmatpush1.bf16.msra.mxu0 0
        %5525 = vmatprep.subr.bf16.mxu0 0
        %5526 = vmatpush1.bf16.msra.mxu0 0
        %5527 = vmatprep.subr.bf16.mxu0 0
        %5528 = vmatpush1.bf16.msra.mxu0 0
        %5529 = vmatprep.subr.bf16.mxu0 0
        %5530 = vmatpush1.bf16.msra.mxu0 0
        %5531 = vmatprep.subr.bf16.mxu0 0
        %5532 = vmatpush1.bf16.msra.mxu0 0
        %5533 = vmatprep.subr.bf16.mxu0 0
        %5534 = vmatpush1.bf16.msra.mxu0 0
        %5535 = vmatprep.subr.bf16.mxu0 0
        %5536 = vmatpush1.bf16.msra.mxu0 0
        %5537 = vmatprep.subr.bf16.mxu0 0
        %5538 = vmatpush1.bf16.msra.mxu0 0
        %5539 = vmatprep.subr.bf16.mxu0 0
        %5540 = vmatpush1.bf16.msra.mxu0 0
        %5541 = vmatprep.subr.bf16.mxu0 0
        %5542 = vmatpush1.bf16.msra.mxu0 0
        %5543 = vmatprep.mubr.bf16.mxu0 0
        %5544 = vmatmul.mubr.bf16.gmra.mrb[0].mxu0 %v5509
        %v5545 = vpop.f32.mrb[0].mxu0
        %v5546 = vadd.f32 0.0, %v5545
        %v5547 = vpop.f32.mrb[0].mxu0
        %v5548 = vpop.f32.mrb[0].mxu0
        %v5549 = vpop.f32.mrb[0].mxu0
        %5550 = vdwg.mxu0
        %5552 = vrot.lane.b32.xlu0 %v5330, 8
        %v5553 = vpop.permute.xlu0 %5552
        %5556 = vrot.lane.b32.xlu0 %v5438, 16
        %v5557 = vpop.permute.xlu0 %5556
        %5560 = vrot.lane.b32.xlu0 %v5546, 24
        %v5561 = vpop.permute.xlu0 %5560
        %v5563 = vsel %vm2595, %v5221, %v5553
        %v5564 = vsel %vm2643, %v5563, %v5557
        %v5565 = vsel %vm3105, %v5564, %v5561
        %v5566 = vld [vmem:[%s77] sm:$0xf]
        %v5567 = vld [vmem:[%s77 + $0x4] sm:$0xf]
        %v5568 = vld [vmem:[%s77 + $0x8] sm:$0xf]
        %v5569 = vld [vmem:[%s77 + $0xc] sm:$0xf]
        %v5570 = vpack.c.bf16 %v5565, %v5565
        %v5571 = vld [vmem:[#allocation15] sm:$0x1]
        %v5573 = vlaneseq
        %v5574 = vshrl.u32 %v5573, 7
        %v5575 = vsub.s32 0, %v5574
        %v5576 = vrot.slane %v5571, %v5575
        %v5582 = vunpack.c.l.b16 %v5566
        %v5583 = vunpack.c.l.b16 %v5567
        %v5584 = vunpack.c.l.b16 %v5568
        %v5585 = vunpack.c.l.b16 %v5569
        %v5586 = vpack.c.b16 %v5583, %v5582
        %v5587 = vpack.c.b16 %v5585, %v5584
        %v5591 = vsel %vm2546, %v5570, 0
        %5593 = vmatprep.subr.bf16.mxu0 0
        %5594 = vmatpush1.bf16.msra.mxu0 %v5586
        %5595 = vmatprep.subr.bf16.mxu0 0
        %5596 = vmatpush1.bf16.msra.mxu0 %v5587
        %5597 = vmatprep.subr.bf16.mxu0 0
        %5598 = vmatpush1.bf16.msra.mxu0 0
        %5599 = vmatprep.subr.bf16.mxu0 0
        %5600 = vmatpush1.bf16.msra.mxu0 0
        %5601 = vmatprep.subr.bf16.mxu0 0
        %5602 = vmatpush1.bf16.msra.mxu0 0
        %5603 = vmatprep.subr.bf16.mxu0 0
        %5604 = vmatpush1.bf16.msra.mxu0 0
        %5605 = vmatprep.subr.bf16.mxu0 0
        %5606 = vmatpush1.bf16.msra.mxu0 0
        %5607 = vmatprep.subr.bf16.mxu0 0
        %5608 = vmatpush1.bf16.msra.mxu0 0
        %5609 = vmatprep.subr.bf16.mxu0 0
        %5610 = vmatpush1.bf16.msra.mxu0 0
        %5611 = vmatprep.subr.bf16.mxu0 0
        %5612 = vmatpush1.bf16.msra.mxu0 0
        %5613 = vmatprep.subr.bf16.mxu0 0
        %5614 = vmatpush1.bf16.msra.mxu0 0
        %5615 = vmatprep.subr.bf16.mxu0 0
        %5616 = vmatpush1.bf16.msra.mxu0 0
        %5617 = vmatprep.subr.bf16.mxu0 0
        %5618 = vmatpush1.bf16.msra.mxu0 0
        %5619 = vmatprep.subr.bf16.mxu0 0
        %5620 = vmatpush1.bf16.msra.mxu0 0
        %5621 = vmatprep.subr.bf16.mxu0 0
        %5622 = vmatpush1.bf16.msra.mxu0 0
        %5623 = vmatprep.subr.bf16.mxu0 0
        %5624 = vmatpush1.bf16.msra.mxu0 0
        %5625 = vmatprep.mubr.bf16.mxu0 0
        %5626 = vmatmul.mubr.bf16.gmra.mrb[0].mxu0 %v5591
        %v5627 = vpop.f32.mrb[0].mxu0
        %v5628 = vadd.f32 %v5576, %v5627
        %v5629 = vpop.f32.mrb[0].mxu0
        %v5630 = vpop.f32.mrb[0].mxu0
        %v5631 = vpop.f32.mrb[0].mxu0
        %5632 = vdwg.mxu0
        %v5633 = vadd.f32 %v5628, %v4983
        %v5634 = vld [vmem:[#allocation16] sm:$0x1]
        %v5635 = vld [vmem:[#allocation18] sm:$0x1]
        %v5636 = vsel %vm2546, %v5633, 0.0
        %5637 = vadd.xlane.f32.xlu0 %v5636
        %v5638 = vpop.xlane.xlu0 %5637
        %v5639 = vmul.f32 %v5638, %v3186
        %v5640 = vsub.f32 %v5633, %v5639
        %v5641 = vmul.f32 %v5640, %v5640
        %v5642 = vsel %vm2546, %v5641, 0.0
        %5643 = vadd.xlane.f32.xlu0 %v5642
        %v5644 = vpop.xlane.xlu0 %5643
        %v5645 = vmul.f32 %v5644, %v3186
        %v5646 = vadd.f32 %v5645, 1e-05
        %v5647 = vrsqrt.pop %v5646
        %v5648 = vmul.f32 %v5640, %v5647
        %v5650 = vlaneseq
        %v5651 = vshrl.u32 %v5650, 7
        %v5652 = vsub.s32 0, %v5651
        %v5653 = vrot.slane %v5634, %v5652
        %v5655 = vmul.f32 %v5648, %v5653
        %v5657 = vlaneseq
        %v5658 = vshrl.u32 %v5657, 7
        %v5659 = vsub.s32 0, %v5658
        %v5660 = vrot.slane %v5635, %v5659
        %v5662 = vadd.f32 %v5655, %v5660
        %v5663 = vld [vmem:[%s85] sm:$0xf]
        %v5664 = vld [vmem:[%s85 + $0x4] sm:$0xf]
        %v5665 = vld [vmem:[%s85 + $0x8] sm:$0xf]
        %v5666 = vld [vmem:[%s85 + $0xc] sm:$0xf]
        %v5667 = vpack.c.bf16 %v5662, %v5662
        %v5668 = vld [vmem:[#allocation19] sm:$0x1]
        %v5670 = vlaneseq
        %v5671 = vshrl.u32 %v5670, 7
        %v5672 = vsub.s32 0, %v5671
        %v5673 = vrot.slane %v5668, %v5672
        %v5679 = vunpack.c.l.b16 %v5663
        %v5680 = vunpack.c.l.b16 %v5664
        %v5681 = vunpack.c.l.b16 %v5665
        %v5682 = vunpack.c.l.b16 %v5666
        %v5683 = vpack.c.b16 %v5680, %v5679
        %v5684 = vpack.c.b16 %v5682, %v5681
        %v5688 = vsel %vm2546, %v5667, 0
        %5690 = vmatprep.subr.bf16.mxu0 0
        %5691 = vmatpush1.bf16.msra.mxu0 %v5683
        %5692 = vmatprep.subr.bf16.mxu0 0
        %5693 = vmatpush1.bf16.msra.mxu0 %v5684
        %5694 = vmatprep.subr.bf16.mxu0 0
        %5695 = vmatpush1.bf16.msra.mxu0 0
        %5696 = vmatprep.subr.bf16.mxu0 0
        %5697 = vmatpush1.bf16.msra.mxu0 0
        %5698 = vmatprep.subr.bf16.mxu0 0
        %5699 = vmatpush1.bf16.msra.mxu0 0
        %5700 = vmatprep.subr.bf16.mxu0 0
        %5701 = vmatpush1.bf16.msra.mxu0 0
        %5702 = vmatprep.subr.bf16.mxu0 0
        %5703 = vmatpush1.bf16.msra.mxu0 0
        %5704 = vmatprep.subr.bf16.mxu0 0
        %5705 = vmatpush1.bf16.msra.mxu0 0
        %5706 = vmatprep.subr.bf16.mxu0 0
        %5707 = vmatpush1.bf16.msra.mxu0 0
        %5708 = vmatprep.subr.bf16.mxu0 0
        %5709 = vmatpush1.bf16.msra.mxu0 0
        %5710 = vmatprep.subr.bf16.mxu0 0
        %5711 = vmatpush1.bf16.msra.mxu0 0
        %5712 = vmatprep.subr.bf16.mxu0 0
        %5713 = vmatpush1.bf16.msra.mxu0 0
        %5714 = vmatprep.subr.bf16.mxu0 0
        %5715 = vmatpush1.bf16.msra.mxu0 0
        %5716 = vmatprep.subr.bf16.mxu0 0
        %5717 = vmatpush1.bf16.msra.mxu0 0
        %5718 = vmatprep.subr.bf16.mxu0 0
        %5719 = vmatpush1.bf16.msra.mxu0 0
        %5720 = vmatprep.subr.bf16.mxu0 0
        %5721 = vmatpush1.bf16.msra.mxu0 0
        %5722 = vmatprep.mubr.bf16.mxu0 0
        %5723 = vmatmul.mubr.bf16.gmra.mrb[0].mxu0 %v5688
        %v5724 = vpop.f32.mrb[0].mxu0
        %v5725 = vadd.f32 %v5673, %v5724
        %v5726 = vpop.f32.mrb[0].mxu0
        %v5727 = vpop.f32.mrb[0].mxu0
        %v5728 = vpop.f32.mrb[0].mxu0
        %5729 = vdwg.mxu0
        %v5730 = vmax.f32 %v5725, 0.0
        %v5731 = vld [vmem:[%s89] sm:$0xf]
        %v5732 = vld [vmem:[%s89 + $0x4] sm:$0xf]
        %v5733 = vld [vmem:[%s89 + $0x8] sm:$0xf]
        %v5734 = vld [vmem:[%s89 + $0xc] sm:$0xf]
        %v5735 = vld [vmem:[%s89 + $0x10] sm:$0xf]
        %v5736 = vld [vmem:[%s89 + $0x14] sm:$0xf]
        %v5737 = vld [vmem:[%s89 + $0x18] sm:$0xf]
        %v5738 = vld [vmem:[%s89 + $0x1c] sm:$0xf]
        %v5739 = vpack.c.bf16 %v5730, %v5730
        %v5740 = vld [vmem:[#allocation21] sm:$0x1]
        %v5742 = vlaneseq
        %v5743 = vshrl.u32 %v5742, 7
        %v5744 = vsub.s32 0, %v5743
        %v5745 = vrot.slane %v5740, %v5744
        %v5755 = vunpack.c.l.b16 %v5731
        %v5756 = vunpack.c.l.b16 %v5732
        %v5757 = vunpack.c.l.b16 %v5733
        %v5758 = vunpack.c.l.b16 %v5734
        %v5759 = vunpack.c.l.b16 %v5735
        %v5760 = vunpack.c.l.b16 %v5736
        %v5761 = vunpack.c.l.b16 %v5737
        %v5762 = vunpack.c.l.b16 %v5738
        %v5763 = vpack.c.b16 %v5756, %v5755
        %v5764 = vpack.c.b16 %v5758, %v5757
        %v5765 = vpack.c.b16 %v5760, %v5759
        %v5766 = vpack.c.b16 %v5762, %v5761
        %v5772 = vsel %vm3333, %v5739, 0
        %5774 = vmatprep.subr.bf16.mxu0 0
        %5775 = vmatpush1.bf16.msra.mxu0 %v5763
        %5776 = vmatprep.subr.bf16.mxu0 0
        %5777 = vmatpush1.bf16.msra.mxu0 %v5764
        %5778 = vmatprep.subr.bf16.mxu0 0
        %5779 = vmatpush1.bf16.msra.mxu0 %v5765
        %5780 = vmatprep.subr.bf16.mxu0 0
        %5781 = vmatpush1.bf16.msra.mxu0 %v5766
        %5782 = vmatprep.subr.bf16.mxu0 0
        %5783 = vmatpush1.bf16.msra.mxu0 0
        %5784 = vmatprep.subr.bf16.mxu0 0
        %5785 = vmatpush1.bf16.msra.mxu0 0
        %5786 = vmatprep.subr.bf16.mxu0 0
        %5787 = vmatpush1.bf16.msra.mxu0 0
        %5788 = vmatprep.subr.bf16.mxu0 0
        %5789 = vmatpush1.bf16.msra.mxu0 0
        %5790 = vmatprep.subr.bf16.mxu0 0
        %5791 = vmatpush1.bf16.msra.mxu0 0
        %5792 = vmatprep.subr.bf16.mxu0 0
        %5793 = vmatpush1.bf16.msra.mxu0 0
        %5794 = vmatprep.subr.bf16.mxu0 0
        %5795 = vmatpush1.bf16.msra.mxu0 0
        %5796 = vmatprep.subr.bf16.mxu0 0
        %5797 = vmatpush1.bf16.msra.mxu0 0
        %5798 = vmatprep.subr.bf16.mxu0 0
        %5799 = vmatpush1.bf16.msra.mxu0 0
        %5800 = vmatprep.subr.bf16.mxu0 0
        %5801 = vmatpush1.bf16.msra.mxu0 0
        %5802 = vmatprep.subr.bf16.mxu0 0
        %5803 = vmatpush1.bf16.msra.mxu0 0
        %5804 = vmatprep.subr.bf16.mxu0 0
        %5805 = vmatpush1.bf16.msra.mxu0 0
        %5806 = vmatprep.mubr.bf16.mxu0 0
        %5807 = vmatmul.mubr.bf16.gmra.mrb[0].mxu0 %v5772
        %v5808 = vpop.f32.mrb[0].mxu0
        %v5809 = vadd.f32 %v5745, %v5808
        %v5810 = vpop.f32.mrb[0].mxu0
        %v5811 = vpop.f32.mrb[0].mxu0
        %v5812 = vpop.f32.mrb[0].mxu0
        %5813 = vdwg.mxu0
        %v5814 = vadd.f32 %v5809, %v5662
        %v5815 = vld [vmem:[#allocation22] sm:$0x1]
        %v5816 = vld [vmem:[#allocation24] sm:$0x1]
        %v5817 = vsel %vm2546, %v5814, 0.0
        %5818 = vadd.xlane.f32.xlu0 %v5817
        %v5819 = vpop.xlane.xlu0 %5818
        %v5820 = vmul.f32 %v5819, %v3186
        %v5821 = vsub.f32 %v5814, %v5820
        %v5822 = vmul.f32 %v5821, %v5821
        %v5823 = vsel %vm2546, %v5822, 0.0
        %5824 = vadd.xlane.f32.xlu0 %v5823
        %v5825 = vpop.xlane.xlu0 %5824
        %v5826 = vmul.f32 %v5825, %v3186
        %v5827 = vadd.f32 %v5826, 1e-05
        %v5828 = vrsqrt.pop %v5827
        %v5829 = vmul.f32 %v5821, %v5828
        %v5831 = vlaneseq
        %v5832 = vshrl.u32 %v5831, 7
        %v5833 = vsub.s32 0, %v5832
        %v5834 = vrot.slane %v5815, %v5833
        %v5836 = vmul.f32 %v5829, %v5834
        %v5838 = vlaneseq
        %v5839 = vshrl.u32 %v5838, 7
        %v5840 = vsub.s32 0, %v5839
        %v5841 = vrot.slane %v5816, %v5840
        %v5843 = vadd.f32 %v5836, %v5841
        %v5844 = vld [vmem:[%s97] sm:$0xf]
        %v5845 = vld [vmem:[%s97 + $0x4] sm:$0xf]
        %v5846 = vld [vmem:[%s97 + $0x8] sm:$0xf]
        %v5847 = vld [vmem:[%s97 + $0xc] sm:$0xf]
        %v5848 = vpack.c.bf16 %v5843, %v5843
        %v5849 = vld [vmem:[#allocation25] sm:$0x1]
        %v5851 = vlaneseq
        %v5852 = vshrl.u32 %v5851, 7
        %v5853 = vsub.s32 0, %v5852
        %v5854 = vrot.slane %v5849, %v5853
        %v5860 = vunpack.c.l.b16 %v5844
        %v5861 = vunpack.c.l.b16 %v5845
        %v5862 = vunpack.c.l.b16 %v5846
        %v5863 = vunpack.c.l.b16 %v5847
        %v5864 = vpack.c.b16 %v5861, %v5860
        %v5865 = vpack.c.b16 %v5863, %v5862
        %v5869 = vsel %vm2546, %v5848, 0
        %5871 = vmatprep.subr.bf16.mxu0 0
        %5872 = vmatpush1.bf16.msra.mxu0 %v5864
        %5873 = vmatprep.subr.bf16.mxu0 0
        %5874 = vmatpush1.bf16.msra.mxu0 %v5865
        %5875 = vmatprep.subr.bf16.mxu0 0
        %5876 = vmatpush1.bf16.msra.mxu0 0
        %5877 = vmatprep.subr.bf16.mxu0 0
        %5878 = vmatpush1.bf16.msra.mxu0 0
        %5879 = vmatprep.subr.bf16.mxu0 0
        %5880 = vmatpush1.bf16.msra.mxu0 0
        %5881 = vmatprep.subr.bf16.mxu0 0
        %5882 = vmatpush1.bf16.msra.mxu0 0
        %5883 = vmatprep.subr.bf16.mxu0 0
        %5884 = vmatpush1.bf16.msra.mxu0 0
        %5885 = vmatprep.subr.bf16.mxu0 0
        %5886 = vmatpush1.bf16.msra.mxu0 0
        %5887 = vmatprep.subr.bf16.mxu0 0
        %5888 = vmatpush1.bf16.msra.mxu0 0
        %5889 = vmatprep.subr.bf16.mxu0 0
        %5890 = vmatpush1.bf16.msra.mxu0 0
        %5891 = vmatprep.subr.bf16.mxu0 0
        %5892 = vmatpush1.bf16.msra.mxu0 0
        %5893 = vmatprep.subr.bf16.mxu0 0
        %5894 = vmatpush1.bf16.msra.mxu0 0
        %5895 = vmatprep.subr.bf16.mxu0 0
        %5896 = vmatpush1.bf16.msra.mxu0 0
        %5897 = vmatprep.subr.bf16.mxu0 0
        %5898 = vmatpush1.bf16.msra.mxu0 0
        %5899 = vmatprep.subr.bf16.mxu0 0
        %5900 = vmatpush1.bf16.msra.mxu0 0
        %5901 = vmatprep.subr.bf16.mxu0 0
        %5902 = vmatpush1.bf16.msra.mxu0 0
        %5903 = vmatprep.mubr.bf16.mxu0 0
        %5904 = vmatmul.mubr.bf16.gmra.mrb[0].mxu0 %v5869
        %v5905 = vpop.f32.mrb[0].mxu0
        %v5906 = vadd.f32 %v5854, %v5905
        %v5907 = vpop.f32.mrb[0].mxu0
        %v5908 = vpop.f32.mrb[0].mxu0
        %v5909 = vpop.f32.mrb[0].mxu0
        %5910 = vdwg.mxu0
        %v5911 = vpack.c.bf16 %v5906, %v5906
        %5913 = vrot.lane.b32.xlu0 %v5911, 96
        %v5914 = vpop.permute.xlu0 %5913
        %v5916 = vsel %vm2595, %v5911, 0
        %v5919 = vsel %vm2595, %v5914, 0
        %5921 = vmatprep.subr.bf16.mxu0 0
        %5922 = vmatpush1.bf16.xpose.msra.mxu0 %v5919
        %5923 = vmatprep.subr.bf16.mxu0 0
        %5924 = vmatpush1.bf16.xpose.msra.mxu0 0
        %5925 = vmatprep.subr.bf16.mxu0 0
        %5926 = vmatpush1.bf16.xpose.msra.mxu0 0
        %5927 = vmatprep.subr.bf16.mxu0 0
        %5928 = vmatpush1.bf16.xpose.msra.mxu0 0
        %5929 = vmatprep.subr.bf16.mxu0 0
        %5930 = vmatpush1.bf16.xpose.msra.mxu0 0
        %5931 = vmatprep.subr.bf16.mxu0 0
        %5932 = vmatpush1.bf16.xpose.msra.mxu0 0
        %5933 = vmatprep.subr.bf16.mxu0 0
        %5934 = vmatpush1.bf16.xpose.msra.mxu0 0
        %5935 = vmatprep.subr.bf16.mxu0 0
        %5936 = vmatpush1.bf16.xpose.msra.mxu0 0
        %5937 = vmatprep.subr.bf16.mxu0 0
        %5938 = vmatpush1.bf16.xpose.msra.mxu0 0
        %5939 = vmatprep.subr.bf16.mxu0 0
        %5940 = vmatpush1.bf16.xpose.msra.mxu0 0
        %5941 = vmatprep.subr.bf16.mxu0 0
        %5942 = vmatpush1.bf16.xpose.msra.mxu0 0
        %5943 = vmatprep.subr.bf16.mxu0 0
        %5944 = vmatpush1.bf16.xpose.msra.mxu0 0
        %5945 = vmatprep.subr.bf16.mxu0 0
        %5946 = vmatpush1.bf16.xpose.msra.mxu0 0
        %5947 = vmatprep.subr.bf16.mxu0 0
        %5948 = vmatpush1.bf16.xpose.msra.mxu0 0
        %5949 = vmatprep.subr.bf16.mxu0 0
        %5950 = vmatpush1.bf16.xpose.msra.mxu0 0
        %5951 = vmatprep.subr.bf16.mxu0 0
        %5952 = vmatpush1.bf16.xpose.msra.mxu0 0
        %5953 = vmatprep.mubr.bf16.mxu0 0
        %5954 = vmatmul.mubr.bf16.gmra.mrb[0].mxu0 %v5916
        %v5955 = vpop.f32.mrb[0].mxu0
        %v5956 = vadd.f32 %v2521, %v5955
        %v5957 = vpop.f32.mrb[0].mxu0
        %v5958 = vpop.f32.mrb[0].mxu0
        %v5959 = vpop.f32.mrb[0].mxu0
        %5960 = vdwg.mxu0
        %v5961 = vsel %vm2595, %v5956, -inf
        %5962 = vmax.xlane.f32.xlu0 %v5961
        %v5963 = vpop.xlane.xlu0 %5962
        %v5964 = vsub.f32 %v5956, %v5963
        %v5965 = vmul.f32 %v5964, 1.442695
        %v5966 = vpow.pop %v5965
        %v5967 = vsel %vm2595, %v5966, 0.0
        %5968 = vadd.xlane.f32.xlu0 %v5967
        %v5969 = vpop.xlane.xlu0 %5968
        %v5970 = vrcp.pop %v5969
        %v5971 = vmul.f32 %v5966, %v5970
        %v5972 = vpack.c.bf16 %v5971, %v5971
        %5973 = vrot.lane.b32.xlu0 %v5911, 64
        %v5974 = vpop.permute.xlu0 %5973
        %v5976 = vsel %vm2595, %v5972, 0
        %v5979 = vsel %vm4498, %v5974, 0
        %5981 = vmatprep.subr.bf16.mxu0 0
        %5982 = vmatpush1.bf16.msra.mxu0 %v5979
        %5983 = vmatprep.subr.bf16.mxu0 0
        %5984 = vmatpush1.bf16.msra.mxu0 0
        %5985 = vmatprep.subr.bf16.mxu0 0
        %5986 = vmatpush1.bf16.msra.mxu0 0
        %5987 = vmatprep.subr.bf16.mxu0 0
        %5988 = vmatpush1.bf16.msra.mxu0 0
        %5989 = vmatprep.subr.bf16.mxu0 0
        %5990 = vmatpush1.bf16.msra.mxu0 0
        %5991 = vmatprep.subr.bf16.mxu0 0
        %5992 = vmatpush1.bf16.msra.mxu0 0
        %5993 = vmatprep.subr.bf16.mxu0 0
        %5994 = vmatpush1.bf16.msra.mxu0 0
        %5995 = vmatprep.subr.bf16.mxu0 0
        %5996 = vmatpush1.bf16.msra.mxu0 0
        %5997 = vmatprep.subr.bf16.mxu0 0
        %5998 = vmatpush1.bf16.msra.mxu0 0
        %5999 = vmatprep.subr.bf16.mxu0 0
        %6000 = vmatpush1.bf16.msra.mxu0 0
        %6001 = vmatprep.subr.bf16.mxu0 0
        %6002 = vmatpush1.bf16.msra.mxu0 0
        %6003 = vmatprep.subr.bf16.mxu0 0
        %6004 = vmatpush1.bf16.msra.mxu0 0
        %6005 = vmatprep.subr.bf16.mxu0 0
        %6006 = vmatpush1.bf16.msra.mxu0 0
        %6007 = vmatprep.subr.bf16.mxu0 0
        %6008 = vmatpush1.bf16.msra.mxu0 0
        %6009 = vmatprep.subr.bf16.mxu0 0
        %6010 = vmatpush1.bf16.msra.mxu0 0
        %6011 = vmatprep.subr.bf16.mxu0 0
        %6012 = vmatpush1.bf16.msra.mxu0 0
        %6013 = vmatprep.mubr.bf16.mxu0 0
        %6014 = vmatmul.mubr.bf16.gmra.mrb[0].mxu0 %v5976
        %v6015 = vpop.f32.mrb[0].mxu0
        %v6016 = vadd.f32 0.0, %v6015
        %v6017 = vpop.f32.mrb[0].mxu0
        %v6018 = vpop.f32.mrb[0].mxu0
        %v6019 = vpop.f32.mrb[0].mxu0
        %6020 = vdwg.mxu0
        %6021 = vrot.lane.b32.xlu0 %v5911, 120
        %v6022 = vpop.permute.xlu0 %6021
        %6023 = vrot.lane.b32.xlu0 %v5911, 88
        %v6024 = vpop.permute.xlu0 %6023
        %v6026 = vsel %vm2595, %v6022, 0
        %v6029 = vsel %vm2595, %v6024, 0
        %6031 = vmatprep.subr.bf16.mxu0 0
        %6032 = vmatpush1.bf16.xpose.msra.mxu0 %v6029
        %6033 = vmatprep.subr.bf16.mxu0 0
        %6034 = vmatpush1.bf16.xpose.msra.mxu0 0
        %6035 = vmatprep.subr.bf16.mxu0 0
        %6036 = vmatpush1.bf16.xpose.msra.mxu0 0
        %6037 = vmatprep.subr.bf16.mxu0 0
        %6038 = vmatpush1.bf16.xpose.msra.mxu0 0
        %6039 = vmatprep.subr.bf16.mxu0 0
        %6040 = vmatpush1.bf16.xpose.msra.mxu0 0
        %6041 = vmatprep.subr.bf16.mxu0 0
        %6042 = vmatpush1.bf16.xpose.msra.mxu0 0
        %6043 = vmatprep.subr.bf16.mxu0 0
        %6044 = vmatpush1.bf16.xpose.msra.mxu0 0
        %6045 = vmatprep.subr.bf16.mxu0 0
        %6046 = vmatpush1.bf16.xpose.msra.mxu0 0
        %6047 = vmatprep.subr.bf16.mxu0 0
        %6048 = vmatpush1.bf16.xpose.msra.mxu0 0
        %6049 = vmatprep.subr.bf16.mxu0 0
        %6050 = vmatpush1.bf16.xpose.msra.mxu0 0
        %6051 = vmatprep.subr.bf16.mxu0 0
        %6052 = vmatpush1.bf16.xpose.msra.mxu0 0
        %6053 = vmatprep.subr.bf16.mxu0 0
        %6054 = vmatpush1.bf16.xpose.msra.mxu0 0
        %6055 = vmatprep.subr.bf16.mxu0 0
        %6056 = vmatpush1.bf16.xpose.msra.mxu0 0
        %6057 = vmatprep.subr.bf16.mxu0 0
        %6058 = vmatpush1.bf16.xpose.msra.mxu0 0
        %6059 = vmatprep.subr.bf16.mxu0 0
        %6060 = vmatpush1.bf16.xpose.msra.mxu0 0
        %6061 = vmatprep.subr.bf16.mxu0 0
        %6062 = vmatpush1.bf16.xpose.msra.mxu0 0
        %6063 = vmatprep.mubr.bf16.mxu0 0
        %6064 = vmatmul.mubr.bf16.gmra.mrb[0].mxu0 %v6026
        %v6065 = vpop.f32.mrb[0].mxu0
        %v6066 = vadd.f32 %v2521, %v6065
        %v6067 = vpop.f32.mrb[0].mxu0
        %v6068 = vpop.f32.mrb[0].mxu0
        %v6069 = vpop.f32.mrb[0].mxu0
        %6070 = vdwg.mxu0
        %v6071 = vsel %vm2595, %v6066, -inf
        %6072 = vmax.xlane.f32.xlu0 %v6071
        %v6073 = vpop.xlane.xlu0 %6072
        %v6074 = vsub.f32 %v6066, %v6073
        %v6075 = vmul.f32 %v6074, 1.442695
        %v6076 = vpow.pop %v6075
        %v6077 = vsel %vm2595, %v6076, 0.0
        %6078 = vadd.xlane.f32.xlu0 %v6077
        %v6079 = vpop.xlane.xlu0 %6078
        %v6080 = vrcp.pop %v6079
        %v6081 = vmul.f32 %v6076, %v6080
        %v6082 = vpack.c.bf16 %v6081, %v6081
        %6083 = vrot.lane.b32.xlu0 %v5911, 56
        %v6084 = vpop.permute.xlu0 %6083
        %v6086 = vsel %vm2595, %v6082, 0
        %v6089 = vsel %vm4498, %v6084, 0
        %6091 = vmatprep.subr.bf16.mxu0 0
        %6092 = vmatpush1.bf16.msra.mxu0 %v6089
        %6093 = vmatprep.subr.bf16.mxu0 0
        %6094 = vmatpush1.bf16.msra.mxu0 0
        %6095 = vmatprep.subr.bf16.mxu0 0
        %6096 = vmatpush1.bf16.msra.mxu0 0
        %6097 = vmatprep.subr.bf16.mxu0 0
        %6098 = vmatpush1.bf16.msra.mxu0 0
        %6099 = vmatprep.subr.bf16.mxu0 0
        %6100 = vmatpush1.bf16.msra.mxu0 0
        %6101 = vmatprep.subr.bf16.mxu0 0
        %6102 = vmatpush1.bf16.msra.mxu0 0
        %6103 = vmatprep.subr.bf16.mxu0 0
        %6104 = vmatpush1.bf16.msra.mxu0 0
        %6105 = vmatprep.subr.bf16.mxu0 0
        %6106 = vmatpush1.bf16.msra.mxu0 0
        %6107 = vmatprep.subr.bf16.mxu0 0
        %6108 = vmatpush1.bf16.msra.mxu0 0
        %6109 = vmatprep.subr.bf16.mxu0 0
        %6110 = vmatpush1.bf16.msra.mxu0 0
        %6111 = vmatprep.subr.bf16.mxu0 0
        %6112 = vmatpush1.bf16.msra.mxu0 0
        %6113 = vmatprep.subr.bf16.mxu0 0
        %6114 = vmatpush1.bf16.msra.mxu0 0
        %6115 = vmatprep.subr.bf16.mxu0 0
        %6116 = vmatpush1.bf16.msra.mxu0 0
        %6117 = vmatprep.subr.bf16.mxu0 0
        %6118 = vmatpush1.bf16.msra.mxu0 0
        %6119 = vmatprep.subr.bf16.mxu0 0
        %6120 = vmatpush1.bf16.msra.mxu0 0
        %6121 = vmatprep.subr.bf16.mxu0 0
        %6122 = vmatpush1.bf16.msra.mxu0 0
        %6123 = vmatprep.mubr.bf16.mxu0 0
        %6124 = vmatmul.mubr.bf16.gmra.mrb[0].mxu0 %v6086
        %v6125 = vpop.f32.mrb[0].mxu0
        %v6126 = vadd.f32 0.0, %v6125
        %v6127 = vpop.f32.mrb[0].mxu0
        %v6128 = vpop.f32.mrb[0].mxu0
        %v6129 = vpop.f32.mrb[0].mxu0
        %6130 = vdwg.mxu0
        %6131 = vrot.lane.b32.xlu0 %v5911, 112
        %v6132 = vpop.permute.xlu0 %6131
        %6133 = vrot.lane.b32.xlu0 %v5911, 80
        %v6134 = vpop.permute.xlu0 %6133
        %v6136 = vsel %vm2595, %v6132, 0
        %v6139 = vsel %vm2595, %v6134, 0
        %6141 = vmatprep.subr.bf16.mxu0 0
        %6142 = vmatpush1.bf16.xpose.msra.mxu0 %v6139
        %6143 = vmatprep.subr.bf16.mxu0 0
        %6144 = vmatpush1.bf16.xpose.msra.mxu0 0
        %6145 = vmatprep.subr.bf16.mxu0 0
        %6146 = vmatpush1.bf16.xpose.msra.mxu0 0
        %6147 = vmatprep.subr.bf16.mxu0 0
        %6148 = vmatpush1.bf16.xpose.msra.mxu0 0
        %6149 = vmatprep.subr.bf16.mxu0 0
        %6150 = vmatpush1.bf16.xpose.msra.mxu0 0
        %6151 = vmatprep.subr.bf16.mxu0 0
        %6152 = vmatpush1.bf16.xpose.msra.mxu0 0
        %6153 = vmatprep.subr.bf16.mxu0 0
        %6154 = vmatpush1.bf16.xpose.msra.mxu0 0
        %6155 = vmatprep.subr.bf16.mxu0 0
        %6156 = vmatpush1.bf16.xpose.msra.mxu0 0
        %6157 = vmatprep.subr.bf16.mxu0 0
        %6158 = vmatpush1.bf16.xpose.msra.mxu0 0
        %6159 = vmatprep.subr.bf16.mxu0 0
        %6160 = vmatpush1.bf16.xpose.msra.mxu0 0
        %6161 = vmatprep.subr.bf16.mxu0 0
        %6162 = vmatpush1.bf16.xpose.msra.mxu0 0
        %6163 = vmatprep.subr.bf16.mxu0 0
        %6164 = vmatpush1.bf16.xpose.msra.mxu0 0
        %6165 = vmatprep.subr.bf16.mxu0 0
        %6166 = vmatpush1.bf16.xpose.msra.mxu0 0
        %6167 = vmatprep.subr.bf16.mxu0 0
        %6168 = vmatpush1.bf16.xpose.msra.mxu0 0
        %6169 = vmatprep.subr.bf16.mxu0 0
        %6170 = vmatpush1.bf16.xpose.msra.mxu0 0
        %6171 = vmatprep.subr.bf16.mxu0 0
        %6172 = vmatpush1.bf16.xpose.msra.mxu0 0
        %6173 = vmatprep.mubr.bf16.mxu0 0
        %6174 = vmatmul.mubr.bf16.gmra.mrb[0].mxu0 %v6136
        %v6175 = vpop.f32.mrb[0].mxu0
        %v6176 = vadd.f32 %v2521, %v6175
        %v6177 = vpop.f32.mrb[0].mxu0
        %v6178 = vpop.f32.mrb[0].mxu0
        %v6179 = vpop.f32.mrb[0].mxu0
        %6180 = vdwg.mxu0
        %v6181 = vsel %vm2595, %v6176, -inf
        %6182 = vmax.xlane.f32.xlu0 %v6181
        %v6183 = vpop.xlane.xlu0 %6182
        %v6184 = vsub.f32 %v6176, %v6183
        %v6185 = vmul.f32 %v6184, 1.442695
        %v6186 = vpow.pop %v6185
        %v6187 = vsel %vm2595, %v6186, 0.0
        %6188 = vadd.xlane.f32.xlu0 %v6187
        %v6189 = vpop.xlane.xlu0 %6188
        %v6190 = vrcp.pop %v6189
        %v6191 = vmul.f32 %v6186, %v6190
        %v6192 = vpack.c.bf16 %v6191, %v6191
        %6193 = vrot.lane.b32.xlu0 %v5911, 48
        %v6194 = vpop.permute.xlu0 %6193
        %v6196 = vsel %vm2595, %v6192, 0
        %v6199 = vsel %vm4498, %v6194, 0
        %6201 = vmatprep.subr.bf16.mxu0 0
        %6202 = vmatpush1.bf16.msra.mxu0 %v6199
        %6203 = vmatprep.subr.bf16.mxu0 0
        %6204 = vmatpush1.bf16.msra.mxu0 0
        %6205 = vmatprep.subr.bf16.mxu0 0
        %6206 = vmatpush1.bf16.msra.mxu0 0
        %6207 = vmatprep.subr.bf16.mxu0 0
        %6208 = vmatpush1.bf16.msra.mxu0 0
        %6209 = vmatprep.subr.bf16.mxu0 0
        %6210 = vmatpush1.bf16.msra.mxu0 0
        %6211 = vmatprep.subr.bf16.mxu0 0
        %6212 = vmatpush1.bf16.msra.mxu0 0
        %6213 = vmatprep.subr.bf16.mxu0 0
        %6214 = vmatpush1.bf16.msra.mxu0 0
        %6215 = vmatprep.subr.bf16.mxu0 0
        %6216 = vmatpush1.bf16.msra.mxu0 0
        %6217 = vmatprep.subr.bf16.mxu0 0
        %6218 = vmatpush1.bf16.msra.mxu0 0
        %6219 = vmatprep.subr.bf16.mxu0 0
        %6220 = vmatpush1.bf16.msra.mxu0 0
        %6221 = vmatprep.subr.bf16.mxu0 0
        %6222 = vmatpush1.bf16.msra.mxu0 0
        %6223 = vmatprep.subr.bf16.mxu0 0
        %6224 = vmatpush1.bf16.msra.mxu0 0
        %6225 = vmatprep.subr.bf16.mxu0 0
        %6226 = vmatpush1.bf16.msra.mxu0 0
        %6227 = vmatprep.subr.bf16.mxu0 0
        %6228 = vmatpush1.bf16.msra.mxu0 0
        %6229 = vmatprep.subr.bf16.mxu0 0
        %6230 = vmatpush1.bf16.msra.mxu0 0
        %6231 = vmatprep.subr.bf16.mxu0 0
        %6232 = vmatpush1.bf16.msra.mxu0 0
        %6233 = vmatprep.mubr.bf16.mxu0 0
        %6234 = vmatmul.mubr.bf16.gmra.mrb[0].mxu0 %v6196
        %v6235 = vpop.f32.mrb[0].mxu0
        %v6236 = vadd.f32 0.0, %v6235
        %v6237 = vpop.f32.mrb[0].mxu0
        %v6238 = vpop.f32.mrb[0].mxu0
        %v6239 = vpop.f32.mrb[0].mxu0
        %6240 = vdwg.mxu0
        %6241 = vrot.lane.b32.xlu0 %v5911, 104
        %v6242 = vpop.permute.xlu0 %6241
        %6243 = vrot.lane.b32.xlu0 %v5911, 72
        %v6244 = vpop.permute.xlu0 %6243
        %v6246 = vsel %vm2595, %v6242, 0
        %v6249 = vsel %vm2595, %v6244, 0
        %6251 = vmatprep.subr.bf16.mxu0 0
        %6252 = vmatpush1.bf16.xpose.msra.mxu0 %v6249
        %6253 = vmatprep.subr.bf16.mxu0 0
        %6254 = vmatpush1.bf16.xpose.msra.mxu0 0
        %6255 = vmatprep.subr.bf16.mxu0 0
        %6256 = vmatpush1.bf16.xpose.msra.mxu0 0
        %6257 = vmatprep.subr.bf16.mxu0 0
        %6258 = vmatpush1.bf16.xpose.msra.mxu0 0
        %6259 = vmatprep.subr.bf16.mxu0 0
        %6260 = vmatpush1.bf16.xpose.msra.mxu0 0
        %6261 = vmatprep.subr.bf16.mxu0 0
        %6262 = vmatpush1.bf16.xpose.msra.mxu0 0
        %6263 = vmatprep.subr.bf16.mxu0 0
        %6264 = vmatpush1.bf16.xpose.msra.mxu0 0
        %6265 = vmatprep.subr.bf16.mxu0 0
        %6266 = vmatpush1.bf16.xpose.msra.mxu0 0
        %6267 = vmatprep.subr.bf16.mxu0 0
        %6268 = vmatpush1.bf16.xpose.msra.mxu0 0
        %6269 = vmatprep.subr.bf16.mxu0 0
        %6270 = vmatpush1.bf16.xpose.msra.mxu0 0
        %6271 = vmatprep.subr.bf16.mxu0 0
        %6272 = vmatpush1.bf16.xpose.msra.mxu0 0
        %6273 = vmatprep.subr.bf16.mxu0 0
        %6274 = vmatpush1.bf16.xpose.msra.mxu0 0
        %6275 = vmatprep.subr.bf16.mxu0 0
        %6276 = vmatpush1.bf16.xpose.msra.mxu0 0
        %6277 = vmatprep.subr.bf16.mxu0 0
        %6278 = vmatpush1.bf16.xpose.msra.mxu0 0
        %6279 = vmatprep.subr.bf16.mxu0 0
        %6280 = vmatpush1.bf16.xpose.msra.mxu0 0
        %6281 = vmatprep.subr.bf16.mxu0 0
        %6282 = vmatpush1.bf16.xpose.msra.mxu0 0
        %6283 = vmatprep.mubr.bf16.mxu0 0
        %6284 = vmatmul.mubr.bf16.gmra.mrb[0].mxu0 %v6246
        %v6285 = vpop.f32.mrb[0].mxu0
        %v6286 = vadd.f32 %v2521, %v6285
        %v6287 = vpop.f32.mrb[0].mxu0
        %v6288 = vpop.f32.mrb[0].mxu0
        %v6289 = vpop.f32.mrb[0].mxu0
        %6290 = vdwg.mxu0
        %v6291 = vsel %vm2595, %v6286, -inf
        %6292 = vmax.xlane.f32.xlu0 %v6291
        %v6293 = vpop.xlane.xlu0 %6292
        %v6294 = vsub.f32 %v6286, %v6293
        %v6295 = vmul.f32 %v6294, 1.442695
        %v6296 = vpow.pop %v6295
        %v6297 = vsel %vm2595, %v6296, 0.0
        %6298 = vadd.xlane.f32.xlu0 %v6297
        %v6299 = vpop.xlane.xlu0 %6298
        %v6300 = vrcp.pop %v6299
        %v6301 = vmul.f32 %v6296, %v6300
        %v6302 = vpack.c.bf16 %v6301, %v6301
        %6303 = vrot.lane.b32.xlu0 %v5911, 40
        %v6304 = vpop.permute.xlu0 %6303
        %v6306 = vsel %vm2595, %v6302, 0
        %v6309 = vsel %vm4498, %v6304, 0
        %6311 = vmatprep.subr.bf16.mxu0 0
        %6312 = vmatpush1.bf16.msra.mxu0 %v6309
        %6313 = vmatprep.subr.bf16.mxu0 0
        %6314 = vmatpush1.bf16.msra.mxu0 0
        %6315 = vmatprep.subr.bf16.mxu0 0
        %6316 = vmatpush1.bf16.msra.mxu0 0
        %6317 = vmatprep.subr.bf16.mxu0 0
        %6318 = vmatpush1.bf16.msra.mxu0 0
        %6319 = vmatprep.subr.bf16.mxu0 0
        %6320 = vmatpush1.bf16.msra.mxu0 0
        %6321 = vmatprep.subr.bf16.mxu0 0
        %6322 = vmatpush1.bf16.msra.mxu0 0
        %6323 = vmatprep.subr.bf16.mxu0 0
        %6324 = vmatpush1.bf16.msra.mxu0 0
        %6325 = vmatprep.subr.bf16.mxu0 0
        %6326 = vmatpush1.bf16.msra.mxu0 0
        %6327 = vmatprep.subr.bf16.mxu0 0
        %6328 = vmatpush1.bf16.msra.mxu0 0
        %6329 = vmatprep.subr.bf16.mxu0 0
        %6330 = vmatpush1.bf16.msra.mxu0 0
        %6331 = vmatprep.subr.bf16.mxu0 0
        %6332 = vmatpush1.bf16.msra.mxu0 0
        %6333 = vmatprep.subr.bf16.mxu0 0
        %6334 = vmatpush1.bf16.msra.mxu0 0
        %6335 = vmatprep.subr.bf16.mxu0 0
        %6336 = vmatpush1.bf16.msra.mxu0 0
        %6337 = vmatprep.subr.bf16.mxu0 0
        %6338 = vmatpush1.bf16.msra.mxu0 0
        %6339 = vmatprep.subr.bf16.mxu0 0
        %6340 = vmatpush1.bf16.msra.mxu0 0
        %6341 = vmatprep.subr.bf16.mxu0 0
        %6342 = vmatpush1.bf16.msra.mxu0 0
        %6343 = vmatprep.mubr.bf16.mxu0 0
        %6344 = vmatmul.mubr.bf16.gmra.mrb[0].mxu0 %v6306
        %v6345 = vpop.f32.mrb[0].mxu0
        %v6346 = vadd.f32 0.0, %v6345
        %v6347 = vpop.f32.mrb[0].mxu0
        %v6348 = vpop.f32.mrb[0].mxu0
        %v6349 = vpop.f32.mrb[0].mxu0
        %6350 = vdwg.mxu0
        %6352 = vrot.lane.b32.xlu0 %v6126, 8
        %v6353 = vpop.permute.xlu0 %6352
        %6356 = vrot.lane.b32.xlu0 %v6236, 16
        %v6357 = vpop.permute.xlu0 %6356
        %6360 = vrot.lane.b32.xlu0 %v6346, 24
        %v6361 = vpop.permute.xlu0 %6360
        %v6363 = vsel %vm2595, %v6016, %v6353
        %v6364 = vsel %vm2643, %v6363, %v6357
        %v6365 = vsel %vm3105, %v6364, %v6361
        %v6366 = vld [vmem:[%s101] sm:$0xf]
        %v6367 = vld [vmem:[%s101 + $0x4] sm:$0xf]
        %v6368 = vld [vmem:[%s101 + $0x8] sm:$0xf]
        %v6369 = vld [vmem:[%s101 + $0xc] sm:$0xf]
        %v6370 = vpack.c.bf16 %v6365, %v6365
        %v6371 = vld [vmem:[#allocation27] sm:$0x1]
        %v6373 = vlaneseq
        %v6374 = vshrl.u32 %v6373, 7
        %v6375 = vsub.s32 0, %v6374
        %v6376 = vrot.slane %v6371, %v6375
        %v6382 = vunpack.c.l.b16 %v6366
        %v6383 = vunpack.c.l.b16 %v6367
        %v6384 = vunpack.c.l.b16 %v6368
        %v6385 = vunpack.c.l.b16 %v6369
        %v6386 = vpack.c.b16 %v6383, %v6382
        %v6387 = vpack.c.b16 %v6385, %v6384
        %v6391 = vsel %vm2546, %v6370, 0
        %6393 = vmatprep.subr.bf16.mxu0 0
        %6394 = vmatpush1.bf16.msra.mxu0 %v6386
        %6395 = vmatprep.subr.bf16.mxu0 0
        %6396 = vmatpush1.bf16.msra.mxu0 %v6387
        %6397 = vmatprep.subr.bf16.mxu0 0
        %6398 = vmatpush1.bf16.msra.mxu0 0
        %6399 = vmatprep.subr.bf16.mxu0 0
        %6400 = vmatpush1.bf16.msra.mxu0 0
        %6401 = vmatprep.subr.bf16.mxu0 0
        %6402 = vmatpush1.bf16.msra.mxu0 0
        %6403 = vmatprep.subr.bf16.mxu0 0
        %6404 = vmatpush1.bf16.msra.mxu0 0
        %6405 = vmatprep.subr.bf16.mxu0 0
        %6406 = vmatpush1.bf16.msra.mxu0 0
        %6407 = vmatprep.subr.bf16.mxu0 0
        %6408 = vmatpush1.bf16.msra.mxu0 0
        %6409 = vmatprep.subr.bf16.mxu0 0
        %6410 = vmatpush1.bf16.msra.mxu0 0
        %6411 = vmatprep.subr.bf16.mxu0 0
        %6412 = vmatpush1.bf16.msra.mxu0 0
        %6413 = vmatprep.subr.bf16.mxu0 0
        %6414 = vmatpush1.bf16.msra.mxu0 0
        %6415 = vmatprep.subr.bf16.mxu0 0
        %6416 = vmatpush1.bf16.msra.mxu0 0
        %6417 = vmatprep.subr.bf16.mxu0 0
        %6418 = vmatpush1.bf16.msra.mxu0 0
        %6419 = vmatprep.subr.bf16.mxu0 0
        %6420 = vmatpush1.bf16.msra.mxu0 0
        %6421 = vmatprep.subr.bf16.mxu0 0
        %6422 = vmatpush1.bf16.msra.mxu0 0
        %6423 = vmatprep.subr.bf16.mxu0 0
        %6424 = vmatpush1.bf16.msra.mxu0 0
        %6425 = vmatprep.mubr.bf16.mxu0 0
        %6426 = vmatmul.mubr.bf16.gmra.mrb[0].mxu0 %v6391
        %v6427 = vpop.f32.mrb[0].mxu0
        %v6428 = vadd.f32 %v6376, %v6427
        %v6429 = vpop.f32.mrb[0].mxu0
        %v6430 = vpop.f32.mrb[0].mxu0
        %v6431 = vpop.f32.mrb[0].mxu0
        %6432 = vdwg.mxu0
        %v6433 = vadd.f32 %v6428, %v5843
        %v6434 = vld [vmem:[#allocation28] sm:$0x1]
        %v6435 = vld [vmem:[#allocation30] sm:$0x1]
        %v6436 = vsel %vm2546, %v6433, 0.0
        %6437 = vadd.xlane.f32.xlu0 %v6436
        %v6438 = vpop.xlane.xlu0 %6437
        %v6439 = vmul.f32 %v6438, %v3186
        %v6440 = vsub.f32 %v6433, %v6439
        %v6441 = vmul.f32 %v6440, %v6440
        %v6442 = vsel %vm2546, %v6441, 0.0
        %6443 = vadd.xlane.f32.xlu0 %v6442
        %v6444 = vpop.xlane.xlu0 %6443
        %v6445 = vmul.f32 %v6444, %v3186
        %v6446 = vadd.f32 %v6445, 1e-05
        %v6447 = vrsqrt.pop %v6446
        %v6448 = vmul.f32 %v6440, %v6447
        %v6450 = vlaneseq
        %v6451 = vshrl.u32 %v6450, 7
        %v6452 = vsub.s32 0, %v6451
        %v6453 = vrot.slane %v6434, %v6452
        %v6455 = vmul.f32 %v6448, %v6453
        %v6457 = vlaneseq
        %v6458 = vshrl.u32 %v6457, 7
        %v6459 = vsub.s32 0, %v6458
        %v6460 = vrot.slane %v6435, %v6459
        %v6462 = vadd.f32 %v6455, %v6460
        %v6463 = vld [vmem:[%s109] sm:$0xf]
        %v6464 = vld [vmem:[%s109 + $0x4] sm:$0xf]
        %v6465 = vld [vmem:[%s109 + $0x8] sm:$0xf]
        %v6466 = vld [vmem:[%s109 + $0xc] sm:$0xf]
        %v6467 = vpack.c.bf16 %v6462, %v6462
        %v6468 = vld [vmem:[#allocation31] sm:$0x1]
        %v6470 = vlaneseq
        %v6471 = vshrl.u32 %v6470, 7
        %v6472 = vsub.s32 0, %v6471
        %v6473 = vrot.slane %v6468, %v6472
        %v6479 = vunpack.c.l.b16 %v6463
        %v6480 = vunpack.c.l.b16 %v6464
        %v6481 = vunpack.c.l.b16 %v6465
        %v6482 = vunpack.c.l.b16 %v6466
        %v6483 = vpack.c.b16 %v6480, %v6479
        %v6484 = vpack.c.b16 %v6482, %v6481
        %v6488 = vsel %vm2546, %v6467, 0
        %6490 = vmatprep.subr.bf16.mxu0 0
        %6491 = vmatpush1.bf16.msra.mxu0 %v6483
        %6492 = vmatprep.subr.bf16.mxu0 0
        %6493 = vmatpush1.bf16.msra.mxu0 %v6484
        %6494 = vmatprep.subr.bf16.mxu0 0
        %6495 = vmatpush1.bf16.msra.mxu0 0
        %6496 = vmatprep.subr.bf16.mxu0 0
        %6497 = vmatpush1.bf16.msra.mxu0 0
        %6498 = vmatprep.subr.bf16.mxu0 0
        %6499 = vmatpush1.bf16.msra.mxu0 0
        %6500 = vmatprep.subr.bf16.mxu0 0
        %6501 = vmatpush1.bf16.msra.mxu0 0
        %6502 = vmatprep.subr.bf16.mxu0 0
        %6503 = vmatpush1.bf16.msra.mxu0 0
        %6504 = vmatprep.subr.bf16.mxu0 0
        %6505 = vmatpush1.bf16.msra.mxu0 0
        %6506 = vmatprep.subr.bf16.mxu0 0
        %6507 = vmatpush1.bf16.msra.mxu0 0
        %6508 = vmatprep.subr.bf16.mxu0 0
        %6509 = vmatpush1.bf16.msra.mxu0 0
        %6510 = vmatprep.subr.bf16.mxu0 0
        %6511 = vmatpush1.bf16.msra.mxu0 0
        %6512 = vmatprep.subr.bf16.mxu0 0
        %6513 = vmatpush1.bf16.msra.mxu0 0
        %6514 = vmatprep.subr.bf16.mxu0 0
        %6515 = vmatpush1.bf16.msra.mxu0 0
        %6516 = vmatprep.subr.bf16.mxu0 0
        %6517 = vmatpush1.bf16.msra.mxu0 0
        %6518 = vmatprep.subr.bf16.mxu0 0
        %6519 = vmatpush1.bf16.msra.mxu0 0
        %6520 = vmatprep.subr.bf16.mxu0 0
        %6521 = vmatpush1.bf16.msra.mxu0 0
        %6522 = vmatprep.mubr.bf16.mxu0 0
        %6523 = vmatmul.mubr.bf16.gmra.mrb[0].mxu0 %v6488
        %v6524 = vpop.f32.mrb[0].mxu0
        %v6525 = vadd.f32 %v6473, %v6524
        %v6526 = vpop.f32.mrb[0].mxu0
        %v6527 = vpop.f32.mrb[0].mxu0
        %v6528 = vpop.f32.mrb[0].mxu0
        %6529 = vdwg.mxu0
        %v6530 = vld [vmem:[%s113] sm:$0xf]
        %v6531 = vld [vmem:[%s113 + $0x4] sm:$0xf]
        %v6532 = vld [vmem:[%s113 + $0x8] sm:$0xf]
        %v6533 = vld [vmem:[%s113 + $0xc] sm:$0xf]
        %v6534 = vld [vmem:[#allocation33] sm:$0x1]
        %v6536 = vlaneseq
        %v6537 = vshrl.u32 %v6536, 7
        %v6538 = vsub.s32 0, %v6537
        %v6539 = vrot.slane %v6534, %v6538
        %v6545 = vunpack.c.l.b16 %v6530
        %v6546 = vunpack.c.l.b16 %v6531
        %v6547 = vunpack.c.l.b16 %v6532
        %v6548 = vunpack.c.l.b16 %v6533
        %v6549 = vpack.c.b16 %v6546, %v6545
        %v6550 = vpack.c.b16 %v6548, %v6547
        %6553 = vmatprep.subr.bf16.mxu0 0
        %6554 = vmatpush1.bf16.msra.mxu0 %v6549
        %6555 = vmatprep.subr.bf16.mxu0 0
        %6556 = vmatpush1.bf16.msra.mxu0 %v6550
        %6557 = vmatprep.subr.bf16.mxu0 0
        %6558 = vmatpush1.bf16.msra.mxu0 0
        %6559 = vmatprep.subr.bf16.mxu0 0
        %6560 = vmatpush1.bf16.msra.mxu0 0
        %6561 = vmatprep.subr.bf16.mxu0 0
        %6562 = vmatpush1.bf16.msra.mxu0 0
        %6563 = vmatprep.subr.bf16.mxu0 0
        %6564 = vmatpush1.bf16.msra.mxu0 0
        %6565 = vmatprep.subr.bf16.mxu0 0
        %6566 = vmatpush1.bf16.msra.mxu0 0
        %6567 = vmatprep.subr.bf16.mxu0 0
        %6568 = vmatpush1.bf16.msra.mxu0 0
        %6569 = vmatprep.subr.bf16.mxu0 0
        %6570 = vmatpush1.bf16.msra.mxu0 0
        %6571 = vmatprep.subr.bf16.mxu0 0
        %6572 = vmatpush1.bf16.msra.mxu0 0
        %6573 = vmatprep.subr.bf16.mxu0 0
        %6574 = vmatpush1.bf16.msra.mxu0 0
        %6575 = vmatprep.subr.bf16.mxu0 0
        %6576 = vmatpush1.bf16.msra.mxu0 0
        %6577 = vmatprep.subr.bf16.mxu0 0
        %6578 = vmatpush1.bf16.msra.mxu0 0
        %6579 = vmatprep.subr.bf16.mxu0 0
        %6580 = vmatpush1.bf16.msra.mxu0 0
        %6581 = vmatprep.subr.bf16.mxu0 0
        %6582 = vmatpush1.bf16.msra.mxu0 0
        %6583 = vmatprep.subr.bf16.mxu0 0
        %6584 = vmatpush1.bf16.msra.mxu0 0
        %6585 = vmatprep.mubr.bf16.mxu0 0
        %6586 = vmatmul.mubr.bf16.gmra.mrb[0].mxu0 %v5076
        %v6587 = vpop.f32.mrb[0].mxu0
        %v6588 = vadd.f32 %v6539, %v6587
        %v6589 = vpop.f32.mrb[0].mxu0
        %v6590 = vpop.f32.mrb[0].mxu0
        %v6591 = vadd.f32 %v6539, %v6590
        %v6592 = vpop.f32.mrb[0].mxu0
        %6593 = vdwg.mxu0
        %v6594 = vpack.c.bf16 %v6525, %v6525
        %v6595 = vpack.c.bf16 %v6591, %v6588
        %v6597 = vsel %vm2595, %v6594, 0
        %v6600 = vsel %vm2595, %v6595, 0
        %6602 = vmatprep.subr.bf16.mxu0 0
        %6603 = vmatpush1.bf16.xpose.msra.mxu0 %v6600
        %6604 = vmatprep.subr.bf16.mxu0 0
        %6605 = vmatpush1.bf16.xpose.msra.mxu0 0
        %6606 = vmatprep.subr.bf16.mxu0 0
        %6607 = vmatpush1.bf16.xpose.msra.mxu0 0
        %6608 = vmatprep.subr.bf16.mxu0 0
        %6609 = vmatpush1.bf16.xpose.msra.mxu0 0
        %6610 = vmatprep.subr.bf16.mxu0 0
        %6611 = vmatpush1.bf16.xpose.msra.mxu0 0
        %6612 = vmatprep.subr.bf16.mxu0 0
        %6613 = vmatpush1.bf16.xpose.msra.mxu0 0
        %6614 = vmatprep.subr.bf16.mxu0 0
        %6615 = vmatpush1.bf16.xpose.msra.mxu0 0
        %6616 = vmatprep.subr.bf16.mxu0 0
        %6617 = vmatpush1.bf16.xpose.msra.mxu0 0
        %6618 = vmatprep.subr.bf16.mxu0 0
        %6619 = vmatpush1.bf16.xpose.msra.mxu0 0
        %6620 = vmatprep.subr.bf16.mxu0 0
        %6621 = vmatpush1.bf16.xpose.msra.mxu0 0
        %6622 = vmatprep.subr.bf16.mxu0 0
        %6623 = vmatpush1.bf16.xpose.msra.mxu0 0
        %6624 = vmatprep.subr.bf16.mxu0 0
        %6625 = vmatpush1.bf16.xpose.msra.mxu0 0
        %6626 = vmatprep.subr.bf16.mxu0 0
        %6627 = vmatpush1.bf16.xpose.msra.mxu0 0
        %6628 = vmatprep.subr.bf16.mxu0 0
        %6629 = vmatpush1.bf16.xpose.msra.mxu0 0
        %6630 = vmatprep.subr.bf16.mxu0 0
        %6631 = vmatpush1.bf16.xpose.msra.mxu0 0
        %6632 = vmatprep.subr.bf16.mxu0 0
        %6633 = vmatpush1.bf16.xpose.msra.mxu0 0
        %6634 = vmatprep.mubr.bf16.mxu0 0
        %6635 = vmatmul.mubr.bf16.gmra.mrb[0].mxu0 %v6597
        %v6636 = vpop.f32.mrb[0].mxu0
        %v6637 = vadd.f32 %v2517, %v6636
        %v6638 = vpop.f32.mrb[0].mxu0
        %v6639 = vpop.f32.mrb[0].mxu0
        %v6640 = vpop.f32.mrb[0].mxu0
        %6641 = vdwg.mxu0
        %v6642 = vsel %vm2643, %v6637, -inf
        %6643 = vmax.xlane.f32.xlu0 %v6642
        %v6644 = vpop.xlane.xlu0 %6643
        %v6645 = vsub.f32 %v6637, %v6644
        %v6646 = vmul.f32 %v6645, 1.442695
        %v6647 = vpow.pop %v6646
        %v6648 = vsel %vm2643, %v6647, 0.0
        %6649 = vadd.xlane.f32.xlu0 %v6648
        %v6650 = vpop.xlane.xlu0 %6649
        %v6651 = vrcp.pop %v6650
        %v6652 = vmul.f32 %v6647, %v6651
        %v6653 = vpack.c.bf16 %v6652, %v6652
        %6655 = vrot.lane.b32.xlu0 %v6595, 96
        %v6656 = vpop.permute.xlu0 %6655
        %v6659 = vsel %vm2643, %v6653, 0
        %6661 = vmatprep.subr.bf16.mxu0 0
        %6662 = vmatpush1.bf16.msra.mxu0 %v6656
        %6663 = vmatprep.subr.bf16.mxu0 0
        %6664 = vmatpush1.bf16.msra.mxu0 0
        %6665 = vmatprep.subr.bf16.mxu0 0
        %6666 = vmatpush1.bf16.msra.mxu0 0
        %6667 = vmatprep.subr.bf16.mxu0 0
        %6668 = vmatpush1.bf16.msra.mxu0 0
        %6669 = vmatprep.subr.bf16.mxu0 0
        %6670 = vmatpush1.bf16.msra.mxu0 0
        %6671 = vmatprep.subr.bf16.mxu0 0
        %6672 = vmatpush1.bf16.msra.mxu0 0
        %6673 = vmatprep.subr.bf16.mxu0 0
        %6674 = vmatpush1.bf16.msra.mxu0 0
        %6675 = vmatprep.subr.bf16.mxu0 0
        %6676 = vmatpush1.bf16.msra.mxu0 0
        %6677 = vmatprep.subr.bf16.mxu0 0
        %6678 = vmatpush1.bf16.msra.mxu0 0
        %6679 = vmatprep.subr.bf16.mxu0 0
        %6680 = vmatpush1.bf16.msra.mxu0 0
        %6681 = vmatprep.subr.bf16.mxu0 0
        %6682 = vmatpush1.bf16.msra.mxu0 0
        %6683 = vmatprep.subr.bf16.mxu0 0
        %6684 = vmatpush1.bf16.msra.mxu0 0
        %6685 = vmatprep.subr.bf16.mxu0 0
        %6686 = vmatpush1.bf16.msra.mxu0 0
        %6687 = vmatprep.subr.bf16.mxu0 0
        %6688 = vmatpush1.bf16.msra.mxu0 0
        %6689 = vmatprep.subr.bf16.mxu0 0
        %6690 = vmatpush1.bf16.msra.mxu0 0
        %6691 = vmatprep.subr.bf16.mxu0 0
        %6692 = vmatpush1.bf16.msra.mxu0 0
        %6693 = vmatprep.mubr.bf16.mxu0 0
        %6694 = vmatmul.mubr.bf16.gmra.mrb[0].mxu0 %v6659
        %v6695 = vpop.f32.mrb[0].mxu0
        %v6696 = vadd.f32 0.0, %v6695
        %v6697 = vpop.f32.mrb[0].mxu0
        %v6698 = vpop.f32.mrb[0].mxu0
        %v6699 = vpop.f32.mrb[0].mxu0
        %6700 = vdwg.mxu0
        %6702 = vrot.lane.b32.xlu0 %v6594, 120
        %v6703 = vpop.permute.xlu0 %6702
        %6704 = vrot.lane.b32.xlu0 %v6595, 120
        %v6705 = vpop.permute.xlu0 %6704
        %v6707 = vsel %vm2595, %v6703, 0
        %v6710 = vsel %vm2595, %v6705, 0
        %6712 = vmatprep.subr.bf16.mxu0 0
        %6713 = vmatpush1.bf16.xpose.msra.mxu0 %v6710
        %6714 = vmatprep.subr.bf16.mxu0 0
        %6715 = vmatpush1.bf16.xpose.msra.mxu0 0
        %6716 = vmatprep.subr.bf16.mxu0 0
        %6717 = vmatpush1.bf16.xpose.msra.mxu0 0
        %6718 = vmatprep.subr.bf16.mxu0 0
        %6719 = vmatpush1.bf16.xpose.msra.mxu0 0
        %6720 = vmatprep.subr.bf16.mxu0 0
        %6721 = vmatpush1.bf16.xpose.msra.mxu0 0
        %6722 = vmatprep.subr.bf16.mxu0 0
        %6723 = vmatpush1.bf16.xpose.msra.mxu0 0
        %6724 = vmatprep.subr.bf16.mxu0 0
        %6725 = vmatpush1.bf16.xpose.msra.mxu0 0
        %6726 = vmatprep.subr.bf16.mxu0 0
        %6727 = vmatpush1.bf16.xpose.msra.mxu0 0
        %6728 = vmatprep.subr.bf16.mxu0 0
        %6729 = vmatpush1.bf16.xpose.msra.mxu0 0
        %6730 = vmatprep.subr.bf16.mxu0 0
        %6731 = vmatpush1.bf16.xpose.msra.mxu0 0
        %6732 = vmatprep.subr.bf16.mxu0 0
        %6733 = vmatpush1.bf16.xpose.msra.mxu0 0
        %6734 = vmatprep.subr.bf16.mxu0 0
        %6735 = vmatpush1.bf16.xpose.msra.mxu0 0
        %6736 = vmatprep.subr.bf16.mxu0 0
        %6737 = vmatpush1.bf16.xpose.msra.mxu0 0
        %6738 = vmatprep.subr.bf16.mxu0 0
        %6739 = vmatpush1.bf16.xpose.msra.mxu0 0
        %6740 = vmatprep.subr.bf16.mxu0 0
        %6741 = vmatpush1.bf16.xpose.msra.mxu0 0
        %6742 = vmatprep.subr.bf16.mxu0 0
        %6743 = vmatpush1.bf16.xpose.msra.mxu0 0
        %6744 = vmatprep.mubr.bf16.mxu0 0
        %6745 = vmatmul.mubr.bf16.gmra.mrb[0].mxu0 %v6707
        %v6746 = vpop.f32.mrb[0].mxu0
        %v6747 = vadd.f32 %v2517, %v6746
        %v6748 = vpop.f32.mrb[0].mxu0
        %v6749 = vpop.f32.mrb[0].mxu0
        %v6750 = vpop.f32.mrb[0].mxu0
        %6751 = vdwg.mxu0
        %v6752 = vsel %vm2643, %v6747, -inf
        %6753 = vmax.xlane.f32.xlu0 %v6752
        %v6754 = vpop.xlane.xlu0 %6753
        %v6755 = vsub.f32 %v6747, %v6754
        %v6756 = vmul.f32 %v6755, 1.442695
        %v6757 = vpow.pop %v6756
        %v6758 = vsel %vm2643, %v6757, 0.0
        %6759 = vadd.xlane.f32.xlu0 %v6758
        %v6760 = vpop.xlane.xlu0 %6759
        %v6761 = vrcp.pop %v6760
        %v6762 = vmul.f32 %v6757, %v6761
        %v6763 = vpack.c.bf16 %v6762, %v6762
        %6764 = vrot.lane.b32.xlu0 %v6595, 88
        %v6765 = vpop.permute.xlu0 %6764
        %v6768 = vsel %vm2643, %v6763, 0
        %6770 = vmatprep.subr.bf16.mxu0 0
        %6771 = vmatpush1.bf16.msra.mxu0 %v6765
        %6772 = vmatprep.subr.bf16.mxu0 0
        %6773 = vmatpush1.bf16.msra.mxu0 0
        %6774 = vmatprep.subr.bf16.mxu0 0
        %6775 = vmatpush1.bf16.msra.mxu0 0
        %6776 = vmatprep.subr.bf16.mxu0 0
        %6777 = vmatpush1.bf16.msra.mxu0 0
        %6778 = vmatprep.subr.bf16.mxu0 0
        %6779 = vmatpush1.bf16.msra.mxu0 0
        %6780 = vmatprep.subr.bf16.mxu0 0
        %6781 = vmatpush1.bf16.msra.mxu0 0
        %6782 = vmatprep.subr.bf16.mxu0 0
        %6783 = vmatpush1.bf16.msra.mxu0 0
        %6784 = vmatprep.subr.bf16.mxu0 0
        %6785 = vmatpush1.bf16.msra.mxu0 0
        %6786 = vmatprep.subr.bf16.mxu0 0
        %6787 = vmatpush1.bf16.msra.mxu0 0
        %6788 = vmatprep.subr.bf16.mxu0 0
        %6789 = vmatpush1.bf16.msra.mxu0 0
        %6790 = vmatprep.subr.bf16.mxu0 0
        %6791 = vmatpush1.bf16.msra.mxu0 0
        %6792 = vmatprep.subr.bf16.mxu0 0
        %6793 = vmatpush1.bf16.msra.mxu0 0
        %6794 = vmatprep.subr.bf16.mxu0 0
        %6795 = vmatpush1.bf16.msra.mxu0 0
        %6796 = vmatprep.subr.bf16.mxu0 0
        %6797 = vmatpush1.bf16.msra.mxu0 0
        %6798 = vmatprep.subr.bf16.mxu0 0
        %6799 = vmatpush1.bf16.msra.mxu0 0
        %6800 = vmatprep.subr.bf16.mxu0 0
        %6801 = vmatpush1.bf16.msra.mxu0 0
        %6802 = vmatprep.mubr.bf16.mxu0 0
        %6803 = vmatmul.mubr.bf16.gmra.mrb[0].mxu0 %v6768
        %v6804 = vpop.f32.mrb[0].mxu0
        %v6805 = vadd.f32 0.0, %v6804
        %v6806 = vpop.f32.mrb[0].mxu0
        %v6807 = vpop.f32.mrb[0].mxu0
        %v6808 = vpop.f32.mrb[0].mxu0
        %6809 = vdwg.mxu0
        %6810 = vrot.lane.b32.xlu0 %v6594, 112
        %v6811 = vpop.permute.xlu0 %6810
        %6812 = vrot.lane.b32.xlu0 %v6595, 112
        %v6813 = vpop.permute.xlu0 %6812
        %v6815 = vsel %vm2595, %v6811, 0
        %v6818 = vsel %vm2595, %v6813, 0
        %6820 = vmatprep.subr.bf16.mxu0 0
        %6821 = vmatpush1.bf16.xpose.msra.mxu0 %v6818
        %6822 = vmatprep.subr.bf16.mxu0 0
        %6823 = vmatpush1.bf16.xpose.msra.mxu0 0
        %6824 = vmatprep.subr.bf16.mxu0 0
        %6825 = vmatpush1.bf16.xpose.msra.mxu0 0
        %6826 = vmatprep.subr.bf16.mxu0 0
        %6827 = vmatpush1.bf16.xpose.msra.mxu0 0
        %6828 = vmatprep.subr.bf16.mxu0 0
        %6829 = vmatpush1.bf16.xpose.msra.mxu0 0
        %6830 = vmatprep.subr.bf16.mxu0 0
        %6831 = vmatpush1.bf16.xpose.msra.mxu0 0
        %6832 = vmatprep.subr.bf16.mxu0 0
        %6833 = vmatpush1.bf16.xpose.msra.mxu0 0
        %6834 = vmatprep.subr.bf16.mxu0 0
        %6835 = vmatpush1.bf16.xpose.msra.mxu0 0
        %6836 = vmatprep.subr.bf16.mxu0 0
        %6837 = vmatpush1.bf16.xpose.msra.mxu0 0
        %6838 = vmatprep.subr.bf16.mxu0 0
        %6839 = vmatpush1.bf16.xpose.msra.mxu0 0
        %6840 = vmatprep.subr.bf16.mxu0 0
        %6841 = vmatpush1.bf16.xpose.msra.mxu0 0
        %6842 = vmatprep.subr.bf16.mxu0 0
        %6843 = vmatpush1.bf16.xpose.msra.mxu0 0
        %6844 = vmatprep.subr.bf16.mxu0 0
        %6845 = vmatpush1.bf16.xpose.msra.mxu0 0
        %6846 = vmatprep.subr.bf16.mxu0 0
        %6847 = vmatpush1.bf16.xpose.msra.mxu0 0
        %6848 = vmatprep.subr.bf16.mxu0 0
        %6849 = vmatpush1.bf16.xpose.msra.mxu0 0
        %6850 = vmatprep.subr.bf16.mxu0 0
        %6851 = vmatpush1.bf16.xpose.msra.mxu0 0
        %6852 = vmatprep.mubr.bf16.mxu0 0
        %6853 = vmatmul.mubr.bf16.gmra.mrb[0].mxu0 %v6815
        %v6854 = vpop.f32.mrb[0].mxu0
        %v6855 = vadd.f32 %v2517, %v6854
        %v6856 = vpop.f32.mrb[0].mxu0
        %v6857 = vpop.f32.mrb[0].mxu0
        %v6858 = vpop.f32.mrb[0].mxu0
        %6859 = vdwg.mxu0
        %v6860 = vsel %vm2643, %v6855, -inf
        %6861 = vmax.xlane.f32.xlu0 %v6860
        %v6862 = vpop.xlane.xlu0 %6861
        %v6863 = vsub.f32 %v6855, %v6862
        %v6864 = vmul.f32 %v6863, 1.442695
        %v6865 = vpow.pop %v6864
        %v6866 = vsel %vm2643, %v6865, 0.0
        %6867 = vadd.xlane.f32.xlu0 %v6866
        %v6868 = vpop.xlane.xlu0 %6867
        %v6869 = vrcp.pop %v6868
        %v6870 = vmul.f32 %v6865, %v6869
        %v6871 = vpack.c.bf16 %v6870, %v6870
        %6872 = vrot.lane.b32.xlu0 %v6595, 80
        %v6873 = vpop.permute.xlu0 %6872
        %v6876 = vsel %vm2643, %v6871, 0
        %6878 = vmatprep.subr.bf16.mxu0 0
        %6879 = vmatpush1.bf16.msra.mxu0 %v6873
        %6880 = vmatprep.subr.bf16.mxu0 0
        %6881 = vmatpush1.bf16.msra.mxu0 0
        %6882 = vmatprep.subr.bf16.mxu0 0
        %6883 = vmatpush1.bf16.msra.mxu0 0
        %6884 = vmatprep.subr.bf16.mxu0 0
        %6885 = vmatpush1.bf16.msra.mxu0 0
        %6886 = vmatprep.subr.bf16.mxu0 0
        %6887 = vmatpush1.bf16.msra.mxu0 0
        %6888 = vmatprep.subr.bf16.mxu0 0
        %6889 = vmatpush1.bf16.msra.mxu0 0
        %6890 = vmatprep.subr.bf16.mxu0 0
        %6891 = vmatpush1.bf16.msra.mxu0 0
        %6892 = vmatprep.subr.bf16.mxu0 0
        %6893 = vmatpush1.bf16.msra.mxu0 0
        %6894 = vmatprep.subr.bf16.mxu0 0
        %6895 = vmatpush1.bf16.msra.mxu0 0
        %6896 = vmatprep.subr.bf16.mxu0 0
        %6897 = vmatpush1.bf16.msra.mxu0 0
        %6898 = vmatprep.subr.bf16.mxu0 0
        %6899 = vmatpush1.bf16.msra.mxu0 0
        %6900 = vmatprep.subr.bf16.mxu0 0
        %6901 = vmatpush1.bf16.msra.mxu0 0
        %6902 = vmatprep.subr.bf16.mxu0 0
        %6903 = vmatpush1.bf16.msra.mxu0 0
        %6904 = vmatprep.subr.bf16.mxu0 0
        %6905 = vmatpush1.bf16.msra.mxu0 0
        %6906 = vmatprep.subr.bf16.mxu0 0
        %6907 = vmatpush1.bf16.msra.mxu0 0
        %6908 = vmatprep.subr.bf16.mxu0 0
        %6909 = vmatpush1.bf16.msra.mxu0 0
        %6910 = vmatprep.mubr.bf16.mxu0 0
        %6911 = vmatmul.mubr.bf16.gmra.mrb[0].mxu0 %v6876
        %v6912 = vpop.f32.mrb[0].mxu0
        %v6913 = vadd.f32 0.0, %v6912
        %v6914 = vpop.f32.mrb[0].mxu0
        %v6915 = vpop.f32.mrb[0].mxu0
        %v6916 = vpop.f32.mrb[0].mxu0
        %6917 = vdwg.mxu0
        %6918 = vrot.lane.b32.xlu0 %v6594, 104
        %v6919 = vpop.permute.xlu0 %6918
        %6920 = vrot.lane.b32.xlu0 %v6595, 104
        %v6921 = vpop.permute.xlu0 %6920
        %v6923 = vsel %vm2595, %v6919, 0
        %v6926 = vsel %vm2595, %v6921, 0
        %6928 = vmatprep.subr.bf16.mxu0 0
        %6929 = vmatpush1.bf16.xpose.msra.mxu0 %v6926
        %6930 = vmatprep.subr.bf16.mxu0 0
        %6931 = vmatpush1.bf16.xpose.msra.mxu0 0
        %6932 = vmatprep.subr.bf16.mxu0 0
        %6933 = vmatpush1.bf16.xpose.msra.mxu0 0
        %6934 = vmatprep.subr.bf16.mxu0 0
        %6935 = vmatpush1.bf16.xpose.msra.mxu0 0
        %6936 = vmatprep.subr.bf16.mxu0 0
        %6937 = vmatpush1.bf16.xpose.msra.mxu0 0
        %6938 = vmatprep.subr.bf16.mxu0 0
        %6939 = vmatpush1.bf16.xpose.msra.mxu0 0
        %6940 = vmatprep.subr.bf16.mxu0 0
        %6941 = vmatpush1.bf16.xpose.msra.mxu0 0
        %6942 = vmatprep.subr.bf16.mxu0 0
        %6943 = vmatpush1.bf16.xpose.msra.mxu0 0
        %6944 = vmatprep.subr.bf16.mxu0 0
        %6945 = vmatpush1.bf16.xpose.msra.mxu0 0
        %6946 = vmatprep.subr.bf16.mxu0 0
        %6947 = vmatpush1.bf16.xpose.msra.mxu0 0
        %6948 = vmatprep.subr.bf16.mxu0 0
        %6949 = vmatpush1.bf16.xpose.msra.mxu0 0
        %6950 = vmatprep.subr.bf16.mxu0 0
        %6951 = vmatpush1.bf16.xpose.msra.mxu0 0
        %6952 = vmatprep.subr.bf16.mxu0 0
        %6953 = vmatpush1.bf16.xpose.msra.mxu0 0
        %6954 = vmatprep.subr.bf16.mxu0 0
        %6955 = vmatpush1.bf16.xpose.msra.mxu0 0
        %6956 = vmatprep.subr.bf16.mxu0 0
        %6957 = vmatpush1.bf16.xpose.msra.mxu0 0
        %6958 = vmatprep.subr.bf16.mxu0 0
        %6959 = vmatpush1.bf16.xpose.msra.mxu0 0
        %6960 = vmatprep.mubr.bf16.mxu0 0
        %6961 = vmatmul.mubr.bf16.gmra.mrb[0].mxu0 %v6923
        %v6962 = vpop.f32.mrb[0].mxu0
        %v6963 = vadd.f32 %v2517, %v6962
        %v6964 = vpop.f32.mrb[0].mxu0
        %v6965 = vpop.f32.mrb[0].mxu0
        %v6966 = vpop.f32.mrb[0].mxu0
        %6967 = vdwg.mxu0
        %v6968 = vsel %vm2643, %v6963, -inf
        %6969 = vmax.xlane.f32.xlu0 %v6968
        %v6970 = vpop.xlane.xlu0 %6969
        %v6971 = vsub.f32 %v6963, %v6970
        %v6972 = vmul.f32 %v6971, 1.442695
        %v6973 = vpow.pop %v6972
        %v6974 = vsel %vm2643, %v6973, 0.0
        %6975 = vadd.xlane.f32.xlu0 %v6974
        %v6976 = vpop.xlane.xlu0 %6975
        %v6977 = vrcp.pop %v6976
        %v6978 = vmul.f32 %v6973, %v6977
        %v6979 = vpack.c.bf16 %v6978, %v6978
        %6980 = vrot.lane.b32.xlu0 %v6595, 72
        %v6981 = vpop.permute.xlu0 %6980
        %v6984 = vsel %vm2643, %v6979, 0
        %6986 = vmatprep.subr.bf16.mxu0 0
        %6987 = vmatpush1.bf16.msra.mxu0 %v6981
        %6988 = vmatprep.subr.bf16.mxu0 0
        %6989 = vmatpush1.bf16.msra.mxu0 0
        %6990 = vmatprep.subr.bf16.mxu0 0
        %6991 = vmatpush1.bf16.msra.mxu0 0
        %6992 = vmatprep.subr.bf16.mxu0 0
        %6993 = vmatpush1.bf16.msra.mxu0 0
        %6994 = vmatprep.subr.bf16.mxu0 0
        %6995 = vmatpush1.bf16.msra.mxu0 0
        %6996 = vmatprep.subr.bf16.mxu0 0
        %6997 = vmatpush1.bf16.msra.mxu0 0
        %6998 = vmatprep.subr.bf16.mxu0 0
        %6999 = vmatpush1.bf16.msra.mxu0 0
        %7000 = vmatprep.subr.bf16.mxu0 0
        %7001 = vmatpush1.bf16.msra.mxu0 0
        %7002 = vmatprep.subr.bf16.mxu0 0
        %7003 = vmatpush1.bf16.msra.mxu0 0
        %7004 = vmatprep.subr.bf16.mxu0 0
        %7005 = vmatpush1.bf16.msra.mxu0 0
        %7006 = vmatprep.subr.bf16.mxu0 0
        %7007 = vmatpush1.bf16.msra.mxu0 0
        %7008 = vmatprep.subr.bf16.mxu0 0
        %7009 = vmatpush1.bf16.msra.mxu0 0
        %7010 = vmatprep.subr.bf16.mxu0 0
        %7011 = vmatpush1.bf16.msra.mxu0 0
        %7012 = vmatprep.subr.bf16.mxu0 0
        %7013 = vmatpush1.bf16.msra.mxu0 0
        %7014 = vmatprep.subr.bf16.mxu0 0
        %7015 = vmatpush1.bf16.msra.mxu0 0
        %7016 = vmatprep.subr.bf16.mxu0 0
        %7017 = vmatpush1.bf16.msra.mxu0 0
        %7018 = vmatprep.mubr.bf16.mxu0 0
        %7019 = vmatmul.mubr.bf16.gmra.mrb[0].mxu0 %v6984
        %v7020 = vpop.f32.mrb[0].mxu0
        %v7021 = vadd.f32 0.0, %v7020
        %v7022 = vpop.f32.mrb[0].mxu0
        %v7023 = vpop.f32.mrb[0].mxu0
        %v7024 = vpop.f32.mrb[0].mxu0
        %7025 = vdwg.mxu0
        %7027 = vrot.lane.b32.xlu0 %v6805, 8
        %v7028 = vpop.permute.xlu0 %7027
        %7031 = vrot.lane.b32.xlu0 %v6913, 16
        %v7032 = vpop.permute.xlu0 %7031
        %7035 = vrot.lane.b32.xlu0 %v7021, 24
        %v7036 = vpop.permute.xlu0 %7035
        %v7038 = vsel %vm2595, %v6696, %v7028
        %v7039 = vsel %vm2643, %v7038, %v7032
        %v7040 = vsel %vm3105, %v7039, %v7036
        %v7041 = vld [vmem:[%s117] sm:$0xf]
        %v7042 = vld [vmem:[%s117 + $0x4] sm:$0xf]
        %v7043 = vld [vmem:[%s117 + $0x8] sm:$0xf]
        %v7044 = vld [vmem:[%s117 + $0xc] sm:$0xf]
        %v7045 = vpack.c.bf16 %v7040, %v7040
        %v7046 = vld [vmem:[#allocation34] sm:$0x1]
        %v7048 = vlaneseq
        %v7049 = vshrl.u32 %v7048, 7
        %v7050 = vsub.s32 0, %v7049
        %v7051 = vrot.slane %v7046, %v7050
        %v7057 = vunpack.c.l.b16 %v7041
        %v7058 = vunpack.c.l.b16 %v7042
        %v7059 = vunpack.c.l.b16 %v7043
        %v7060 = vunpack.c.l.b16 %v7044
        %v7061 = vpack.c.b16 %v7058, %v7057
        %v7062 = vpack.c.b16 %v7060, %v7059
        %v7066 = vsel %vm2546, %v7045, 0
        %7068 = vmatprep.subr.bf16.mxu0 0
        %7069 = vmatpush1.bf16.msra.mxu0 %v7061
        %7070 = vmatprep.subr.bf16.mxu0 0
        %7071 = vmatpush1.bf16.msra.mxu0 %v7062
        %7072 = vmatprep.subr.bf16.mxu0 0
        %7073 = vmatpush1.bf16.msra.mxu0 0
        %7074 = vmatprep.subr.bf16.mxu0 0
        %7075 = vmatpush1.bf16.msra.mxu0 0
        %7076 = vmatprep.subr.bf16.mxu0 0
        %7077 = vmatpush1.bf16.msra.mxu0 0
        %7078 = vmatprep.subr.bf16.mxu0 0
        %7079 = vmatpush1.bf16.msra.mxu0 0
        %7080 = vmatprep.subr.bf16.mxu0 0
        %7081 = vmatpush1.bf16.msra.mxu0 0
        %7082 = vmatprep.subr.bf16.mxu0 0
        %7083 = vmatpush1.bf16.msra.mxu0 0
        %7084 = vmatprep.subr.bf16.mxu0 0
        %7085 = vmatpush1.bf16.msra.mxu0 0
        %7086 = vmatprep.subr.bf16.mxu0 0
        %7087 = vmatpush1.bf16.msra.mxu0 0
        %7088 = vmatprep.subr.bf16.mxu0 0
        %7089 = vmatpush1.bf16.msra.mxu0 0
        %7090 = vmatprep.subr.bf16.mxu0 0
        %7091 = vmatpush1.bf16.msra.mxu0 0
        %7092 = vmatprep.subr.bf16.mxu0 0
        %7093 = vmatpush1.bf16.msra.mxu0 0
        %7094 = vmatprep.subr.bf16.mxu0 0
        %7095 = vmatpush1.bf16.msra.mxu0 0
        %7096 = vmatprep.subr.bf16.mxu0 0
        %7097 = vmatpush1.bf16.msra.mxu0 0
        %7098 = vmatprep.subr.bf16.mxu0 0
        %7099 = vmatpush1.bf16.msra.mxu0 0
        %7100 = vmatprep.mubr.bf16.mxu0 0
        %7101 = vmatmul.mubr.bf16.gmra.mrb[0].mxu0 %v7066
        %v7102 = vpop.f32.mrb[0].mxu0
        %v7103 = vadd.f32 %v7051, %v7102
        %v7104 = vpop.f32.mrb[0].mxu0
        %v7105 = vpop.f32.mrb[0].mxu0
        %v7106 = vpop.f32.mrb[0].mxu0
        %7107 = vdwg.mxu0
        %v7108 = vadd.f32 %v7103, %v6462
        %v7109 = vld [vmem:[#allocation36] sm:$0x1]
        %v7110 = vld [vmem:[#allocation37] sm:$0x1]
        %v7111 = vsel %vm2546, %v7108, 0.0
        %7112 = vadd.xlane.f32.xlu0 %v7111
        %v7113 = vpop.xlane.xlu0 %7112
        %v7114 = vmul.f32 %v7113, %v3186
        %v7115 = vsub.f32 %v7108, %v7114
        %v7116 = vmul.f32 %v7115, %v7115
        %v7117 = vsel %vm2546, %v7116, 0.0
        %7118 = vadd.xlane.f32.xlu0 %v7117
        %v7119 = vpop.xlane.xlu0 %7118
        %v7120 = vmul.f32 %v7119, %v3186
        %v7121 = vadd.f32 %v7120, 1e-05
        %v7122 = vrsqrt.pop %v7121
        %v7123 = vmul.f32 %v7115, %v7122
        %v7125 = vlaneseq
        %v7126 = vshrl.u32 %v7125, 7
        %v7127 = vsub.s32 0, %v7126
        %v7128 = vrot.slane %v7109, %v7127
        %v7130 = vmul.f32 %v7123, %v7128
        %v7132 = vlaneseq
        %v7133 = vshrl.u32 %v7132, 7
        %v7134 = vsub.s32 0, %v7133
        %v7135 = vrot.slane %v7110, %v7134
        %v7137 = vadd.f32 %v7130, %v7135
        %v7138 = vld [vmem:[%s125] sm:$0xf]
        %v7139 = vld [vmem:[%s125 + $0x4] sm:$0xf]
        %v7140 = vld [vmem:[%s125 + $0x8] sm:$0xf]
        %v7141 = vld [vmem:[%s125 + $0xc] sm:$0xf]
        %v7142 = vpack.c.bf16 %v7137, %v7137
        %v7143 = vld [vmem:[#allocation39] sm:$0x1]
        %v7145 = vlaneseq
        %v7146 = vshrl.u32 %v7145, 7
        %v7147 = vsub.s32 0, %v7146
        %v7148 = vrot.slane %v7143, %v7147
        %v7154 = vunpack.c.l.b16 %v7138
        %v7155 = vunpack.c.l.b16 %v7139
        %v7156 = vunpack.c.l.b16 %v7140
        %v7157 = vunpack.c.l.b16 %v7141
        %v7158 = vpack.c.b16 %v7155, %v7154
        %v7159 = vpack.c.b16 %v7157, %v7156
        %v7163 = vsel %vm2546, %v7142, 0
        %7165 = vmatprep.subr.bf16.mxu0 0
        %7166 = vmatpush1.bf16.msra.mxu0 %v7158
        %7167 = vmatprep.subr.bf16.mxu0 0
        %7168 = vmatpush1.bf16.msra.mxu0 %v7159
        %7169 = vmatprep.subr.bf16.mxu0 0
        %7170 = vmatpush1.bf16.msra.mxu0 0
        %7171 = vmatprep.subr.bf16.mxu0 0
        %7172 = vmatpush1.bf16.msra.mxu0 0
        %7173 = vmatprep.subr.bf16.mxu0 0
        %7174 = vmatpush1.bf16.msra.mxu0 0
        %7175 = vmatprep.subr.bf16.mxu0 0
        %7176 = vmatpush1.bf16.msra.mxu0 0
        %7177 = vmatprep.subr.bf16.mxu0 0
        %7178 = vmatpush1.bf16.msra.mxu0 0
        %7179 = vmatprep.subr.bf16.mxu0 0
        %7180 = vmatpush1.bf16.msra.mxu0 0
        %7181 = vmatprep.subr.bf16.mxu0 0
        %7182 = vmatpush1.bf16.msra.mxu0 0
        %7183 = vmatprep.subr.bf16.mxu0 0
        %7184 = vmatpush1.bf16.msra.mxu0 0
        %7185 = vmatprep.subr.bf16.mxu0 0
        %7186 = vmatpush1.bf16.msra.mxu0 0
        %7187 = vmatprep.subr.bf16.mxu0 0
        %7188 = vmatpush1.bf16.msra.mxu0 0
        %7189 = vmatprep.subr.bf16.mxu0 0
        %7190 = vmatpush1.bf16.msra.mxu0 0
        %7191 = vmatprep.subr.bf16.mxu0 0
        %7192 = vmatpush1.bf16.msra.mxu0 0
        %7193 = vmatprep.subr.bf16.mxu0 0
        %7194 = vmatpush1.bf16.msra.mxu0 0
        %7195 = vmatprep.subr.bf16.mxu0 0
        %7196 = vmatpush1.bf16.msra.mxu0 0
        %7197 = vmatprep.mubr.bf16.mxu0 0
        %7198 = vmatmul.mubr.bf16.gmra.mrb[0].mxu0 %v7163
        %v7199 = vpop.f32.mrb[0].mxu0
        %v7200 = vadd.f32 %v7148, %v7199
        %v7201 = vpop.f32.mrb[0].mxu0
        %v7202 = vpop.f32.mrb[0].mxu0
        %v7203 = vpop.f32.mrb[0].mxu0
        %7204 = vdwg.mxu0
        %v7205 = vmax.f32 %v7200, 0.0
        %v7206 = vld [vmem:[%s129] sm:$0xf]
        %v7207 = vld [vmem:[%s129 + $0x4] sm:$0xf]
        %v7208 = vld [vmem:[%s129 + $0x8] sm:$0xf]
        %v7209 = vld [vmem:[%s129 + $0xc] sm:$0xf]
        %v7210 = vld [vmem:[%s129 + $0x10] sm:$0xf]
        %v7211 = vld [vmem:[%s129 + $0x14] sm:$0xf]
        %v7212 = vld [vmem:[%s129 + $0x18] sm:$0xf]
        %v7213 = vld [vmem:[%s129 + $0x1c] sm:$0xf]
        %v7214 = vpack.c.bf16 %v7205, %v7205
        %v7215 = vld [vmem:[#allocation40] sm:$0x1]
        %v7217 = vlaneseq
        %v7218 = vshrl.u32 %v7217, 7
        %v7219 = vsub.s32 0, %v7218
        %v7220 = vrot.slane %v7215, %v7219
        %v7230 = vunpack.c.l.b16 %v7206
        %v7231 = vunpack.c.l.b16 %v7207
        %v7232 = vunpack.c.l.b16 %v7208
        %v7233 = vunpack.c.l.b16 %v7209
        %v7234 = vunpack.c.l.b16 %v7210
        %v7235 = vunpack.c.l.b16 %v7211
        %v7236 = vunpack.c.l.b16 %v7212
        %v7237 = vunpack.c.l.b16 %v7213
        %v7238 = vpack.c.b16 %v7231, %v7230
        %v7239 = vpack.c.b16 %v7233, %v7232
        %v7240 = vpack.c.b16 %v7235, %v7234
        %v7241 = vpack.c.b16 %v7237, %v7236
        %v7247 = vsel %vm3333, %v7214, 0
        %7249 = vmatprep.subr.bf16.mxu0 0
        %7250 = vmatpush1.bf16.msra.mxu0 %v7238
        %7251 = vmatprep.subr.bf16.mxu0 0
        %7252 = vmatpush1.bf16.msra.mxu0 %v7239
        %7253 = vmatprep.subr.bf16.mxu0 0
        %7254 = vmatpush1.bf16.msra.mxu0 %v7240
        %7255 = vmatprep.subr.bf16.mxu0 0
        %7256 = vmatpush1.bf16.msra.mxu0 %v7241
        %7257 = vmatprep.subr.bf16.mxu0 0
        %7258 = vmatpush1.bf16.msra.mxu0 0
        %7259 = vmatprep.subr.bf16.mxu0 0
        %7260 = vmatpush1.bf16.msra.mxu0 0
        %7261 = vmatprep.subr.bf16.mxu0 0
        %7262 = vmatpush1.bf16.msra.mxu0 0
        %7263 = vmatprep.subr.bf16.mxu0 0
        %7264 = vmatpush1.bf16.msra.mxu0 0
        %7265 = vmatprep.subr.bf16.mxu0 0
        %7266 = vmatpush1.bf16.msra.mxu0 0
        %7267 = vmatprep.subr.bf16.mxu0 0
        %7268 = vmatpush1.bf16.msra.mxu0 0
        %7269 = vmatprep.subr.bf16.mxu0 0
        %7270 = vmatpush1.bf16.msra.mxu0 0
        %7271 = vmatprep.subr.bf16.mxu0 0
        %7272 = vmatpush1.bf16.msra.mxu0 0
        %7273 = vmatprep.subr.bf16.mxu0 0
        %7274 = vmatpush1.bf16.msra.mxu0 0
        %7275 = vmatprep.subr.bf16.mxu0 0
        %7276 = vmatpush1.bf16.msra.mxu0 0
        %7277 = vmatprep.subr.bf16.mxu0 0
        %7278 = vmatpush1.bf16.msra.mxu0 0
        %7279 = vmatprep.subr.bf16.mxu0 0
        %7280 = vmatpush1.bf16.msra.mxu0 0
        %7281 = vmatprep.mubr.bf16.mxu0 0
        %7282 = vmatmul.mubr.bf16.gmra.mrb[0].mxu0 %v7247
        %v7283 = vpop.f32.mrb[0].mxu0
        %v7284 = vadd.f32 %v7220, %v7283
        %v7285 = vpop.f32.mrb[0].mxu0
        %v7286 = vpop.f32.mrb[0].mxu0
        %v7287 = vpop.f32.mrb[0].mxu0
        %7288 = vdwg.mxu0
        %v7289 = vadd.f32 %v7284, %v7137
        %v7290 = vld [vmem:[#allocation42] sm:$0x1]
        %v7291 = vld [vmem:[#allocation43] sm:$0x1]
        %v7292 = vsel %vm2546, %v7289, 0.0
        %7293 = vadd.xlane.f32.xlu0 %v7292
        %v7294 = vpop.xlane.xlu0 %7293
        %v7295 = vmul.f32 %v7294, %v3186
        %v7296 = vsub.f32 %v7289, %v7295
        %v7297 = vmul.f32 %v7296, %v7296
        %v7298 = vsel %vm2546, %v7297, 0.0
        %7299 = vadd.xlane.f32.xlu0 %v7298
        %v7300 = vpop.xlane.xlu0 %7299
        %v7301 = vmul.f32 %v7300, %v3186
        %v7302 = vadd.f32 %v7301, 1e-05
        %v7303 = vrsqrt.pop %v7302
        %v7304 = vmul.f32 %v7296, %v7303
        %v7306 = vlaneseq
        %v7307 = vshrl.u32 %v7306, 7
        %v7308 = vsub.s32 0, %v7307
        %v7309 = vrot.slane %v7290, %v7308
        %v7311 = vmul.f32 %v7304, %v7309
        %v7313 = vlaneseq
        %v7314 = vshrl.u32 %v7313, 7
        %v7315 = vsub.s32 0, %v7314
        %v7316 = vrot.slane %v7291, %v7315
        %v7318 = vadd.f32 %v7311, %v7316
        %v7319 = vld [vmem:[#allocation45] sm:$0x1]
        %v7320 = vld [vmem:[#allocation46] sm:$0x1]
        %v7321 = vsel %vm2546, %v7318, 0.0
        %7322 = vadd.xlane.f32.xlu0 %v7321
        %v7323 = vpop.xlane.xlu0 %7322
        %v7324 = vmul.f32 %v7323, %v3186
        %v7325 = vsub.f32 %v7318, %v7324
        %v7326 = vmul.f32 %v7325, %v7325
        %v7327 = vsel %vm2546, %v7326, 0.0
        %7328 = vadd.xlane.f32.xlu0 %v7327
        %v7329 = vpop.xlane.xlu0 %7328
        %v7330 = vmul.f32 %v7329, %v3186
        %v7331 = vadd.f32 %v7330, 1e-05
        %v7332 = vrsqrt.pop %v7331
        %v7333 = vmul.f32 %v7325, %v7332
        %v7335 = vlaneseq
        %v7336 = vshrl.u32 %v7335, 7
        %v7337 = vsub.s32 0, %v7336
        %v7338 = vrot.slane %v7319, %v7337
        %v7340 = vmul.f32 %v7333, %v7338
        %v7342 = vlaneseq
        %v7343 = vshrl.u32 %v7342, 7
        %v7344 = vsub.s32 0, %v7343
        %v7345 = vrot.slane %v7320, %v7344
        %v7347 = vadd.f32 %v7340, %v7345
        %v7348 = vld [vmem:[%s141] sm:$0xf]
        %v7349 = vld [vmem:[%s141 + $0x4] sm:$0xf]
        %v7350 = vld [vmem:[%s141 + $0x8] sm:$0xf]
        %v7351 = vld [vmem:[%s141 + $0xc] sm:$0xf]
        %v7352 = vpack.c.bf16 %v7347, %v7347
        %v7353 = vld [vmem:[#allocation48] sm:$0x1]
        %v7355 = vlaneseq
        %v7356 = vshrl.u32 %v7355, 7
        %v7357 = vsub.s32 0, %v7356
        %v7358 = vrot.slane %v7353, %v7357
        %v7364 = vunpack.c.l.b16 %v7348
        %v7365 = vunpack.c.l.b16 %v7349
        %v7366 = vunpack.c.l.b16 %v7350
        %v7367 = vunpack.c.l.b16 %v7351
        %v7368 = vpack.c.b16 %v7365, %v7364
        %v7369 = vpack.c.b16 %v7367, %v7366
        %v7373 = vsel %vm2546, %v7352, 0
        %7375 = vmatprep.subr.bf16.mxu0 0
        %7376 = vmatpush1.bf16.msra.mxu0 %v7368
        %7377 = vmatprep.subr.bf16.mxu0 0
        %7378 = vmatpush1.bf16.msra.mxu0 %v7369
        %7379 = vmatprep.subr.bf16.mxu0 0
        %7380 = vmatpush1.bf16.msra.mxu0 0
        %7381 = vmatprep.subr.bf16.mxu0 0
        %7382 = vmatpush1.bf16.msra.mxu0 0
        %7383 = vmatprep.subr.bf16.mxu0 0
        %7384 = vmatpush1.bf16.msra.mxu0 0
        %7385 = vmatprep.subr.bf16.mxu0 0
        %7386 = vmatpush1.bf16.msra.mxu0 0
        %7387 = vmatprep.subr.bf16.mxu0 0
        %7388 = vmatpush1.bf16.msra.mxu0 0
        %7389 = vmatprep.subr.bf16.mxu0 0
        %7390 = vmatpush1.bf16.msra.mxu0 0
        %7391 = vmatprep.subr.bf16.mxu0 0
        %7392 = vmatpush1.bf16.msra.mxu0 0
        %7393 = vmatprep.subr.bf16.mxu0 0
        %7394 = vmatpush1.bf16.msra.mxu0 0
        %7395 = vmatprep.subr.bf16.mxu0 0
        %7396 = vmatpush1.bf16.msra.mxu0 0
        %7397 = vmatprep.subr.bf16.mxu0 0
        %7398 = vmatpush1.bf16.msra.mxu0 0
        %7399 = vmatprep.subr.bf16.mxu0 0
        %7400 = vmatpush1.bf16.msra.mxu0 0
        %7401 = vmatprep.subr.bf16.mxu0 0
        %7402 = vmatpush1.bf16.msra.mxu0 0
        %7403 = vmatprep.subr.bf16.mxu0 0
        %7404 = vmatpush1.bf16.msra.mxu0 0
        %7405 = vmatprep.subr.bf16.mxu0 0
        %7406 = vmatpush1.bf16.msra.mxu0 0
        %7407 = vmatprep.mubr.bf16.mxu0 0
        %7408 = vmatmul.mubr.bf16.gmra.mrb[0].mxu0 %v7373
        %v7409 = vpop.f32.mrb[0].mxu0
        %v7410 = vadd.f32 %v7358, %v7409
        %v7411 = vpop.f32.mrb[0].mxu0
        %v7412 = vpop.f32.mrb[0].mxu0
        %v7413 = vpop.f32.mrb[0].mxu0
        %7414 = vdwg.mxu0
        %7415 = vst [vmem:[%s2509] sm:$0xff] %v7410
        %p7416 = scmp.lt.s32.totalorder %s172, 1
        %s7417 = scalar_select %p7416, %s172, 1
        %s7418 = smul.addr %s7417, 8
        %s7419 = scalar_lea.vmem %s145, %s7418
        // Predicated region
        $region433: #{transformer_decoder_model_forward.1} parent=307 // pred_check
          %p7420 = pneg %p1712
        $region434: #{transformer_decoder_model_forward.1} parent=307 // pred_check_branch
          %7422 = sbr.rel (%p7420) target = $region436
        $region435: #{transformer_decoder_model_forward.1} parent=307 // pred_region
          _
        $region436: #{transformer_decoder_model_forward.1} parent=307 // pred_fallthru
          _
      $region308: #{transformer_decoder_model_forward.1} parent=5 // pred_fallthru
        _
      %p7423 = scmp.le.s32.totalorder 2, %s167
      // Predicated region
      $region437: #{transformer_decoder_model_forward.1} parent=5 // pred_check
        %p7424 = pneg %p7423
      $region438: #{transformer_decoder_model_forward.1} parent=5 // pred_check_branch
        %7426 = sbr.rel (%p7424) target = $region440
      $region439: #{transformer_decoder_model_forward.1} parent=5 // pred_region
        %s7427 = ssub.s32 %s167, 2
        // Predicated region
        $region441: #{transformer_decoder_model_forward.1} parent=439 // pred_check
          %p7428 = pneg %p1718
        $region442: #{transformer_decoder_model_forward.1} parent=439 // pred_check_branch
          %7430 = sbr.rel (%p7428) target = $region444
        $region443: #{transformer_decoder_model_forward.1} parent=439 // pred_region
          %p7431 = scmp.lt.s32.totalorder %s173, 1
          %s7432 = scalar_select %p7431, %s173, 1
          %s7433 = smul.addr %s7432, 8
          %s7434 = scalar_lea.vmem %s145, %s7433
        $region444: #{transformer_decoder_model_forward.1} parent=439 // pred_fallthru
          _
      $region440: #{transformer_decoder_model_forward.1} parent=5 // pred_fallthru
        _
    $region6: #{transformer_decoder_model_forward.1} parent=1 // loop_footer
      %s171 = sadd.s32 1, %s167
    $region7: #{transformer_decoder_model_forward.1} parent=1 // loop_footer_branch
      %166 = sbr.rel target = $region3
    $region8: #{transformer_decoder_model_forward.1} parent=1 // loop_exit
      _
    %7435 = vsyncpa [#allocation3], 1
    %s7436 = scalar_lea.sflag [#allocation3], 1
    %7437 = vsyncpa %s7436, 1
    %7438 = vsyncpa [#allocation5], 1
    %7439 = vsyncpa [#allocation8], 1
    %7440 = vsyncpa [#allocation11], 1
    %7441 = vsyncpa [#allocation14], 1
    %7442 = vsyncpa [#allocation17], 1
    %7443 = vsyncpa [#allocation20], 1
    %7444 = vsyncpa [#allocation23], 1
    %7445 = vsyncpa [#allocation26], 1
    %7446 = vsyncpa [#allocation29], 1
    %7447 = vsyncpa [#allocation32], 1
    %7448 = vsyncpa [#allocation35], 1
    %7449 = vsyncpa [#allocation38], 1
    %7450 = vsyncpa [#allocation41], 1
    %7451 = vsyncpa [#allocation44], 1
    %7452 = vsyncpa [#allocation47], 1

</llo_original>
